<compile_context>
chip_gen: v6e
topology: v6e:2x2x1
jax: 0.10.0
libtpu: 0.0.40
codegen_flags: <defaults>
</compile_context>

<pallas_src>
import functools
import math

import numpy as np
import jax
import jax.numpy as jnp
from jax.experimental import pallas as pl
from jax.experimental.pallas import tpu as pltpu


# ----------------------------------------------------------------------------
# Host-side: PyTorch-exact bilinear (align_corners=False) interpolation matrix.
# ----------------------------------------------------------------------------
def _bilinear_matrix(in_size, out_size):
    """Returns M of shape (out_size, in_size): y = M @ x along one axis."""
    scale = in_size / out_size
    o = np.arange(out_size, dtype=np.float64)
    s = np.maximum(scale * (o + 0.5) - 0.5, 0.0)
    i0 = np.floor(s).astype(np.int64)
    i1 = np.minimum(i0 + 1, in_size - 1)
    w1 = s - i0
    w0 = 1.0 - w1
    m = np.zeros((out_size, in_size), dtype=np.float64)
    m[np.arange(out_size), i0] += w0
    m[np.arange(out_size), i1] += w1
    return m.astype(np.float32)


# ----------------------------------------------------------------------------
# Fused Pallas kernel: all convs + resize + relu-add chain for one batch block.
# ----------------------------------------------------------------------------
def _fused_dynconv_kernel(*refs, kernel_sizes, needs_resize, offsets, out_hw,
                          c_in, c_out, hp, wp, lp, bblk, s_max, oh0, ow0):
    n_br = len(kernel_sizes)
    n_rs = sum(needs_resize)
    x_ref = refs[0]                           # (c_in, bblk*lp)   lane-dense
    w_refs = refs[1:1 + n_br]                 # each (k*k, c_out, c_in)
    r_refs = refs[1 + n_br:1 + n_br + n_rs]   # each (ohi*owi, oh0*ow0)
    o_ref = refs[1 + n_br + n_rs]             # (c_out, bblk*oh0*ow0)

    total = bblk * lp
    win = total - s_max                       # common tap-slice length
    xf = x_ref[...]

    # Branch -> resize-matrix index.
    r_map, rc = {}, 0
    for i, nr in enumerate(needs_resize):
        if nr:
            r_map[i] = rc
            rc += 1

    # -- per-tap accumulation on the flat padded frame -----------------------
    # acc_i[co, j] = sum_{kh,kw,ci} W_i[co,ci,kh,kw] * xf[ci, j + kh*wp + kw]
    # The conv output for element b at (r, c) is acc_i at lane
    # j = b*lp + (off_i + r)*wp + (off_i + c); shifted reads never cross an
    # element's hp*wp frame for extracted positions (off_i = max_pad - pad_i).
    k_max = max(kernel_sizes)
    accs = [None] * n_br
    for kh in range(k_max):
        for kw in range(k_max):
            users = [i for i in range(n_br)
                     if kh < kernel_sizes[i] and kw < kernel_sizes[i]]
            if not users:
                continue
            s = kh * wp + kw
            xs = xf[:, s:s + win] if s else xf[:, :win]
            for i in users:
                k = kernel_sizes[i]
                wt = w_refs[i][kh * k + kw]          # (c_out, c_in)
                y = jnp.dot(wt, xs, preferred_element_type=jnp.float32)
                accs[i] = y if accs[i] is None else accs[i] + y

    # -- crop, resize, relu-add chain, lane-dense store ----------------------
    hw0 = oh0 * ow0
    for b in range(bblk):
        base = b * lp                                # multiple of 128
        out = None
        for i in range(n_br):
            ohi, owi = out_hw[i]
            off = offsets[i]
            blk = accs[i][:, base:base + hp * wp].reshape(c_out, hp, wp)
            conv = blk[:, off:off + ohi, off:off + owi].reshape(c_out,
                                                                ohi * owi)
            if needs_resize[i]:
                # bilinear resize to branch-0 size as one 2-D matmul.
                conv = jnp.dot(conv, r_refs[r_map[i]][...],
                               preferred_element_type=jnp.float32)
            if i == 0:
                out = jnp.maximum(conv, 0.0)
            else:
                out = jnp.maximum(out + conv, 0.0)
        o_ref[:, b * hw0:(b + 1) * hw0] = out


def dynamic_conv_module_forward(x, weights, *, batch_block=None,
                                compute_dtype=jnp.float32):
    """x: (N, C, H, W) f32; weights: list of (Cout, C, k, k) f32."""
    n, c_in, h, w = x.shape
    c_out = weights[0].shape[0]
    ks = [int(wt.shape[-1]) for wt in weights]
    pads = [(k - 1) // 2 for k in ks]
    max_pad = max(pads)
    out_hw = [(h + 2 * p - k + 1, w + 2 * p - k + 1)
              for k, p in zip(ks, pads)]
    oh0, ow0 = out_hw[0]
    hw0 = oh0 * ow0
    needs_resize = tuple(hw != (oh0, ow0) for hw in out_hw)
    offsets = tuple(max_pad - p for p in pads)

    hp, wp = h + 2 * max_pad, w + 2 * max_pad
    k_max = max(ks)
    s_max = (k_max - 1) * (wp + 1)
    # Per-element flat frame length: multiple of 128 lanes, large enough that
    # the common tap-slice window (lp - s_max) still covers a full hp*wp frame.
    lp = ((hp * wp + s_max + 127) // 128) * 128
    assert hp * wp + s_max <= lp

    # -- batch blocking ------------------------------------------------------
    if batch_block is None:
        # default keeps >=2 "parallel" grid steps (both v7x TCs busy); on
        # single-TC v5e/v6e pass batch_block=n to collapse to a single step.
        batch_block = max(1, (n + 1) // 2)
    bblk = min(batch_block, n)
    steps = (n + bblk - 1) // bblk
    n_pad = steps * bblk

    # -- host-side prep (tiny one-time XLA ops, no per-step kernel work) -----
    xq = x.astype(compute_dtype)
    if n_pad != n:
        xq = jnp.pad(xq, ((0, n_pad - n), (0, 0), (0, 0), (0, 0)))
    xq = jnp.pad(xq, ((0, 0), (0, 0), (max_pad, max_pad), (max_pad, max_pad)))
    xq = xq.reshape(n_pad, c_in, hp * wp)
    xq = jnp.pad(xq, ((0, 0), (0, 0), (0, lp - hp * wp)))
    xq = (xq.reshape(steps, bblk, c_in, lp)
            .transpose(0, 2, 1, 3)
            .reshape(steps, c_in, bblk * lp))

    # Weights in tap-major layout: (k*k, c_out, c_in), tap index = kh*k + kw.
    w_taps = [jnp.transpose(wt, (2, 3, 0, 1)).reshape(k * k, c_out, c_in)
                 .astype(compute_dtype)
              for wt, k in zip(weights, ks)]

    # Resize matrices (static -> host numpy), transposed kron of 1-D factors.
    # TODO(synk): separable R_h/R_w + row-tiled grid once H*W grows (v7x VMEM).
    r_mats = []
    for (ohi, owi), nr in zip(out_hw, needs_resize):
        if nr:
            rh = _bilinear_matrix(ohi, oh0)                 # (oh0, ohi)
            rw = _bilinear_matrix(owi, ow0)                 # (ow0, owi)
            r_mats.append(jnp.asarray(np.kron(rh, rw).T))   # (ohi*owi, hw0)

    kernel = functools.partial(
        _fused_dynconv_kernel, kernel_sizes=tuple(ks),
        needs_resize=needs_resize, offsets=offsets, out_hw=tuple(out_hw),
        c_in=c_in, c_out=c_out, hp=hp, wp=wp, lp=lp, bblk=bblk, s_max=s_max,
        oh0=oh0, ow0=ow0)

    in_specs = [pl.BlockSpec((None, c_in, bblk * lp), lambda s: (s, 0, 0))]
    in_specs += [pl.BlockSpec(wt.shape, lambda s: (0, 0, 0)) for wt in w_taps]
    in_specs += [pl.BlockSpec(r.shape, lambda s: (0, 0)) for r in r_mats]

    out_flat = pl.pallas_call(
        kernel,
        out_shape=jax.ShapeDtypeStruct((steps, c_out, bblk * hw0),
                                       jnp.float32),
        grid=(steps,),
        in_specs=in_specs,
        out_specs=pl.BlockSpec((None, c_out, bblk * hw0), lambda s: (s, 0, 0)),
        compiler_params=pltpu.CompilerParams(
            dimension_semantics=("parallel",),
            vmem_limit_bytes=32 * 1024 * 1024),
    )(xq, *w_taps, *r_mats)

    out = (out_flat.reshape(steps, c_out, bblk, oh0, ow0)
                   .transpose(0, 2, 1, 3, 4)
                   .reshape(n_pad, c_out, oh0, ow0))
    return out[:n] if n_pad != n else out


# ----------------------------------------------------------------------------
# Module wrapper.
# ----------------------------------------------------------------------------
class DynamicConvModulePallas:
    def __init__(self, inplanes, outplanes, scale=3, stride=1, key=None):
        assert stride == 1, "only module default stride=1 implemented"
        # TODO(synk): torch.randint(3, 7) kernel-size draw replaced with a
        # deterministic stand-in (host-side RNG is not a kernel op).
        self.kernel_sizes = [3 + (i % 4) for i in range(scale)]
        self.weights = []
        key = jax.random.PRNGKey(1234) if key is None else key
        for k in self.kernel_sizes:
            key, sub = jax.random.split(key)
            fan_in = inplanes * k * k
            bound = 1.0 / math.sqrt(fan_in)    # ~ kaiming_uniform(a=sqrt(5))
            wgt = jax.random.uniform(sub, (outplanes, inplanes, k, k),
                                     dtype=jnp.float32, minval=-bound,
                                     maxval=bound)
            self.weights.append(wgt)

    def __call__(self, x, *, batch_block=None, compute_dtype=jnp.float32):
        return dynamic_conv_module_forward(x, self.weights,
                                           batch_block=batch_block,
                                           compute_dtype=compute_dtype)


# ----------------------------------------------------------------------------
# Pure-JAX reference (independent path) for correctness check.
# ----------------------------------------------------------------------------
def torch_bilinear_resize(x, out_h, out_w):
    n, c, ih, iw = x.shape
    if (ih, iw) == (out_h, out_w):
        return x
    sy = jnp.maximum((ih / out_h) * (jnp.arange(out_h, dtype=jnp.float32)
                                     + 0.5) - 0.5, 0.0)
    sx = jnp.maximum((iw / out_w) * (jnp.arange(out_w, dtype=jnp.float32)
                                     + 0.5) - 0.5, 0.0)
    y0 = jnp.floor(sy).astype(jnp.int32)
    x0 = jnp.floor(sx).astype(jnp.int32)
    y1 = jnp.minimum(y0 + 1, ih - 1)
    x1 = jnp.minimum(x0 + 1, iw - 1)
    wy1 = (sy - y0)[None, None, :, None]
    wx1 = (sx - x0)[None, None, None, :]
    wy0, wx0 = 1.0 - wy1, 1.0 - wx1
    top, bot = x[:, :, y0, :], x[:, :, y1, :]
    tl, tr = top[:, :, :, x0], top[:, :, :, x1]
    bl, br = bot[:, :, :, x0], bot[:, :, :, x1]
    return wy0 * (wx0 * tl + wx1 * tr) + wy1 * (wx0 * bl + wx1 * br)


def reference_forward(x, weights):
    out = None
    for i, wgt in enumerate(weights):
        k = wgt.shape[-1]
        pad = (k - 1) // 2
        co = jax.lax.conv_general_dilated(
            x, wgt, window_strides=(1, 1), padding=[(pad, pad), (pad, pad)],
            dimension_numbers=("NCHW", "OIHW", "NCHW"),
            precision=jax.lax.Precision.HIGHEST)
        if i == 0:
            out = jnp.maximum(co, 0.0)
        else:
            co = torch_bilinear_resize(co, out.shape[2], out.shape[3])
            out = jnp.maximum(out + co, 0.0)
    return out


if __name__ == "__main__":
    key = jax.random.PRNGKey(0)
    kx, kw = jax.random.split(key)

    N, Cin, H, W = 2, 4, 16, 16
    Cout = 8
    x = jax.random.normal(kx, (N, Cin, H, W), dtype=jnp.float32)

    module = DynamicConvModulePallas(Cin, Cout, scale=3, stride=1, key=kw)
    out = module(x)
    out = jax.block_until_ready(out)

    ref = reference_forward(x, module.weights)
    assert out.shape == ref.shape, (out.shape, ref.shape)
    max_err = float(jnp.max(jnp.abs(out - ref)))
    if max_err > 2e-3:
        raise AssertionError(f"pallas/ref mismatch, max abs err = {max_err}")

    print("KERNEL_OK")
</pallas_src>

<mosaic_0001>
module attributes {stable_mosaic.version = 11 : i64} {
  func.func @_fused_dynconv_kernel(%arg0: i32, %arg1: memref<1x4x512xf32, #tpu.memory_space<vmem>>, %arg2: memref<9x8x4xf32, #tpu.memory_space<vmem>>, %arg3: memref<16x8x4xf32, #tpu.memory_space<vmem>>, %arg4: memref<25x8x4xf32, #tpu.memory_space<vmem>>, %arg5: memref<225x256xf32, #tpu.memory_space<vmem>>, %arg6: memref<1x8x256xf32, #tpu.memory_space<vmem>>) attributes {dimension_semantics = [#tpu.dimension_semantics<parallel>], iteration_bounds = array<i64: 2>, scalar_prefetch = 0 : i64, scratch_operands = 0 : i64, tpu.core_type = #tpu.core_type<tc>, window_params = [{transform_indices = @transform_0, window_bounds = array<i64: 1, 4, 512>}, {pipeline_mode = #tpu.pipeline_mode<synchronous>, transform_indices = @transform_1, window_bounds = array<i64: 9, 8, 4>}, {pipeline_mode = #tpu.pipeline_mode<synchronous>, transform_indices = @transform_2, window_bounds = array<i64: 16, 8, 4>}, {pipeline_mode = #tpu.pipeline_mode<synchronous>, transform_indices = @transform_3, window_bounds = array<i64: 25, 8, 4>}, {pipeline_mode = #tpu.pipeline_mode<synchronous>, transform_indices = @transform_4, window_bounds = array<i64: 225, 256>}, {transform_indices = @transform_5, window_bounds = array<i64: 1, 8, 256>}]} {
    %c0 = arith.constant 0 : index
    %c0_0 = arith.constant 0 : index
    %c0_1 = arith.constant 0 : index
    %0 = vector.load %arg1[%c0, %c0_0, %c0_1] : memref<1x4x512xf32, #tpu.memory_space<vmem>>, vector<1x4x512xf32>
    %1 = vector.shape_cast %0 : vector<1x4x512xf32> to vector<4x512xf32>
    %2 = vector.extract_strided_slice %1 {offsets = [0, 0], sizes = [4, 428], strides = [1, 1]} : vector<4x512xf32> to vector<4x428xf32>
    %c0_2 = arith.constant 0 : index
    %c0_3 = arith.constant 0 : index
    %c0_4 = arith.constant 0 : index
    %3 = vector.load %arg2[%c0_2, %c0_3, %c0_4] : memref<9x8x4xf32, #tpu.memory_space<vmem>>, vector<1x8x4xf32>
    %4 = vector.shape_cast %3 : vector<1x8x4xf32> to vector<8x4xf32>
    %cst = arith.constant dense<0.000000e+00> : vector<8x428xf32>
    %5 = tpu.matmul %4, %2, %cst {dimension_numbers = #tpu.dot_dimension_numbers<[1], [0], [0], [1], [0, 0, 1, 1], [], []>} : vector<8x4xf32>, vector<4x428xf32>, vector<8x428xf32> -> vector<8x428xf32>
    %c0_5 = arith.constant 0 : index
    %c0_6 = arith.constant 0 : index
    %c0_7 = arith.constant 0 : index
    %6 = vector.load %arg3[%c0_5, %c0_6, %c0_7] : memref<16x8x4xf32, #tpu.memory_space<vmem>>, vector<1x8x4xf32>
    %7 = vector.shape_cast %6 : vector<1x8x4xf32> to vector<8x4xf32>
    %cst_8 = arith.constant dense<0.000000e+00> : vector<8x428xf32>
    %8 = tpu.matmul %7, %2, %cst_8 {dimension_numbers = #tpu.dot_dimension_numbers<[1], [0], [0], [1], [0, 0, 1, 1], [], []>} : vector<8x4xf32>, vector<4x428xf32>, vector<8x428xf32> -> vector<8x428xf32>
    %c0_9 = arith.constant 0 : index
    %c0_10 = arith.constant 0 : index
    %c0_11 = arith.constant 0 : index
    %9 = vector.load %arg4[%c0_9, %c0_10, %c0_11] : memref<25x8x4xf32, #tpu.memory_space<vmem>>, vector<1x8x4xf32>
    %10 = vector.shape_cast %9 : vector<1x8x4xf32> to vector<8x4xf32>
    %cst_12 = arith.constant dense<0.000000e+00> : vector<8x428xf32>
    %11 = tpu.matmul %10, %2, %cst_12 {dimension_numbers = #tpu.dot_dimension_numbers<[1], [0], [0], [1], [0, 0, 1, 1], [], []>} : vector<8x4xf32>, vector<4x428xf32>, vector<8x428xf32> -> vector<8x428xf32>
    %12 = vector.extract_strided_slice %1 {offsets = [0, 1], sizes = [4, 428], strides = [1, 1]} : vector<4x512xf32> to vector<4x428xf32>
    %c1 = arith.constant 1 : index
    %c0_13 = arith.constant 0 : index
    %c0_14 = arith.constant 0 : index
    %13 = vector.load %arg2[%c1, %c0_13, %c0_14] : memref<9x8x4xf32, #tpu.memory_space<vmem>>, vector<1x8x4xf32>
    %14 = vector.shape_cast %13 : vector<1x8x4xf32> to vector<8x4xf32>
    %cst_15 = arith.constant dense<0.000000e+00> : vector<8x428xf32>
    %15 = tpu.matmul %14, %12, %cst_15 {dimension_numbers = #tpu.dot_dimension_numbers<[1], [0], [0], [1], [0, 0, 1, 1], [], []>} : vector<8x4xf32>, vector<4x428xf32>, vector<8x428xf32> -> vector<8x428xf32>
    %16 = arith.addf %5, %15 : vector<8x428xf32>
    %c1_16 = arith.constant 1 : index
    %c0_17 = arith.constant 0 : index
    %c0_18 = arith.constant 0 : index
    %17 = vector.load %arg3[%c1_16, %c0_17, %c0_18] : memref<16x8x4xf32, #tpu.memory_space<vmem>>, vector<1x8x4xf32>
    %18 = vector.shape_cast %17 : vector<1x8x4xf32> to vector<8x4xf32>
    %cst_19 = arith.constant dense<0.000000e+00> : vector<8x428xf32>
    %19 = tpu.matmul %18, %12, %cst_19 {dimension_numbers = #tpu.dot_dimension_numbers<[1], [0], [0], [1], [0, 0, 1, 1], [], []>} : vector<8x4xf32>, vector<4x428xf32>, vector<8x428xf32> -> vector<8x428xf32>
    %20 = arith.addf %8, %19 : vector<8x428xf32>
    %c1_20 = arith.constant 1 : index
    %c0_21 = arith.constant 0 : index
    %c0_22 = arith.constant 0 : index
    %21 = vector.load %arg4[%c1_20, %c0_21, %c0_22] : memref<25x8x4xf32, #tpu.memory_space<vmem>>, vector<1x8x4xf32>
    %22 = vector.shape_cast %21 : vector<1x8x4xf32> to vector<8x4xf32>
    %cst_23 = arith.constant dense<0.000000e+00> : vector<8x428xf32>
    %23 = tpu.matmul %22, %12, %cst_23 {dimension_numbers = #tpu.dot_dimension_numbers<[1], [0], [0], [1], [0, 0, 1, 1], [], []>} : vector<8x4xf32>, vector<4x428xf32>, vector<8x428xf32> -> vector<8x428xf32>
    %24 = arith.addf %11, %23 : vector<8x428xf32>
    %25 = vector.extract_strided_slice %1 {offsets = [0, 2], sizes = [4, 428], strides = [1, 1]} : vector<4x512xf32> to vector<4x428xf32>
    %c2 = arith.constant 2 : index
    %c0_24 = arith.constant 0 : index
    %c0_25 = arith.constant 0 : index
    %26 = vector.load %arg2[%c2, %c0_24, %c0_25] : memref<9x8x4xf32, #tpu.memory_space<vmem>>, vector<1x8x4xf32>
    %27 = vector.shape_cast %26 : vector<1x8x4xf32> to vector<8x4xf32>
    %cst_26 = arith.constant dense<0.000000e+00> : vector<8x428xf32>
    %28 = tpu.matmul %27, %25, %cst_26 {dimension_numbers = #tpu.dot_dimension_numbers<[1], [0], [0], [1], [0, 0, 1, 1], [], []>} : vector<8x4xf32>, vector<4x428xf32>, vector<8x428xf32> -> vector<8x428xf32>
    %29 = arith.addf %16, %28 : vector<8x428xf32>
    %c2_27 = arith.constant 2 : index
    %c0_28 = arith.constant 0 : index
    %c0_29 = arith.constant 0 : index
    %30 = vector.load %arg3[%c2_27, %c0_28, %c0_29] : memref<16x8x4xf32, #tpu.memory_space<vmem>>, vector<1x8x4xf32>
    %31 = vector.shape_cast %30 : vector<1x8x4xf32> to vector<8x4xf32>
    %cst_30 = arith.constant dense<0.000000e+00> : vector<8x428xf32>
    %32 = tpu.matmul %31, %25, %cst_30 {dimension_numbers = #tpu.dot_dimension_numbers<[1], [0], [0], [1], [0, 0, 1, 1], [], []>} : vector<8x4xf32>, vector<4x428xf32>, vector<8x428xf32> -> vector<8x428xf32>
    %33 = arith.addf %20, %32 : vector<8x428xf32>
    %c2_31 = arith.constant 2 : index
    %c0_32 = arith.constant 0 : index
    %c0_33 = arith.constant 0 : index
    %34 = vector.load %arg4[%c2_31, %c0_32, %c0_33] : memref<25x8x4xf32, #tpu.memory_space<vmem>>, vector<1x8x4xf32>
    %35 = vector.shape_cast %34 : vector<1x8x4xf32> to vector<8x4xf32>
    %cst_34 = arith.constant dense<0.000000e+00> : vector<8x428xf32>
    %36 = tpu.matmul %35, %25, %cst_34 {dimension_numbers = #tpu.dot_dimension_numbers<[1], [0], [0], [1], [0, 0, 1, 1], [], []>} : vector<8x4xf32>, vector<4x428xf32>, vector<8x428xf32> -> vector<8x428xf32>
    %37 = arith.addf %24, %36 : vector<8x428xf32>
    %38 = vector.extract_strided_slice %1 {offsets = [0, 3], sizes = [4, 428], strides = [1, 1]} : vector<4x512xf32> to vector<4x428xf32>
    %c3 = arith.constant 3 : index
    %c0_35 = arith.constant 0 : index
    %c0_36 = arith.constant 0 : index
    %39 = vector.load %arg3[%c3, %c0_35, %c0_36] : memref<16x8x4xf32, #tpu.memory_space<vmem>>, vector<1x8x4xf32>
    %40 = vector.shape_cast %39 : vector<1x8x4xf32> to vector<8x4xf32>
    %cst_37 = arith.constant dense<0.000000e+00> : vector<8x428xf32>
    %41 = tpu.matmul %40, %38, %cst_37 {dimension_numbers = #tpu.dot_dimension_numbers<[1], [0], [0], [1], [0, 0, 1, 1], [], []>} : vector<8x4xf32>, vector<4x428xf32>, vector<8x428xf32> -> vector<8x428xf32>
    %42 = arith.addf %33, %41 : vector<8x428xf32>
    %c3_38 = arith.constant 3 : index
    %c0_39 = arith.constant 0 : index
    %c0_40 = arith.constant 0 : index
    %43 = vector.load %arg4[%c3_38, %c0_39, %c0_40] : memref<25x8x4xf32, #tpu.memory_space<vmem>>, vector<1x8x4xf32>
    %44 = vector.shape_cast %43 : vector<1x8x4xf32> to vector<8x4xf32>
    %cst_41 = arith.constant dense<0.000000e+00> : vector<8x428xf32>
    %45 = tpu.matmul %44, %38, %cst_41 {dimension_numbers = #tpu.dot_dimension_numbers<[1], [0], [0], [1], [0, 0, 1, 1], [], []>} : vector<8x4xf32>, vector<4x428xf32>, vector<8x428xf32> -> vector<8x428xf32>
    %46 = arith.addf %37, %45 : vector<8x428xf32>
    %47 = vector.extract_strided_slice %1 {offsets = [0, 4], sizes = [4, 428], strides = [1, 1]} : vector<4x512xf32> to vector<4x428xf32>
    %c4 = arith.constant 4 : index
    %c0_42 = arith.constant 0 : index
    %c0_43 = arith.constant 0 : index
    %48 = vector.load %arg4[%c4, %c0_42, %c0_43] : memref<25x8x4xf32, #tpu.memory_space<vmem>>, vector<1x8x4xf32>
    %49 = vector.shape_cast %48 : vector<1x8x4xf32> to vector<8x4xf32>
    %cst_44 = arith.constant dense<0.000000e+00> : vector<8x428xf32>
    %50 = tpu.matmul %49, %47, %cst_44 {dimension_numbers = #tpu.dot_dimension_numbers<[1], [0], [0], [1], [0, 0, 1, 1], [], []>} : vector<8x4xf32>, vector<4x428xf32>, vector<8x428xf32> -> vector<8x428xf32>
    %51 = arith.addf %46, %50 : vector<8x428xf32>
    %52 = vector.extract_strided_slice %1 {offsets = [0, 20], sizes = [4, 428], strides = [1, 1]} : vector<4x512xf32> to vector<4x428xf32>
    %c3_45 = arith.constant 3 : index
    %c0_46 = arith.constant 0 : index
    %c0_47 = arith.constant 0 : index
    %53 = vector.load %arg2[%c3_45, %c0_46, %c0_47] : memref<9x8x4xf32, #tpu.memory_space<vmem>>, vector<1x8x4xf32>
    %54 = vector.shape_cast %53 : vector<1x8x4xf32> to vector<8x4xf32>
    %cst_48 = arith.constant dense<0.000000e+00> : vector<8x428xf32>
    %55 = tpu.matmul %54, %52, %cst_48 {dimension_numbers = #tpu.dot_dimension_numbers<[1], [0], [0], [1], [0, 0, 1, 1], [], []>} : vector<8x4xf32>, vector<4x428xf32>, vector<8x428xf32> -> vector<8x428xf32>
    %56 = arith.addf %29, %55 : vector<8x428xf32>
    %c4_49 = arith.constant 4 : index
    %c0_50 = arith.constant 0 : index
    %c0_51 = arith.constant 0 : index
    %57 = vector.load %arg3[%c4_49, %c0_50, %c0_51] : memref<16x8x4xf32, #tpu.memory_space<vmem>>, vector<1x8x4xf32>
    %58 = vector.shape_cast %57 : vector<1x8x4xf32> to vector<8x4xf32>
    %cst_52 = arith.constant dense<0.000000e+00> : vector<8x428xf32>
    %59 = tpu.matmul %58, %52, %cst_52 {dimension_numbers = #tpu.dot_dimension_numbers<[1], [0], [0], [1], [0, 0, 1, 1], [], []>} : vector<8x4xf32>, vector<4x428xf32>, vector<8x428xf32> -> vector<8x428xf32>
    %60 = arith.addf %42, %59 : vector<8x428xf32>
    %c5 = arith.constant 5 : index
    %c0_53 = arith.constant 0 : index
    %c0_54 = arith.constant 0 : index
    %61 = vector.load %arg4[%c5, %c0_53, %c0_54] : memref<25x8x4xf32, #tpu.memory_space<vmem>>, vector<1x8x4xf32>
    %62 = vector.shape_cast %61 : vector<1x8x4xf32> to vector<8x4xf32>
    %cst_55 = arith.constant dense<0.000000e+00> : vector<8x428xf32>
    %63 = tpu.matmul %62, %52, %cst_55 {dimension_numbers = #tpu.dot_dimension_numbers<[1], [0], [0], [1], [0, 0, 1, 1], [], []>} : vector<8x4xf32>, vector<4x428xf32>, vector<8x428xf32> -> vector<8x428xf32>
    %64 = arith.addf %51, %63 : vector<8x428xf32>
    %65 = vector.extract_strided_slice %1 {offsets = [0, 21], sizes = [4, 428], strides = [1, 1]} : vector<4x512xf32> to vector<4x428xf32>
    %c4_56 = arith.constant 4 : index
    %c0_57 = arith.constant 0 : index
    %c0_58 = arith.constant 0 : index
    %66 = vector.load %arg2[%c4_56, %c0_57, %c0_58] : memref<9x8x4xf32, #tpu.memory_space<vmem>>, vector<1x8x4xf32>
    %67 = vector.shape_cast %66 : vector<1x8x4xf32> to vector<8x4xf32>
    %cst_59 = arith.constant dense<0.000000e+00> : vector<8x428xf32>
    %68 = tpu.matmul %67, %65, %cst_59 {dimension_numbers = #tpu.dot_dimension_numbers<[1], [0], [0], [1], [0, 0, 1, 1], [], []>} : vector<8x4xf32>, vector<4x428xf32>, vector<8x428xf32> -> vector<8x428xf32>
    %69 = arith.addf %56, %68 : vector<8x428xf32>
    %c5_60 = arith.constant 5 : index
    %c0_61 = arith.constant 0 : index
    %c0_62 = arith.constant 0 : index
    %70 = vector.load %arg3[%c5_60, %c0_61, %c0_62] : memref<16x8x4xf32, #tpu.memory_space<vmem>>, vector<1x8x4xf32>
    %71 = vector.shape_cast %70 : vector<1x8x4xf32> to vector<8x4xf32>
    %cst_63 = arith.constant dense<0.000000e+00> : vector<8x428xf32>
    %72 = tpu.matmul %71, %65, %cst_63 {dimension_numbers = #tpu.dot_dimension_numbers<[1], [0], [0], [1], [0, 0, 1, 1], [], []>} : vector<8x4xf32>, vector<4x428xf32>, vector<8x428xf32> -> vector<8x428xf32>
    %73 = arith.addf %60, %72 : vector<8x428xf32>
    %c6 = arith.constant 6 : index
    %c0_64 = arith.constant 0 : index
    %c0_65 = arith.constant 0 : index
    %74 = vector.load %arg4[%c6, %c0_64, %c0_65] : memref<25x8x4xf32, #tpu.memory_space<vmem>>, vector<1x8x4xf32>
    %75 = vector.shape_cast %74 : vector<1x8x4xf32> to vector<8x4xf32>
    %cst_66 = arith.constant dense<0.000000e+00> : vector<8x428xf32>
    %76 = tpu.matmul %75, %65, %cst_66 {dimension_numbers = #tpu.dot_dimension_numbers<[1], [0], [0], [1], [0, 0, 1, 1], [], []>} : vector<8x4xf32>, vector<4x428xf32>, vector<8x428xf32> -> vector<8x428xf32>
    %77 = arith.addf %64, %76 : vector<8x428xf32>
    %78 = vector.extract_strided_slice %1 {offsets = [0, 22], sizes = [4, 428], strides = [1, 1]} : vector<4x512xf32> to vector<4x428xf32>
    %c5_67 = arith.constant 5 : index
    %c0_68 = arith.constant 0 : index
    %c0_69 = arith.constant 0 : index
    %79 = vector.load %arg2[%c5_67, %c0_68, %c0_69] : memref<9x8x4xf32, #tpu.memory_space<vmem>>, vector<1x8x4xf32>
    %80 = vector.shape_cast %79 : vector<1x8x4xf32> to vector<8x4xf32>
    %cst_70 = arith.constant dense<0.000000e+00> : vector<8x428xf32>
    %81 = tpu.matmul %80, %78, %cst_70 {dimension_numbers = #tpu.dot_dimension_numbers<[1], [0], [0], [1], [0, 0, 1, 1], [], []>} : vector<8x4xf32>, vector<4x428xf32>, vector<8x428xf32> -> vector<8x428xf32>
    %82 = arith.addf %69, %81 : vector<8x428xf32>
    %c6_71 = arith.constant 6 : index
    %c0_72 = arith.constant 0 : index
    %c0_73 = arith.constant 0 : index
    %83 = vector.load %arg3[%c6_71, %c0_72, %c0_73] : memref<16x8x4xf32, #tpu.memory_space<vmem>>, vector<1x8x4xf32>
    %84 = vector.shape_cast %83 : vector<1x8x4xf32> to vector<8x4xf32>
    %cst_74 = arith.constant dense<0.000000e+00> : vector<8x428xf32>
    %85 = tpu.matmul %84, %78, %cst_74 {dimension_numbers = #tpu.dot_dimension_numbers<[1], [0], [0], [1], [0, 0, 1, 1], [], []>} : vector<8x4xf32>, vector<4x428xf32>, vector<8x428xf32> -> vector<8x428xf32>
    %86 = arith.addf %73, %85 : vector<8x428xf32>
    %c7 = arith.constant 7 : index
    %c0_75 = arith.constant 0 : index
    %c0_76 = arith.constant 0 : index
    %87 = vector.load %arg4[%c7, %c0_75, %c0_76] : memref<25x8x4xf32, #tpu.memory_space<vmem>>, vector<1x8x4xf32>
    %88 = vector.shape_cast %87 : vector<1x8x4xf32> to vector<8x4xf32>
    %cst_77 = arith.constant dense<0.000000e+00> : vector<8x428xf32>
    %89 = tpu.matmul %88, %78, %cst_77 {dimension_numbers = #tpu.dot_dimension_numbers<[1], [0], [0], [1], [0, 0, 1, 1], [], []>} : vector<8x4xf32>, vector<4x428xf32>, vector<8x428xf32> -> vector<8x428xf32>
    %90 = arith.addf %77, %89 : vector<8x428xf32>
    %91 = vector.extract_strided_slice %1 {offsets = [0, 23], sizes = [4, 428], strides = [1, 1]} : vector<4x512xf32> to vector<4x428xf32>
    %c7_78 = arith.constant 7 : index
    %c0_79 = arith.constant 0 : index
    %c0_80 = arith.constant 0 : index
    %92 = vector.load %arg3[%c7_78, %c0_79, %c0_80] : memref<16x8x4xf32, #tpu.memory_space<vmem>>, vector<1x8x4xf32>
    %93 = vector.shape_cast %92 : vector<1x8x4xf32> to vector<8x4xf32>
    %cst_81 = arith.constant dense<0.000000e+00> : vector<8x428xf32>
    %94 = tpu.matmul %93, %91, %cst_81 {dimension_numbers = #tpu.dot_dimension_numbers<[1], [0], [0], [1], [0, 0, 1, 1], [], []>} : vector<8x4xf32>, vector<4x428xf32>, vector<8x428xf32> -> vector<8x428xf32>
    %95 = arith.addf %86, %94 : vector<8x428xf32>
    %c8 = arith.constant 8 : index
    %c0_82 = arith.constant 0 : index
    %c0_83 = arith.constant 0 : index
    %96 = vector.load %arg4[%c8, %c0_82, %c0_83] : memref<25x8x4xf32, #tpu.memory_space<vmem>>, vector<1x8x4xf32>
    %97 = vector.shape_cast %96 : vector<1x8x4xf32> to vector<8x4xf32>
    %cst_84 = arith.constant dense<0.000000e+00> : vector<8x428xf32>
    %98 = tpu.matmul %97, %91, %cst_84 {dimension_numbers = #tpu.dot_dimension_numbers<[1], [0], [0], [1], [0, 0, 1, 1], [], []>} : vector<8x4xf32>, vector<4x428xf32>, vector<8x428xf32> -> vector<8x428xf32>
    %99 = arith.addf %90, %98 : vector<8x428xf32>
    %100 = vector.extract_strided_slice %1 {offsets = [0, 24], sizes = [4, 428], strides = [1, 1]} : vector<4x512xf32> to vector<4x428xf32>
    %c9 = arith.constant 9 : index
    %c0_85 = arith.constant 0 : index
    %c0_86 = arith.constant 0 : index
    %101 = vector.load %arg4[%c9, %c0_85, %c0_86] : memref<25x8x4xf32, #tpu.memory_space<vmem>>, vector<1x8x4xf32>
    %102 = vector.shape_cast %101 : vector<1x8x4xf32> to vector<8x4xf32>
    %cst_87 = arith.constant dense<0.000000e+00> : vector<8x428xf32>
    %103 = tpu.matmul %102, %100, %cst_87 {dimension_numbers = #tpu.dot_dimension_numbers<[1], [0], [0], [1], [0, 0, 1, 1], [], []>} : vector<8x4xf32>, vector<4x428xf32>, vector<8x428xf32> -> vector<8x428xf32>
    %104 = arith.addf %99, %103 : vector<8x428xf32>
    %105 = vector.extract_strided_slice %1 {offsets = [0, 40], sizes = [4, 428], strides = [1, 1]} : vector<4x512xf32> to vector<4x428xf32>
    %c6_88 = arith.constant 6 : index
    %c0_89 = arith.constant 0 : index
    %c0_90 = arith.constant 0 : index
    %106 = vector.load %arg2[%c6_88, %c0_89, %c0_90] : memref<9x8x4xf32, #tpu.memory_space<vmem>>, vector<1x8x4xf32>
    %107 = vector.shape_cast %106 : vector<1x8x4xf32> to vector<8x4xf32>
    %cst_91 = arith.constant dense<0.000000e+00> : vector<8x428xf32>
    %108 = tpu.matmul %107, %105, %cst_91 {dimension_numbers = #tpu.dot_dimension_numbers<[1], [0], [0], [1], [0, 0, 1, 1], [], []>} : vector<8x4xf32>, vector<4x428xf32>, vector<8x428xf32> -> vector<8x428xf32>
    %109 = arith.addf %82, %108 : vector<8x428xf32>
    %c8_92 = arith.constant 8 : index
    %c0_93 = arith.constant 0 : index
    %c0_94 = arith.constant 0 : index
    %110 = vector.load %arg3[%c8_92, %c0_93, %c0_94] : memref<16x8x4xf32, #tpu.memory_space<vmem>>, vector<1x8x4xf32>
    %111 = vector.shape_cast %110 : vector<1x8x4xf32> to vector<8x4xf32>
    %cst_95 = arith.constant dense<0.000000e+00> : vector<8x428xf32>
    %112 = tpu.matmul %111, %105, %cst_95 {dimension_numbers = #tpu.dot_dimension_numbers<[1], [0], [0], [1], [0, 0, 1, 1], [], []>} : vector<8x4xf32>, vector<4x428xf32>, vector<8x428xf32> -> vector<8x428xf32>
    %113 = arith.addf %95, %112 : vector<8x428xf32>
    %c10 = arith.constant 10 : index
    %c0_96 = arith.constant 0 : index
    %c0_97 = arith.constant 0 : index
    %114 = vector.load %arg4[%c10, %c0_96, %c0_97] : memref<25x8x4xf32, #tpu.memory_space<vmem>>, vector<1x8x4xf32>
    %115 = vector.shape_cast %114 : vector<1x8x4xf32> to vector<8x4xf32>
    %cst_98 = arith.constant dense<0.000000e+00> : vector<8x428xf32>
    %116 = tpu.matmul %115, %105, %cst_98 {dimension_numbers = #tpu.dot_dimension_numbers<[1], [0], [0], [1], [0, 0, 1, 1], [], []>} : vector<8x4xf32>, vector<4x428xf32>, vector<8x428xf32> -> vector<8x428xf32>
    %117 = arith.addf %104, %116 : vector<8x428xf32>
    %118 = vector.extract_strided_slice %1 {offsets = [0, 41], sizes = [4, 428], strides = [1, 1]} : vector<4x512xf32> to vector<4x428xf32>
    %c7_99 = arith.constant 7 : index
    %c0_100 = arith.constant 0 : index
    %c0_101 = arith.constant 0 : index
    %119 = vector.load %arg2[%c7_99, %c0_100, %c0_101] : memref<9x8x4xf32, #tpu.memory_space<vmem>>, vector<1x8x4xf32>
    %120 = vector.shape_cast %119 : vector<1x8x4xf32> to vector<8x4xf32>
    %cst_102 = arith.constant dense<0.000000e+00> : vector<8x428xf32>
    %121 = tpu.matmul %120, %118, %cst_102 {dimension_numbers = #tpu.dot_dimension_numbers<[1], [0], [0], [1], [0, 0, 1, 1], [], []>} : vector<8x4xf32>, vector<4x428xf32>, vector<8x428xf32> -> vector<8x428xf32>
    %122 = arith.addf %109, %121 : vector<8x428xf32>
    %c9_103 = arith.constant 9 : index
    %c0_104 = arith.constant 0 : index
    %c0_105 = arith.constant 0 : index
    %123 = vector.load %arg3[%c9_103, %c0_104, %c0_105] : memref<16x8x4xf32, #tpu.memory_space<vmem>>, vector<1x8x4xf32>
    %124 = vector.shape_cast %123 : vector<1x8x4xf32> to vector<8x4xf32>
    %cst_106 = arith.constant dense<0.000000e+00> : vector<8x428xf32>
    %125 = tpu.matmul %124, %118, %cst_106 {dimension_numbers = #tpu.dot_dimension_numbers<[1], [0], [0], [1], [0, 0, 1, 1], [], []>} : vector<8x4xf32>, vector<4x428xf32>, vector<8x428xf32> -> vector<8x428xf32>
    %126 = arith.addf %113, %125 : vector<8x428xf32>
    %c11 = arith.constant 11 : index
    %c0_107 = arith.constant 0 : index
    %c0_108 = arith.constant 0 : index
    %127 = vector.load %arg4[%c11, %c0_107, %c0_108] : memref<25x8x4xf32, #tpu.memory_space<vmem>>, vector<1x8x4xf32>
    %128 = vector.shape_cast %127 : vector<1x8x4xf32> to vector<8x4xf32>
    %cst_109 = arith.constant dense<0.000000e+00> : vector<8x428xf32>
    %129 = tpu.matmul %128, %118, %cst_109 {dimension_numbers = #tpu.dot_dimension_numbers<[1], [0], [0], [1], [0, 0, 1, 1], [], []>} : vector<8x4xf32>, vector<4x428xf32>, vector<8x428xf32> -> vector<8x428xf32>
    %130 = arith.addf %117, %129 : vector<8x428xf32>
    %131 = vector.extract_strided_slice %1 {offsets = [0, 42], sizes = [4, 428], strides = [1, 1]} : vector<4x512xf32> to vector<4x428xf32>
    %c8_110 = arith.constant 8 : index
    %c0_111 = arith.constant 0 : index
    %c0_112 = arith.constant 0 : index
    %132 = vector.load %arg2[%c8_110, %c0_111, %c0_112] : memref<9x8x4xf32, #tpu.memory_space<vmem>>, vector<1x8x4xf32>
    %133 = vector.shape_cast %132 : vector<1x8x4xf32> to vector<8x4xf32>
    %cst_113 = arith.constant dense<0.000000e+00> : vector<8x428xf32>
    %134 = tpu.matmul %133, %131, %cst_113 {dimension_numbers = #tpu.dot_dimension_numbers<[1], [0], [0], [1], [0, 0, 1, 1], [], []>} : vector<8x4xf32>, vector<4x428xf32>, vector<8x428xf32> -> vector<8x428xf32>
    %135 = arith.addf %122, %134 : vector<8x428xf32>
    %c10_114 = arith.constant 10 : index
    %c0_115 = arith.constant 0 : index
    %c0_116 = arith.constant 0 : index
    %136 = vector.load %arg3[%c10_114, %c0_115, %c0_116] : memref<16x8x4xf32, #tpu.memory_space<vmem>>, vector<1x8x4xf32>
    %137 = vector.shape_cast %136 : vector<1x8x4xf32> to vector<8x4xf32>
    %cst_117 = arith.constant dense<0.000000e+00> : vector<8x428xf32>
    %138 = tpu.matmul %137, %131, %cst_117 {dimension_numbers = #tpu.dot_dimension_numbers<[1], [0], [0], [1], [0, 0, 1, 1], [], []>} : vector<8x4xf32>, vector<4x428xf32>, vector<8x428xf32> -> vector<8x428xf32>
    %139 = arith.addf %126, %138 : vector<8x428xf32>
    %c12 = arith.constant 12 : index
    %c0_118 = arith.constant 0 : index
    %c0_119 = arith.constant 0 : index
    %140 = vector.load %arg4[%c12, %c0_118, %c0_119] : memref<25x8x4xf32, #tpu.memory_space<vmem>>, vector<1x8x4xf32>
    %141 = vector.shape_cast %140 : vector<1x8x4xf32> to vector<8x4xf32>
    %cst_120 = arith.constant dense<0.000000e+00> : vector<8x428xf32>
    %142 = tpu.matmul %141, %131, %cst_120 {dimension_numbers = #tpu.dot_dimension_numbers<[1], [0], [0], [1], [0, 0, 1, 1], [], []>} : vector<8x4xf32>, vector<4x428xf32>, vector<8x428xf32> -> vector<8x428xf32>
    %143 = arith.addf %130, %142 : vector<8x428xf32>
    %144 = vector.extract_strided_slice %1 {offsets = [0, 43], sizes = [4, 428], strides = [1, 1]} : vector<4x512xf32> to vector<4x428xf32>
    %c11_121 = arith.constant 11 : index
    %c0_122 = arith.constant 0 : index
    %c0_123 = arith.constant 0 : index
    %145 = vector.load %arg3[%c11_121, %c0_122, %c0_123] : memref<16x8x4xf32, #tpu.memory_space<vmem>>, vector<1x8x4xf32>
    %146 = vector.shape_cast %145 : vector<1x8x4xf32> to vector<8x4xf32>
    %cst_124 = arith.constant dense<0.000000e+00> : vector<8x428xf32>
    %147 = tpu.matmul %146, %144, %cst_124 {dimension_numbers = #tpu.dot_dimension_numbers<[1], [0], [0], [1], [0, 0, 1, 1], [], []>} : vector<8x4xf32>, vector<4x428xf32>, vector<8x428xf32> -> vector<8x428xf32>
    %148 = arith.addf %139, %147 : vector<8x428xf32>
    %c13 = arith.constant 13 : index
    %c0_125 = arith.constant 0 : index
    %c0_126 = arith.constant 0 : index
    %149 = vector.load %arg4[%c13, %c0_125, %c0_126] : memref<25x8x4xf32, #tpu.memory_space<vmem>>, vector<1x8x4xf32>
    %150 = vector.shape_cast %149 : vector<1x8x4xf32> to vector<8x4xf32>
    %cst_127 = arith.constant dense<0.000000e+00> : vector<8x428xf32>
    %151 = tpu.matmul %150, %144, %cst_127 {dimension_numbers = #tpu.dot_dimension_numbers<[1], [0], [0], [1], [0, 0, 1, 1], [], []>} : vector<8x4xf32>, vector<4x428xf32>, vector<8x428xf32> -> vector<8x428xf32>
    %152 = arith.addf %143, %151 : vector<8x428xf32>
    %153 = vector.extract_strided_slice %1 {offsets = [0, 44], sizes = [4, 428], strides = [1, 1]} : vector<4x512xf32> to vector<4x428xf32>
    %c14 = arith.constant 14 : index
    %c0_128 = arith.constant 0 : index
    %c0_129 = arith.constant 0 : index
    %154 = vector.load %arg4[%c14, %c0_128, %c0_129] : memref<25x8x4xf32, #tpu.memory_space<vmem>>, vector<1x8x4xf32>
    %155 = vector.shape_cast %154 : vector<1x8x4xf32> to vector<8x4xf32>
    %cst_130 = arith.constant dense<0.000000e+00> : vector<8x428xf32>
    %156 = tpu.matmul %155, %153, %cst_130 {dimension_numbers = #tpu.dot_dimension_numbers<[1], [0], [0], [1], [0, 0, 1, 1], [], []>} : vector<8x4xf32>, vector<4x428xf32>, vector<8x428xf32> -> vector<8x428xf32>
    %157 = arith.addf %152, %156 : vector<8x428xf32>
    %158 = vector.extract_strided_slice %1 {offsets = [0, 60], sizes = [4, 428], strides = [1, 1]} : vector<4x512xf32> to vector<4x428xf32>
    %c12_131 = arith.constant 12 : index
    %c0_132 = arith.constant 0 : index
    %c0_133 = arith.constant 0 : index
    %159 = vector.load %arg3[%c12_131, %c0_132, %c0_133] : memref<16x8x4xf32, #tpu.memory_space<vmem>>, vector<1x8x4xf32>
    %160 = vector.shape_cast %159 : vector<1x8x4xf32> to vector<8x4xf32>
    %cst_134 = arith.constant dense<0.000000e+00> : vector<8x428xf32>
    %161 = tpu.matmul %160, %158, %cst_134 {dimension_numbers = #tpu.dot_dimension_numbers<[1], [0], [0], [1], [0, 0, 1, 1], [], []>} : vector<8x4xf32>, vector<4x428xf32>, vector<8x428xf32> -> vector<8x428xf32>
    %162 = arith.addf %148, %161 : vector<8x428xf32>
    %c15 = arith.constant 15 : index
    %c0_135 = arith.constant 0 : index
    %c0_136 = arith.constant 0 : index
    %163 = vector.load %arg4[%c15, %c0_135, %c0_136] : memref<25x8x4xf32, #tpu.memory_space<vmem>>, vector<1x8x4xf32>
    %164 = vector.shape_cast %163 : vector<1x8x4xf32> to vector<8x4xf32>
    %cst_137 = arith.constant dense<0.000000e+00> : vector<8x428xf32>
    %165 = tpu.matmul %164, %158, %cst_137 {dimension_numbers = #tpu.dot_dimension_numbers<[1], [0], [0], [1], [0, 0, 1, 1], [], []>} : vector<8x4xf32>, vector<4x428xf32>, vector<8x428xf32> -> vector<8x428xf32>
    %166 = arith.addf %157, %165 : vector<8x428xf32>
    %167 = vector.extract_strided_slice %1 {offsets = [0, 61], sizes = [4, 428], strides = [1, 1]} : vector<4x512xf32> to vector<4x428xf32>
    %c13_138 = arith.constant 13 : index
    %c0_139 = arith.constant 0 : index
    %c0_140 = arith.constant 0 : index
    %168 = vector.load %arg3[%c13_138, %c0_139, %c0_140] : memref<16x8x4xf32, #tpu.memory_space<vmem>>, vector<1x8x4xf32>
    %169 = vector.shape_cast %168 : vector<1x8x4xf32> to vector<8x4xf32>
    %cst_141 = arith.constant dense<0.000000e+00> : vector<8x428xf32>
    %170 = tpu.matmul %169, %167, %cst_141 {dimension_numbers = #tpu.dot_dimension_numbers<[1], [0], [0], [1], [0, 0, 1, 1], [], []>} : vector<8x4xf32>, vector<4x428xf32>, vector<8x428xf32> -> vector<8x428xf32>
    %171 = arith.addf %162, %170 : vector<8x428xf32>
    %c16 = arith.constant 16 : index
    %c0_142 = arith.constant 0 : index
    %c0_143 = arith.constant 0 : index
    %172 = vector.load %arg4[%c16, %c0_142, %c0_143] : memref<25x8x4xf32, #tpu.memory_space<vmem>>, vector<1x8x4xf32>
    %173 = vector.shape_cast %172 : vector<1x8x4xf32> to vector<8x4xf32>
    %cst_144 = arith.constant dense<0.000000e+00> : vector<8x428xf32>
    %174 = tpu.matmul %173, %167, %cst_144 {dimension_numbers = #tpu.dot_dimension_numbers<[1], [0], [0], [1], [0, 0, 1, 1], [], []>} : vector<8x4xf32>, vector<4x428xf32>, vector<8x428xf32> -> vector<8x428xf32>
    %175 = arith.addf %166, %174 : vector<8x428xf32>
    %176 = vector.extract_strided_slice %1 {offsets = [0, 62], sizes = [4, 428], strides = [1, 1]} : vector<4x512xf32> to vector<4x428xf32>
    %c14_145 = arith.constant 14 : index
    %c0_146 = arith.constant 0 : index
    %c0_147 = arith.constant 0 : index
    %177 = vector.load %arg3[%c14_145, %c0_146, %c0_147] : memref<16x8x4xf32, #tpu.memory_space<vmem>>, vector<1x8x4xf32>
    %178 = vector.shape_cast %177 : vector<1x8x4xf32> to vector<8x4xf32>
    %cst_148 = arith.constant dense<0.000000e+00> : vector<8x428xf32>
    %179 = tpu.matmul %178, %176, %cst_148 {dimension_numbers = #tpu.dot_dimension_numbers<[1], [0], [0], [1], [0, 0, 1, 1], [], []>} : vector<8x4xf32>, vector<4x428xf32>, vector<8x428xf32> -> vector<8x428xf32>
    %180 = arith.addf %171, %179 : vector<8x428xf32>
    %c17 = arith.constant 17 : index
    %c0_149 = arith.constant 0 : index
    %c0_150 = arith.constant 0 : index
    %181 = vector.load %arg4[%c17, %c0_149, %c0_150] : memref<25x8x4xf32, #tpu.memory_space<vmem>>, vector<1x8x4xf32>
    %182 = vector.shape_cast %181 : vector<1x8x4xf32> to vector<8x4xf32>
    %cst_151 = arith.constant dense<0.000000e+00> : vector<8x428xf32>
    %183 = tpu.matmul %182, %176, %cst_151 {dimension_numbers = #tpu.dot_dimension_numbers<[1], [0], [0], [1], [0, 0, 1, 1], [], []>} : vector<8x4xf32>, vector<4x428xf32>, vector<8x428xf32> -> vector<8x428xf32>
    %184 = arith.addf %175, %183 : vector<8x428xf32>
    %185 = vector.extract_strided_slice %1 {offsets = [0, 63], sizes = [4, 428], strides = [1, 1]} : vector<4x512xf32> to vector<4x428xf32>
    %c15_152 = arith.constant 15 : index
    %c0_153 = arith.constant 0 : index
    %c0_154 = arith.constant 0 : index
    %186 = vector.load %arg3[%c15_152, %c0_153, %c0_154] : memref<16x8x4xf32, #tpu.memory_space<vmem>>, vector<1x8x4xf32>
    %187 = vector.shape_cast %186 : vector<1x8x4xf32> to vector<8x4xf32>
    %cst_155 = arith.constant dense<0.000000e+00> : vector<8x428xf32>
    %188 = tpu.matmul %187, %185, %cst_155 {dimension_numbers = #tpu.dot_dimension_numbers<[1], [0], [0], [1], [0, 0, 1, 1], [], []>} : vector<8x4xf32>, vector<4x428xf32>, vector<8x428xf32> -> vector<8x428xf32>
    %189 = arith.addf %180, %188 : vector<8x428xf32>
    %c18 = arith.constant 18 : index
    %c0_156 = arith.constant 0 : index
    %c0_157 = arith.constant 0 : index
    %190 = vector.load %arg4[%c18, %c0_156, %c0_157] : memref<25x8x4xf32, #tpu.memory_space<vmem>>, vector<1x8x4xf32>
    %191 = vector.shape_cast %190 : vector<1x8x4xf32> to vector<8x4xf32>
    %cst_158 = arith.constant dense<0.000000e+00> : vector<8x428xf32>
    %192 = tpu.matmul %191, %185, %cst_158 {dimension_numbers = #tpu.dot_dimension_numbers<[1], [0], [0], [1], [0, 0, 1, 1], [], []>} : vector<8x4xf32>, vector<4x428xf32>, vector<8x428xf32> -> vector<8x428xf32>
    %193 = arith.addf %184, %192 : vector<8x428xf32>
    %194 = vector.extract_strided_slice %1 {offsets = [0, 64], sizes = [4, 428], strides = [1, 1]} : vector<4x512xf32> to vector<4x428xf32>
    %c19 = arith.constant 19 : index
    %c0_159 = arith.constant 0 : index
    %c0_160 = arith.constant 0 : index
    %195 = vector.load %arg4[%c19, %c0_159, %c0_160] : memref<25x8x4xf32, #tpu.memory_space<vmem>>, vector<1x8x4xf32>
    %196 = vector.shape_cast %195 : vector<1x8x4xf32> to vector<8x4xf32>
    %cst_161 = arith.constant dense<0.000000e+00> : vector<8x428xf32>
    %197 = tpu.matmul %196, %194, %cst_161 {dimension_numbers = #tpu.dot_dimension_numbers<[1], [0], [0], [1], [0, 0, 1, 1], [], []>} : vector<8x4xf32>, vector<4x428xf32>, vector<8x428xf32> -> vector<8x428xf32>
    %198 = arith.addf %193, %197 : vector<8x428xf32>
    %199 = vector.extract_strided_slice %1 {offsets = [0, 80], sizes = [4, 428], strides = [1, 1]} : vector<4x512xf32> to vector<4x428xf32>
    %c20 = arith.constant 20 : index
    %c0_162 = arith.constant 0 : index
    %c0_163 = arith.constant 0 : index
    %200 = vector.load %arg4[%c20, %c0_162, %c0_163] : memref<25x8x4xf32, #tpu.memory_space<vmem>>, vector<1x8x4xf32>
    %201 = vector.shape_cast %200 : vector<1x8x4xf32> to vector<8x4xf32>
    %cst_164 = arith.constant dense<0.000000e+00> : vector<8x428xf32>
    %202 = tpu.matmul %201, %199, %cst_164 {dimension_numbers = #tpu.dot_dimension_numbers<[1], [0], [0], [1], [0, 0, 1, 1], [], []>} : vector<8x4xf32>, vector<4x428xf32>, vector<8x428xf32> -> vector<8x428xf32>
    %203 = arith.addf %198, %202 : vector<8x428xf32>
    %204 = vector.extract_strided_slice %1 {offsets = [0, 81], sizes = [4, 428], strides = [1, 1]} : vector<4x512xf32> to vector<4x428xf32>
    %c21 = arith.constant 21 : index
    %c0_165 = arith.constant 0 : index
    %c0_166 = arith.constant 0 : index
    %205 = vector.load %arg4[%c21, %c0_165, %c0_166] : memref<25x8x4xf32, #tpu.memory_space<vmem>>, vector<1x8x4xf32>
    %206 = vector.shape_cast %205 : vector<1x8x4xf32> to vector<8x4xf32>
    %cst_167 = arith.constant dense<0.000000e+00> : vector<8x428xf32>
    %207 = tpu.matmul %206, %204, %cst_167 {dimension_numbers = #tpu.dot_dimension_numbers<[1], [0], [0], [1], [0, 0, 1, 1], [], []>} : vector<8x4xf32>, vector<4x428xf32>, vector<8x428xf32> -> vector<8x428xf32>
    %208 = arith.addf %203, %207 : vector<8x428xf32>
    %209 = vector.extract_strided_slice %1 {offsets = [0, 82], sizes = [4, 428], strides = [1, 1]} : vector<4x512xf32> to vector<4x428xf32>
    %c22 = arith.constant 22 : index
    %c0_168 = arith.constant 0 : index
    %c0_169 = arith.constant 0 : index
    %210 = vector.load %arg4[%c22, %c0_168, %c0_169] : memref<25x8x4xf32, #tpu.memory_space<vmem>>, vector<1x8x4xf32>
    %211 = vector.shape_cast %210 : vector<1x8x4xf32> to vector<8x4xf32>
    %cst_170 = arith.constant dense<0.000000e+00> : vector<8x428xf32>
    %212 = tpu.matmul %211, %209, %cst_170 {dimension_numbers = #tpu.dot_dimension_numbers<[1], [0], [0], [1], [0, 0, 1, 1], [], []>} : vector<8x4xf32>, vector<4x428xf32>, vector<8x428xf32> -> vector<8x428xf32>
    %213 = arith.addf %208, %212 : vector<8x428xf32>
    %214 = vector.extract_strided_slice %1 {offsets = [0, 83], sizes = [4, 428], strides = [1, 1]} : vector<4x512xf32> to vector<4x428xf32>
    %c23 = arith.constant 23 : index
    %c0_171 = arith.constant 0 : index
    %c0_172 = arith.constant 0 : index
    %215 = vector.load %arg4[%c23, %c0_171, %c0_172] : memref<25x8x4xf32, #tpu.memory_space<vmem>>, vector<1x8x4xf32>
    %216 = vector.shape_cast %215 : vector<1x8x4xf32> to vector<8x4xf32>
    %cst_173 = arith.constant dense<0.000000e+00> : vector<8x428xf32>
    %217 = tpu.matmul %216, %214, %cst_173 {dimension_numbers = #tpu.dot_dimension_numbers<[1], [0], [0], [1], [0, 0, 1, 1], [], []>} : vector<8x4xf32>, vector<4x428xf32>, vector<8x428xf32> -> vector<8x428xf32>
    %218 = arith.addf %213, %217 : vector<8x428xf32>
    %219 = vector.extract_strided_slice %1 {offsets = [0, 84], sizes = [4, 428], strides = [1, 1]} : vector<4x512xf32> to vector<4x428xf32>
    %c24 = arith.constant 24 : index
    %c0_174 = arith.constant 0 : index
    %c0_175 = arith.constant 0 : index
    %220 = vector.load %arg4[%c24, %c0_174, %c0_175] : memref<25x8x4xf32, #tpu.memory_space<vmem>>, vector<1x8x4xf32>
    %221 = vector.shape_cast %220 : vector<1x8x4xf32> to vector<8x4xf32>
    %cst_176 = arith.constant dense<0.000000e+00> : vector<8x428xf32>
    %222 = tpu.matmul %221, %219, %cst_176 {dimension_numbers = #tpu.dot_dimension_numbers<[1], [0], [0], [1], [0, 0, 1, 1], [], []>} : vector<8x4xf32>, vector<4x428xf32>, vector<8x428xf32> -> vector<8x428xf32>
    %223 = arith.addf %218, %222 : vector<8x428xf32>
    %224 = vector.extract_strided_slice %135 {offsets = [0, 0], sizes = [8, 400], strides = [1, 1]} : vector<8x428xf32> to vector<8x400xf32>
    %225 = vector.shape_cast %224 : vector<8x400xf32> to vector<8x20x20xf32>
    %226 = vector.extract_strided_slice %225 {offsets = [0, 1, 1], sizes = [8, 16, 16], strides = [1, 1, 1]} : vector<8x20x20xf32> to vector<8x16x16xf32>
    %227 = vector.shape_cast %226 : vector<8x16x16xf32> to vector<8x256xf32>
    %cst_177 = arith.constant 0.000000e+00 : f32
    %228 = vector.broadcast %cst_177 : f32 to vector<8x256xf32>
    %229 = arith.maximumf %227, %228 : vector<8x256xf32>
    %230 = vector.extract_strided_slice %189 {offsets = [0, 0], sizes = [8, 400], strides = [1, 1]} : vector<8x428xf32> to vector<8x400xf32>
    %231 = vector.shape_cast %230 : vector<8x400xf32> to vector<8x20x20xf32>
    %232 = vector.extract_strided_slice %231 {offsets = [0, 1, 1], sizes = [8, 15, 15], strides = [1, 1, 1]} : vector<8x20x20xf32> to vector<8x15x15xf32>
    %233 = vector.shape_cast %232 : vector<8x15x15xf32> to vector<8x225xf32>
    %c0_178 = arith.constant 0 : index
    %c0_179 = arith.constant 0 : index
    %234 = vector.load %arg5[%c0_178, %c0_179] : memref<225x256xf32, #tpu.memory_space<vmem>>, vector<225x256xf32>
    %cst_180 = arith.constant dense<0.000000e+00> : vector<8x256xf32>
    %235 = tpu.matmul %233, %234, %cst_180 {dimension_numbers = #tpu.dot_dimension_numbers<[1], [0], [0], [1], [0, 0, 1, 1], [], []>} : vector<8x225xf32>, vector<225x256xf32>, vector<8x256xf32> -> vector<8x256xf32>
    %236 = arith.addf %229, %235 : vector<8x256xf32>
    %cst_181 = arith.constant 0.000000e+00 : f32
    %237 = vector.broadcast %cst_181 : f32 to vector<8x256xf32>
    %238 = arith.maximumf %236, %237 : vector<8x256xf32>
    %239 = vector.extract_strided_slice %223 {offsets = [0, 0], sizes = [8, 400], strides = [1, 1]} : vector<8x428xf32> to vector<8x400xf32>
    %240 = vector.shape_cast %239 : vector<8x400xf32> to vector<8x20x20xf32>
    %241 = vector.extract_strided_slice %240 {offsets = [0, 0, 0], sizes = [8, 16, 16], strides = [1, 1, 1]} : vector<8x20x20xf32> to vector<8x16x16xf32>
    %242 = vector.shape_cast %241 : vector<8x16x16xf32> to vector<8x256xf32>
    %243 = arith.addf %238, %242 : vector<8x256xf32>
    %cst_182 = arith.constant 0.000000e+00 : f32
    %244 = vector.broadcast %cst_182 : f32 to vector<8x256xf32>
    %245 = arith.maximumf %243, %244 : vector<8x256xf32>
    %c0_183 = arith.constant 0 : index
    %c0_184 = arith.constant 0 : index
    %c0_185 = arith.constant 0 : index
    %246 = vector.load %arg6[%c0_183, %c0_184, %c0_185] : memref<1x8x256xf32, #tpu.memory_space<vmem>>, vector<1x8x256xf32>
    %247 = vector.shape_cast %246 : vector<1x8x256xf32> to vector<8x256xf32>
    %248 = vector.shape_cast %245 : vector<8x256xf32> to vector<1x8x256xf32>
    tpu.vector_store %arg6[%c0_183, %c0_184, %c0_185], %248 {strides = array<i32>} : memref<1x8x256xf32, #tpu.memory_space<vmem>>, vector<1x8x256xf32>,
    return
  }
  func.func @transform_0(%arg0: i32) -> (i32, i32, i32) {
    %c0_i32 = arith.constant 0 : i32
    %c0_i32_0 = arith.constant 0 : i32
    %c0_i32_1 = arith.constant 0 : i32
    return %arg0, %c0_i32, %c0_i32_0 : i32, i32, i32
  }
  func.func @transform_1(%arg0: i32) -> (i32, i32, i32) {
    %c0_i32 = arith.constant 0 : i32
    %c0_i32_0 = arith.constant 0 : i32
    %c0_i32_1 = arith.constant 0 : i32
    %c0_i32_2 = arith.constant 0 : i32
    return %c0_i32, %c0_i32_0, %c0_i32_1 : i32, i32, i32
  }
  func.func @transform_2(%arg0: i32) -> (i32, i32, i32) {
    %c0_i32 = arith.constant 0 : i32
    %c0_i32_0 = arith.constant 0 : i32
    %c0_i32_1 = arith.constant 0 : i32
    %c0_i32_2 = arith.constant 0 : i32
    return %c0_i32, %c0_i32_0, %c0_i32_1 : i32, i32, i32
  }
  func.func @transform_3(%arg0: i32) -> (i32, i32, i32) {
    %c0_i32 = arith.constant 0 : i32
    %c0_i32_0 = arith.constant 0 : i32
    %c0_i32_1 = arith.constant 0 : i32
    %c0_i32_2 = arith.constant 0 : i32
    return %c0_i32, %c0_i32_0, %c0_i32_1 : i32, i32, i32
  }
  func.func @transform_4(%arg0: i32) -> (i32, i32) {
    %c0_i32 = arith.constant 0 : i32
    %c0_i32_0 = arith.constant 0 : i32
    %c0_i32_1 = arith.constant 0 : i32
    return %c0_i32, %c0_i32_0 : i32, i32
  }
  func.func @transform_5(%arg0: i32) -> (i32, i32, i32) {
    %c0_i32 = arith.constant 0 : i32
    %c0_i32_0 = arith.constant 0 : i32
    %c0_i32_1 = arith.constant 0 : i32
    return %arg0, %c0_i32, %c0_i32_0 : i32, i32, i32
  }
}

</mosaic_0001>

<llo_original>
// kernel: tpu_custom_call.1
$region0: #{tpu_custom_call.1}
  #allocation0 [shape = 'u32[]', space=smem, size = 0x4, offset = 0x4, fixed_abs, tag = 'smem constant byte address 0x4 - core index']
  #allocation1 [shape = 'u32[144,128]{1,0:T(1,128)}', space=vmem, size = 0x12000, scoped, tag = 'internal scratch']
  %s0 = inlined_call_operand.vmem [shape: f32[2,4,512], index: 0, kind: input, shape index: {}]
  %s1 = inlined_call_operand.vmem [shape: f32[9,8,4], index: 1, kind: input, shape index: {}]
  %s2 = inlined_call_operand.vmem [shape: f32[16,8,4], index: 2, kind: input, shape index: {}]
  %s3 = inlined_call_operand.vmem [shape: f32[25,8,4], index: 3, kind: input, shape index: {}]
  %s4 = inlined_call_operand.vmem [shape: f32[225,256], index: 4, kind: input, shape index: {}]
  %s5 = inlined_call_operand.hbm [shape: f32[2,8,256], index: 5, kind: output, shape index: {}]
  %s6 = sld [smem:[#allocation0]]
  $region53: #{tpu_custom_call.1} parent=0
    _
  %s8 = ssub.s32 1, %s6
  %s9 = scalar_select 0, %s8, %s6
  $region1: #{tpu_custom_call.1} parent=0
    #allocation2 [shape = 'u8[16384]{0}', space=vmem, size = 0x4000, scoped, tag = 'output window, operand 0']
    #allocation3 [shape = 's32[2]{0}', space=sflag, size = 0x8, scoped, tag = 'scoped memory for tpu_custom_call.1']
    %10 = vsyncpa [#allocation3], 0
    %s11 = scalar_lea.sflag [#allocation3], 1
    %12 = vsyncpa %s11, 0
    loop: start=0, step=1, limit=4
    $region2: #{tpu_custom_call.1} parent=1 // loop_pre_header
      _
    $region3: #{tpu_custom_call.1} parent=1 // loop_header
      %s14 = sphi 0, %s18
      %p15 = scmp.ge.s32.totalorder %s14, 4
      %s24 = sphi 0, %s26
      %s27 = sphi 0, %s24
      %s28 = sphi 0, %s27
      %s44 = sphi 0, %s28
      %s48 = sphi 0, %s48
      %s50 = sphi 0, %s48
      %s51 = sphi 0, %s50
      %s65 = sphi 0, %s51
      %s69 = sphi 0, %s69
      %s71 = sphi 0, %s69
      %s72 = sphi 0, %s71
      %s86 = sphi 0, %s72
      %s90 = sphi 0, %s90
      %s92 = sphi 0, %s90
      %s93 = sphi 0, %s92
      %s107 = sphi 0, %s93
      %s111 = sphi 0, %s111
      %s113 = sphi 0, %s111
      %s114 = sphi 0, %s113
      %s128 = sphi 0, %s114
      %s134 = sphi 0, %s136
      %s137 = sphi 0, %s134
      %s138 = sphi 0, %s137
      %s154 = sphi 0, %s138
    $region4: #{tpu_custom_call.1} parent=1 // loop_header_branch
      %17 = sbr.rel (%p15) target = $region8
    $region5: #{tpu_custom_call.1} parent=1 // loop_body
      %s19 = ssub.s32 %s14, 1
      %s20 = ssub.s32 %s14, 2
      %s21 = sadd.s32 %s14, 1
      %s22 = ssub.s32 %s14, %s21
      %p23 = scmp.eq.s32.totalorder %s22, 0
      %s25 = sadd.s32 %s24, 1
      %s26 = scalar_select %p23, %s24, %s25
      %p29 = pneg %p23
      %p30 = scmp.eq.s32.totalorder %s14, 1
      %p31 = por %p29, %p30
      %p32 = scmp.ne.s32.totalorder %s24, %s27
      %p33 = scmp.eq.s32.totalorder %s14, 0
      %p34 = por %p32, %p33
      %p35 = scmp.ne.s32.totalorder %s24, %s27
      %p36 = scmp.eq.s32.totalorder %s19, 1
      %p37 = por %p35, %p36
      %p38 = scmp.ne.s32.totalorder %s27, %s28
      %p39 = scmp.eq.s32.totalorder %s19, 0
      %p40 = por %p38, %p39
      %p41 = scmp.ne.s32.totalorder %s27, %s28
      %p42 = scmp.eq.s32.totalorder %s20, 1
      %p43 = por %p41, %p42
      %p45 = scmp.ne.s32.totalorder %s28, %s44
      %p46 = scmp.eq.s32.totalorder %s20, 0
      %p47 = por %p45, %p46
      %s49 = sadd.s32 %s48, 1
      %p52 = scmp.eq.s32.totalorder %s14, 1
      %p53 = scmp.ne.s32.totalorder %s48, %s50
      %p54 = scmp.eq.s32.totalorder %s14, 0
      %p55 = por %p53, %p54
      %p56 = scmp.ne.s32.totalorder %s48, %s50
      %p57 = scmp.eq.s32.totalorder %s19, 1
      %p58 = por %p56, %p57
      %p59 = scmp.ne.s32.totalorder %s50, %s51
      %p60 = scmp.eq.s32.totalorder %s19, 0
      %p61 = por %p59, %p60
      %p62 = scmp.ne.s32.totalorder %s50, %s51
      %p63 = scmp.eq.s32.totalorder %s20, 1
      %p64 = por %p62, %p63
      %p66 = scmp.ne.s32.totalorder %s51, %s65
      %p67 = scmp.eq.s32.totalorder %s20, 0
      %p68 = por %p66, %p67
      %s70 = sadd.s32 %s69, 1
      %p73 = scmp.eq.s32.totalorder %s14, 1
      %p74 = scmp.ne.s32.totalorder %s69, %s71
      %p75 = scmp.eq.s32.totalorder %s14, 0
      %p76 = por %p74, %p75
      %p77 = scmp.ne.s32.totalorder %s69, %s71
      %p78 = scmp.eq.s32.totalorder %s19, 1
      %p79 = por %p77, %p78
      %p80 = scmp.ne.s32.totalorder %s71, %s72
      %p81 = scmp.eq.s32.totalorder %s19, 0
      %p82 = por %p80, %p81
      %p83 = scmp.ne.s32.totalorder %s71, %s72
      %p84 = scmp.eq.s32.totalorder %s20, 1
      %p85 = por %p83, %p84
      %p87 = scmp.ne.s32.totalorder %s72, %s86
      %p88 = scmp.eq.s32.totalorder %s20, 0
      %p89 = por %p87, %p88
      %s91 = sadd.s32 %s90, 1
      %p94 = scmp.eq.s32.totalorder %s14, 1
      %p95 = scmp.ne.s32.totalorder %s90, %s92
      %p96 = scmp.eq.s32.totalorder %s14, 0
      %p97 = por %p95, %p96
      %p98 = scmp.ne.s32.totalorder %s90, %s92
      %p99 = scmp.eq.s32.totalorder %s19, 1
      %p100 = por %p98, %p99
      %p101 = scmp.ne.s32.totalorder %s92, %s93
      %p102 = scmp.eq.s32.totalorder %s19, 0
      %p103 = por %p101, %p102
      %p104 = scmp.ne.s32.totalorder %s92, %s93
      %p105 = scmp.eq.s32.totalorder %s20, 1
      %p106 = por %p104, %p105
      %p108 = scmp.ne.s32.totalorder %s93, %s107
      %p109 = scmp.eq.s32.totalorder %s20, 0
      %p110 = por %p108, %p109
      %s112 = sadd.s32 %s111, 1
      %p115 = scmp.eq.s32.totalorder %s14, 1
      %p116 = scmp.ne.s32.totalorder %s111, %s113
      %p117 = scmp.eq.s32.totalorder %s14, 0
      %p118 = por %p116, %p117
      %p119 = scmp.ne.s32.totalorder %s111, %s113
      %p120 = scmp.eq.s32.totalorder %s19, 1
      %p121 = por %p119, %p120
      %p122 = scmp.ne.s32.totalorder %s113, %s114
      %p123 = scmp.eq.s32.totalorder %s19, 0
      %p124 = por %p122, %p123
      %p125 = scmp.ne.s32.totalorder %s113, %s114
      %p126 = scmp.eq.s32.totalorder %s20, 1
      %p127 = por %p125, %p126
      %p129 = scmp.ne.s32.totalorder %s114, %s128
      %p130 = scmp.eq.s32.totalorder %s20, 0
      %p131 = por %p129, %p130
      %s132 = ssub.s32 %s14, %s21
      %p133 = scmp.eq.s32.totalorder %s132, 0
      %s135 = sadd.s32 %s134, 1
      %s136 = scalar_select %p133, %s134, %s135
      %p139 = pneg %p133
      %p140 = scmp.eq.s32.totalorder %s14, 1
      %p141 = por %p139, %p140
      %p142 = scmp.ne.s32.totalorder %s134, %s137
      %p143 = scmp.eq.s32.totalorder %s14, 0
      %p144 = por %p142, %p143
      %p145 = scmp.ne.s32.totalorder %s134, %s137
      %p146 = scmp.eq.s32.totalorder %s19, 1
      %p147 = por %p145, %p146
      %p148 = scmp.ne.s32.totalorder %s137, %s138
      %p149 = scmp.eq.s32.totalorder %s19, 0
      %p150 = por %p148, %p149
      %p151 = scmp.ne.s32.totalorder %s137, %s138
      %p152 = scmp.eq.s32.totalorder %s20, 1
      %p153 = por %p151, %p152
      %p155 = scmp.ne.s32.totalorder %s138, %s154
      %p156 = scmp.eq.s32.totalorder %s20, 0
      %p157 = por %p155, %p156
      %p158 = scmp.le.s32.totalorder 1, %s14
      %p159 = scmp.lt.s32.totalorder %s14, 3
      %p160 = pnand %p158, %p159
      %p161 = pneg %p160
      // Predicated region
      $region9: #{tpu_custom_call.1} parent=5 // pred_check
        _
      $region10: #{tpu_custom_call.1} parent=5 // pred_check_branch
        %163 = sbr.rel (%p160) target = $region12
      $region11: #{tpu_custom_call.1} parent=5 // pred_region
        %s164 = ssub.s32 %s14, 1
        // Predicated region
        $region13: #{tpu_custom_call.1} parent=11 // pred_check
          %p165 = pneg %p61
        $region14: #{tpu_custom_call.1} parent=11 // pred_check_branch
          %167 = sbr.rel (%p165) target = $region16
        $region15: #{tpu_custom_call.1} parent=11 // pred_region
          _
        $region16: #{tpu_custom_call.1} parent=11 // pred_fallthru
          _
        // Predicated region
        $region17: #{tpu_custom_call.1} parent=11 // pred_check
          %p168 = pneg %p82
        $region18: #{tpu_custom_call.1} parent=11 // pred_check_branch
          %170 = sbr.rel (%p168) target = $region20
        $region19: #{tpu_custom_call.1} parent=11 // pred_region
          _
        $region20: #{tpu_custom_call.1} parent=11 // pred_fallthru
          _
        // Predicated region
        $region21: #{tpu_custom_call.1} parent=11 // pred_check
          %p171 = pneg %p103
        $region22: #{tpu_custom_call.1} parent=11 // pred_check_branch
          %173 = sbr.rel (%p171) target = $region24
        $region23: #{tpu_custom_call.1} parent=11 // pred_region
          _
        $region24: #{tpu_custom_call.1} parent=11 // pred_fallthru
          _
        // Predicated region
        $region25: #{tpu_custom_call.1} parent=11 // pred_check
          %p174 = pneg %p124
        $region26: #{tpu_custom_call.1} parent=11 // pred_check_branch
          %176 = sbr.rel (%p174) target = $region28
        $region27: #{tpu_custom_call.1} parent=11 // pred_region
          _
        $region28: #{tpu_custom_call.1} parent=11 // pred_fallthru
          _
      $region12: #{tpu_custom_call.1} parent=5 // pred_fallthru
        _
      %p177 = scmp.lt.s32.totalorder %s14, 2
      // Predicated region
      $region29: #{tpu_custom_call.1} parent=5 // pred_check
        %p178 = pneg %p177
      $region30: #{tpu_custom_call.1} parent=5 // pred_check_branch
        %180 = sbr.rel (%p178) target = $region32
      $region31: #{tpu_custom_call.1} parent=5 // pred_region
        // Predicated region
        $region33: #{tpu_custom_call.1} parent=31 // pred_check
          %p181 = pneg %p34
        $region34: #{tpu_custom_call.1} parent=31 // pred_check_branch
          %183 = sbr.rel (%p181) target = $region36
        $region35: #{tpu_custom_call.1} parent=31 // pred_region
          %p184 = scmp.lt.s32.totalorder %s14, 1
          %s185 = scalar_select %p184, %s14, 1
          %s186 = smul.addr %s185, 4
          %s187 = smul.addr %s186, 4
          %s188 = scalar_lea.vmem %s0, %s187
        $region36: #{tpu_custom_call.1} parent=31 // pred_fallthru
          _
      $region32: #{tpu_custom_call.1} parent=5 // pred_fallthru
        _
      %p189 = scmp.le.s32.totalorder 1, %s14
      %p190 = scmp.lt.s32.totalorder %s14, 3
      %p191 = pnand %p189, %p190
      %p192 = pneg %p191
      // Predicated region
      $region37: #{tpu_custom_call.1} parent=5 // pred_check
        _
      $region38: #{tpu_custom_call.1} parent=5 // pred_check_branch
        %194 = sbr.rel (%p191) target = $region40
      $region39: #{tpu_custom_call.1} parent=5 // pred_region
        %s195 = ssub.s32 %s14, 1
        %p196 = scmp.lt.s32.totalorder %s19, 1
        %s197 = scalar_select %p196, %s19, 1
        %s198 = smul.addr %s197, 4
        %s199 = smul.addr %s198, 4
        %s200 = scalar_lea.vmem %s0, %s199
        %p201 = pneg %p40
        %p202 = pneg %p37
        %p203 = pneg %p61
        %p204 = pneg %p58
        %p205 = pneg %p82
        %p206 = pneg %p79
        %p207 = pneg %p103
        %p208 = pneg %p100
        %p209 = pneg %p124
        %p210 = pneg %p121
        %p211 = pneg %p150
        %p212 = pneg %p147
        %s213 = sand.u32 %s137, 1
        %s214 = scalar_lea.sflag [#allocation3], %s213
        %s215 = sand.u32 %s137, 1
        %s216 = smul.addr %s215, 16
        %s217 = scalar_lea.vmem [#allocation2], %s216
        %p218 = scmp.lt.s32.totalorder %s19, 1
        %s219 = scalar_select %p218, %s19, 1
        %s220 = smul.addr %s219, 4
        %s221 = smul.addr %s220, 4
        %s222 = scalar_lea.vmem %s0, %s221
        %v223 = vld [vmem:[%s222] sm:$0xff]
        %v224 = vld [vmem:[%s222 + $0x8] sm:$0xff]
        %v225 = vld [vmem:[%s1] sm:$0xff]
        %v226 = vld [vmem:[%s2] sm:$0xff]
        %v227 = vld [vmem:[%s3] sm:$0xff]
        %s228 = scalar_lea.vmem %s1, 8
        %v229 = vld [vmem:[%s228] sm:$0xff]
        %v232 = vcombine.high %v223, %v223
        %v233 = vcombine.high %v224, %v224
        %234 = vrot.lane.b32.xlu0 %v223, 127
        %v235 = vpop.permute.xlu0 %234
        %236 = vrot.lane.b32.xlu0 %v232, 127
        %v237 = vpop.permute.xlu0 %236
        %238 = vrot.lane.b32.xlu0 %v224, 127
        %v239 = vpop.permute.xlu0 %238
        %240 = vrot.lane.b32.xlu0 %v233, 127
        %v241 = vpop.permute.xlu0 %240
        %vm242 = vcmask 1039360
        %v243 = vsel %vm242, %v235, %v237
        %v244 = vsel %vm242, %v237, %v239
        %v245 = vsel %vm242, %v239, %v241
        %vm246 = vcmask 31744
        %v248 = vsel %vm246, %v229, 0
        %vm250 = vcmask 1043456
        %v251 = vsel %vm250, %v243, 0
        %v253 = vsel %vm250, %v244, 0
        %v255 = vsel %vm250, %v245, 0
        %v257 = vsel %vm250, %v241, 0
        %259 = vmatprep.subr.mxu0 0.0
        %260 = vmatpush1.msra.mxu0 0.0
        %261 = vmatprep.subr.mxu0 0.0
        %262 = vmatpush1.msra.mxu0 0.0
        %263 = vmatprep.subr.mxu0 0.0
        %264 = vmatpush1.msra.mxu0 0.0
        %265 = vmatprep.subr.mxu0 0.0
        %266 = vmatpush1.msra.mxu0 0.0
        %267 = vmatprep.subr.mxu0 0.0
        %268 = vmatpush1.msra.mxu0 0.0
        %269 = vmatprep.subr.mxu0 0.0
        %270 = vmatpush1.msra.mxu0 0.0
        %271 = vmatprep.subr.mxu0 0.0
        %272 = vmatpush1.msra.mxu0 0.0
        %273 = vmatprep.subr.mxu0 0.0
        %274 = vmatpush1.msra.mxu0 0.0
        %275 = vmatprep.subr.mxu0 0.0
        %276 = vmatpush1.msra.mxu0 0.0
        %277 = vmatprep.subr.mxu0 0.0
        %278 = vmatpush1.msra.mxu0 0.0
        %279 = vmatprep.subr.mxu0 0.0
        %280 = vmatpush1.msra.mxu0 0.0
        %281 = vmatprep.subr.mxu0 0.0
        %282 = vmatpush1.msra.mxu0 0.0
        %283 = vmatprep.subr.mxu0 0.0
        %284 = vmatpush1.msra.mxu0 0.0
        %285 = vmatprep.subr.mxu0 0.0
        %286 = vmatpush1.msra.mxu0 0.0
        %287 = vmatprep.subr.mxu0 0.0
        %288 = vmatpush1.msra.mxu0 0.0
        %289 = vmatprep.subr.mxu0 %v253
        %290 = vmatpush1.msra.mxu0 %v251
        %291 = vmatprep.subr.mxu0 0.0
        %292 = vmatpush2.msra.mxu0 0.0
        %293 = vmatprep.subr.mxu0 0.0
        %294 = vmatpush2.msra.mxu0 0.0
        %295 = vmatprep.subr.mxu0 0.0
        %296 = vmatpush2.msra.mxu0 0.0
        %297 = vmatprep.subr.mxu0 0.0
        %298 = vmatpush2.msra.mxu0 0.0
        %299 = vmatprep.subr.mxu0 0.0
        %300 = vmatpush2.msra.mxu0 0.0
        %301 = vmatprep.subr.mxu0 0.0
        %302 = vmatpush2.msra.mxu0 0.0
        %303 = vmatprep.subr.mxu0 0.0
        %304 = vmatpush2.msra.mxu0 0.0
        %305 = vmatprep.subr.mxu0 0.0
        %306 = vmatpush2.msra.mxu0 0.0
        %307 = vmatprep.subr.mxu0 0.0
        %308 = vmatpush2.msra.mxu0 0.0
        %309 = vmatprep.subr.mxu0 0.0
        %310 = vmatpush2.msra.mxu0 0.0
        %311 = vmatprep.subr.mxu0 0.0
        %312 = vmatpush2.msra.mxu0 0.0
        %313 = vmatprep.subr.mxu0 0.0
        %314 = vmatpush2.msra.mxu0 0.0
        %315 = vmatprep.subr.mxu0 0.0
        %316 = vmatpush2.msra.mxu0 0.0
        %317 = vmatprep.subr.mxu0 0.0
        %318 = vmatpush2.msra.mxu0 0.0
        %319 = vmatprep.subr.mxu0 0.0
        %320 = vmatpush2.msra.mxu0 0.0
        %321 = vmatprep.subr.mxu0 0.0
        %322 = vmatpush2.msra.mxu0 0.0
        %323 = vmatprep.mubr.f32.mxu0 0.0
        %324 = vmatmul.mubr.f32.gmra.mxu0 %v248
        %v325 = vpop.f32.mrf.mxu0
        %v326 = vadd.f32 0.0, %v325
        %v327 = vpop.f32.mrf.mxu0
        %v328 = vadd.f32 0.0, %v327
        %329 = vdwg.mxu0
        %330 = vmatprep.subr.mxu0 0.0
        %331 = vmatpush1.msra.mxu0 0.0
        %332 = vmatprep.subr.mxu0 0.0
        %333 = vmatpush1.msra.mxu0 0.0
        %334 = vmatprep.subr.mxu0 0.0
        %335 = vmatpush1.msra.mxu0 0.0
        %336 = vmatprep.subr.mxu0 0.0
        %337 = vmatpush1.msra.mxu0 0.0
        %338 = vmatprep.subr.mxu0 0.0
        %339 = vmatpush1.msra.mxu0 0.0
        %340 = vmatprep.subr.mxu0 0.0
        %341 = vmatpush1.msra.mxu0 0.0
        %342 = vmatprep.subr.mxu0 0.0
        %343 = vmatpush1.msra.mxu0 0.0
        %344 = vmatprep.subr.mxu0 0.0
        %345 = vmatpush1.msra.mxu0 0.0
        %346 = vmatprep.subr.mxu0 0.0
        %347 = vmatpush1.msra.mxu0 0.0
        %348 = vmatprep.subr.mxu0 0.0
        %349 = vmatpush1.msra.mxu0 0.0
        %350 = vmatprep.subr.mxu0 0.0
        %351 = vmatpush1.msra.mxu0 0.0
        %352 = vmatprep.subr.mxu0 0.0
        %353 = vmatpush1.msra.mxu0 0.0
        %354 = vmatprep.subr.mxu0 0.0
        %355 = vmatpush1.msra.mxu0 0.0
        %356 = vmatprep.subr.mxu0 0.0
        %357 = vmatpush1.msra.mxu0 0.0
        %358 = vmatprep.subr.mxu0 0.0
        %359 = vmatpush1.msra.mxu0 0.0
        %360 = vmatprep.subr.mxu0 %v257
        %361 = vmatpush1.msra.mxu0 %v255
        %362 = vmatprep.subr.mxu0 0.0
        %363 = vmatpush2.msra.mxu0 0.0
        %364 = vmatprep.subr.mxu0 0.0
        %365 = vmatpush2.msra.mxu0 0.0
        %366 = vmatprep.subr.mxu0 0.0
        %367 = vmatpush2.msra.mxu0 0.0
        %368 = vmatprep.subr.mxu0 0.0
        %369 = vmatpush2.msra.mxu0 0.0
        %370 = vmatprep.subr.mxu0 0.0
        %371 = vmatpush2.msra.mxu0 0.0
        %372 = vmatprep.subr.mxu0 0.0
        %373 = vmatpush2.msra.mxu0 0.0
        %374 = vmatprep.subr.mxu0 0.0
        %375 = vmatpush2.msra.mxu0 0.0
        %376 = vmatprep.subr.mxu0 0.0
        %377 = vmatpush2.msra.mxu0 0.0
        %378 = vmatprep.subr.mxu0 0.0
        %379 = vmatpush2.msra.mxu0 0.0
        %380 = vmatprep.subr.mxu0 0.0
        %381 = vmatpush2.msra.mxu0 0.0
        %382 = vmatprep.subr.mxu0 0.0
        %383 = vmatpush2.msra.mxu0 0.0
        %384 = vmatprep.subr.mxu0 0.0
        %385 = vmatpush2.msra.mxu0 0.0
        %386 = vmatprep.subr.mxu0 0.0
        %387 = vmatpush2.msra.mxu0 0.0
        %388 = vmatprep.subr.mxu0 0.0
        %389 = vmatpush2.msra.mxu0 0.0
        %390 = vmatprep.subr.mxu0 0.0
        %391 = vmatpush2.msra.mxu0 0.0
        %392 = vmatprep.subr.mxu0 0.0
        %393 = vmatpush2.msra.mxu0 0.0
        %394 = vmatprep.mubr.f32.mxu0 0.0
        %395 = vmatmul.mubr.f32.gmra.mxu0 %v248
        %v396 = vpop.f32.mrf.mxu0
        %v397 = vadd.f32 0.0, %v396
        %v398 = vpop.f32.mrf.mxu0
        %v399 = vadd.f32 0.0, %v398
        %400 = vdwg.mxu0
        %v402 = vsel %vm246, %v225, 0
        %v404 = vsel %vm250, %v223, 0
        %v406 = vsel %vm250, %v232, 0
        %v408 = vsel %vm250, %v224, 0
        %v410 = vsel %vm250, %v233, 0
        %412 = vmatprep.subr.mxu0 0.0
        %413 = vmatpush1.msra.mxu0 0.0
        %414 = vmatprep.subr.mxu0 0.0
        %415 = vmatpush1.msra.mxu0 0.0
        %416 = vmatprep.subr.mxu0 0.0
        %417 = vmatpush1.msra.mxu0 0.0
        %418 = vmatprep.subr.mxu0 0.0
        %419 = vmatpush1.msra.mxu0 0.0
        %420 = vmatprep.subr.mxu0 0.0
        %421 = vmatpush1.msra.mxu0 0.0
        %422 = vmatprep.subr.mxu0 0.0
        %423 = vmatpush1.msra.mxu0 0.0
        %424 = vmatprep.subr.mxu0 0.0
        %425 = vmatpush1.msra.mxu0 0.0
        %426 = vmatprep.subr.mxu0 0.0
        %427 = vmatpush1.msra.mxu0 0.0
        %428 = vmatprep.subr.mxu0 0.0
        %429 = vmatpush1.msra.mxu0 0.0
        %430 = vmatprep.subr.mxu0 0.0
        %431 = vmatpush1.msra.mxu0 0.0
        %432 = vmatprep.subr.mxu0 0.0
        %433 = vmatpush1.msra.mxu0 0.0
        %434 = vmatprep.subr.mxu0 0.0
        %435 = vmatpush1.msra.mxu0 0.0
        %436 = vmatprep.subr.mxu0 0.0
        %437 = vmatpush1.msra.mxu0 0.0
        %438 = vmatprep.subr.mxu0 0.0
        %439 = vmatpush1.msra.mxu0 0.0
        %440 = vmatprep.subr.mxu0 0.0
        %441 = vmatpush1.msra.mxu0 0.0
        %442 = vmatprep.subr.mxu0 %v406
        %443 = vmatpush1.msra.mxu0 %v404
        %444 = vmatprep.subr.mxu0 0.0
        %445 = vmatpush2.msra.mxu0 0.0
        %446 = vmatprep.subr.mxu0 0.0
        %447 = vmatpush2.msra.mxu0 0.0
        %448 = vmatprep.subr.mxu0 0.0
        %449 = vmatpush2.msra.mxu0 0.0
        %450 = vmatprep.subr.mxu0 0.0
        %451 = vmatpush2.msra.mxu0 0.0
        %452 = vmatprep.subr.mxu0 0.0
        %453 = vmatpush2.msra.mxu0 0.0
        %454 = vmatprep.subr.mxu0 0.0
        %455 = vmatpush2.msra.mxu0 0.0
        %456 = vmatprep.subr.mxu0 0.0
        %457 = vmatpush2.msra.mxu0 0.0
        %458 = vmatprep.subr.mxu0 0.0
        %459 = vmatpush2.msra.mxu0 0.0
        %460 = vmatprep.subr.mxu0 0.0
        %461 = vmatpush2.msra.mxu0 0.0
        %462 = vmatprep.subr.mxu0 0.0
        %463 = vmatpush2.msra.mxu0 0.0
        %464 = vmatprep.subr.mxu0 0.0
        %465 = vmatpush2.msra.mxu0 0.0
        %466 = vmatprep.subr.mxu0 0.0
        %467 = vmatpush2.msra.mxu0 0.0
        %468 = vmatprep.subr.mxu0 0.0
        %469 = vmatpush2.msra.mxu0 0.0
        %470 = vmatprep.subr.mxu0 0.0
        %471 = vmatpush2.msra.mxu0 0.0
        %472 = vmatprep.subr.mxu0 0.0
        %473 = vmatpush2.msra.mxu0 0.0
        %474 = vmatprep.subr.mxu0 0.0
        %475 = vmatpush2.msra.mxu0 0.0
        %476 = vmatprep.mubr.f32.mxu0 0.0
        %477 = vmatmul.mubr.f32.gmra.mxu0 %v402
        %v478 = vpop.f32.mrf.mxu0
        %v479 = vadd.f32 %v326, %v478
        %v480 = vpop.f32.mrf.mxu0
        %v481 = vadd.f32 %v328, %v480
        %482 = vdwg.mxu0
        %483 = vmatprep.subr.mxu0 0.0
        %484 = vmatpush1.msra.mxu0 0.0
        %485 = vmatprep.subr.mxu0 0.0
        %486 = vmatpush1.msra.mxu0 0.0
        %487 = vmatprep.subr.mxu0 0.0
        %488 = vmatpush1.msra.mxu0 0.0
        %489 = vmatprep.subr.mxu0 0.0
        %490 = vmatpush1.msra.mxu0 0.0
        %491 = vmatprep.subr.mxu0 0.0
        %492 = vmatpush1.msra.mxu0 0.0
        %493 = vmatprep.subr.mxu0 0.0
        %494 = vmatpush1.msra.mxu0 0.0
        %495 = vmatprep.subr.mxu0 0.0
        %496 = vmatpush1.msra.mxu0 0.0
        %497 = vmatprep.subr.mxu0 0.0
        %498 = vmatpush1.msra.mxu0 0.0
        %499 = vmatprep.subr.mxu0 0.0
        %500 = vmatpush1.msra.mxu0 0.0
        %501 = vmatprep.subr.mxu0 0.0
        %502 = vmatpush1.msra.mxu0 0.0
        %503 = vmatprep.subr.mxu0 0.0
        %504 = vmatpush1.msra.mxu0 0.0
        %505 = vmatprep.subr.mxu0 0.0
        %506 = vmatpush1.msra.mxu0 0.0
        %507 = vmatprep.subr.mxu0 0.0
        %508 = vmatpush1.msra.mxu0 0.0
        %509 = vmatprep.subr.mxu0 0.0
        %510 = vmatpush1.msra.mxu0 0.0
        %511 = vmatprep.subr.mxu0 0.0
        %512 = vmatpush1.msra.mxu0 0.0
        %513 = vmatprep.subr.mxu0 %v410
        %514 = vmatpush1.msra.mxu0 %v408
        %515 = vmatprep.subr.mxu0 0.0
        %516 = vmatpush2.msra.mxu0 0.0
        %517 = vmatprep.subr.mxu0 0.0
        %518 = vmatpush2.msra.mxu0 0.0
        %519 = vmatprep.subr.mxu0 0.0
        %520 = vmatpush2.msra.mxu0 0.0
        %521 = vmatprep.subr.mxu0 0.0
        %522 = vmatpush2.msra.mxu0 0.0
        %523 = vmatprep.subr.mxu0 0.0
        %524 = vmatpush2.msra.mxu0 0.0
        %525 = vmatprep.subr.mxu0 0.0
        %526 = vmatpush2.msra.mxu0 0.0
        %527 = vmatprep.subr.mxu0 0.0
        %528 = vmatpush2.msra.mxu0 0.0
        %529 = vmatprep.subr.mxu0 0.0
        %530 = vmatpush2.msra.mxu0 0.0
        %531 = vmatprep.subr.mxu0 0.0
        %532 = vmatpush2.msra.mxu0 0.0
        %533 = vmatprep.subr.mxu0 0.0
        %534 = vmatpush2.msra.mxu0 0.0
        %535 = vmatprep.subr.mxu0 0.0
        %536 = vmatpush2.msra.mxu0 0.0
        %537 = vmatprep.subr.mxu0 0.0
        %538 = vmatpush2.msra.mxu0 0.0
        %539 = vmatprep.subr.mxu0 0.0
        %540 = vmatpush2.msra.mxu0 0.0
        %541 = vmatprep.subr.mxu0 0.0
        %542 = vmatpush2.msra.mxu0 0.0
        %543 = vmatprep.subr.mxu0 0.0
        %544 = vmatpush2.msra.mxu0 0.0
        %545 = vmatprep.subr.mxu0 0.0
        %546 = vmatpush2.msra.mxu0 0.0
        %547 = vmatprep.mubr.f32.mxu0 0.0
        %548 = vmatmul.mubr.f32.gmra.mxu0 %v402
        %v549 = vpop.f32.mrf.mxu0
        %v550 = vadd.f32 %v397, %v549
        %v551 = vpop.f32.mrf.mxu0
        %v552 = vadd.f32 %v399, %v551
        %553 = vdwg.mxu0
        %s554 = scalar_lea.vmem %s2, 8
        %v555 = vld [vmem:[%s554] sm:$0xff]
        %v557 = vsel %vm246, %v555, 0
        %559 = vmatprep.subr.mxu0 0.0
        %560 = vmatpush1.msra.mxu0 0.0
        %561 = vmatprep.subr.mxu0 0.0
        %562 = vmatpush1.msra.mxu0 0.0
        %563 = vmatprep.subr.mxu0 0.0
        %564 = vmatpush1.msra.mxu0 0.0
        %565 = vmatprep.subr.mxu0 0.0
        %566 = vmatpush1.msra.mxu0 0.0
        %567 = vmatprep.subr.mxu0 0.0
        %568 = vmatpush1.msra.mxu0 0.0
        %569 = vmatprep.subr.mxu0 0.0
        %570 = vmatpush1.msra.mxu0 0.0
        %571 = vmatprep.subr.mxu0 0.0
        %572 = vmatpush1.msra.mxu0 0.0
        %573 = vmatprep.subr.mxu0 0.0
        %574 = vmatpush1.msra.mxu0 0.0
        %575 = vmatprep.subr.mxu0 0.0
        %576 = vmatpush1.msra.mxu0 0.0
        %577 = vmatprep.subr.mxu0 0.0
        %578 = vmatpush1.msra.mxu0 0.0
        %579 = vmatprep.subr.mxu0 0.0
        %580 = vmatpush1.msra.mxu0 0.0
        %581 = vmatprep.subr.mxu0 0.0
        %582 = vmatpush1.msra.mxu0 0.0
        %583 = vmatprep.subr.mxu0 0.0
        %584 = vmatpush1.msra.mxu0 0.0
        %585 = vmatprep.subr.mxu0 0.0
        %586 = vmatpush1.msra.mxu0 0.0
        %587 = vmatprep.subr.mxu0 0.0
        %588 = vmatpush1.msra.mxu0 0.0
        %589 = vmatprep.subr.mxu0 %v253
        %590 = vmatpush1.msra.mxu0 %v251
        %591 = vmatprep.subr.mxu0 0.0
        %592 = vmatpush2.msra.mxu0 0.0
        %593 = vmatprep.subr.mxu0 0.0
        %594 = vmatpush2.msra.mxu0 0.0
        %595 = vmatprep.subr.mxu0 0.0
        %596 = vmatpush2.msra.mxu0 0.0
        %597 = vmatprep.subr.mxu0 0.0
        %598 = vmatpush2.msra.mxu0 0.0
        %599 = vmatprep.subr.mxu0 0.0
        %600 = vmatpush2.msra.mxu0 0.0
        %601 = vmatprep.subr.mxu0 0.0
        %602 = vmatpush2.msra.mxu0 0.0
        %603 = vmatprep.subr.mxu0 0.0
        %604 = vmatpush2.msra.mxu0 0.0
        %605 = vmatprep.subr.mxu0 0.0
        %606 = vmatpush2.msra.mxu0 0.0
        %607 = vmatprep.subr.mxu0 0.0
        %608 = vmatpush2.msra.mxu0 0.0
        %609 = vmatprep.subr.mxu0 0.0
        %610 = vmatpush2.msra.mxu0 0.0
        %611 = vmatprep.subr.mxu0 0.0
        %612 = vmatpush2.msra.mxu0 0.0
        %613 = vmatprep.subr.mxu0 0.0
        %614 = vmatpush2.msra.mxu0 0.0
        %615 = vmatprep.subr.mxu0 0.0
        %616 = vmatpush2.msra.mxu0 0.0
        %617 = vmatprep.subr.mxu0 0.0
        %618 = vmatpush2.msra.mxu0 0.0
        %619 = vmatprep.subr.mxu0 0.0
        %620 = vmatpush2.msra.mxu0 0.0
        %621 = vmatprep.subr.mxu0 0.0
        %622 = vmatpush2.msra.mxu0 0.0
        %623 = vmatprep.mubr.f32.mxu0 0.0
        %624 = vmatmul.mubr.f32.gmra.mxu0 %v557
        %v625 = vpop.f32.mrf.mxu0
        %v626 = vadd.f32 0.0, %v625
        %v627 = vpop.f32.mrf.mxu0
        %v628 = vadd.f32 0.0, %v627
        %629 = vdwg.mxu0
        %630 = vmatprep.subr.mxu0 0.0
        %631 = vmatpush1.msra.mxu0 0.0
        %632 = vmatprep.subr.mxu0 0.0
        %633 = vmatpush1.msra.mxu0 0.0
        %634 = vmatprep.subr.mxu0 0.0
        %635 = vmatpush1.msra.mxu0 0.0
        %636 = vmatprep.subr.mxu0 0.0
        %637 = vmatpush1.msra.mxu0 0.0
        %638 = vmatprep.subr.mxu0 0.0
        %639 = vmatpush1.msra.mxu0 0.0
        %640 = vmatprep.subr.mxu0 0.0
        %641 = vmatpush1.msra.mxu0 0.0
        %642 = vmatprep.subr.mxu0 0.0
        %643 = vmatpush1.msra.mxu0 0.0
        %644 = vmatprep.subr.mxu0 0.0
        %645 = vmatpush1.msra.mxu0 0.0
        %646 = vmatprep.subr.mxu0 0.0
        %647 = vmatpush1.msra.mxu0 0.0
        %648 = vmatprep.subr.mxu0 0.0
        %649 = vmatpush1.msra.mxu0 0.0
        %650 = vmatprep.subr.mxu0 0.0
        %651 = vmatpush1.msra.mxu0 0.0
        %652 = vmatprep.subr.mxu0 0.0
        %653 = vmatpush1.msra.mxu0 0.0
        %654 = vmatprep.subr.mxu0 0.0
        %655 = vmatpush1.msra.mxu0 0.0
        %656 = vmatprep.subr.mxu0 0.0
        %657 = vmatpush1.msra.mxu0 0.0
        %658 = vmatprep.subr.mxu0 0.0
        %659 = vmatpush1.msra.mxu0 0.0
        %660 = vmatprep.subr.mxu0 %v257
        %661 = vmatpush1.msra.mxu0 %v255
        %662 = vmatprep.subr.mxu0 0.0
        %663 = vmatpush2.msra.mxu0 0.0
        %664 = vmatprep.subr.mxu0 0.0
        %665 = vmatpush2.msra.mxu0 0.0
        %666 = vmatprep.subr.mxu0 0.0
        %667 = vmatpush2.msra.mxu0 0.0
        %668 = vmatprep.subr.mxu0 0.0
        %669 = vmatpush2.msra.mxu0 0.0
        %670 = vmatprep.subr.mxu0 0.0
        %671 = vmatpush2.msra.mxu0 0.0
        %672 = vmatprep.subr.mxu0 0.0
        %673 = vmatpush2.msra.mxu0 0.0
        %674 = vmatprep.subr.mxu0 0.0
        %675 = vmatpush2.msra.mxu0 0.0
        %676 = vmatprep.subr.mxu0 0.0
        %677 = vmatpush2.msra.mxu0 0.0
        %678 = vmatprep.subr.mxu0 0.0
        %679 = vmatpush2.msra.mxu0 0.0
        %680 = vmatprep.subr.mxu0 0.0
        %681 = vmatpush2.msra.mxu0 0.0
        %682 = vmatprep.subr.mxu0 0.0
        %683 = vmatpush2.msra.mxu0 0.0
        %684 = vmatprep.subr.mxu0 0.0
        %685 = vmatpush2.msra.mxu0 0.0
        %686 = vmatprep.subr.mxu0 0.0
        %687 = vmatpush2.msra.mxu0 0.0
        %688 = vmatprep.subr.mxu0 0.0
        %689 = vmatpush2.msra.mxu0 0.0
        %690 = vmatprep.subr.mxu0 0.0
        %691 = vmatpush2.msra.mxu0 0.0
        %692 = vmatprep.subr.mxu0 0.0
        %693 = vmatpush2.msra.mxu0 0.0
        %694 = vmatprep.mubr.f32.mxu0 0.0
        %695 = vmatmul.mubr.f32.gmra.mxu0 %v557
        %v696 = vpop.f32.mrf.mxu0
        %v697 = vadd.f32 0.0, %v696
        %v698 = vpop.f32.mrf.mxu0
        %699 = vdwg.mxu0
        %v701 = vsel %vm246, %v226, 0
        %703 = vmatprep.subr.mxu0 0.0
        %704 = vmatpush1.msra.mxu0 0.0
        %705 = vmatprep.subr.mxu0 0.0
        %706 = vmatpush1.msra.mxu0 0.0
        %707 = vmatprep.subr.mxu0 0.0
        %708 = vmatpush1.msra.mxu0 0.0
        %709 = vmatprep.subr.mxu0 0.0
        %710 = vmatpush1.msra.mxu0 0.0
        %711 = vmatprep.subr.mxu0 0.0
        %712 = vmatpush1.msra.mxu0 0.0
        %713 = vmatprep.subr.mxu0 0.0
        %714 = vmatpush1.msra.mxu0 0.0
        %715 = vmatprep.subr.mxu0 0.0
        %716 = vmatpush1.msra.mxu0 0.0
        %717 = vmatprep.subr.mxu0 0.0
        %718 = vmatpush1.msra.mxu0 0.0
        %719 = vmatprep.subr.mxu0 0.0
        %720 = vmatpush1.msra.mxu0 0.0
        %721 = vmatprep.subr.mxu0 0.0
        %722 = vmatpush1.msra.mxu0 0.0
        %723 = vmatprep.subr.mxu0 0.0
        %724 = vmatpush1.msra.mxu0 0.0
        %725 = vmatprep.subr.mxu0 0.0
        %726 = vmatpush1.msra.mxu0 0.0
        %727 = vmatprep.subr.mxu0 0.0
        %728 = vmatpush1.msra.mxu0 0.0
        %729 = vmatprep.subr.mxu0 0.0
        %730 = vmatpush1.msra.mxu0 0.0
        %731 = vmatprep.subr.mxu0 0.0
        %732 = vmatpush1.msra.mxu0 0.0
        %733 = vmatprep.subr.mxu0 %v406
        %734 = vmatpush1.msra.mxu0 %v404
        %735 = vmatprep.subr.mxu0 0.0
        %736 = vmatpush2.msra.mxu0 0.0
        %737 = vmatprep.subr.mxu0 0.0
        %738 = vmatpush2.msra.mxu0 0.0
        %739 = vmatprep.subr.mxu0 0.0
        %740 = vmatpush2.msra.mxu0 0.0
        %741 = vmatprep.subr.mxu0 0.0
        %742 = vmatpush2.msra.mxu0 0.0
        %743 = vmatprep.subr.mxu0 0.0
        %744 = vmatpush2.msra.mxu0 0.0
        %745 = vmatprep.subr.mxu0 0.0
        %746 = vmatpush2.msra.mxu0 0.0
        %747 = vmatprep.subr.mxu0 0.0
        %748 = vmatpush2.msra.mxu0 0.0
        %749 = vmatprep.subr.mxu0 0.0
        %750 = vmatpush2.msra.mxu0 0.0
        %751 = vmatprep.subr.mxu0 0.0
        %752 = vmatpush2.msra.mxu0 0.0
        %753 = vmatprep.subr.mxu0 0.0
        %754 = vmatpush2.msra.mxu0 0.0
        %755 = vmatprep.subr.mxu0 0.0
        %756 = vmatpush2.msra.mxu0 0.0
        %757 = vmatprep.subr.mxu0 0.0
        %758 = vmatpush2.msra.mxu0 0.0
        %759 = vmatprep.subr.mxu0 0.0
        %760 = vmatpush2.msra.mxu0 0.0
        %761 = vmatprep.subr.mxu0 0.0
        %762 = vmatpush2.msra.mxu0 0.0
        %763 = vmatprep.subr.mxu0 0.0
        %764 = vmatpush2.msra.mxu0 0.0
        %765 = vmatprep.subr.mxu0 0.0
        %766 = vmatpush2.msra.mxu0 0.0
        %767 = vmatprep.mubr.f32.mxu0 0.0
        %768 = vmatmul.mubr.f32.gmra.mxu0 %v701
        %v769 = vpop.f32.mrf.mxu0
        %v770 = vadd.f32 %v626, %v769
        %v771 = vpop.f32.mrf.mxu0
        %v772 = vadd.f32 %v628, %v771
        %773 = vdwg.mxu0
        %774 = vmatprep.subr.mxu0 0.0
        %775 = vmatpush1.msra.mxu0 0.0
        %776 = vmatprep.subr.mxu0 0.0
        %777 = vmatpush1.msra.mxu0 0.0
        %778 = vmatprep.subr.mxu0 0.0
        %779 = vmatpush1.msra.mxu0 0.0
        %780 = vmatprep.subr.mxu0 0.0
        %781 = vmatpush1.msra.mxu0 0.0
        %782 = vmatprep.subr.mxu0 0.0
        %783 = vmatpush1.msra.mxu0 0.0
        %784 = vmatprep.subr.mxu0 0.0
        %785 = vmatpush1.msra.mxu0 0.0
        %786 = vmatprep.subr.mxu0 0.0
        %787 = vmatpush1.msra.mxu0 0.0
        %788 = vmatprep.subr.mxu0 0.0
        %789 = vmatpush1.msra.mxu0 0.0
        %790 = vmatprep.subr.mxu0 0.0
        %791 = vmatpush1.msra.mxu0 0.0
        %792 = vmatprep.subr.mxu0 0.0
        %793 = vmatpush1.msra.mxu0 0.0
        %794 = vmatprep.subr.mxu0 0.0
        %795 = vmatpush1.msra.mxu0 0.0
        %796 = vmatprep.subr.mxu0 0.0
        %797 = vmatpush1.msra.mxu0 0.0
        %798 = vmatprep.subr.mxu0 0.0
        %799 = vmatpush1.msra.mxu0 0.0
        %800 = vmatprep.subr.mxu0 0.0
        %801 = vmatpush1.msra.mxu0 0.0
        %802 = vmatprep.subr.mxu0 0.0
        %803 = vmatpush1.msra.mxu0 0.0
        %804 = vmatprep.subr.mxu0 %v410
        %805 = vmatpush1.msra.mxu0 %v408
        %806 = vmatprep.subr.mxu0 0.0
        %807 = vmatpush2.msra.mxu0 0.0
        %808 = vmatprep.subr.mxu0 0.0
        %809 = vmatpush2.msra.mxu0 0.0
        %810 = vmatprep.subr.mxu0 0.0
        %811 = vmatpush2.msra.mxu0 0.0
        %812 = vmatprep.subr.mxu0 0.0
        %813 = vmatpush2.msra.mxu0 0.0
        %814 = vmatprep.subr.mxu0 0.0
        %815 = vmatpush2.msra.mxu0 0.0
        %816 = vmatprep.subr.mxu0 0.0
        %817 = vmatpush2.msra.mxu0 0.0
        %818 = vmatprep.subr.mxu0 0.0
        %819 = vmatpush2.msra.mxu0 0.0
        %820 = vmatprep.subr.mxu0 0.0
        %821 = vmatpush2.msra.mxu0 0.0
        %822 = vmatprep.subr.mxu0 0.0
        %823 = vmatpush2.msra.mxu0 0.0
        %824 = vmatprep.subr.mxu0 0.0
        %825 = vmatpush2.msra.mxu0 0.0
        %826 = vmatprep.subr.mxu0 0.0
        %827 = vmatpush2.msra.mxu0 0.0
        %828 = vmatprep.subr.mxu0 0.0
        %829 = vmatpush2.msra.mxu0 0.0
        %830 = vmatprep.subr.mxu0 0.0
        %831 = vmatpush2.msra.mxu0 0.0
        %832 = vmatprep.subr.mxu0 0.0
        %833 = vmatpush2.msra.mxu0 0.0
        %834 = vmatprep.subr.mxu0 0.0
        %835 = vmatpush2.msra.mxu0 0.0
        %836 = vmatprep.subr.mxu0 0.0
        %837 = vmatpush2.msra.mxu0 0.0
        %838 = vmatprep.mubr.f32.mxu0 0.0
        %839 = vmatmul.mubr.f32.gmra.mxu0 %v701
        %v840 = vpop.f32.mrf.mxu0
        %v841 = vadd.f32 %v697, %v840
        %v842 = vpop.f32.mrf.mxu0
        %843 = vdwg.mxu0
        %s844 = scalar_lea.vmem %s3, 8
        %v845 = vld [vmem:[%s844] sm:$0xff]
        %v847 = vsel %vm246, %v845, 0
        %849 = vmatprep.subr.mxu0 0.0
        %850 = vmatpush1.msra.mxu0 0.0
        %851 = vmatprep.subr.mxu0 0.0
        %852 = vmatpush1.msra.mxu0 0.0
        %853 = vmatprep.subr.mxu0 0.0
        %854 = vmatpush1.msra.mxu0 0.0
        %855 = vmatprep.subr.mxu0 0.0
        %856 = vmatpush1.msra.mxu0 0.0
        %857 = vmatprep.subr.mxu0 0.0
        %858 = vmatpush1.msra.mxu0 0.0
        %859 = vmatprep.subr.mxu0 0.0
        %860 = vmatpush1.msra.mxu0 0.0
        %861 = vmatprep.subr.mxu0 0.0
        %862 = vmatpush1.msra.mxu0 0.0
        %863 = vmatprep.subr.mxu0 0.0
        %864 = vmatpush1.msra.mxu0 0.0
        %865 = vmatprep.subr.mxu0 0.0
        %866 = vmatpush1.msra.mxu0 0.0
        %867 = vmatprep.subr.mxu0 0.0
        %868 = vmatpush1.msra.mxu0 0.0
        %869 = vmatprep.subr.mxu0 0.0
        %870 = vmatpush1.msra.mxu0 0.0
        %871 = vmatprep.subr.mxu0 0.0
        %872 = vmatpush1.msra.mxu0 0.0
        %873 = vmatprep.subr.mxu0 0.0
        %874 = vmatpush1.msra.mxu0 0.0
        %875 = vmatprep.subr.mxu0 0.0
        %876 = vmatpush1.msra.mxu0 0.0
        %877 = vmatprep.subr.mxu0 0.0
        %878 = vmatpush1.msra.mxu0 0.0
        %879 = vmatprep.subr.mxu0 %v253
        %880 = vmatpush1.msra.mxu0 %v251
        %881 = vmatprep.subr.mxu0 0.0
        %882 = vmatpush2.msra.mxu0 0.0
        %883 = vmatprep.subr.mxu0 0.0
        %884 = vmatpush2.msra.mxu0 0.0
        %885 = vmatprep.subr.mxu0 0.0
        %886 = vmatpush2.msra.mxu0 0.0
        %887 = vmatprep.subr.mxu0 0.0
        %888 = vmatpush2.msra.mxu0 0.0
        %889 = vmatprep.subr.mxu0 0.0
        %890 = vmatpush2.msra.mxu0 0.0
        %891 = vmatprep.subr.mxu0 0.0
        %892 = vmatpush2.msra.mxu0 0.0
        %893 = vmatprep.subr.mxu0 0.0
        %894 = vmatpush2.msra.mxu0 0.0
        %895 = vmatprep.subr.mxu0 0.0
        %896 = vmatpush2.msra.mxu0 0.0
        %897 = vmatprep.subr.mxu0 0.0
        %898 = vmatpush2.msra.mxu0 0.0
        %899 = vmatprep.subr.mxu0 0.0
        %900 = vmatpush2.msra.mxu0 0.0
        %901 = vmatprep.subr.mxu0 0.0
        %902 = vmatpush2.msra.mxu0 0.0
        %903 = vmatprep.subr.mxu0 0.0
        %904 = vmatpush2.msra.mxu0 0.0
        %905 = vmatprep.subr.mxu0 0.0
        %906 = vmatpush2.msra.mxu0 0.0
        %907 = vmatprep.subr.mxu0 0.0
        %908 = vmatpush2.msra.mxu0 0.0
        %909 = vmatprep.subr.mxu0 0.0
        %910 = vmatpush2.msra.mxu0 0.0
        %911 = vmatprep.subr.mxu0 0.0
        %912 = vmatpush2.msra.mxu0 0.0
        %913 = vmatprep.mubr.f32.mxu0 0.0
        %914 = vmatmul.mubr.f32.gmra.mxu0 %v847
        %v915 = vpop.f32.mrf.mxu0
        %v916 = vadd.f32 0.0, %v915
        %v917 = vpop.f32.mrf.mxu0
        %v918 = vadd.f32 0.0, %v917
        %919 = vdwg.mxu0
        %920 = vmatprep.subr.mxu0 0.0
        %921 = vmatpush1.msra.mxu0 0.0
        %922 = vmatprep.subr.mxu0 0.0
        %923 = vmatpush1.msra.mxu0 0.0
        %924 = vmatprep.subr.mxu0 0.0
        %925 = vmatpush1.msra.mxu0 0.0
        %926 = vmatprep.subr.mxu0 0.0
        %927 = vmatpush1.msra.mxu0 0.0
        %928 = vmatprep.subr.mxu0 0.0
        %929 = vmatpush1.msra.mxu0 0.0
        %930 = vmatprep.subr.mxu0 0.0
        %931 = vmatpush1.msra.mxu0 0.0
        %932 = vmatprep.subr.mxu0 0.0
        %933 = vmatpush1.msra.mxu0 0.0
        %934 = vmatprep.subr.mxu0 0.0
        %935 = vmatpush1.msra.mxu0 0.0
        %936 = vmatprep.subr.mxu0 0.0
        %937 = vmatpush1.msra.mxu0 0.0
        %938 = vmatprep.subr.mxu0 0.0
        %939 = vmatpush1.msra.mxu0 0.0
        %940 = vmatprep.subr.mxu0 0.0
        %941 = vmatpush1.msra.mxu0 0.0
        %942 = vmatprep.subr.mxu0 0.0
        %943 = vmatpush1.msra.mxu0 0.0
        %944 = vmatprep.subr.mxu0 0.0
        %945 = vmatpush1.msra.mxu0 0.0
        %946 = vmatprep.subr.mxu0 0.0
        %947 = vmatpush1.msra.mxu0 0.0
        %948 = vmatprep.subr.mxu0 0.0
        %949 = vmatpush1.msra.mxu0 0.0
        %950 = vmatprep.subr.mxu0 %v257
        %951 = vmatpush1.msra.mxu0 %v255
        %952 = vmatprep.subr.mxu0 0.0
        %953 = vmatpush2.msra.mxu0 0.0
        %954 = vmatprep.subr.mxu0 0.0
        %955 = vmatpush2.msra.mxu0 0.0
        %956 = vmatprep.subr.mxu0 0.0
        %957 = vmatpush2.msra.mxu0 0.0
        %958 = vmatprep.subr.mxu0 0.0
        %959 = vmatpush2.msra.mxu0 0.0
        %960 = vmatprep.subr.mxu0 0.0
        %961 = vmatpush2.msra.mxu0 0.0
        %962 = vmatprep.subr.mxu0 0.0
        %963 = vmatpush2.msra.mxu0 0.0
        %964 = vmatprep.subr.mxu0 0.0
        %965 = vmatpush2.msra.mxu0 0.0
        %966 = vmatprep.subr.mxu0 0.0
        %967 = vmatpush2.msra.mxu0 0.0
        %968 = vmatprep.subr.mxu0 0.0
        %969 = vmatpush2.msra.mxu0 0.0
        %970 = vmatprep.subr.mxu0 0.0
        %971 = vmatpush2.msra.mxu0 0.0
        %972 = vmatprep.subr.mxu0 0.0
        %973 = vmatpush2.msra.mxu0 0.0
        %974 = vmatprep.subr.mxu0 0.0
        %975 = vmatpush2.msra.mxu0 0.0
        %976 = vmatprep.subr.mxu0 0.0
        %977 = vmatpush2.msra.mxu0 0.0
        %978 = vmatprep.subr.mxu0 0.0
        %979 = vmatpush2.msra.mxu0 0.0
        %980 = vmatprep.subr.mxu0 0.0
        %981 = vmatpush2.msra.mxu0 0.0
        %982 = vmatprep.subr.mxu0 0.0
        %983 = vmatpush2.msra.mxu0 0.0
        %984 = vmatprep.mubr.f32.mxu0 0.0
        %985 = vmatmul.mubr.f32.gmra.mxu0 %v847
        %v986 = vpop.f32.mrf.mxu0
        %v987 = vadd.f32 0.0, %v986
        %v988 = vpop.f32.mrf.mxu0
        %989 = vdwg.mxu0
        %v991 = vsel %vm246, %v227, 0
        %993 = vmatprep.subr.mxu0 0.0
        %994 = vmatpush1.msra.mxu0 0.0
        %995 = vmatprep.subr.mxu0 0.0
        %996 = vmatpush1.msra.mxu0 0.0
        %997 = vmatprep.subr.mxu0 0.0
        %998 = vmatpush1.msra.mxu0 0.0
        %999 = vmatprep.subr.mxu0 0.0
        %1000 = vmatpush1.msra.mxu0 0.0
        %1001 = vmatprep.subr.mxu0 0.0
        %1002 = vmatpush1.msra.mxu0 0.0
        %1003 = vmatprep.subr.mxu0 0.0
        %1004 = vmatpush1.msra.mxu0 0.0
        %1005 = vmatprep.subr.mxu0 0.0
        %1006 = vmatpush1.msra.mxu0 0.0
        %1007 = vmatprep.subr.mxu0 0.0
        %1008 = vmatpush1.msra.mxu0 0.0
        %1009 = vmatprep.subr.mxu0 0.0
        %1010 = vmatpush1.msra.mxu0 0.0
        %1011 = vmatprep.subr.mxu0 0.0
        %1012 = vmatpush1.msra.mxu0 0.0
        %1013 = vmatprep.subr.mxu0 0.0
        %1014 = vmatpush1.msra.mxu0 0.0
        %1015 = vmatprep.subr.mxu0 0.0
        %1016 = vmatpush1.msra.mxu0 0.0
        %1017 = vmatprep.subr.mxu0 0.0
        %1018 = vmatpush1.msra.mxu0 0.0
        %1019 = vmatprep.subr.mxu0 0.0
        %1020 = vmatpush1.msra.mxu0 0.0
        %1021 = vmatprep.subr.mxu0 0.0
        %1022 = vmatpush1.msra.mxu0 0.0
        %1023 = vmatprep.subr.mxu0 %v406
        %1024 = vmatpush1.msra.mxu0 %v404
        %1025 = vmatprep.subr.mxu0 0.0
        %1026 = vmatpush2.msra.mxu0 0.0
        %1027 = vmatprep.subr.mxu0 0.0
        %1028 = vmatpush2.msra.mxu0 0.0
        %1029 = vmatprep.subr.mxu0 0.0
        %1030 = vmatpush2.msra.mxu0 0.0
        %1031 = vmatprep.subr.mxu0 0.0
        %1032 = vmatpush2.msra.mxu0 0.0
        %1033 = vmatprep.subr.mxu0 0.0
        %1034 = vmatpush2.msra.mxu0 0.0
        %1035 = vmatprep.subr.mxu0 0.0
        %1036 = vmatpush2.msra.mxu0 0.0
        %1037 = vmatprep.subr.mxu0 0.0
        %1038 = vmatpush2.msra.mxu0 0.0
        %1039 = vmatprep.subr.mxu0 0.0
        %1040 = vmatpush2.msra.mxu0 0.0
        %1041 = vmatprep.subr.mxu0 0.0
        %1042 = vmatpush2.msra.mxu0 0.0
        %1043 = vmatprep.subr.mxu0 0.0
        %1044 = vmatpush2.msra.mxu0 0.0
        %1045 = vmatprep.subr.mxu0 0.0
        %1046 = vmatpush2.msra.mxu0 0.0
        %1047 = vmatprep.subr.mxu0 0.0
        %1048 = vmatpush2.msra.mxu0 0.0
        %1049 = vmatprep.subr.mxu0 0.0
        %1050 = vmatpush2.msra.mxu0 0.0
        %1051 = vmatprep.subr.mxu0 0.0
        %1052 = vmatpush2.msra.mxu0 0.0
        %1053 = vmatprep.subr.mxu0 0.0
        %1054 = vmatpush2.msra.mxu0 0.0
        %1055 = vmatprep.subr.mxu0 0.0
        %1056 = vmatpush2.msra.mxu0 0.0
        %1057 = vmatprep.mubr.f32.mxu0 0.0
        %1058 = vmatmul.mubr.f32.gmra.mxu0 %v991
        %v1059 = vpop.f32.mrf.mxu0
        %v1060 = vadd.f32 %v916, %v1059
        %v1061 = vpop.f32.mrf.mxu0
        %v1062 = vadd.f32 %v918, %v1061
        %1063 = vdwg.mxu0
        %1064 = vmatprep.subr.mxu0 0.0
        %1065 = vmatpush1.msra.mxu0 0.0
        %1066 = vmatprep.subr.mxu0 0.0
        %1067 = vmatpush1.msra.mxu0 0.0
        %1068 = vmatprep.subr.mxu0 0.0
        %1069 = vmatpush1.msra.mxu0 0.0
        %1070 = vmatprep.subr.mxu0 0.0
        %1071 = vmatpush1.msra.mxu0 0.0
        %1072 = vmatprep.subr.mxu0 0.0
        %1073 = vmatpush1.msra.mxu0 0.0
        %1074 = vmatprep.subr.mxu0 0.0
        %1075 = vmatpush1.msra.mxu0 0.0
        %1076 = vmatprep.subr.mxu0 0.0
        %1077 = vmatpush1.msra.mxu0 0.0
        %1078 = vmatprep.subr.mxu0 0.0
        %1079 = vmatpush1.msra.mxu0 0.0
        %1080 = vmatprep.subr.mxu0 0.0
        %1081 = vmatpush1.msra.mxu0 0.0
        %1082 = vmatprep.subr.mxu0 0.0
        %1083 = vmatpush1.msra.mxu0 0.0
        %1084 = vmatprep.subr.mxu0 0.0
        %1085 = vmatpush1.msra.mxu0 0.0
        %1086 = vmatprep.subr.mxu0 0.0
        %1087 = vmatpush1.msra.mxu0 0.0
        %1088 = vmatprep.subr.mxu0 0.0
        %1089 = vmatpush1.msra.mxu0 0.0
        %1090 = vmatprep.subr.mxu0 0.0
        %1091 = vmatpush1.msra.mxu0 0.0
        %1092 = vmatprep.subr.mxu0 0.0
        %1093 = vmatpush1.msra.mxu0 0.0
        %1094 = vmatprep.subr.mxu0 %v410
        %1095 = vmatpush1.msra.mxu0 %v408
        %1096 = vmatprep.subr.mxu0 0.0
        %1097 = vmatpush2.msra.mxu0 0.0
        %1098 = vmatprep.subr.mxu0 0.0
        %1099 = vmatpush2.msra.mxu0 0.0
        %1100 = vmatprep.subr.mxu0 0.0
        %1101 = vmatpush2.msra.mxu0 0.0
        %1102 = vmatprep.subr.mxu0 0.0
        %1103 = vmatpush2.msra.mxu0 0.0
        %1104 = vmatprep.subr.mxu0 0.0
        %1105 = vmatpush2.msra.mxu0 0.0
        %1106 = vmatprep.subr.mxu0 0.0
        %1107 = vmatpush2.msra.mxu0 0.0
        %1108 = vmatprep.subr.mxu0 0.0
        %1109 = vmatpush2.msra.mxu0 0.0
        %1110 = vmatprep.subr.mxu0 0.0
        %1111 = vmatpush2.msra.mxu0 0.0
        %1112 = vmatprep.subr.mxu0 0.0
        %1113 = vmatpush2.msra.mxu0 0.0
        %1114 = vmatprep.subr.mxu0 0.0
        %1115 = vmatpush2.msra.mxu0 0.0
        %1116 = vmatprep.subr.mxu0 0.0
        %1117 = vmatpush2.msra.mxu0 0.0
        %1118 = vmatprep.subr.mxu0 0.0
        %1119 = vmatpush2.msra.mxu0 0.0
        %1120 = vmatprep.subr.mxu0 0.0
        %1121 = vmatpush2.msra.mxu0 0.0
        %1122 = vmatprep.subr.mxu0 0.0
        %1123 = vmatpush2.msra.mxu0 0.0
        %1124 = vmatprep.subr.mxu0 0.0
        %1125 = vmatpush2.msra.mxu0 0.0
        %1126 = vmatprep.subr.mxu0 0.0
        %1127 = vmatpush2.msra.mxu0 0.0
        %1128 = vmatprep.mubr.f32.mxu0 0.0
        %1129 = vmatmul.mubr.f32.gmra.mxu0 %v991
        %v1130 = vpop.f32.mrf.mxu0
        %v1131 = vadd.f32 %v987, %v1130
        %v1132 = vpop.f32.mrf.mxu0
        %1133 = vdwg.mxu0
        %s1134 = scalar_lea.vmem %s1, 16
        %v1135 = vld [vmem:[%s1134] sm:$0xff]
        %1136 = vrot.lane.b32.xlu0 %v223, 126
        %v1137 = vpop.permute.xlu0 %1136
        %1138 = vrot.lane.b32.xlu0 %v232, 126
        %v1139 = vpop.permute.xlu0 %1138
        %1140 = vrot.lane.b32.xlu0 %v224, 126
        %v1141 = vpop.permute.xlu0 %1140
        %1142 = vrot.lane.b32.xlu0 %v233, 126
        %v1143 = vpop.permute.xlu0 %1142
        %vm1144 = vcmask 1031168
        %v1145 = vsel %vm1144, %v1137, %v1139
        %v1146 = vsel %vm1144, %v1139, %v1141
        %v1147 = vsel %vm1144, %v1141, %v1143
        %v1149 = vsel %vm246, %v1135, 0
        %v1151 = vsel %vm250, %v1145, 0
        %v1153 = vsel %vm250, %v1146, 0
        %v1155 = vsel %vm250, %v1147, 0
        %v1157 = vsel %vm250, %v1143, 0
        %1159 = vmatprep.subr.mxu0 0.0
        %1160 = vmatpush1.msra.mxu0 0.0
        %1161 = vmatprep.subr.mxu0 0.0
        %1162 = vmatpush1.msra.mxu0 0.0
        %1163 = vmatprep.subr.mxu0 0.0
        %1164 = vmatpush1.msra.mxu0 0.0
        %1165 = vmatprep.subr.mxu0 0.0
        %1166 = vmatpush1.msra.mxu0 0.0
        %1167 = vmatprep.subr.mxu0 0.0
        %1168 = vmatpush1.msra.mxu0 0.0
        %1169 = vmatprep.subr.mxu0 0.0
        %1170 = vmatpush1.msra.mxu0 0.0
        %1171 = vmatprep.subr.mxu0 0.0
        %1172 = vmatpush1.msra.mxu0 0.0
        %1173 = vmatprep.subr.mxu0 0.0
        %1174 = vmatpush1.msra.mxu0 0.0
        %1175 = vmatprep.subr.mxu0 0.0
        %1176 = vmatpush1.msra.mxu0 0.0
        %1177 = vmatprep.subr.mxu0 0.0
        %1178 = vmatpush1.msra.mxu0 0.0
        %1179 = vmatprep.subr.mxu0 0.0
        %1180 = vmatpush1.msra.mxu0 0.0
        %1181 = vmatprep.subr.mxu0 0.0
        %1182 = vmatpush1.msra.mxu0 0.0
        %1183 = vmatprep.subr.mxu0 0.0
        %1184 = vmatpush1.msra.mxu0 0.0
        %1185 = vmatprep.subr.mxu0 0.0
        %1186 = vmatpush1.msra.mxu0 0.0
        %1187 = vmatprep.subr.mxu0 0.0
        %1188 = vmatpush1.msra.mxu0 0.0
        %1189 = vmatprep.subr.mxu0 %v1153
        %1190 = vmatpush1.msra.mxu0 %v1151
        %1191 = vmatprep.subr.mxu0 0.0
        %1192 = vmatpush2.msra.mxu0 0.0
        %1193 = vmatprep.subr.mxu0 0.0
        %1194 = vmatpush2.msra.mxu0 0.0
        %1195 = vmatprep.subr.mxu0 0.0
        %1196 = vmatpush2.msra.mxu0 0.0
        %1197 = vmatprep.subr.mxu0 0.0
        %1198 = vmatpush2.msra.mxu0 0.0
        %1199 = vmatprep.subr.mxu0 0.0
        %1200 = vmatpush2.msra.mxu0 0.0
        %1201 = vmatprep.subr.mxu0 0.0
        %1202 = vmatpush2.msra.mxu0 0.0
        %1203 = vmatprep.subr.mxu0 0.0
        %1204 = vmatpush2.msra.mxu0 0.0
        %1205 = vmatprep.subr.mxu0 0.0
        %1206 = vmatpush2.msra.mxu0 0.0
        %1207 = vmatprep.subr.mxu0 0.0
        %1208 = vmatpush2.msra.mxu0 0.0
        %1209 = vmatprep.subr.mxu0 0.0
        %1210 = vmatpush2.msra.mxu0 0.0
        %1211 = vmatprep.subr.mxu0 0.0
        %1212 = vmatpush2.msra.mxu0 0.0
        %1213 = vmatprep.subr.mxu0 0.0
        %1214 = vmatpush2.msra.mxu0 0.0
        %1215 = vmatprep.subr.mxu0 0.0
        %1216 = vmatpush2.msra.mxu0 0.0
        %1217 = vmatprep.subr.mxu0 0.0
        %1218 = vmatpush2.msra.mxu0 0.0
        %1219 = vmatprep.subr.mxu0 0.0
        %1220 = vmatpush2.msra.mxu0 0.0
        %1221 = vmatprep.subr.mxu0 0.0
        %1222 = vmatpush2.msra.mxu0 0.0
        %1223 = vmatprep.mubr.f32.mxu0 0.0
        %1224 = vmatmul.mubr.f32.gmra.mxu0 %v1149
        %v1225 = vpop.f32.mrf.mxu0
        %v1226 = vadd.f32 0.0, %v1225
        %v1227 = vpop.f32.mrf.mxu0
        %v1228 = vadd.f32 0.0, %v1227
        %1229 = vdwg.mxu0
        %1230 = vmatprep.subr.mxu0 0.0
        %1231 = vmatpush1.msra.mxu0 0.0
        %1232 = vmatprep.subr.mxu0 0.0
        %1233 = vmatpush1.msra.mxu0 0.0
        %1234 = vmatprep.subr.mxu0 0.0
        %1235 = vmatpush1.msra.mxu0 0.0
        %1236 = vmatprep.subr.mxu0 0.0
        %1237 = vmatpush1.msra.mxu0 0.0
        %1238 = vmatprep.subr.mxu0 0.0
        %1239 = vmatpush1.msra.mxu0 0.0
        %1240 = vmatprep.subr.mxu0 0.0
        %1241 = vmatpush1.msra.mxu0 0.0
        %1242 = vmatprep.subr.mxu0 0.0
        %1243 = vmatpush1.msra.mxu0 0.0
        %1244 = vmatprep.subr.mxu0 0.0
        %1245 = vmatpush1.msra.mxu0 0.0
        %1246 = vmatprep.subr.mxu0 0.0
        %1247 = vmatpush1.msra.mxu0 0.0
        %1248 = vmatprep.subr.mxu0 0.0
        %1249 = vmatpush1.msra.mxu0 0.0
        %1250 = vmatprep.subr.mxu0 0.0
        %1251 = vmatpush1.msra.mxu0 0.0
        %1252 = vmatprep.subr.mxu0 0.0
        %1253 = vmatpush1.msra.mxu0 0.0
        %1254 = vmatprep.subr.mxu0 0.0
        %1255 = vmatpush1.msra.mxu0 0.0
        %1256 = vmatprep.subr.mxu0 0.0
        %1257 = vmatpush1.msra.mxu0 0.0
        %1258 = vmatprep.subr.mxu0 0.0
        %1259 = vmatpush1.msra.mxu0 0.0
        %1260 = vmatprep.subr.mxu0 %v1157
        %1261 = vmatpush1.msra.mxu0 %v1155
        %1262 = vmatprep.subr.mxu0 0.0
        %1263 = vmatpush2.msra.mxu0 0.0
        %1264 = vmatprep.subr.mxu0 0.0
        %1265 = vmatpush2.msra.mxu0 0.0
        %1266 = vmatprep.subr.mxu0 0.0
        %1267 = vmatpush2.msra.mxu0 0.0
        %1268 = vmatprep.subr.mxu0 0.0
        %1269 = vmatpush2.msra.mxu0 0.0
        %1270 = vmatprep.subr.mxu0 0.0
        %1271 = vmatpush2.msra.mxu0 0.0
        %1272 = vmatprep.subr.mxu0 0.0
        %1273 = vmatpush2.msra.mxu0 0.0
        %1274 = vmatprep.subr.mxu0 0.0
        %1275 = vmatpush2.msra.mxu0 0.0
        %1276 = vmatprep.subr.mxu0 0.0
        %1277 = vmatpush2.msra.mxu0 0.0
        %1278 = vmatprep.subr.mxu0 0.0
        %1279 = vmatpush2.msra.mxu0 0.0
        %1280 = vmatprep.subr.mxu0 0.0
        %1281 = vmatpush2.msra.mxu0 0.0
        %1282 = vmatprep.subr.mxu0 0.0
        %1283 = vmatpush2.msra.mxu0 0.0
        %1284 = vmatprep.subr.mxu0 0.0
        %1285 = vmatpush2.msra.mxu0 0.0
        %1286 = vmatprep.subr.mxu0 0.0
        %1287 = vmatpush2.msra.mxu0 0.0
        %1288 = vmatprep.subr.mxu0 0.0
        %1289 = vmatpush2.msra.mxu0 0.0
        %1290 = vmatprep.subr.mxu0 0.0
        %1291 = vmatpush2.msra.mxu0 0.0
        %1292 = vmatprep.subr.mxu0 0.0
        %1293 = vmatpush2.msra.mxu0 0.0
        %1294 = vmatprep.mubr.f32.mxu0 0.0
        %1295 = vmatmul.mubr.f32.gmra.mxu0 %v1149
        %v1296 = vpop.f32.mrf.mxu0
        %v1297 = vadd.f32 0.0, %v1296
        %v1298 = vpop.f32.mrf.mxu0
        %v1299 = vadd.f32 0.0, %v1298
        %1300 = vdwg.mxu0
        %v1301 = vadd.f32 %v479, %v1226
        %v1302 = vadd.f32 %v481, %v1228
        %v1303 = vadd.f32 %v550, %v1297
        %v1304 = vadd.f32 %v552, %v1299
        %s1305 = scalar_lea.vmem %s2, 16
        %v1306 = vld [vmem:[%s1305] sm:$0xff]
        %v1308 = vsel %vm246, %v1306, 0
        %1310 = vmatprep.subr.mxu0 0.0
        %1311 = vmatpush1.msra.mxu0 0.0
        %1312 = vmatprep.subr.mxu0 0.0
        %1313 = vmatpush1.msra.mxu0 0.0
        %1314 = vmatprep.subr.mxu0 0.0
        %1315 = vmatpush1.msra.mxu0 0.0
        %1316 = vmatprep.subr.mxu0 0.0
        %1317 = vmatpush1.msra.mxu0 0.0
        %1318 = vmatprep.subr.mxu0 0.0
        %1319 = vmatpush1.msra.mxu0 0.0
        %1320 = vmatprep.subr.mxu0 0.0
        %1321 = vmatpush1.msra.mxu0 0.0
        %1322 = vmatprep.subr.mxu0 0.0
        %1323 = vmatpush1.msra.mxu0 0.0
        %1324 = vmatprep.subr.mxu0 0.0
        %1325 = vmatpush1.msra.mxu0 0.0
        %1326 = vmatprep.subr.mxu0 0.0
        %1327 = vmatpush1.msra.mxu0 0.0
        %1328 = vmatprep.subr.mxu0 0.0
        %1329 = vmatpush1.msra.mxu0 0.0
        %1330 = vmatprep.subr.mxu0 0.0
        %1331 = vmatpush1.msra.mxu0 0.0
        %1332 = vmatprep.subr.mxu0 0.0
        %1333 = vmatpush1.msra.mxu0 0.0
        %1334 = vmatprep.subr.mxu0 0.0
        %1335 = vmatpush1.msra.mxu0 0.0
        %1336 = vmatprep.subr.mxu0 0.0
        %1337 = vmatpush1.msra.mxu0 0.0
        %1338 = vmatprep.subr.mxu0 0.0
        %1339 = vmatpush1.msra.mxu0 0.0
        %1340 = vmatprep.subr.mxu0 %v1153
        %1341 = vmatpush1.msra.mxu0 %v1151
        %1342 = vmatprep.subr.mxu0 0.0
        %1343 = vmatpush2.msra.mxu0 0.0
        %1344 = vmatprep.subr.mxu0 0.0
        %1345 = vmatpush2.msra.mxu0 0.0
        %1346 = vmatprep.subr.mxu0 0.0
        %1347 = vmatpush2.msra.mxu0 0.0
        %1348 = vmatprep.subr.mxu0 0.0
        %1349 = vmatpush2.msra.mxu0 0.0
        %1350 = vmatprep.subr.mxu0 0.0
        %1351 = vmatpush2.msra.mxu0 0.0
        %1352 = vmatprep.subr.mxu0 0.0
        %1353 = vmatpush2.msra.mxu0 0.0
        %1354 = vmatprep.subr.mxu0 0.0
        %1355 = vmatpush2.msra.mxu0 0.0
        %1356 = vmatprep.subr.mxu0 0.0
        %1357 = vmatpush2.msra.mxu0 0.0
        %1358 = vmatprep.subr.mxu0 0.0
        %1359 = vmatpush2.msra.mxu0 0.0
        %1360 = vmatprep.subr.mxu0 0.0
        %1361 = vmatpush2.msra.mxu0 0.0
        %1362 = vmatprep.subr.mxu0 0.0
        %1363 = vmatpush2.msra.mxu0 0.0
        %1364 = vmatprep.subr.mxu0 0.0
        %1365 = vmatpush2.msra.mxu0 0.0
        %1366 = vmatprep.subr.mxu0 0.0
        %1367 = vmatpush2.msra.mxu0 0.0
        %1368 = vmatprep.subr.mxu0 0.0
        %1369 = vmatpush2.msra.mxu0 0.0
        %1370 = vmatprep.subr.mxu0 0.0
        %1371 = vmatpush2.msra.mxu0 0.0
        %1372 = vmatprep.subr.mxu0 0.0
        %1373 = vmatpush2.msra.mxu0 0.0
        %1374 = vmatprep.mubr.f32.mxu0 0.0
        %1375 = vmatmul.mubr.f32.gmra.mxu0 %v1308
        %v1376 = vpop.f32.mrf.mxu0
        %v1377 = vadd.f32 0.0, %v1376
        %v1378 = vpop.f32.mrf.mxu0
        %v1379 = vadd.f32 0.0, %v1378
        %1380 = vdwg.mxu0
        %1381 = vmatprep.subr.mxu0 0.0
        %1382 = vmatpush1.msra.mxu0 0.0
        %1383 = vmatprep.subr.mxu0 0.0
        %1384 = vmatpush1.msra.mxu0 0.0
        %1385 = vmatprep.subr.mxu0 0.0
        %1386 = vmatpush1.msra.mxu0 0.0
        %1387 = vmatprep.subr.mxu0 0.0
        %1388 = vmatpush1.msra.mxu0 0.0
        %1389 = vmatprep.subr.mxu0 0.0
        %1390 = vmatpush1.msra.mxu0 0.0
        %1391 = vmatprep.subr.mxu0 0.0
        %1392 = vmatpush1.msra.mxu0 0.0
        %1393 = vmatprep.subr.mxu0 0.0
        %1394 = vmatpush1.msra.mxu0 0.0
        %1395 = vmatprep.subr.mxu0 0.0
        %1396 = vmatpush1.msra.mxu0 0.0
        %1397 = vmatprep.subr.mxu0 0.0
        %1398 = vmatpush1.msra.mxu0 0.0
        %1399 = vmatprep.subr.mxu0 0.0
        %1400 = vmatpush1.msra.mxu0 0.0
        %1401 = vmatprep.subr.mxu0 0.0
        %1402 = vmatpush1.msra.mxu0 0.0
        %1403 = vmatprep.subr.mxu0 0.0
        %1404 = vmatpush1.msra.mxu0 0.0
        %1405 = vmatprep.subr.mxu0 0.0
        %1406 = vmatpush1.msra.mxu0 0.0
        %1407 = vmatprep.subr.mxu0 0.0
        %1408 = vmatpush1.msra.mxu0 0.0
        %1409 = vmatprep.subr.mxu0 0.0
        %1410 = vmatpush1.msra.mxu0 0.0
        %1411 = vmatprep.subr.mxu0 %v1157
        %1412 = vmatpush1.msra.mxu0 %v1155
        %1413 = vmatprep.subr.mxu0 0.0
        %1414 = vmatpush2.msra.mxu0 0.0
        %1415 = vmatprep.subr.mxu0 0.0
        %1416 = vmatpush2.msra.mxu0 0.0
        %1417 = vmatprep.subr.mxu0 0.0
        %1418 = vmatpush2.msra.mxu0 0.0
        %1419 = vmatprep.subr.mxu0 0.0
        %1420 = vmatpush2.msra.mxu0 0.0
        %1421 = vmatprep.subr.mxu0 0.0
        %1422 = vmatpush2.msra.mxu0 0.0
        %1423 = vmatprep.subr.mxu0 0.0
        %1424 = vmatpush2.msra.mxu0 0.0
        %1425 = vmatprep.subr.mxu0 0.0
        %1426 = vmatpush2.msra.mxu0 0.0
        %1427 = vmatprep.subr.mxu0 0.0
        %1428 = vmatpush2.msra.mxu0 0.0
        %1429 = vmatprep.subr.mxu0 0.0
        %1430 = vmatpush2.msra.mxu0 0.0
        %1431 = vmatprep.subr.mxu0 0.0
        %1432 = vmatpush2.msra.mxu0 0.0
        %1433 = vmatprep.subr.mxu0 0.0
        %1434 = vmatpush2.msra.mxu0 0.0
        %1435 = vmatprep.subr.mxu0 0.0
        %1436 = vmatpush2.msra.mxu0 0.0
        %1437 = vmatprep.subr.mxu0 0.0
        %1438 = vmatpush2.msra.mxu0 0.0
        %1439 = vmatprep.subr.mxu0 0.0
        %1440 = vmatpush2.msra.mxu0 0.0
        %1441 = vmatprep.subr.mxu0 0.0
        %1442 = vmatpush2.msra.mxu0 0.0
        %1443 = vmatprep.subr.mxu0 0.0
        %1444 = vmatpush2.msra.mxu0 0.0
        %1445 = vmatprep.mubr.f32.mxu0 0.0
        %1446 = vmatmul.mubr.f32.gmra.mxu0 %v1308
        %v1447 = vpop.f32.mrf.mxu0
        %v1448 = vadd.f32 0.0, %v1447
        %v1449 = vpop.f32.mrf.mxu0
        %1450 = vdwg.mxu0
        %v1451 = vadd.f32 %v770, %v1377
        %v1452 = vadd.f32 %v772, %v1379
        %v1453 = vadd.f32 %v841, %v1448
        %s1454 = scalar_lea.vmem %s3, 16
        %v1455 = vld [vmem:[%s1454] sm:$0xff]
        %v1457 = vsel %vm246, %v1455, 0
        %1459 = vmatprep.subr.mxu0 0.0
        %1460 = vmatpush1.msra.mxu0 0.0
        %1461 = vmatprep.subr.mxu0 0.0
        %1462 = vmatpush1.msra.mxu0 0.0
        %1463 = vmatprep.subr.mxu0 0.0
        %1464 = vmatpush1.msra.mxu0 0.0
        %1465 = vmatprep.subr.mxu0 0.0
        %1466 = vmatpush1.msra.mxu0 0.0
        %1467 = vmatprep.subr.mxu0 0.0
        %1468 = vmatpush1.msra.mxu0 0.0
        %1469 = vmatprep.subr.mxu0 0.0
        %1470 = vmatpush1.msra.mxu0 0.0
        %1471 = vmatprep.subr.mxu0 0.0
        %1472 = vmatpush1.msra.mxu0 0.0
        %1473 = vmatprep.subr.mxu0 0.0
        %1474 = vmatpush1.msra.mxu0 0.0
        %1475 = vmatprep.subr.mxu0 0.0
        %1476 = vmatpush1.msra.mxu0 0.0
        %1477 = vmatprep.subr.mxu0 0.0
        %1478 = vmatpush1.msra.mxu0 0.0
        %1479 = vmatprep.subr.mxu0 0.0
        %1480 = vmatpush1.msra.mxu0 0.0
        %1481 = vmatprep.subr.mxu0 0.0
        %1482 = vmatpush1.msra.mxu0 0.0
        %1483 = vmatprep.subr.mxu0 0.0
        %1484 = vmatpush1.msra.mxu0 0.0
        %1485 = vmatprep.subr.mxu0 0.0
        %1486 = vmatpush1.msra.mxu0 0.0
        %1487 = vmatprep.subr.mxu0 0.0
        %1488 = vmatpush1.msra.mxu0 0.0
        %1489 = vmatprep.subr.mxu0 %v1153
        %1490 = vmatpush1.msra.mxu0 %v1151
        %1491 = vmatprep.subr.mxu0 0.0
        %1492 = vmatpush2.msra.mxu0 0.0
        %1493 = vmatprep.subr.mxu0 0.0
        %1494 = vmatpush2.msra.mxu0 0.0
        %1495 = vmatprep.subr.mxu0 0.0
        %1496 = vmatpush2.msra.mxu0 0.0
        %1497 = vmatprep.subr.mxu0 0.0
        %1498 = vmatpush2.msra.mxu0 0.0
        %1499 = vmatprep.subr.mxu0 0.0
        %1500 = vmatpush2.msra.mxu0 0.0
        %1501 = vmatprep.subr.mxu0 0.0
        %1502 = vmatpush2.msra.mxu0 0.0
        %1503 = vmatprep.subr.mxu0 0.0
        %1504 = vmatpush2.msra.mxu0 0.0
        %1505 = vmatprep.subr.mxu0 0.0
        %1506 = vmatpush2.msra.mxu0 0.0
        %1507 = vmatprep.subr.mxu0 0.0
        %1508 = vmatpush2.msra.mxu0 0.0
        %1509 = vmatprep.subr.mxu0 0.0
        %1510 = vmatpush2.msra.mxu0 0.0
        %1511 = vmatprep.subr.mxu0 0.0
        %1512 = vmatpush2.msra.mxu0 0.0
        %1513 = vmatprep.subr.mxu0 0.0
        %1514 = vmatpush2.msra.mxu0 0.0
        %1515 = vmatprep.subr.mxu0 0.0
        %1516 = vmatpush2.msra.mxu0 0.0
        %1517 = vmatprep.subr.mxu0 0.0
        %1518 = vmatpush2.msra.mxu0 0.0
        %1519 = vmatprep.subr.mxu0 0.0
        %1520 = vmatpush2.msra.mxu0 0.0
        %1521 = vmatprep.subr.mxu0 0.0
        %1522 = vmatpush2.msra.mxu0 0.0
        %1523 = vmatprep.mubr.f32.mxu0 0.0
        %1524 = vmatmul.mubr.f32.gmra.mxu0 %v1457
        %v1525 = vpop.f32.mrf.mxu0
        %v1526 = vadd.f32 0.0, %v1525
        %v1527 = vpop.f32.mrf.mxu0
        %v1528 = vadd.f32 0.0, %v1527
        %1529 = vdwg.mxu0
        %1530 = vmatprep.subr.mxu0 0.0
        %1531 = vmatpush1.msra.mxu0 0.0
        %1532 = vmatprep.subr.mxu0 0.0
        %1533 = vmatpush1.msra.mxu0 0.0
        %1534 = vmatprep.subr.mxu0 0.0
        %1535 = vmatpush1.msra.mxu0 0.0
        %1536 = vmatprep.subr.mxu0 0.0
        %1537 = vmatpush1.msra.mxu0 0.0
        %1538 = vmatprep.subr.mxu0 0.0
        %1539 = vmatpush1.msra.mxu0 0.0
        %1540 = vmatprep.subr.mxu0 0.0
        %1541 = vmatpush1.msra.mxu0 0.0
        %1542 = vmatprep.subr.mxu0 0.0
        %1543 = vmatpush1.msra.mxu0 0.0
        %1544 = vmatprep.subr.mxu0 0.0
        %1545 = vmatpush1.msra.mxu0 0.0
        %1546 = vmatprep.subr.mxu0 0.0
        %1547 = vmatpush1.msra.mxu0 0.0
        %1548 = vmatprep.subr.mxu0 0.0
        %1549 = vmatpush1.msra.mxu0 0.0
        %1550 = vmatprep.subr.mxu0 0.0
        %1551 = vmatpush1.msra.mxu0 0.0
        %1552 = vmatprep.subr.mxu0 0.0
        %1553 = vmatpush1.msra.mxu0 0.0
        %1554 = vmatprep.subr.mxu0 0.0
        %1555 = vmatpush1.msra.mxu0 0.0
        %1556 = vmatprep.subr.mxu0 0.0
        %1557 = vmatpush1.msra.mxu0 0.0
        %1558 = vmatprep.subr.mxu0 0.0
        %1559 = vmatpush1.msra.mxu0 0.0
        %1560 = vmatprep.subr.mxu0 %v1157
        %1561 = vmatpush1.msra.mxu0 %v1155
        %1562 = vmatprep.subr.mxu0 0.0
        %1563 = vmatpush2.msra.mxu0 0.0
        %1564 = vmatprep.subr.mxu0 0.0
        %1565 = vmatpush2.msra.mxu0 0.0
        %1566 = vmatprep.subr.mxu0 0.0
        %1567 = vmatpush2.msra.mxu0 0.0
        %1568 = vmatprep.subr.mxu0 0.0
        %1569 = vmatpush2.msra.mxu0 0.0
        %1570 = vmatprep.subr.mxu0 0.0
        %1571 = vmatpush2.msra.mxu0 0.0
        %1572 = vmatprep.subr.mxu0 0.0
        %1573 = vmatpush2.msra.mxu0 0.0
        %1574 = vmatprep.subr.mxu0 0.0
        %1575 = vmatpush2.msra.mxu0 0.0
        %1576 = vmatprep.subr.mxu0 0.0
        %1577 = vmatpush2.msra.mxu0 0.0
        %1578 = vmatprep.subr.mxu0 0.0
        %1579 = vmatpush2.msra.mxu0 0.0
        %1580 = vmatprep.subr.mxu0 0.0
        %1581 = vmatpush2.msra.mxu0 0.0
        %1582 = vmatprep.subr.mxu0 0.0
        %1583 = vmatpush2.msra.mxu0 0.0
        %1584 = vmatprep.subr.mxu0 0.0
        %1585 = vmatpush2.msra.mxu0 0.0
        %1586 = vmatprep.subr.mxu0 0.0
        %1587 = vmatpush2.msra.mxu0 0.0
        %1588 = vmatprep.subr.mxu0 0.0
        %1589 = vmatpush2.msra.mxu0 0.0
        %1590 = vmatprep.subr.mxu0 0.0
        %1591 = vmatpush2.msra.mxu0 0.0
        %1592 = vmatprep.subr.mxu0 0.0
        %1593 = vmatpush2.msra.mxu0 0.0
        %1594 = vmatprep.mubr.f32.mxu0 0.0
        %1595 = vmatmul.mubr.f32.gmra.mxu0 %v1457
        %v1596 = vpop.f32.mrf.mxu0
        %v1597 = vadd.f32 0.0, %v1596
        %v1598 = vpop.f32.mrf.mxu0
        %1599 = vdwg.mxu0
        %v1600 = vadd.f32 %v1060, %v1526
        %v1601 = vadd.f32 %v1062, %v1528
        %v1602 = vadd.f32 %v1131, %v1597
        %s1603 = scalar_lea.vmem %s2, 24
        %v1604 = vld [vmem:[%s1603] sm:$0xff]
        %1605 = vrot.lane.b32.xlu0 %v223, 125
        %v1606 = vpop.permute.xlu0 %1605
        %1607 = vrot.lane.b32.xlu0 %v232, 125
        %v1608 = vpop.permute.xlu0 %1607
        %1609 = vrot.lane.b32.xlu0 %v224, 125
        %v1610 = vpop.permute.xlu0 %1609
        %1611 = vrot.lane.b32.xlu0 %v233, 125
        %v1612 = vpop.permute.xlu0 %1611
        %vm1613 = vcmask 1022976
        %v1614 = vsel %vm1613, %v1606, %v1608
        %v1615 = vsel %vm1613, %v1608, %v1610
        %v1616 = vsel %vm1613, %v1610, %v1612
        %v1618 = vsel %vm246, %v1604, 0
        %v1620 = vsel %vm250, %v1614, 0
        %v1622 = vsel %vm250, %v1615, 0
        %v1624 = vsel %vm250, %v1616, 0
        %v1626 = vsel %vm250, %v1612, 0
        %1628 = vmatprep.subr.mxu0 0.0
        %1629 = vmatpush1.msra.mxu0 0.0
        %1630 = vmatprep.subr.mxu0 0.0
        %1631 = vmatpush1.msra.mxu0 0.0
        %1632 = vmatprep.subr.mxu0 0.0
        %1633 = vmatpush1.msra.mxu0 0.0
        %1634 = vmatprep.subr.mxu0 0.0
        %1635 = vmatpush1.msra.mxu0 0.0
        %1636 = vmatprep.subr.mxu0 0.0
        %1637 = vmatpush1.msra.mxu0 0.0
        %1638 = vmatprep.subr.mxu0 0.0
        %1639 = vmatpush1.msra.mxu0 0.0
        %1640 = vmatprep.subr.mxu0 0.0
        %1641 = vmatpush1.msra.mxu0 0.0
        %1642 = vmatprep.subr.mxu0 0.0
        %1643 = vmatpush1.msra.mxu0 0.0
        %1644 = vmatprep.subr.mxu0 0.0
        %1645 = vmatpush1.msra.mxu0 0.0
        %1646 = vmatprep.subr.mxu0 0.0
        %1647 = vmatpush1.msra.mxu0 0.0
        %1648 = vmatprep.subr.mxu0 0.0
        %1649 = vmatpush1.msra.mxu0 0.0
        %1650 = vmatprep.subr.mxu0 0.0
        %1651 = vmatpush1.msra.mxu0 0.0
        %1652 = vmatprep.subr.mxu0 0.0
        %1653 = vmatpush1.msra.mxu0 0.0
        %1654 = vmatprep.subr.mxu0 0.0
        %1655 = vmatpush1.msra.mxu0 0.0
        %1656 = vmatprep.subr.mxu0 0.0
        %1657 = vmatpush1.msra.mxu0 0.0
        %1658 = vmatprep.subr.mxu0 %v1622
        %1659 = vmatpush1.msra.mxu0 %v1620
        %1660 = vmatprep.subr.mxu0 0.0
        %1661 = vmatpush2.msra.mxu0 0.0
        %1662 = vmatprep.subr.mxu0 0.0
        %1663 = vmatpush2.msra.mxu0 0.0
        %1664 = vmatprep.subr.mxu0 0.0
        %1665 = vmatpush2.msra.mxu0 0.0
        %1666 = vmatprep.subr.mxu0 0.0
        %1667 = vmatpush2.msra.mxu0 0.0
        %1668 = vmatprep.subr.mxu0 0.0
        %1669 = vmatpush2.msra.mxu0 0.0
        %1670 = vmatprep.subr.mxu0 0.0
        %1671 = vmatpush2.msra.mxu0 0.0
        %1672 = vmatprep.subr.mxu0 0.0
        %1673 = vmatpush2.msra.mxu0 0.0
        %1674 = vmatprep.subr.mxu0 0.0
        %1675 = vmatpush2.msra.mxu0 0.0
        %1676 = vmatprep.subr.mxu0 0.0
        %1677 = vmatpush2.msra.mxu0 0.0
        %1678 = vmatprep.subr.mxu0 0.0
        %1679 = vmatpush2.msra.mxu0 0.0
        %1680 = vmatprep.subr.mxu0 0.0
        %1681 = vmatpush2.msra.mxu0 0.0
        %1682 = vmatprep.subr.mxu0 0.0
        %1683 = vmatpush2.msra.mxu0 0.0
        %1684 = vmatprep.subr.mxu0 0.0
        %1685 = vmatpush2.msra.mxu0 0.0
        %1686 = vmatprep.subr.mxu0 0.0
        %1687 = vmatpush2.msra.mxu0 0.0
        %1688 = vmatprep.subr.mxu0 0.0
        %1689 = vmatpush2.msra.mxu0 0.0
        %1690 = vmatprep.subr.mxu0 0.0
        %1691 = vmatpush2.msra.mxu0 0.0
        %1692 = vmatprep.mubr.f32.mxu0 0.0
        %1693 = vmatmul.mubr.f32.gmra.mxu0 %v1618
        %v1694 = vpop.f32.mrf.mxu0
        %v1695 = vadd.f32 0.0, %v1694
        %v1696 = vpop.f32.mrf.mxu0
        %v1697 = vadd.f32 0.0, %v1696
        %1698 = vdwg.mxu0
        %1699 = vmatprep.subr.mxu0 0.0
        %1700 = vmatpush1.msra.mxu0 0.0
        %1701 = vmatprep.subr.mxu0 0.0
        %1702 = vmatpush1.msra.mxu0 0.0
        %1703 = vmatprep.subr.mxu0 0.0
        %1704 = vmatpush1.msra.mxu0 0.0
        %1705 = vmatprep.subr.mxu0 0.0
        %1706 = vmatpush1.msra.mxu0 0.0
        %1707 = vmatprep.subr.mxu0 0.0
        %1708 = vmatpush1.msra.mxu0 0.0
        %1709 = vmatprep.subr.mxu0 0.0
        %1710 = vmatpush1.msra.mxu0 0.0
        %1711 = vmatprep.subr.mxu0 0.0
        %1712 = vmatpush1.msra.mxu0 0.0
        %1713 = vmatprep.subr.mxu0 0.0
        %1714 = vmatpush1.msra.mxu0 0.0
        %1715 = vmatprep.subr.mxu0 0.0
        %1716 = vmatpush1.msra.mxu0 0.0
        %1717 = vmatprep.subr.mxu0 0.0
        %1718 = vmatpush1.msra.mxu0 0.0
        %1719 = vmatprep.subr.mxu0 0.0
        %1720 = vmatpush1.msra.mxu0 0.0
        %1721 = vmatprep.subr.mxu0 0.0
        %1722 = vmatpush1.msra.mxu0 0.0
        %1723 = vmatprep.subr.mxu0 0.0
        %1724 = vmatpush1.msra.mxu0 0.0
        %1725 = vmatprep.subr.mxu0 0.0
        %1726 = vmatpush1.msra.mxu0 0.0
        %1727 = vmatprep.subr.mxu0 0.0
        %1728 = vmatpush1.msra.mxu0 0.0
        %1729 = vmatprep.subr.mxu0 %v1626
        %1730 = vmatpush1.msra.mxu0 %v1624
        %1731 = vmatprep.subr.mxu0 0.0
        %1732 = vmatpush2.msra.mxu0 0.0
        %1733 = vmatprep.subr.mxu0 0.0
        %1734 = vmatpush2.msra.mxu0 0.0
        %1735 = vmatprep.subr.mxu0 0.0
        %1736 = vmatpush2.msra.mxu0 0.0
        %1737 = vmatprep.subr.mxu0 0.0
        %1738 = vmatpush2.msra.mxu0 0.0
        %1739 = vmatprep.subr.mxu0 0.0
        %1740 = vmatpush2.msra.mxu0 0.0
        %1741 = vmatprep.subr.mxu0 0.0
        %1742 = vmatpush2.msra.mxu0 0.0
        %1743 = vmatprep.subr.mxu0 0.0
        %1744 = vmatpush2.msra.mxu0 0.0
        %1745 = vmatprep.subr.mxu0 0.0
        %1746 = vmatpush2.msra.mxu0 0.0
        %1747 = vmatprep.subr.mxu0 0.0
        %1748 = vmatpush2.msra.mxu0 0.0
        %1749 = vmatprep.subr.mxu0 0.0
        %1750 = vmatpush2.msra.mxu0 0.0
        %1751 = vmatprep.subr.mxu0 0.0
        %1752 = vmatpush2.msra.mxu0 0.0
        %1753 = vmatprep.subr.mxu0 0.0
        %1754 = vmatpush2.msra.mxu0 0.0
        %1755 = vmatprep.subr.mxu0 0.0
        %1756 = vmatpush2.msra.mxu0 0.0
        %1757 = vmatprep.subr.mxu0 0.0
        %1758 = vmatpush2.msra.mxu0 0.0
        %1759 = vmatprep.subr.mxu0 0.0
        %1760 = vmatpush2.msra.mxu0 0.0
        %1761 = vmatprep.subr.mxu0 0.0
        %1762 = vmatpush2.msra.mxu0 0.0
        %1763 = vmatprep.mubr.f32.mxu0 0.0
        %1764 = vmatmul.mubr.f32.gmra.mxu0 %v1618
        %v1765 = vpop.f32.mrf.mxu0
        %v1766 = vadd.f32 0.0, %v1765
        %v1767 = vpop.f32.mrf.mxu0
        %1768 = vdwg.mxu0
        %v1769 = vadd.f32 %v1451, %v1695
        %v1770 = vadd.f32 %v1452, %v1697
        %v1771 = vadd.f32 %v1453, %v1766
        %s1772 = scalar_lea.vmem %s3, 24
        %v1773 = vld [vmem:[%s1772] sm:$0xff]
        %v1775 = vsel %vm246, %v1773, 0
        %1777 = vmatprep.subr.mxu0 0.0
        %1778 = vmatpush1.msra.mxu0 0.0
        %1779 = vmatprep.subr.mxu0 0.0
        %1780 = vmatpush1.msra.mxu0 0.0
        %1781 = vmatprep.subr.mxu0 0.0
        %1782 = vmatpush1.msra.mxu0 0.0
        %1783 = vmatprep.subr.mxu0 0.0
        %1784 = vmatpush1.msra.mxu0 0.0
        %1785 = vmatprep.subr.mxu0 0.0
        %1786 = vmatpush1.msra.mxu0 0.0
        %1787 = vmatprep.subr.mxu0 0.0
        %1788 = vmatpush1.msra.mxu0 0.0
        %1789 = vmatprep.subr.mxu0 0.0
        %1790 = vmatpush1.msra.mxu0 0.0
        %1791 = vmatprep.subr.mxu0 0.0
        %1792 = vmatpush1.msra.mxu0 0.0
        %1793 = vmatprep.subr.mxu0 0.0
        %1794 = vmatpush1.msra.mxu0 0.0
        %1795 = vmatprep.subr.mxu0 0.0
        %1796 = vmatpush1.msra.mxu0 0.0
        %1797 = vmatprep.subr.mxu0 0.0
        %1798 = vmatpush1.msra.mxu0 0.0
        %1799 = vmatprep.subr.mxu0 0.0
        %1800 = vmatpush1.msra.mxu0 0.0
        %1801 = vmatprep.subr.mxu0 0.0
        %1802 = vmatpush1.msra.mxu0 0.0
        %1803 = vmatprep.subr.mxu0 0.0
        %1804 = vmatpush1.msra.mxu0 0.0
        %1805 = vmatprep.subr.mxu0 0.0
        %1806 = vmatpush1.msra.mxu0 0.0
        %1807 = vmatprep.subr.mxu0 %v1622
        %1808 = vmatpush1.msra.mxu0 %v1620
        %1809 = vmatprep.subr.mxu0 0.0
        %1810 = vmatpush2.msra.mxu0 0.0
        %1811 = vmatprep.subr.mxu0 0.0
        %1812 = vmatpush2.msra.mxu0 0.0
        %1813 = vmatprep.subr.mxu0 0.0
        %1814 = vmatpush2.msra.mxu0 0.0
        %1815 = vmatprep.subr.mxu0 0.0
        %1816 = vmatpush2.msra.mxu0 0.0
        %1817 = vmatprep.subr.mxu0 0.0
        %1818 = vmatpush2.msra.mxu0 0.0
        %1819 = vmatprep.subr.mxu0 0.0
        %1820 = vmatpush2.msra.mxu0 0.0
        %1821 = vmatprep.subr.mxu0 0.0
        %1822 = vmatpush2.msra.mxu0 0.0
        %1823 = vmatprep.subr.mxu0 0.0
        %1824 = vmatpush2.msra.mxu0 0.0
        %1825 = vmatprep.subr.mxu0 0.0
        %1826 = vmatpush2.msra.mxu0 0.0
        %1827 = vmatprep.subr.mxu0 0.0
        %1828 = vmatpush2.msra.mxu0 0.0
        %1829 = vmatprep.subr.mxu0 0.0
        %1830 = vmatpush2.msra.mxu0 0.0
        %1831 = vmatprep.subr.mxu0 0.0
        %1832 = vmatpush2.msra.mxu0 0.0
        %1833 = vmatprep.subr.mxu0 0.0
        %1834 = vmatpush2.msra.mxu0 0.0
        %1835 = vmatprep.subr.mxu0 0.0
        %1836 = vmatpush2.msra.mxu0 0.0
        %1837 = vmatprep.subr.mxu0 0.0
        %1838 = vmatpush2.msra.mxu0 0.0
        %1839 = vmatprep.subr.mxu0 0.0
        %1840 = vmatpush2.msra.mxu0 0.0
        %1841 = vmatprep.mubr.f32.mxu0 0.0
        %1842 = vmatmul.mubr.f32.gmra.mxu0 %v1775
        %v1843 = vpop.f32.mrf.mxu0
        %v1844 = vadd.f32 0.0, %v1843
        %v1845 = vpop.f32.mrf.mxu0
        %v1846 = vadd.f32 0.0, %v1845
        %1847 = vdwg.mxu0
        %1848 = vmatprep.subr.mxu0 0.0
        %1849 = vmatpush1.msra.mxu0 0.0
        %1850 = vmatprep.subr.mxu0 0.0
        %1851 = vmatpush1.msra.mxu0 0.0
        %1852 = vmatprep.subr.mxu0 0.0
        %1853 = vmatpush1.msra.mxu0 0.0
        %1854 = vmatprep.subr.mxu0 0.0
        %1855 = vmatpush1.msra.mxu0 0.0
        %1856 = vmatprep.subr.mxu0 0.0
        %1857 = vmatpush1.msra.mxu0 0.0
        %1858 = vmatprep.subr.mxu0 0.0
        %1859 = vmatpush1.msra.mxu0 0.0
        %1860 = vmatprep.subr.mxu0 0.0
        %1861 = vmatpush1.msra.mxu0 0.0
        %1862 = vmatprep.subr.mxu0 0.0
        %1863 = vmatpush1.msra.mxu0 0.0
        %1864 = vmatprep.subr.mxu0 0.0
        %1865 = vmatpush1.msra.mxu0 0.0
        %1866 = vmatprep.subr.mxu0 0.0
        %1867 = vmatpush1.msra.mxu0 0.0
        %1868 = vmatprep.subr.mxu0 0.0
        %1869 = vmatpush1.msra.mxu0 0.0
        %1870 = vmatprep.subr.mxu0 0.0
        %1871 = vmatpush1.msra.mxu0 0.0
        %1872 = vmatprep.subr.mxu0 0.0
        %1873 = vmatpush1.msra.mxu0 0.0
        %1874 = vmatprep.subr.mxu0 0.0
        %1875 = vmatpush1.msra.mxu0 0.0
        %1876 = vmatprep.subr.mxu0 0.0
        %1877 = vmatpush1.msra.mxu0 0.0
        %1878 = vmatprep.subr.mxu0 %v1626
        %1879 = vmatpush1.msra.mxu0 %v1624
        %1880 = vmatprep.subr.mxu0 0.0
        %1881 = vmatpush2.msra.mxu0 0.0
        %1882 = vmatprep.subr.mxu0 0.0
        %1883 = vmatpush2.msra.mxu0 0.0
        %1884 = vmatprep.subr.mxu0 0.0
        %1885 = vmatpush2.msra.mxu0 0.0
        %1886 = vmatprep.subr.mxu0 0.0
        %1887 = vmatpush2.msra.mxu0 0.0
        %1888 = vmatprep.subr.mxu0 0.0
        %1889 = vmatpush2.msra.mxu0 0.0
        %1890 = vmatprep.subr.mxu0 0.0
        %1891 = vmatpush2.msra.mxu0 0.0
        %1892 = vmatprep.subr.mxu0 0.0
        %1893 = vmatpush2.msra.mxu0 0.0
        %1894 = vmatprep.subr.mxu0 0.0
        %1895 = vmatpush2.msra.mxu0 0.0
        %1896 = vmatprep.subr.mxu0 0.0
        %1897 = vmatpush2.msra.mxu0 0.0
        %1898 = vmatprep.subr.mxu0 0.0
        %1899 = vmatpush2.msra.mxu0 0.0
        %1900 = vmatprep.subr.mxu0 0.0
        %1901 = vmatpush2.msra.mxu0 0.0
        %1902 = vmatprep.subr.mxu0 0.0
        %1903 = vmatpush2.msra.mxu0 0.0
        %1904 = vmatprep.subr.mxu0 0.0
        %1905 = vmatpush2.msra.mxu0 0.0
        %1906 = vmatprep.subr.mxu0 0.0
        %1907 = vmatpush2.msra.mxu0 0.0
        %1908 = vmatprep.subr.mxu0 0.0
        %1909 = vmatpush2.msra.mxu0 0.0
        %1910 = vmatprep.subr.mxu0 0.0
        %1911 = vmatpush2.msra.mxu0 0.0
        %1912 = vmatprep.mubr.f32.mxu0 0.0
        %1913 = vmatmul.mubr.f32.gmra.mxu0 %v1775
        %v1914 = vpop.f32.mrf.mxu0
        %v1915 = vadd.f32 0.0, %v1914
        %v1916 = vpop.f32.mrf.mxu0
        %1917 = vdwg.mxu0
        %v1918 = vadd.f32 %v1600, %v1844
        %v1919 = vadd.f32 %v1601, %v1846
        %v1920 = vadd.f32 %v1602, %v1915
        %s1921 = scalar_lea.vmem %s3, 32
        %v1922 = vld [vmem:[%s1921] sm:$0xff]
        %1923 = vrot.lane.b32.xlu0 %v223, 124
        %v1924 = vpop.permute.xlu0 %1923
        %1925 = vrot.lane.b32.xlu0 %v232, 124
        %v1926 = vpop.permute.xlu0 %1925
        %1927 = vrot.lane.b32.xlu0 %v224, 124
        %v1928 = vpop.permute.xlu0 %1927
        %1929 = vrot.lane.b32.xlu0 %v233, 124
        %v1930 = vpop.permute.xlu0 %1929
        %vm1931 = vcmask 1014784
        %v1932 = vsel %vm1931, %v1924, %v1926
        %v1933 = vsel %vm1931, %v1926, %v1928
        %v1934 = vsel %vm1931, %v1928, %v1930
        %v1936 = vsel %vm246, %v1922, 0
        %v1938 = vsel %vm250, %v1932, 0
        %v1940 = vsel %vm250, %v1933, 0
        %v1942 = vsel %vm250, %v1934, 0
        %v1944 = vsel %vm250, %v1930, 0
        %1946 = vmatprep.subr.mxu0 0.0
        %1947 = vmatpush1.msra.mxu0 0.0
        %1948 = vmatprep.subr.mxu0 0.0
        %1949 = vmatpush1.msra.mxu0 0.0
        %1950 = vmatprep.subr.mxu0 0.0
        %1951 = vmatpush1.msra.mxu0 0.0
        %1952 = vmatprep.subr.mxu0 0.0
        %1953 = vmatpush1.msra.mxu0 0.0
        %1954 = vmatprep.subr.mxu0 0.0
        %1955 = vmatpush1.msra.mxu0 0.0
        %1956 = vmatprep.subr.mxu0 0.0
        %1957 = vmatpush1.msra.mxu0 0.0
        %1958 = vmatprep.subr.mxu0 0.0
        %1959 = vmatpush1.msra.mxu0 0.0
        %1960 = vmatprep.subr.mxu0 0.0
        %1961 = vmatpush1.msra.mxu0 0.0
        %1962 = vmatprep.subr.mxu0 0.0
        %1963 = vmatpush1.msra.mxu0 0.0
        %1964 = vmatprep.subr.mxu0 0.0
        %1965 = vmatpush1.msra.mxu0 0.0
        %1966 = vmatprep.subr.mxu0 0.0
        %1967 = vmatpush1.msra.mxu0 0.0
        %1968 = vmatprep.subr.mxu0 0.0
        %1969 = vmatpush1.msra.mxu0 0.0
        %1970 = vmatprep.subr.mxu0 0.0
        %1971 = vmatpush1.msra.mxu0 0.0
        %1972 = vmatprep.subr.mxu0 0.0
        %1973 = vmatpush1.msra.mxu0 0.0
        %1974 = vmatprep.subr.mxu0 0.0
        %1975 = vmatpush1.msra.mxu0 0.0
        %1976 = vmatprep.subr.mxu0 %v1940
        %1977 = vmatpush1.msra.mxu0 %v1938
        %1978 = vmatprep.subr.mxu0 0.0
        %1979 = vmatpush2.msra.mxu0 0.0
        %1980 = vmatprep.subr.mxu0 0.0
        %1981 = vmatpush2.msra.mxu0 0.0
        %1982 = vmatprep.subr.mxu0 0.0
        %1983 = vmatpush2.msra.mxu0 0.0
        %1984 = vmatprep.subr.mxu0 0.0
        %1985 = vmatpush2.msra.mxu0 0.0
        %1986 = vmatprep.subr.mxu0 0.0
        %1987 = vmatpush2.msra.mxu0 0.0
        %1988 = vmatprep.subr.mxu0 0.0
        %1989 = vmatpush2.msra.mxu0 0.0
        %1990 = vmatprep.subr.mxu0 0.0
        %1991 = vmatpush2.msra.mxu0 0.0
        %1992 = vmatprep.subr.mxu0 0.0
        %1993 = vmatpush2.msra.mxu0 0.0
        %1994 = vmatprep.subr.mxu0 0.0
        %1995 = vmatpush2.msra.mxu0 0.0
        %1996 = vmatprep.subr.mxu0 0.0
        %1997 = vmatpush2.msra.mxu0 0.0
        %1998 = vmatprep.subr.mxu0 0.0
        %1999 = vmatpush2.msra.mxu0 0.0
        %2000 = vmatprep.subr.mxu0 0.0
        %2001 = vmatpush2.msra.mxu0 0.0
        %2002 = vmatprep.subr.mxu0 0.0
        %2003 = vmatpush2.msra.mxu0 0.0
        %2004 = vmatprep.subr.mxu0 0.0
        %2005 = vmatpush2.msra.mxu0 0.0
        %2006 = vmatprep.subr.mxu0 0.0
        %2007 = vmatpush2.msra.mxu0 0.0
        %2008 = vmatprep.subr.mxu0 0.0
        %2009 = vmatpush2.msra.mxu0 0.0
        %2010 = vmatprep.mubr.f32.mxu0 0.0
        %2011 = vmatmul.mubr.f32.gmra.mxu0 %v1936
        %v2012 = vpop.f32.mrf.mxu0
        %v2013 = vadd.f32 0.0, %v2012
        %v2014 = vpop.f32.mrf.mxu0
        %v2015 = vadd.f32 0.0, %v2014
        %2016 = vdwg.mxu0
        %2017 = vmatprep.subr.mxu0 0.0
        %2018 = vmatpush1.msra.mxu0 0.0
        %2019 = vmatprep.subr.mxu0 0.0
        %2020 = vmatpush1.msra.mxu0 0.0
        %2021 = vmatprep.subr.mxu0 0.0
        %2022 = vmatpush1.msra.mxu0 0.0
        %2023 = vmatprep.subr.mxu0 0.0
        %2024 = vmatpush1.msra.mxu0 0.0
        %2025 = vmatprep.subr.mxu0 0.0
        %2026 = vmatpush1.msra.mxu0 0.0
        %2027 = vmatprep.subr.mxu0 0.0
        %2028 = vmatpush1.msra.mxu0 0.0
        %2029 = vmatprep.subr.mxu0 0.0
        %2030 = vmatpush1.msra.mxu0 0.0
        %2031 = vmatprep.subr.mxu0 0.0
        %2032 = vmatpush1.msra.mxu0 0.0
        %2033 = vmatprep.subr.mxu0 0.0
        %2034 = vmatpush1.msra.mxu0 0.0
        %2035 = vmatprep.subr.mxu0 0.0
        %2036 = vmatpush1.msra.mxu0 0.0
        %2037 = vmatprep.subr.mxu0 0.0
        %2038 = vmatpush1.msra.mxu0 0.0
        %2039 = vmatprep.subr.mxu0 0.0
        %2040 = vmatpush1.msra.mxu0 0.0
        %2041 = vmatprep.subr.mxu0 0.0
        %2042 = vmatpush1.msra.mxu0 0.0
        %2043 = vmatprep.subr.mxu0 0.0
        %2044 = vmatpush1.msra.mxu0 0.0
        %2045 = vmatprep.subr.mxu0 0.0
        %2046 = vmatpush1.msra.mxu0 0.0
        %2047 = vmatprep.subr.mxu0 %v1944
        %2048 = vmatpush1.msra.mxu0 %v1942
        %2049 = vmatprep.subr.mxu0 0.0
        %2050 = vmatpush2.msra.mxu0 0.0
        %2051 = vmatprep.subr.mxu0 0.0
        %2052 = vmatpush2.msra.mxu0 0.0
        %2053 = vmatprep.subr.mxu0 0.0
        %2054 = vmatpush2.msra.mxu0 0.0
        %2055 = vmatprep.subr.mxu0 0.0
        %2056 = vmatpush2.msra.mxu0 0.0
        %2057 = vmatprep.subr.mxu0 0.0
        %2058 = vmatpush2.msra.mxu0 0.0
        %2059 = vmatprep.subr.mxu0 0.0
        %2060 = vmatpush2.msra.mxu0 0.0
        %2061 = vmatprep.subr.mxu0 0.0
        %2062 = vmatpush2.msra.mxu0 0.0
        %2063 = vmatprep.subr.mxu0 0.0
        %2064 = vmatpush2.msra.mxu0 0.0
        %2065 = vmatprep.subr.mxu0 0.0
        %2066 = vmatpush2.msra.mxu0 0.0
        %2067 = vmatprep.subr.mxu0 0.0
        %2068 = vmatpush2.msra.mxu0 0.0
        %2069 = vmatprep.subr.mxu0 0.0
        %2070 = vmatpush2.msra.mxu0 0.0
        %2071 = vmatprep.subr.mxu0 0.0
        %2072 = vmatpush2.msra.mxu0 0.0
        %2073 = vmatprep.subr.mxu0 0.0
        %2074 = vmatpush2.msra.mxu0 0.0
        %2075 = vmatprep.subr.mxu0 0.0
        %2076 = vmatpush2.msra.mxu0 0.0
        %2077 = vmatprep.subr.mxu0 0.0
        %2078 = vmatpush2.msra.mxu0 0.0
        %2079 = vmatprep.subr.mxu0 0.0
        %2080 = vmatpush2.msra.mxu0 0.0
        %2081 = vmatprep.mubr.f32.mxu0 0.0
        %2082 = vmatmul.mubr.f32.gmra.mxu0 %v1936
        %v2083 = vpop.f32.mrf.mxu0
        %v2084 = vadd.f32 0.0, %v2083
        %v2085 = vpop.f32.mrf.mxu0
        %2086 = vdwg.mxu0
        %v2087 = vadd.f32 %v1918, %v2013
        %v2088 = vadd.f32 %v1919, %v2015
        %v2089 = vadd.f32 %v1920, %v2084
        %s2090 = scalar_lea.vmem %s1, 24
        %v2091 = vld [vmem:[%s2090] sm:$0xff]
        %2092 = vrot.lane.b32.xlu0 %v223, 108
        %v2093 = vpop.permute.xlu0 %2092
        %2094 = vrot.lane.b32.xlu0 %v232, 108
        %v2095 = vpop.permute.xlu0 %2094
        %2096 = vrot.lane.b32.xlu0 %v224, 108
        %v2097 = vpop.permute.xlu0 %2096
        %2098 = vrot.lane.b32.xlu0 %v233, 108
        %v2099 = vpop.permute.xlu0 %2098
        %vm2100 = vcmask 883712
        %v2101 = vsel %vm2100, %v2093, %v2095
        %v2102 = vsel %vm2100, %v2095, %v2097
        %v2103 = vsel %vm2100, %v2097, %v2099
        %v2105 = vsel %vm246, %v2091, 0
        %v2107 = vsel %vm250, %v2101, 0
        %v2109 = vsel %vm250, %v2102, 0
        %v2111 = vsel %vm250, %v2103, 0
        %v2113 = vsel %vm250, %v2099, 0
        %2115 = vmatprep.subr.mxu0 0.0
        %2116 = vmatpush1.msra.mxu0 0.0
        %2117 = vmatprep.subr.mxu0 0.0
        %2118 = vmatpush1.msra.mxu0 0.0
        %2119 = vmatprep.subr.mxu0 0.0
        %2120 = vmatpush1.msra.mxu0 0.0
        %2121 = vmatprep.subr.mxu0 0.0
        %2122 = vmatpush1.msra.mxu0 0.0
        %2123 = vmatprep.subr.mxu0 0.0
        %2124 = vmatpush1.msra.mxu0 0.0
        %2125 = vmatprep.subr.mxu0 0.0
        %2126 = vmatpush1.msra.mxu0 0.0
        %2127 = vmatprep.subr.mxu0 0.0
        %2128 = vmatpush1.msra.mxu0 0.0
        %2129 = vmatprep.subr.mxu0 0.0
        %2130 = vmatpush1.msra.mxu0 0.0
        %2131 = vmatprep.subr.mxu0 0.0
        %2132 = vmatpush1.msra.mxu0 0.0
        %2133 = vmatprep.subr.mxu0 0.0
        %2134 = vmatpush1.msra.mxu0 0.0
        %2135 = vmatprep.subr.mxu0 0.0
        %2136 = vmatpush1.msra.mxu0 0.0
        %2137 = vmatprep.subr.mxu0 0.0
        %2138 = vmatpush1.msra.mxu0 0.0
        %2139 = vmatprep.subr.mxu0 0.0
        %2140 = vmatpush1.msra.mxu0 0.0
        %2141 = vmatprep.subr.mxu0 0.0
        %2142 = vmatpush1.msra.mxu0 0.0
        %2143 = vmatprep.subr.mxu0 0.0
        %2144 = vmatpush1.msra.mxu0 0.0
        %2145 = vmatprep.subr.mxu0 %v2109
        %2146 = vmatpush1.msra.mxu0 %v2107
        %2147 = vmatprep.subr.mxu0 0.0
        %2148 = vmatpush2.msra.mxu0 0.0
        %2149 = vmatprep.subr.mxu0 0.0
        %2150 = vmatpush2.msra.mxu0 0.0
        %2151 = vmatprep.subr.mxu0 0.0
        %2152 = vmatpush2.msra.mxu0 0.0
        %2153 = vmatprep.subr.mxu0 0.0
        %2154 = vmatpush2.msra.mxu0 0.0
        %2155 = vmatprep.subr.mxu0 0.0
        %2156 = vmatpush2.msra.mxu0 0.0
        %2157 = vmatprep.subr.mxu0 0.0
        %2158 = vmatpush2.msra.mxu0 0.0
        %2159 = vmatprep.subr.mxu0 0.0
        %2160 = vmatpush2.msra.mxu0 0.0
        %2161 = vmatprep.subr.mxu0 0.0
        %2162 = vmatpush2.msra.mxu0 0.0
        %2163 = vmatprep.subr.mxu0 0.0
        %2164 = vmatpush2.msra.mxu0 0.0
        %2165 = vmatprep.subr.mxu0 0.0
        %2166 = vmatpush2.msra.mxu0 0.0
        %2167 = vmatprep.subr.mxu0 0.0
        %2168 = vmatpush2.msra.mxu0 0.0
        %2169 = vmatprep.subr.mxu0 0.0
        %2170 = vmatpush2.msra.mxu0 0.0
        %2171 = vmatprep.subr.mxu0 0.0
        %2172 = vmatpush2.msra.mxu0 0.0
        %2173 = vmatprep.subr.mxu0 0.0
        %2174 = vmatpush2.msra.mxu0 0.0
        %2175 = vmatprep.subr.mxu0 0.0
        %2176 = vmatpush2.msra.mxu0 0.0
        %2177 = vmatprep.subr.mxu0 0.0
        %2178 = vmatpush2.msra.mxu0 0.0
        %2179 = vmatprep.mubr.f32.mxu0 0.0
        %2180 = vmatmul.mubr.f32.gmra.mxu0 %v2105
        %v2181 = vpop.f32.mrf.mxu0
        %v2182 = vadd.f32 0.0, %v2181
        %v2183 = vpop.f32.mrf.mxu0
        %v2184 = vadd.f32 0.0, %v2183
        %2185 = vdwg.mxu0
        %2186 = vmatprep.subr.mxu0 0.0
        %2187 = vmatpush1.msra.mxu0 0.0
        %2188 = vmatprep.subr.mxu0 0.0
        %2189 = vmatpush1.msra.mxu0 0.0
        %2190 = vmatprep.subr.mxu0 0.0
        %2191 = vmatpush1.msra.mxu0 0.0
        %2192 = vmatprep.subr.mxu0 0.0
        %2193 = vmatpush1.msra.mxu0 0.0
        %2194 = vmatprep.subr.mxu0 0.0
        %2195 = vmatpush1.msra.mxu0 0.0
        %2196 = vmatprep.subr.mxu0 0.0
        %2197 = vmatpush1.msra.mxu0 0.0
        %2198 = vmatprep.subr.mxu0 0.0
        %2199 = vmatpush1.msra.mxu0 0.0
        %2200 = vmatprep.subr.mxu0 0.0
        %2201 = vmatpush1.msra.mxu0 0.0
        %2202 = vmatprep.subr.mxu0 0.0
        %2203 = vmatpush1.msra.mxu0 0.0
        %2204 = vmatprep.subr.mxu0 0.0
        %2205 = vmatpush1.msra.mxu0 0.0
        %2206 = vmatprep.subr.mxu0 0.0
        %2207 = vmatpush1.msra.mxu0 0.0
        %2208 = vmatprep.subr.mxu0 0.0
        %2209 = vmatpush1.msra.mxu0 0.0
        %2210 = vmatprep.subr.mxu0 0.0
        %2211 = vmatpush1.msra.mxu0 0.0
        %2212 = vmatprep.subr.mxu0 0.0
        %2213 = vmatpush1.msra.mxu0 0.0
        %2214 = vmatprep.subr.mxu0 0.0
        %2215 = vmatpush1.msra.mxu0 0.0
        %2216 = vmatprep.subr.mxu0 %v2113
        %2217 = vmatpush1.msra.mxu0 %v2111
        %2218 = vmatprep.subr.mxu0 0.0
        %2219 = vmatpush2.msra.mxu0 0.0
        %2220 = vmatprep.subr.mxu0 0.0
        %2221 = vmatpush2.msra.mxu0 0.0
        %2222 = vmatprep.subr.mxu0 0.0
        %2223 = vmatpush2.msra.mxu0 0.0
        %2224 = vmatprep.subr.mxu0 0.0
        %2225 = vmatpush2.msra.mxu0 0.0
        %2226 = vmatprep.subr.mxu0 0.0
        %2227 = vmatpush2.msra.mxu0 0.0
        %2228 = vmatprep.subr.mxu0 0.0
        %2229 = vmatpush2.msra.mxu0 0.0
        %2230 = vmatprep.subr.mxu0 0.0
        %2231 = vmatpush2.msra.mxu0 0.0
        %2232 = vmatprep.subr.mxu0 0.0
        %2233 = vmatpush2.msra.mxu0 0.0
        %2234 = vmatprep.subr.mxu0 0.0
        %2235 = vmatpush2.msra.mxu0 0.0
        %2236 = vmatprep.subr.mxu0 0.0
        %2237 = vmatpush2.msra.mxu0 0.0
        %2238 = vmatprep.subr.mxu0 0.0
        %2239 = vmatpush2.msra.mxu0 0.0
        %2240 = vmatprep.subr.mxu0 0.0
        %2241 = vmatpush2.msra.mxu0 0.0
        %2242 = vmatprep.subr.mxu0 0.0
        %2243 = vmatpush2.msra.mxu0 0.0
        %2244 = vmatprep.subr.mxu0 0.0
        %2245 = vmatpush2.msra.mxu0 0.0
        %2246 = vmatprep.subr.mxu0 0.0
        %2247 = vmatpush2.msra.mxu0 0.0
        %2248 = vmatprep.subr.mxu0 0.0
        %2249 = vmatpush2.msra.mxu0 0.0
        %2250 = vmatprep.mubr.f32.mxu0 0.0
        %2251 = vmatmul.mubr.f32.gmra.mxu0 %v2105
        %v2252 = vpop.f32.mrf.mxu0
        %v2253 = vadd.f32 0.0, %v2252
        %v2254 = vpop.f32.mrf.mxu0
        %v2255 = vadd.f32 0.0, %v2254
        %2256 = vdwg.mxu0
        %v2257 = vadd.f32 %v1301, %v2182
        %v2258 = vadd.f32 %v1302, %v2184
        %v2259 = vadd.f32 %v1303, %v2253
        %v2260 = vadd.f32 %v1304, %v2255
        %s2261 = scalar_lea.vmem %s2, 32
        %v2262 = vld [vmem:[%s2261] sm:$0xff]
        %v2264 = vsel %vm246, %v2262, 0
        %2266 = vmatprep.subr.mxu0 0.0
        %2267 = vmatpush1.msra.mxu0 0.0
        %2268 = vmatprep.subr.mxu0 0.0
        %2269 = vmatpush1.msra.mxu0 0.0
        %2270 = vmatprep.subr.mxu0 0.0
        %2271 = vmatpush1.msra.mxu0 0.0
        %2272 = vmatprep.subr.mxu0 0.0
        %2273 = vmatpush1.msra.mxu0 0.0
        %2274 = vmatprep.subr.mxu0 0.0
        %2275 = vmatpush1.msra.mxu0 0.0
        %2276 = vmatprep.subr.mxu0 0.0
        %2277 = vmatpush1.msra.mxu0 0.0
        %2278 = vmatprep.subr.mxu0 0.0
        %2279 = vmatpush1.msra.mxu0 0.0
        %2280 = vmatprep.subr.mxu0 0.0
        %2281 = vmatpush1.msra.mxu0 0.0
        %2282 = vmatprep.subr.mxu0 0.0
        %2283 = vmatpush1.msra.mxu0 0.0
        %2284 = vmatprep.subr.mxu0 0.0
        %2285 = vmatpush1.msra.mxu0 0.0
        %2286 = vmatprep.subr.mxu0 0.0
        %2287 = vmatpush1.msra.mxu0 0.0
        %2288 = vmatprep.subr.mxu0 0.0
        %2289 = vmatpush1.msra.mxu0 0.0
        %2290 = vmatprep.subr.mxu0 0.0
        %2291 = vmatpush1.msra.mxu0 0.0
        %2292 = vmatprep.subr.mxu0 0.0
        %2293 = vmatpush1.msra.mxu0 0.0
        %2294 = vmatprep.subr.mxu0 0.0
        %2295 = vmatpush1.msra.mxu0 0.0
        %2296 = vmatprep.subr.mxu0 %v2109
        %2297 = vmatpush1.msra.mxu0 %v2107
        %2298 = vmatprep.subr.mxu0 0.0
        %2299 = vmatpush2.msra.mxu0 0.0
        %2300 = vmatprep.subr.mxu0 0.0
        %2301 = vmatpush2.msra.mxu0 0.0
        %2302 = vmatprep.subr.mxu0 0.0
        %2303 = vmatpush2.msra.mxu0 0.0
        %2304 = vmatprep.subr.mxu0 0.0
        %2305 = vmatpush2.msra.mxu0 0.0
        %2306 = vmatprep.subr.mxu0 0.0
        %2307 = vmatpush2.msra.mxu0 0.0
        %2308 = vmatprep.subr.mxu0 0.0
        %2309 = vmatpush2.msra.mxu0 0.0
        %2310 = vmatprep.subr.mxu0 0.0
        %2311 = vmatpush2.msra.mxu0 0.0
        %2312 = vmatprep.subr.mxu0 0.0
        %2313 = vmatpush2.msra.mxu0 0.0
        %2314 = vmatprep.subr.mxu0 0.0
        %2315 = vmatpush2.msra.mxu0 0.0
        %2316 = vmatprep.subr.mxu0 0.0
        %2317 = vmatpush2.msra.mxu0 0.0
        %2318 = vmatprep.subr.mxu0 0.0
        %2319 = vmatpush2.msra.mxu0 0.0
        %2320 = vmatprep.subr.mxu0 0.0
        %2321 = vmatpush2.msra.mxu0 0.0
        %2322 = vmatprep.subr.mxu0 0.0
        %2323 = vmatpush2.msra.mxu0 0.0
        %2324 = vmatprep.subr.mxu0 0.0
        %2325 = vmatpush2.msra.mxu0 0.0
        %2326 = vmatprep.subr.mxu0 0.0
        %2327 = vmatpush2.msra.mxu0 0.0
        %2328 = vmatprep.subr.mxu0 0.0
        %2329 = vmatpush2.msra.mxu0 0.0
        %2330 = vmatprep.mubr.f32.mxu0 0.0
        %2331 = vmatmul.mubr.f32.gmra.mxu0 %v2264
        %v2332 = vpop.f32.mrf.mxu0
        %v2333 = vadd.f32 0.0, %v2332
        %v2334 = vpop.f32.mrf.mxu0
        %v2335 = vadd.f32 0.0, %v2334
        %2336 = vdwg.mxu0
        %2337 = vmatprep.subr.mxu0 0.0
        %2338 = vmatpush1.msra.mxu0 0.0
        %2339 = vmatprep.subr.mxu0 0.0
        %2340 = vmatpush1.msra.mxu0 0.0
        %2341 = vmatprep.subr.mxu0 0.0
        %2342 = vmatpush1.msra.mxu0 0.0
        %2343 = vmatprep.subr.mxu0 0.0
        %2344 = vmatpush1.msra.mxu0 0.0
        %2345 = vmatprep.subr.mxu0 0.0
        %2346 = vmatpush1.msra.mxu0 0.0
        %2347 = vmatprep.subr.mxu0 0.0
        %2348 = vmatpush1.msra.mxu0 0.0
        %2349 = vmatprep.subr.mxu0 0.0
        %2350 = vmatpush1.msra.mxu0 0.0
        %2351 = vmatprep.subr.mxu0 0.0
        %2352 = vmatpush1.msra.mxu0 0.0
        %2353 = vmatprep.subr.mxu0 0.0
        %2354 = vmatpush1.msra.mxu0 0.0
        %2355 = vmatprep.subr.mxu0 0.0
        %2356 = vmatpush1.msra.mxu0 0.0
        %2357 = vmatprep.subr.mxu0 0.0
        %2358 = vmatpush1.msra.mxu0 0.0
        %2359 = vmatprep.subr.mxu0 0.0
        %2360 = vmatpush1.msra.mxu0 0.0
        %2361 = vmatprep.subr.mxu0 0.0
        %2362 = vmatpush1.msra.mxu0 0.0
        %2363 = vmatprep.subr.mxu0 0.0
        %2364 = vmatpush1.msra.mxu0 0.0
        %2365 = vmatprep.subr.mxu0 0.0
        %2366 = vmatpush1.msra.mxu0 0.0
        %2367 = vmatprep.subr.mxu0 %v2113
        %2368 = vmatpush1.msra.mxu0 %v2111
        %2369 = vmatprep.subr.mxu0 0.0
        %2370 = vmatpush2.msra.mxu0 0.0
        %2371 = vmatprep.subr.mxu0 0.0
        %2372 = vmatpush2.msra.mxu0 0.0
        %2373 = vmatprep.subr.mxu0 0.0
        %2374 = vmatpush2.msra.mxu0 0.0
        %2375 = vmatprep.subr.mxu0 0.0
        %2376 = vmatpush2.msra.mxu0 0.0
        %2377 = vmatprep.subr.mxu0 0.0
        %2378 = vmatpush2.msra.mxu0 0.0
        %2379 = vmatprep.subr.mxu0 0.0
        %2380 = vmatpush2.msra.mxu0 0.0
        %2381 = vmatprep.subr.mxu0 0.0
        %2382 = vmatpush2.msra.mxu0 0.0
        %2383 = vmatprep.subr.mxu0 0.0
        %2384 = vmatpush2.msra.mxu0 0.0
        %2385 = vmatprep.subr.mxu0 0.0
        %2386 = vmatpush2.msra.mxu0 0.0
        %2387 = vmatprep.subr.mxu0 0.0
        %2388 = vmatpush2.msra.mxu0 0.0
        %2389 = vmatprep.subr.mxu0 0.0
        %2390 = vmatpush2.msra.mxu0 0.0
        %2391 = vmatprep.subr.mxu0 0.0
        %2392 = vmatpush2.msra.mxu0 0.0
        %2393 = vmatprep.subr.mxu0 0.0
        %2394 = vmatpush2.msra.mxu0 0.0
        %2395 = vmatprep.subr.mxu0 0.0
        %2396 = vmatpush2.msra.mxu0 0.0
        %2397 = vmatprep.subr.mxu0 0.0
        %2398 = vmatpush2.msra.mxu0 0.0
        %2399 = vmatprep.subr.mxu0 0.0
        %2400 = vmatpush2.msra.mxu0 0.0
        %2401 = vmatprep.mubr.f32.mxu0 0.0
        %2402 = vmatmul.mubr.f32.gmra.mxu0 %v2264
        %v2403 = vpop.f32.mrf.mxu0
        %v2404 = vadd.f32 0.0, %v2403
        %v2405 = vpop.f32.mrf.mxu0
        %2406 = vdwg.mxu0
        %v2407 = vadd.f32 %v1769, %v2333
        %v2408 = vadd.f32 %v1770, %v2335
        %v2409 = vadd.f32 %v1771, %v2404
        %s2410 = scalar_lea.vmem %s3, 40
        %v2411 = vld [vmem:[%s2410] sm:$0xff]
        %v2413 = vsel %vm246, %v2411, 0
        %2415 = vmatprep.subr.mxu0 0.0
        %2416 = vmatpush1.msra.mxu0 0.0
        %2417 = vmatprep.subr.mxu0 0.0
        %2418 = vmatpush1.msra.mxu0 0.0
        %2419 = vmatprep.subr.mxu0 0.0
        %2420 = vmatpush1.msra.mxu0 0.0
        %2421 = vmatprep.subr.mxu0 0.0
        %2422 = vmatpush1.msra.mxu0 0.0
        %2423 = vmatprep.subr.mxu0 0.0
        %2424 = vmatpush1.msra.mxu0 0.0
        %2425 = vmatprep.subr.mxu0 0.0
        %2426 = vmatpush1.msra.mxu0 0.0
        %2427 = vmatprep.subr.mxu0 0.0
        %2428 = vmatpush1.msra.mxu0 0.0
        %2429 = vmatprep.subr.mxu0 0.0
        %2430 = vmatpush1.msra.mxu0 0.0
        %2431 = vmatprep.subr.mxu0 0.0
        %2432 = vmatpush1.msra.mxu0 0.0
        %2433 = vmatprep.subr.mxu0 0.0
        %2434 = vmatpush1.msra.mxu0 0.0
        %2435 = vmatprep.subr.mxu0 0.0
        %2436 = vmatpush1.msra.mxu0 0.0
        %2437 = vmatprep.subr.mxu0 0.0
        %2438 = vmatpush1.msra.mxu0 0.0
        %2439 = vmatprep.subr.mxu0 0.0
        %2440 = vmatpush1.msra.mxu0 0.0
        %2441 = vmatprep.subr.mxu0 0.0
        %2442 = vmatpush1.msra.mxu0 0.0
        %2443 = vmatprep.subr.mxu0 0.0
        %2444 = vmatpush1.msra.mxu0 0.0
        %2445 = vmatprep.subr.mxu0 %v2109
        %2446 = vmatpush1.msra.mxu0 %v2107
        %2447 = vmatprep.subr.mxu0 0.0
        %2448 = vmatpush2.msra.mxu0 0.0
        %2449 = vmatprep.subr.mxu0 0.0
        %2450 = vmatpush2.msra.mxu0 0.0
        %2451 = vmatprep.subr.mxu0 0.0
        %2452 = vmatpush2.msra.mxu0 0.0
        %2453 = vmatprep.subr.mxu0 0.0
        %2454 = vmatpush2.msra.mxu0 0.0
        %2455 = vmatprep.subr.mxu0 0.0
        %2456 = vmatpush2.msra.mxu0 0.0
        %2457 = vmatprep.subr.mxu0 0.0
        %2458 = vmatpush2.msra.mxu0 0.0
        %2459 = vmatprep.subr.mxu0 0.0
        %2460 = vmatpush2.msra.mxu0 0.0
        %2461 = vmatprep.subr.mxu0 0.0
        %2462 = vmatpush2.msra.mxu0 0.0
        %2463 = vmatprep.subr.mxu0 0.0
        %2464 = vmatpush2.msra.mxu0 0.0
        %2465 = vmatprep.subr.mxu0 0.0
        %2466 = vmatpush2.msra.mxu0 0.0
        %2467 = vmatprep.subr.mxu0 0.0
        %2468 = vmatpush2.msra.mxu0 0.0
        %2469 = vmatprep.subr.mxu0 0.0
        %2470 = vmatpush2.msra.mxu0 0.0
        %2471 = vmatprep.subr.mxu0 0.0
        %2472 = vmatpush2.msra.mxu0 0.0
        %2473 = vmatprep.subr.mxu0 0.0
        %2474 = vmatpush2.msra.mxu0 0.0
        %2475 = vmatprep.subr.mxu0 0.0
        %2476 = vmatpush2.msra.mxu0 0.0
        %2477 = vmatprep.subr.mxu0 0.0
        %2478 = vmatpush2.msra.mxu0 0.0
        %2479 = vmatprep.mubr.f32.mxu0 0.0
        %2480 = vmatmul.mubr.f32.gmra.mxu0 %v2413
        %v2481 = vpop.f32.mrf.mxu0
        %v2482 = vadd.f32 0.0, %v2481
        %v2483 = vpop.f32.mrf.mxu0
        %v2484 = vadd.f32 0.0, %v2483
        %2485 = vdwg.mxu0
        %2486 = vmatprep.subr.mxu0 0.0
        %2487 = vmatpush1.msra.mxu0 0.0
        %2488 = vmatprep.subr.mxu0 0.0
        %2489 = vmatpush1.msra.mxu0 0.0
        %2490 = vmatprep.subr.mxu0 0.0
        %2491 = vmatpush1.msra.mxu0 0.0
        %2492 = vmatprep.subr.mxu0 0.0
        %2493 = vmatpush1.msra.mxu0 0.0
        %2494 = vmatprep.subr.mxu0 0.0
        %2495 = vmatpush1.msra.mxu0 0.0
        %2496 = vmatprep.subr.mxu0 0.0
        %2497 = vmatpush1.msra.mxu0 0.0
        %2498 = vmatprep.subr.mxu0 0.0
        %2499 = vmatpush1.msra.mxu0 0.0
        %2500 = vmatprep.subr.mxu0 0.0
        %2501 = vmatpush1.msra.mxu0 0.0
        %2502 = vmatprep.subr.mxu0 0.0
        %2503 = vmatpush1.msra.mxu0 0.0
        %2504 = vmatprep.subr.mxu0 0.0
        %2505 = vmatpush1.msra.mxu0 0.0
        %2506 = vmatprep.subr.mxu0 0.0
        %2507 = vmatpush1.msra.mxu0 0.0
        %2508 = vmatprep.subr.mxu0 0.0
        %2509 = vmatpush1.msra.mxu0 0.0
        %2510 = vmatprep.subr.mxu0 0.0
        %2511 = vmatpush1.msra.mxu0 0.0
        %2512 = vmatprep.subr.mxu0 0.0
        %2513 = vmatpush1.msra.mxu0 0.0
        %2514 = vmatprep.subr.mxu0 0.0
        %2515 = vmatpush1.msra.mxu0 0.0
        %2516 = vmatprep.subr.mxu0 %v2113
        %2517 = vmatpush1.msra.mxu0 %v2111
        %2518 = vmatprep.subr.mxu0 0.0
        %2519 = vmatpush2.msra.mxu0 0.0
        %2520 = vmatprep.subr.mxu0 0.0
        %2521 = vmatpush2.msra.mxu0 0.0
        %2522 = vmatprep.subr.mxu0 0.0
        %2523 = vmatpush2.msra.mxu0 0.0
        %2524 = vmatprep.subr.mxu0 0.0
        %2525 = vmatpush2.msra.mxu0 0.0
        %2526 = vmatprep.subr.mxu0 0.0
        %2527 = vmatpush2.msra.mxu0 0.0
        %2528 = vmatprep.subr.mxu0 0.0
        %2529 = vmatpush2.msra.mxu0 0.0
        %2530 = vmatprep.subr.mxu0 0.0
        %2531 = vmatpush2.msra.mxu0 0.0
        %2532 = vmatprep.subr.mxu0 0.0
        %2533 = vmatpush2.msra.mxu0 0.0
        %2534 = vmatprep.subr.mxu0 0.0
        %2535 = vmatpush2.msra.mxu0 0.0
        %2536 = vmatprep.subr.mxu0 0.0
        %2537 = vmatpush2.msra.mxu0 0.0
        %2538 = vmatprep.subr.mxu0 0.0
        %2539 = vmatpush2.msra.mxu0 0.0
        %2540 = vmatprep.subr.mxu0 0.0
        %2541 = vmatpush2.msra.mxu0 0.0
        %2542 = vmatprep.subr.mxu0 0.0
        %2543 = vmatpush2.msra.mxu0 0.0
        %2544 = vmatprep.subr.mxu0 0.0
        %2545 = vmatpush2.msra.mxu0 0.0
        %2546 = vmatprep.subr.mxu0 0.0
        %2547 = vmatpush2.msra.mxu0 0.0
        %2548 = vmatprep.subr.mxu0 0.0
        %2549 = vmatpush2.msra.mxu0 0.0
        %2550 = vmatprep.mubr.f32.mxu0 0.0
        %2551 = vmatmul.mubr.f32.gmra.mxu0 %v2413
        %v2552 = vpop.f32.mrf.mxu0
        %v2553 = vadd.f32 0.0, %v2552
        %v2554 = vpop.f32.mrf.mxu0
        %2555 = vdwg.mxu0
        %v2556 = vadd.f32 %v2087, %v2482
        %v2557 = vadd.f32 %v2088, %v2484
        %v2558 = vadd.f32 %v2089, %v2553
        %s2559 = scalar_lea.vmem %s1, 32
        %v2560 = vld [vmem:[%s2559] sm:$0xff]
        %2561 = vrot.lane.b32.xlu0 %v223, 107
        %v2562 = vpop.permute.xlu0 %2561
        %2563 = vrot.lane.b32.xlu0 %v232, 107
        %v2564 = vpop.permute.xlu0 %2563
        %2565 = vrot.lane.b32.xlu0 %v224, 107
        %v2566 = vpop.permute.xlu0 %2565
        %2567 = vrot.lane.b32.xlu0 %v233, 107
        %v2568 = vpop.permute.xlu0 %2567
        %vm2569 = vcmask 875520
        %v2570 = vsel %vm2569, %v2562, %v2564
        %v2571 = vsel %vm2569, %v2564, %v2566
        %v2572 = vsel %vm2569, %v2566, %v2568
        %v2574 = vsel %vm246, %v2560, 0
        %v2576 = vsel %vm250, %v2570, 0
        %v2578 = vsel %vm250, %v2571, 0
        %v2580 = vsel %vm250, %v2572, 0
        %v2582 = vsel %vm250, %v2568, 0
        %2584 = vmatprep.subr.mxu0 0.0
        %2585 = vmatpush1.msra.mxu0 0.0
        %2586 = vmatprep.subr.mxu0 0.0
        %2587 = vmatpush1.msra.mxu0 0.0
        %2588 = vmatprep.subr.mxu0 0.0
        %2589 = vmatpush1.msra.mxu0 0.0
        %2590 = vmatprep.subr.mxu0 0.0
        %2591 = vmatpush1.msra.mxu0 0.0
        %2592 = vmatprep.subr.mxu0 0.0
        %2593 = vmatpush1.msra.mxu0 0.0
        %2594 = vmatprep.subr.mxu0 0.0
        %2595 = vmatpush1.msra.mxu0 0.0
        %2596 = vmatprep.subr.mxu0 0.0
        %2597 = vmatpush1.msra.mxu0 0.0
        %2598 = vmatprep.subr.mxu0 0.0
        %2599 = vmatpush1.msra.mxu0 0.0
        %2600 = vmatprep.subr.mxu0 0.0
        %2601 = vmatpush1.msra.mxu0 0.0
        %2602 = vmatprep.subr.mxu0 0.0
        %2603 = vmatpush1.msra.mxu0 0.0
        %2604 = vmatprep.subr.mxu0 0.0
        %2605 = vmatpush1.msra.mxu0 0.0
        %2606 = vmatprep.subr.mxu0 0.0
        %2607 = vmatpush1.msra.mxu0 0.0
        %2608 = vmatprep.subr.mxu0 0.0
        %2609 = vmatpush1.msra.mxu0 0.0
        %2610 = vmatprep.subr.mxu0 0.0
        %2611 = vmatpush1.msra.mxu0 0.0
        %2612 = vmatprep.subr.mxu0 0.0
        %2613 = vmatpush1.msra.mxu0 0.0
        %2614 = vmatprep.subr.mxu0 %v2578
        %2615 = vmatpush1.msra.mxu0 %v2576
        %2616 = vmatprep.subr.mxu0 0.0
        %2617 = vmatpush2.msra.mxu0 0.0
        %2618 = vmatprep.subr.mxu0 0.0
        %2619 = vmatpush2.msra.mxu0 0.0
        %2620 = vmatprep.subr.mxu0 0.0
        %2621 = vmatpush2.msra.mxu0 0.0
        %2622 = vmatprep.subr.mxu0 0.0
        %2623 = vmatpush2.msra.mxu0 0.0
        %2624 = vmatprep.subr.mxu0 0.0
        %2625 = vmatpush2.msra.mxu0 0.0
        %2626 = vmatprep.subr.mxu0 0.0
        %2627 = vmatpush2.msra.mxu0 0.0
        %2628 = vmatprep.subr.mxu0 0.0
        %2629 = vmatpush2.msra.mxu0 0.0
        %2630 = vmatprep.subr.mxu0 0.0
        %2631 = vmatpush2.msra.mxu0 0.0
        %2632 = vmatprep.subr.mxu0 0.0
        %2633 = vmatpush2.msra.mxu0 0.0
        %2634 = vmatprep.subr.mxu0 0.0
        %2635 = vmatpush2.msra.mxu0 0.0
        %2636 = vmatprep.subr.mxu0 0.0
        %2637 = vmatpush2.msra.mxu0 0.0
        %2638 = vmatprep.subr.mxu0 0.0
        %2639 = vmatpush2.msra.mxu0 0.0
        %2640 = vmatprep.subr.mxu0 0.0
        %2641 = vmatpush2.msra.mxu0 0.0
        %2642 = vmatprep.subr.mxu0 0.0
        %2643 = vmatpush2.msra.mxu0 0.0
        %2644 = vmatprep.subr.mxu0 0.0
        %2645 = vmatpush2.msra.mxu0 0.0
        %2646 = vmatprep.subr.mxu0 0.0
        %2647 = vmatpush2.msra.mxu0 0.0
        %2648 = vmatprep.mubr.f32.mxu0 0.0
        %2649 = vmatmul.mubr.f32.gmra.mxu0 %v2574
        %v2650 = vpop.f32.mrf.mxu0
        %v2651 = vadd.f32 0.0, %v2650
        %v2652 = vpop.f32.mrf.mxu0
        %v2653 = vadd.f32 0.0, %v2652
        %2654 = vdwg.mxu0
        %2655 = vmatprep.subr.mxu0 0.0
        %2656 = vmatpush1.msra.mxu0 0.0
        %2657 = vmatprep.subr.mxu0 0.0
        %2658 = vmatpush1.msra.mxu0 0.0
        %2659 = vmatprep.subr.mxu0 0.0
        %2660 = vmatpush1.msra.mxu0 0.0
        %2661 = vmatprep.subr.mxu0 0.0
        %2662 = vmatpush1.msra.mxu0 0.0
        %2663 = vmatprep.subr.mxu0 0.0
        %2664 = vmatpush1.msra.mxu0 0.0
        %2665 = vmatprep.subr.mxu0 0.0
        %2666 = vmatpush1.msra.mxu0 0.0
        %2667 = vmatprep.subr.mxu0 0.0
        %2668 = vmatpush1.msra.mxu0 0.0
        %2669 = vmatprep.subr.mxu0 0.0
        %2670 = vmatpush1.msra.mxu0 0.0
        %2671 = vmatprep.subr.mxu0 0.0
        %2672 = vmatpush1.msra.mxu0 0.0
        %2673 = vmatprep.subr.mxu0 0.0
        %2674 = vmatpush1.msra.mxu0 0.0
        %2675 = vmatprep.subr.mxu0 0.0
        %2676 = vmatpush1.msra.mxu0 0.0
        %2677 = vmatprep.subr.mxu0 0.0
        %2678 = vmatpush1.msra.mxu0 0.0
        %2679 = vmatprep.subr.mxu0 0.0
        %2680 = vmatpush1.msra.mxu0 0.0
        %2681 = vmatprep.subr.mxu0 0.0
        %2682 = vmatpush1.msra.mxu0 0.0
        %2683 = vmatprep.subr.mxu0 0.0
        %2684 = vmatpush1.msra.mxu0 0.0
        %2685 = vmatprep.subr.mxu0 %v2582
        %2686 = vmatpush1.msra.mxu0 %v2580
        %2687 = vmatprep.subr.mxu0 0.0
        %2688 = vmatpush2.msra.mxu0 0.0
        %2689 = vmatprep.subr.mxu0 0.0
        %2690 = vmatpush2.msra.mxu0 0.0
        %2691 = vmatprep.subr.mxu0 0.0
        %2692 = vmatpush2.msra.mxu0 0.0
        %2693 = vmatprep.subr.mxu0 0.0
        %2694 = vmatpush2.msra.mxu0 0.0
        %2695 = vmatprep.subr.mxu0 0.0
        %2696 = vmatpush2.msra.mxu0 0.0
        %2697 = vmatprep.subr.mxu0 0.0
        %2698 = vmatpush2.msra.mxu0 0.0
        %2699 = vmatprep.subr.mxu0 0.0
        %2700 = vmatpush2.msra.mxu0 0.0
        %2701 = vmatprep.subr.mxu0 0.0
        %2702 = vmatpush2.msra.mxu0 0.0
        %2703 = vmatprep.subr.mxu0 0.0
        %2704 = vmatpush2.msra.mxu0 0.0
        %2705 = vmatprep.subr.mxu0 0.0
        %2706 = vmatpush2.msra.mxu0 0.0
        %2707 = vmatprep.subr.mxu0 0.0
        %2708 = vmatpush2.msra.mxu0 0.0
        %2709 = vmatprep.subr.mxu0 0.0
        %2710 = vmatpush2.msra.mxu0 0.0
        %2711 = vmatprep.subr.mxu0 0.0
        %2712 = vmatpush2.msra.mxu0 0.0
        %2713 = vmatprep.subr.mxu0 0.0
        %2714 = vmatpush2.msra.mxu0 0.0
        %2715 = vmatprep.subr.mxu0 0.0
        %2716 = vmatpush2.msra.mxu0 0.0
        %2717 = vmatprep.subr.mxu0 0.0
        %2718 = vmatpush2.msra.mxu0 0.0
        %2719 = vmatprep.mubr.f32.mxu0 0.0
        %2720 = vmatmul.mubr.f32.gmra.mxu0 %v2574
        %v2721 = vpop.f32.mrf.mxu0
        %v2722 = vadd.f32 0.0, %v2721
        %v2723 = vpop.f32.mrf.mxu0
        %v2724 = vadd.f32 0.0, %v2723
        %2725 = vdwg.mxu0
        %v2726 = vadd.f32 %v2257, %v2651
        %v2727 = vadd.f32 %v2258, %v2653
        %v2728 = vadd.f32 %v2259, %v2722
        %v2729 = vadd.f32 %v2260, %v2724
        %s2730 = scalar_lea.vmem %s2, 40
        %v2731 = vld [vmem:[%s2730] sm:$0xff]
        %v2733 = vsel %vm246, %v2731, 0
        %2735 = vmatprep.subr.mxu0 0.0
        %2736 = vmatpush1.msra.mxu0 0.0
        %2737 = vmatprep.subr.mxu0 0.0
        %2738 = vmatpush1.msra.mxu0 0.0
        %2739 = vmatprep.subr.mxu0 0.0
        %2740 = vmatpush1.msra.mxu0 0.0
        %2741 = vmatprep.subr.mxu0 0.0
        %2742 = vmatpush1.msra.mxu0 0.0
        %2743 = vmatprep.subr.mxu0 0.0
        %2744 = vmatpush1.msra.mxu0 0.0
        %2745 = vmatprep.subr.mxu0 0.0
        %2746 = vmatpush1.msra.mxu0 0.0
        %2747 = vmatprep.subr.mxu0 0.0
        %2748 = vmatpush1.msra.mxu0 0.0
        %2749 = vmatprep.subr.mxu0 0.0
        %2750 = vmatpush1.msra.mxu0 0.0
        %2751 = vmatprep.subr.mxu0 0.0
        %2752 = vmatpush1.msra.mxu0 0.0
        %2753 = vmatprep.subr.mxu0 0.0
        %2754 = vmatpush1.msra.mxu0 0.0
        %2755 = vmatprep.subr.mxu0 0.0
        %2756 = vmatpush1.msra.mxu0 0.0
        %2757 = vmatprep.subr.mxu0 0.0
        %2758 = vmatpush1.msra.mxu0 0.0
        %2759 = vmatprep.subr.mxu0 0.0
        %2760 = vmatpush1.msra.mxu0 0.0
        %2761 = vmatprep.subr.mxu0 0.0
        %2762 = vmatpush1.msra.mxu0 0.0
        %2763 = vmatprep.subr.mxu0 0.0
        %2764 = vmatpush1.msra.mxu0 0.0
        %2765 = vmatprep.subr.mxu0 %v2578
        %2766 = vmatpush1.msra.mxu0 %v2576
        %2767 = vmatprep.subr.mxu0 0.0
        %2768 = vmatpush2.msra.mxu0 0.0
        %2769 = vmatprep.subr.mxu0 0.0
        %2770 = vmatpush2.msra.mxu0 0.0
        %2771 = vmatprep.subr.mxu0 0.0
        %2772 = vmatpush2.msra.mxu0 0.0
        %2773 = vmatprep.subr.mxu0 0.0
        %2774 = vmatpush2.msra.mxu0 0.0
        %2775 = vmatprep.subr.mxu0 0.0
        %2776 = vmatpush2.msra.mxu0 0.0
        %2777 = vmatprep.subr.mxu0 0.0
        %2778 = vmatpush2.msra.mxu0 0.0
        %2779 = vmatprep.subr.mxu0 0.0
        %2780 = vmatpush2.msra.mxu0 0.0
        %2781 = vmatprep.subr.mxu0 0.0
        %2782 = vmatpush2.msra.mxu0 0.0
        %2783 = vmatprep.subr.mxu0 0.0
        %2784 = vmatpush2.msra.mxu0 0.0
        %2785 = vmatprep.subr.mxu0 0.0
        %2786 = vmatpush2.msra.mxu0 0.0
        %2787 = vmatprep.subr.mxu0 0.0
        %2788 = vmatpush2.msra.mxu0 0.0
        %2789 = vmatprep.subr.mxu0 0.0
        %2790 = vmatpush2.msra.mxu0 0.0
        %2791 = vmatprep.subr.mxu0 0.0
        %2792 = vmatpush2.msra.mxu0 0.0
        %2793 = vmatprep.subr.mxu0 0.0
        %2794 = vmatpush2.msra.mxu0 0.0
        %2795 = vmatprep.subr.mxu0 0.0
        %2796 = vmatpush2.msra.mxu0 0.0
        %2797 = vmatprep.subr.mxu0 0.0
        %2798 = vmatpush2.msra.mxu0 0.0
        %2799 = vmatprep.mubr.f32.mxu0 0.0
        %2800 = vmatmul.mubr.f32.gmra.mxu0 %v2733
        %v2801 = vpop.f32.mrf.mxu0
        %v2802 = vadd.f32 0.0, %v2801
        %v2803 = vpop.f32.mrf.mxu0
        %v2804 = vadd.f32 0.0, %v2803
        %2805 = vdwg.mxu0
        %2806 = vmatprep.subr.mxu0 0.0
        %2807 = vmatpush1.msra.mxu0 0.0
        %2808 = vmatprep.subr.mxu0 0.0
        %2809 = vmatpush1.msra.mxu0 0.0
        %2810 = vmatprep.subr.mxu0 0.0
        %2811 = vmatpush1.msra.mxu0 0.0
        %2812 = vmatprep.subr.mxu0 0.0
        %2813 = vmatpush1.msra.mxu0 0.0
        %2814 = vmatprep.subr.mxu0 0.0
        %2815 = vmatpush1.msra.mxu0 0.0
        %2816 = vmatprep.subr.mxu0 0.0
        %2817 = vmatpush1.msra.mxu0 0.0
        %2818 = vmatprep.subr.mxu0 0.0
        %2819 = vmatpush1.msra.mxu0 0.0
        %2820 = vmatprep.subr.mxu0 0.0
        %2821 = vmatpush1.msra.mxu0 0.0
        %2822 = vmatprep.subr.mxu0 0.0
        %2823 = vmatpush1.msra.mxu0 0.0
        %2824 = vmatprep.subr.mxu0 0.0
        %2825 = vmatpush1.msra.mxu0 0.0
        %2826 = vmatprep.subr.mxu0 0.0
        %2827 = vmatpush1.msra.mxu0 0.0
        %2828 = vmatprep.subr.mxu0 0.0
        %2829 = vmatpush1.msra.mxu0 0.0
        %2830 = vmatprep.subr.mxu0 0.0
        %2831 = vmatpush1.msra.mxu0 0.0
        %2832 = vmatprep.subr.mxu0 0.0
        %2833 = vmatpush1.msra.mxu0 0.0
        %2834 = vmatprep.subr.mxu0 0.0
        %2835 = vmatpush1.msra.mxu0 0.0
        %2836 = vmatprep.subr.mxu0 %v2582
        %2837 = vmatpush1.msra.mxu0 %v2580
        %2838 = vmatprep.subr.mxu0 0.0
        %2839 = vmatpush2.msra.mxu0 0.0
        %2840 = vmatprep.subr.mxu0 0.0
        %2841 = vmatpush2.msra.mxu0 0.0
        %2842 = vmatprep.subr.mxu0 0.0
        %2843 = vmatpush2.msra.mxu0 0.0
        %2844 = vmatprep.subr.mxu0 0.0
        %2845 = vmatpush2.msra.mxu0 0.0
        %2846 = vmatprep.subr.mxu0 0.0
        %2847 = vmatpush2.msra.mxu0 0.0
        %2848 = vmatprep.subr.mxu0 0.0
        %2849 = vmatpush2.msra.mxu0 0.0
        %2850 = vmatprep.subr.mxu0 0.0
        %2851 = vmatpush2.msra.mxu0 0.0
        %2852 = vmatprep.subr.mxu0 0.0
        %2853 = vmatpush2.msra.mxu0 0.0
        %2854 = vmatprep.subr.mxu0 0.0
        %2855 = vmatpush2.msra.mxu0 0.0
        %2856 = vmatprep.subr.mxu0 0.0
        %2857 = vmatpush2.msra.mxu0 0.0
        %2858 = vmatprep.subr.mxu0 0.0
        %2859 = vmatpush2.msra.mxu0 0.0
        %2860 = vmatprep.subr.mxu0 0.0
        %2861 = vmatpush2.msra.mxu0 0.0
        %2862 = vmatprep.subr.mxu0 0.0
        %2863 = vmatpush2.msra.mxu0 0.0
        %2864 = vmatprep.subr.mxu0 0.0
        %2865 = vmatpush2.msra.mxu0 0.0
        %2866 = vmatprep.subr.mxu0 0.0
        %2867 = vmatpush2.msra.mxu0 0.0
        %2868 = vmatprep.subr.mxu0 0.0
        %2869 = vmatpush2.msra.mxu0 0.0
        %2870 = vmatprep.mubr.f32.mxu0 0.0
        %2871 = vmatmul.mubr.f32.gmra.mxu0 %v2733
        %v2872 = vpop.f32.mrf.mxu0
        %v2873 = vadd.f32 0.0, %v2872
        %v2874 = vpop.f32.mrf.mxu0
        %2875 = vdwg.mxu0
        %v2876 = vadd.f32 %v2407, %v2802
        %v2877 = vadd.f32 %v2408, %v2804
        %v2878 = vadd.f32 %v2409, %v2873
        %s2879 = scalar_lea.vmem %s3, 48
        %v2880 = vld [vmem:[%s2879] sm:$0xff]
        %v2882 = vsel %vm246, %v2880, 0
        %2884 = vmatprep.subr.mxu0 0.0
        %2885 = vmatpush1.msra.mxu0 0.0
        %2886 = vmatprep.subr.mxu0 0.0
        %2887 = vmatpush1.msra.mxu0 0.0
        %2888 = vmatprep.subr.mxu0 0.0
        %2889 = vmatpush1.msra.mxu0 0.0
        %2890 = vmatprep.subr.mxu0 0.0
        %2891 = vmatpush1.msra.mxu0 0.0
        %2892 = vmatprep.subr.mxu0 0.0
        %2893 = vmatpush1.msra.mxu0 0.0
        %2894 = vmatprep.subr.mxu0 0.0
        %2895 = vmatpush1.msra.mxu0 0.0
        %2896 = vmatprep.subr.mxu0 0.0
        %2897 = vmatpush1.msra.mxu0 0.0
        %2898 = vmatprep.subr.mxu0 0.0
        %2899 = vmatpush1.msra.mxu0 0.0
        %2900 = vmatprep.subr.mxu0 0.0
        %2901 = vmatpush1.msra.mxu0 0.0
        %2902 = vmatprep.subr.mxu0 0.0
        %2903 = vmatpush1.msra.mxu0 0.0
        %2904 = vmatprep.subr.mxu0 0.0
        %2905 = vmatpush1.msra.mxu0 0.0
        %2906 = vmatprep.subr.mxu0 0.0
        %2907 = vmatpush1.msra.mxu0 0.0
        %2908 = vmatprep.subr.mxu0 0.0
        %2909 = vmatpush1.msra.mxu0 0.0
        %2910 = vmatprep.subr.mxu0 0.0
        %2911 = vmatpush1.msra.mxu0 0.0
        %2912 = vmatprep.subr.mxu0 0.0
        %2913 = vmatpush1.msra.mxu0 0.0
        %2914 = vmatprep.subr.mxu0 %v2578
        %2915 = vmatpush1.msra.mxu0 %v2576
        %2916 = vmatprep.subr.mxu0 0.0
        %2917 = vmatpush2.msra.mxu0 0.0
        %2918 = vmatprep.subr.mxu0 0.0
        %2919 = vmatpush2.msra.mxu0 0.0
        %2920 = vmatprep.subr.mxu0 0.0
        %2921 = vmatpush2.msra.mxu0 0.0
        %2922 = vmatprep.subr.mxu0 0.0
        %2923 = vmatpush2.msra.mxu0 0.0
        %2924 = vmatprep.subr.mxu0 0.0
        %2925 = vmatpush2.msra.mxu0 0.0
        %2926 = vmatprep.subr.mxu0 0.0
        %2927 = vmatpush2.msra.mxu0 0.0
        %2928 = vmatprep.subr.mxu0 0.0
        %2929 = vmatpush2.msra.mxu0 0.0
        %2930 = vmatprep.subr.mxu0 0.0
        %2931 = vmatpush2.msra.mxu0 0.0
        %2932 = vmatprep.subr.mxu0 0.0
        %2933 = vmatpush2.msra.mxu0 0.0
        %2934 = vmatprep.subr.mxu0 0.0
        %2935 = vmatpush2.msra.mxu0 0.0
        %2936 = vmatprep.subr.mxu0 0.0
        %2937 = vmatpush2.msra.mxu0 0.0
        %2938 = vmatprep.subr.mxu0 0.0
        %2939 = vmatpush2.msra.mxu0 0.0
        %2940 = vmatprep.subr.mxu0 0.0
        %2941 = vmatpush2.msra.mxu0 0.0
        %2942 = vmatprep.subr.mxu0 0.0
        %2943 = vmatpush2.msra.mxu0 0.0
        %2944 = vmatprep.subr.mxu0 0.0
        %2945 = vmatpush2.msra.mxu0 0.0
        %2946 = vmatprep.subr.mxu0 0.0
        %2947 = vmatpush2.msra.mxu0 0.0
        %2948 = vmatprep.mubr.f32.mxu0 0.0
        %2949 = vmatmul.mubr.f32.gmra.mxu0 %v2882
        %v2950 = vpop.f32.mrf.mxu0
        %v2951 = vadd.f32 0.0, %v2950
        %v2952 = vpop.f32.mrf.mxu0
        %v2953 = vadd.f32 0.0, %v2952
        %2954 = vdwg.mxu0
        %2955 = vmatprep.subr.mxu0 0.0
        %2956 = vmatpush1.msra.mxu0 0.0
        %2957 = vmatprep.subr.mxu0 0.0
        %2958 = vmatpush1.msra.mxu0 0.0
        %2959 = vmatprep.subr.mxu0 0.0
        %2960 = vmatpush1.msra.mxu0 0.0
        %2961 = vmatprep.subr.mxu0 0.0
        %2962 = vmatpush1.msra.mxu0 0.0
        %2963 = vmatprep.subr.mxu0 0.0
        %2964 = vmatpush1.msra.mxu0 0.0
        %2965 = vmatprep.subr.mxu0 0.0
        %2966 = vmatpush1.msra.mxu0 0.0
        %2967 = vmatprep.subr.mxu0 0.0
        %2968 = vmatpush1.msra.mxu0 0.0
        %2969 = vmatprep.subr.mxu0 0.0
        %2970 = vmatpush1.msra.mxu0 0.0
        %2971 = vmatprep.subr.mxu0 0.0
        %2972 = vmatpush1.msra.mxu0 0.0
        %2973 = vmatprep.subr.mxu0 0.0
        %2974 = vmatpush1.msra.mxu0 0.0
        %2975 = vmatprep.subr.mxu0 0.0
        %2976 = vmatpush1.msra.mxu0 0.0
        %2977 = vmatprep.subr.mxu0 0.0
        %2978 = vmatpush1.msra.mxu0 0.0
        %2979 = vmatprep.subr.mxu0 0.0
        %2980 = vmatpush1.msra.mxu0 0.0
        %2981 = vmatprep.subr.mxu0 0.0
        %2982 = vmatpush1.msra.mxu0 0.0
        %2983 = vmatprep.subr.mxu0 0.0
        %2984 = vmatpush1.msra.mxu0 0.0
        %2985 = vmatprep.subr.mxu0 %v2582
        %2986 = vmatpush1.msra.mxu0 %v2580
        %2987 = vmatprep.subr.mxu0 0.0
        %2988 = vmatpush2.msra.mxu0 0.0
        %2989 = vmatprep.subr.mxu0 0.0
        %2990 = vmatpush2.msra.mxu0 0.0
        %2991 = vmatprep.subr.mxu0 0.0
        %2992 = vmatpush2.msra.mxu0 0.0
        %2993 = vmatprep.subr.mxu0 0.0
        %2994 = vmatpush2.msra.mxu0 0.0
        %2995 = vmatprep.subr.mxu0 0.0
        %2996 = vmatpush2.msra.mxu0 0.0
        %2997 = vmatprep.subr.mxu0 0.0
        %2998 = vmatpush2.msra.mxu0 0.0
        %2999 = vmatprep.subr.mxu0 0.0
        %3000 = vmatpush2.msra.mxu0 0.0
        %3001 = vmatprep.subr.mxu0 0.0
        %3002 = vmatpush2.msra.mxu0 0.0
        %3003 = vmatprep.subr.mxu0 0.0
        %3004 = vmatpush2.msra.mxu0 0.0
        %3005 = vmatprep.subr.mxu0 0.0
        %3006 = vmatpush2.msra.mxu0 0.0
        %3007 = vmatprep.subr.mxu0 0.0
        %3008 = vmatpush2.msra.mxu0 0.0
        %3009 = vmatprep.subr.mxu0 0.0
        %3010 = vmatpush2.msra.mxu0 0.0
        %3011 = vmatprep.subr.mxu0 0.0
        %3012 = vmatpush2.msra.mxu0 0.0
        %3013 = vmatprep.subr.mxu0 0.0
        %3014 = vmatpush2.msra.mxu0 0.0
        %3015 = vmatprep.subr.mxu0 0.0
        %3016 = vmatpush2.msra.mxu0 0.0
        %3017 = vmatprep.subr.mxu0 0.0
        %3018 = vmatpush2.msra.mxu0 0.0
        %3019 = vmatprep.mubr.f32.mxu0 0.0
        %3020 = vmatmul.mubr.f32.gmra.mxu0 %v2882
        %v3021 = vpop.f32.mrf.mxu0
        %v3022 = vadd.f32 0.0, %v3021
        %v3023 = vpop.f32.mrf.mxu0
        %3024 = vdwg.mxu0
        %v3025 = vadd.f32 %v2556, %v2951
        %v3026 = vadd.f32 %v2557, %v2953
        %v3027 = vadd.f32 %v2558, %v3022
        %s3028 = scalar_lea.vmem %s1, 40
        %v3029 = vld [vmem:[%s3028] sm:$0xff]
        %3030 = vrot.lane.b32.xlu0 %v223, 106
        %v3031 = vpop.permute.xlu0 %3030
        %3032 = vrot.lane.b32.xlu0 %v232, 106
        %v3033 = vpop.permute.xlu0 %3032
        %3034 = vrot.lane.b32.xlu0 %v224, 106
        %v3035 = vpop.permute.xlu0 %3034
        %3036 = vrot.lane.b32.xlu0 %v233, 106
        %v3037 = vpop.permute.xlu0 %3036
        %vm3038 = vcmask 867328
        %v3039 = vsel %vm3038, %v3031, %v3033
        %v3040 = vsel %vm3038, %v3033, %v3035
        %v3041 = vsel %vm3038, %v3035, %v3037
        %v3043 = vsel %vm246, %v3029, 0
        %v3045 = vsel %vm250, %v3039, 0
        %v3047 = vsel %vm250, %v3040, 0
        %v3049 = vsel %vm250, %v3041, 0
        %v3051 = vsel %vm250, %v3037, 0
        %3053 = vmatprep.subr.mxu0 0.0
        %3054 = vmatpush1.msra.mxu0 0.0
        %3055 = vmatprep.subr.mxu0 0.0
        %3056 = vmatpush1.msra.mxu0 0.0
        %3057 = vmatprep.subr.mxu0 0.0
        %3058 = vmatpush1.msra.mxu0 0.0
        %3059 = vmatprep.subr.mxu0 0.0
        %3060 = vmatpush1.msra.mxu0 0.0
        %3061 = vmatprep.subr.mxu0 0.0
        %3062 = vmatpush1.msra.mxu0 0.0
        %3063 = vmatprep.subr.mxu0 0.0
        %3064 = vmatpush1.msra.mxu0 0.0
        %3065 = vmatprep.subr.mxu0 0.0
        %3066 = vmatpush1.msra.mxu0 0.0
        %3067 = vmatprep.subr.mxu0 0.0
        %3068 = vmatpush1.msra.mxu0 0.0
        %3069 = vmatprep.subr.mxu0 0.0
        %3070 = vmatpush1.msra.mxu0 0.0
        %3071 = vmatprep.subr.mxu0 0.0
        %3072 = vmatpush1.msra.mxu0 0.0
        %3073 = vmatprep.subr.mxu0 0.0
        %3074 = vmatpush1.msra.mxu0 0.0
        %3075 = vmatprep.subr.mxu0 0.0
        %3076 = vmatpush1.msra.mxu0 0.0
        %3077 = vmatprep.subr.mxu0 0.0
        %3078 = vmatpush1.msra.mxu0 0.0
        %3079 = vmatprep.subr.mxu0 0.0
        %3080 = vmatpush1.msra.mxu0 0.0
        %3081 = vmatprep.subr.mxu0 0.0
        %3082 = vmatpush1.msra.mxu0 0.0
        %3083 = vmatprep.subr.mxu0 %v3047
        %3084 = vmatpush1.msra.mxu0 %v3045
        %3085 = vmatprep.subr.mxu0 0.0
        %3086 = vmatpush2.msra.mxu0 0.0
        %3087 = vmatprep.subr.mxu0 0.0
        %3088 = vmatpush2.msra.mxu0 0.0
        %3089 = vmatprep.subr.mxu0 0.0
        %3090 = vmatpush2.msra.mxu0 0.0
        %3091 = vmatprep.subr.mxu0 0.0
        %3092 = vmatpush2.msra.mxu0 0.0
        %3093 = vmatprep.subr.mxu0 0.0
        %3094 = vmatpush2.msra.mxu0 0.0
        %3095 = vmatprep.subr.mxu0 0.0
        %3096 = vmatpush2.msra.mxu0 0.0
        %3097 = vmatprep.subr.mxu0 0.0
        %3098 = vmatpush2.msra.mxu0 0.0
        %3099 = vmatprep.subr.mxu0 0.0
        %3100 = vmatpush2.msra.mxu0 0.0
        %3101 = vmatprep.subr.mxu0 0.0
        %3102 = vmatpush2.msra.mxu0 0.0
        %3103 = vmatprep.subr.mxu0 0.0
        %3104 = vmatpush2.msra.mxu0 0.0
        %3105 = vmatprep.subr.mxu0 0.0
        %3106 = vmatpush2.msra.mxu0 0.0
        %3107 = vmatprep.subr.mxu0 0.0
        %3108 = vmatpush2.msra.mxu0 0.0
        %3109 = vmatprep.subr.mxu0 0.0
        %3110 = vmatpush2.msra.mxu0 0.0
        %3111 = vmatprep.subr.mxu0 0.0
        %3112 = vmatpush2.msra.mxu0 0.0
        %3113 = vmatprep.subr.mxu0 0.0
        %3114 = vmatpush2.msra.mxu0 0.0
        %3115 = vmatprep.subr.mxu0 0.0
        %3116 = vmatpush2.msra.mxu0 0.0
        %3117 = vmatprep.mubr.f32.mxu0 0.0
        %3118 = vmatmul.mubr.f32.gmra.mxu0 %v3043
        %v3119 = vpop.f32.mrf.mxu0
        %v3120 = vadd.f32 0.0, %v3119
        %v3121 = vpop.f32.mrf.mxu0
        %v3122 = vadd.f32 0.0, %v3121
        %3123 = vdwg.mxu0
        %3124 = vmatprep.subr.mxu0 0.0
        %3125 = vmatpush1.msra.mxu0 0.0
        %3126 = vmatprep.subr.mxu0 0.0
        %3127 = vmatpush1.msra.mxu0 0.0
        %3128 = vmatprep.subr.mxu0 0.0
        %3129 = vmatpush1.msra.mxu0 0.0
        %3130 = vmatprep.subr.mxu0 0.0
        %3131 = vmatpush1.msra.mxu0 0.0
        %3132 = vmatprep.subr.mxu0 0.0
        %3133 = vmatpush1.msra.mxu0 0.0
        %3134 = vmatprep.subr.mxu0 0.0
        %3135 = vmatpush1.msra.mxu0 0.0
        %3136 = vmatprep.subr.mxu0 0.0
        %3137 = vmatpush1.msra.mxu0 0.0
        %3138 = vmatprep.subr.mxu0 0.0
        %3139 = vmatpush1.msra.mxu0 0.0
        %3140 = vmatprep.subr.mxu0 0.0
        %3141 = vmatpush1.msra.mxu0 0.0
        %3142 = vmatprep.subr.mxu0 0.0
        %3143 = vmatpush1.msra.mxu0 0.0
        %3144 = vmatprep.subr.mxu0 0.0
        %3145 = vmatpush1.msra.mxu0 0.0
        %3146 = vmatprep.subr.mxu0 0.0
        %3147 = vmatpush1.msra.mxu0 0.0
        %3148 = vmatprep.subr.mxu0 0.0
        %3149 = vmatpush1.msra.mxu0 0.0
        %3150 = vmatprep.subr.mxu0 0.0
        %3151 = vmatpush1.msra.mxu0 0.0
        %3152 = vmatprep.subr.mxu0 0.0
        %3153 = vmatpush1.msra.mxu0 0.0
        %3154 = vmatprep.subr.mxu0 %v3051
        %3155 = vmatpush1.msra.mxu0 %v3049
        %3156 = vmatprep.subr.mxu0 0.0
        %3157 = vmatpush2.msra.mxu0 0.0
        %3158 = vmatprep.subr.mxu0 0.0
        %3159 = vmatpush2.msra.mxu0 0.0
        %3160 = vmatprep.subr.mxu0 0.0
        %3161 = vmatpush2.msra.mxu0 0.0
        %3162 = vmatprep.subr.mxu0 0.0
        %3163 = vmatpush2.msra.mxu0 0.0
        %3164 = vmatprep.subr.mxu0 0.0
        %3165 = vmatpush2.msra.mxu0 0.0
        %3166 = vmatprep.subr.mxu0 0.0
        %3167 = vmatpush2.msra.mxu0 0.0
        %3168 = vmatprep.subr.mxu0 0.0
        %3169 = vmatpush2.msra.mxu0 0.0
        %3170 = vmatprep.subr.mxu0 0.0
        %3171 = vmatpush2.msra.mxu0 0.0
        %3172 = vmatprep.subr.mxu0 0.0
        %3173 = vmatpush2.msra.mxu0 0.0
        %3174 = vmatprep.subr.mxu0 0.0
        %3175 = vmatpush2.msra.mxu0 0.0
        %3176 = vmatprep.subr.mxu0 0.0
        %3177 = vmatpush2.msra.mxu0 0.0
        %3178 = vmatprep.subr.mxu0 0.0
        %3179 = vmatpush2.msra.mxu0 0.0
        %3180 = vmatprep.subr.mxu0 0.0
        %3181 = vmatpush2.msra.mxu0 0.0
        %3182 = vmatprep.subr.mxu0 0.0
        %3183 = vmatpush2.msra.mxu0 0.0
        %3184 = vmatprep.subr.mxu0 0.0
        %3185 = vmatpush2.msra.mxu0 0.0
        %3186 = vmatprep.subr.mxu0 0.0
        %3187 = vmatpush2.msra.mxu0 0.0
        %3188 = vmatprep.mubr.f32.mxu0 0.0
        %3189 = vmatmul.mubr.f32.gmra.mxu0 %v3043
        %v3190 = vpop.f32.mrf.mxu0
        %v3191 = vadd.f32 0.0, %v3190
        %v3192 = vpop.f32.mrf.mxu0
        %v3193 = vadd.f32 0.0, %v3192
        %3194 = vdwg.mxu0
        %v3195 = vadd.f32 %v2726, %v3120
        %v3196 = vadd.f32 %v2727, %v3122
        %v3197 = vadd.f32 %v2728, %v3191
        %v3198 = vadd.f32 %v2729, %v3193
        %s3199 = scalar_lea.vmem %s2, 48
        %v3200 = vld [vmem:[%s3199] sm:$0xff]
        %v3202 = vsel %vm246, %v3200, 0
        %3204 = vmatprep.subr.mxu0 0.0
        %3205 = vmatpush1.msra.mxu0 0.0
        %3206 = vmatprep.subr.mxu0 0.0
        %3207 = vmatpush1.msra.mxu0 0.0
        %3208 = vmatprep.subr.mxu0 0.0
        %3209 = vmatpush1.msra.mxu0 0.0
        %3210 = vmatprep.subr.mxu0 0.0
        %3211 = vmatpush1.msra.mxu0 0.0
        %3212 = vmatprep.subr.mxu0 0.0
        %3213 = vmatpush1.msra.mxu0 0.0
        %3214 = vmatprep.subr.mxu0 0.0
        %3215 = vmatpush1.msra.mxu0 0.0
        %3216 = vmatprep.subr.mxu0 0.0
        %3217 = vmatpush1.msra.mxu0 0.0
        %3218 = vmatprep.subr.mxu0 0.0
        %3219 = vmatpush1.msra.mxu0 0.0
        %3220 = vmatprep.subr.mxu0 0.0
        %3221 = vmatpush1.msra.mxu0 0.0
        %3222 = vmatprep.subr.mxu0 0.0
        %3223 = vmatpush1.msra.mxu0 0.0
        %3224 = vmatprep.subr.mxu0 0.0
        %3225 = vmatpush1.msra.mxu0 0.0
        %3226 = vmatprep.subr.mxu0 0.0
        %3227 = vmatpush1.msra.mxu0 0.0
        %3228 = vmatprep.subr.mxu0 0.0
        %3229 = vmatpush1.msra.mxu0 0.0
        %3230 = vmatprep.subr.mxu0 0.0
        %3231 = vmatpush1.msra.mxu0 0.0
        %3232 = vmatprep.subr.mxu0 0.0
        %3233 = vmatpush1.msra.mxu0 0.0
        %3234 = vmatprep.subr.mxu0 %v3047
        %3235 = vmatpush1.msra.mxu0 %v3045
        %3236 = vmatprep.subr.mxu0 0.0
        %3237 = vmatpush2.msra.mxu0 0.0
        %3238 = vmatprep.subr.mxu0 0.0
        %3239 = vmatpush2.msra.mxu0 0.0
        %3240 = vmatprep.subr.mxu0 0.0
        %3241 = vmatpush2.msra.mxu0 0.0
        %3242 = vmatprep.subr.mxu0 0.0
        %3243 = vmatpush2.msra.mxu0 0.0
        %3244 = vmatprep.subr.mxu0 0.0
        %3245 = vmatpush2.msra.mxu0 0.0
        %3246 = vmatprep.subr.mxu0 0.0
        %3247 = vmatpush2.msra.mxu0 0.0
        %3248 = vmatprep.subr.mxu0 0.0
        %3249 = vmatpush2.msra.mxu0 0.0
        %3250 = vmatprep.subr.mxu0 0.0
        %3251 = vmatpush2.msra.mxu0 0.0
        %3252 = vmatprep.subr.mxu0 0.0
        %3253 = vmatpush2.msra.mxu0 0.0
        %3254 = vmatprep.subr.mxu0 0.0
        %3255 = vmatpush2.msra.mxu0 0.0
        %3256 = vmatprep.subr.mxu0 0.0
        %3257 = vmatpush2.msra.mxu0 0.0
        %3258 = vmatprep.subr.mxu0 0.0
        %3259 = vmatpush2.msra.mxu0 0.0
        %3260 = vmatprep.subr.mxu0 0.0
        %3261 = vmatpush2.msra.mxu0 0.0
        %3262 = vmatprep.subr.mxu0 0.0
        %3263 = vmatpush2.msra.mxu0 0.0
        %3264 = vmatprep.subr.mxu0 0.0
        %3265 = vmatpush2.msra.mxu0 0.0
        %3266 = vmatprep.subr.mxu0 0.0
        %3267 = vmatpush2.msra.mxu0 0.0
        %3268 = vmatprep.mubr.f32.mxu0 0.0
        %3269 = vmatmul.mubr.f32.gmra.mxu0 %v3202
        %v3270 = vpop.f32.mrf.mxu0
        %v3271 = vadd.f32 0.0, %v3270
        %v3272 = vpop.f32.mrf.mxu0
        %v3273 = vadd.f32 0.0, %v3272
        %3274 = vdwg.mxu0
        %3275 = vmatprep.subr.mxu0 0.0
        %3276 = vmatpush1.msra.mxu0 0.0
        %3277 = vmatprep.subr.mxu0 0.0
        %3278 = vmatpush1.msra.mxu0 0.0
        %3279 = vmatprep.subr.mxu0 0.0
        %3280 = vmatpush1.msra.mxu0 0.0
        %3281 = vmatprep.subr.mxu0 0.0
        %3282 = vmatpush1.msra.mxu0 0.0
        %3283 = vmatprep.subr.mxu0 0.0
        %3284 = vmatpush1.msra.mxu0 0.0
        %3285 = vmatprep.subr.mxu0 0.0
        %3286 = vmatpush1.msra.mxu0 0.0
        %3287 = vmatprep.subr.mxu0 0.0
        %3288 = vmatpush1.msra.mxu0 0.0
        %3289 = vmatprep.subr.mxu0 0.0
        %3290 = vmatpush1.msra.mxu0 0.0
        %3291 = vmatprep.subr.mxu0 0.0
        %3292 = vmatpush1.msra.mxu0 0.0
        %3293 = vmatprep.subr.mxu0 0.0
        %3294 = vmatpush1.msra.mxu0 0.0
        %3295 = vmatprep.subr.mxu0 0.0
        %3296 = vmatpush1.msra.mxu0 0.0
        %3297 = vmatprep.subr.mxu0 0.0
        %3298 = vmatpush1.msra.mxu0 0.0
        %3299 = vmatprep.subr.mxu0 0.0
        %3300 = vmatpush1.msra.mxu0 0.0
        %3301 = vmatprep.subr.mxu0 0.0
        %3302 = vmatpush1.msra.mxu0 0.0
        %3303 = vmatprep.subr.mxu0 0.0
        %3304 = vmatpush1.msra.mxu0 0.0
        %3305 = vmatprep.subr.mxu0 %v3051
        %3306 = vmatpush1.msra.mxu0 %v3049
        %3307 = vmatprep.subr.mxu0 0.0
        %3308 = vmatpush2.msra.mxu0 0.0
        %3309 = vmatprep.subr.mxu0 0.0
        %3310 = vmatpush2.msra.mxu0 0.0
        %3311 = vmatprep.subr.mxu0 0.0
        %3312 = vmatpush2.msra.mxu0 0.0
        %3313 = vmatprep.subr.mxu0 0.0
        %3314 = vmatpush2.msra.mxu0 0.0
        %3315 = vmatprep.subr.mxu0 0.0
        %3316 = vmatpush2.msra.mxu0 0.0
        %3317 = vmatprep.subr.mxu0 0.0
        %3318 = vmatpush2.msra.mxu0 0.0
        %3319 = vmatprep.subr.mxu0 0.0
        %3320 = vmatpush2.msra.mxu0 0.0
        %3321 = vmatprep.subr.mxu0 0.0
        %3322 = vmatpush2.msra.mxu0 0.0
        %3323 = vmatprep.subr.mxu0 0.0
        %3324 = vmatpush2.msra.mxu0 0.0
        %3325 = vmatprep.subr.mxu0 0.0
        %3326 = vmatpush2.msra.mxu0 0.0
        %3327 = vmatprep.subr.mxu0 0.0
        %3328 = vmatpush2.msra.mxu0 0.0
        %3329 = vmatprep.subr.mxu0 0.0
        %3330 = vmatpush2.msra.mxu0 0.0
        %3331 = vmatprep.subr.mxu0 0.0
        %3332 = vmatpush2.msra.mxu0 0.0
        %3333 = vmatprep.subr.mxu0 0.0
        %3334 = vmatpush2.msra.mxu0 0.0
        %3335 = vmatprep.subr.mxu0 0.0
        %3336 = vmatpush2.msra.mxu0 0.0
        %3337 = vmatprep.subr.mxu0 0.0
        %3338 = vmatpush2.msra.mxu0 0.0
        %3339 = vmatprep.mubr.f32.mxu0 0.0
        %3340 = vmatmul.mubr.f32.gmra.mxu0 %v3202
        %v3341 = vpop.f32.mrf.mxu0
        %v3342 = vadd.f32 0.0, %v3341
        %v3343 = vpop.f32.mrf.mxu0
        %3344 = vdwg.mxu0
        %v3345 = vadd.f32 %v2876, %v3271
        %v3346 = vadd.f32 %v2877, %v3273
        %v3347 = vadd.f32 %v2878, %v3342
        %s3348 = scalar_lea.vmem %s3, 56
        %v3349 = vld [vmem:[%s3348] sm:$0xff]
        %v3351 = vsel %vm246, %v3349, 0
        %3353 = vmatprep.subr.mxu0 0.0
        %3354 = vmatpush1.msra.mxu0 0.0
        %3355 = vmatprep.subr.mxu0 0.0
        %3356 = vmatpush1.msra.mxu0 0.0
        %3357 = vmatprep.subr.mxu0 0.0
        %3358 = vmatpush1.msra.mxu0 0.0
        %3359 = vmatprep.subr.mxu0 0.0
        %3360 = vmatpush1.msra.mxu0 0.0
        %3361 = vmatprep.subr.mxu0 0.0
        %3362 = vmatpush1.msra.mxu0 0.0
        %3363 = vmatprep.subr.mxu0 0.0
        %3364 = vmatpush1.msra.mxu0 0.0
        %3365 = vmatprep.subr.mxu0 0.0
        %3366 = vmatpush1.msra.mxu0 0.0
        %3367 = vmatprep.subr.mxu0 0.0
        %3368 = vmatpush1.msra.mxu0 0.0
        %3369 = vmatprep.subr.mxu0 0.0
        %3370 = vmatpush1.msra.mxu0 0.0
        %3371 = vmatprep.subr.mxu0 0.0
        %3372 = vmatpush1.msra.mxu0 0.0
        %3373 = vmatprep.subr.mxu0 0.0
        %3374 = vmatpush1.msra.mxu0 0.0
        %3375 = vmatprep.subr.mxu0 0.0
        %3376 = vmatpush1.msra.mxu0 0.0
        %3377 = vmatprep.subr.mxu0 0.0
        %3378 = vmatpush1.msra.mxu0 0.0
        %3379 = vmatprep.subr.mxu0 0.0
        %3380 = vmatpush1.msra.mxu0 0.0
        %3381 = vmatprep.subr.mxu0 0.0
        %3382 = vmatpush1.msra.mxu0 0.0
        %3383 = vmatprep.subr.mxu0 %v3047
        %3384 = vmatpush1.msra.mxu0 %v3045
        %3385 = vmatprep.subr.mxu0 0.0
        %3386 = vmatpush2.msra.mxu0 0.0
        %3387 = vmatprep.subr.mxu0 0.0
        %3388 = vmatpush2.msra.mxu0 0.0
        %3389 = vmatprep.subr.mxu0 0.0
        %3390 = vmatpush2.msra.mxu0 0.0
        %3391 = vmatprep.subr.mxu0 0.0
        %3392 = vmatpush2.msra.mxu0 0.0
        %3393 = vmatprep.subr.mxu0 0.0
        %3394 = vmatpush2.msra.mxu0 0.0
        %3395 = vmatprep.subr.mxu0 0.0
        %3396 = vmatpush2.msra.mxu0 0.0
        %3397 = vmatprep.subr.mxu0 0.0
        %3398 = vmatpush2.msra.mxu0 0.0
        %3399 = vmatprep.subr.mxu0 0.0
        %3400 = vmatpush2.msra.mxu0 0.0
        %3401 = vmatprep.subr.mxu0 0.0
        %3402 = vmatpush2.msra.mxu0 0.0
        %3403 = vmatprep.subr.mxu0 0.0
        %3404 = vmatpush2.msra.mxu0 0.0
        %3405 = vmatprep.subr.mxu0 0.0
        %3406 = vmatpush2.msra.mxu0 0.0
        %3407 = vmatprep.subr.mxu0 0.0
        %3408 = vmatpush2.msra.mxu0 0.0
        %3409 = vmatprep.subr.mxu0 0.0
        %3410 = vmatpush2.msra.mxu0 0.0
        %3411 = vmatprep.subr.mxu0 0.0
        %3412 = vmatpush2.msra.mxu0 0.0
        %3413 = vmatprep.subr.mxu0 0.0
        %3414 = vmatpush2.msra.mxu0 0.0
        %3415 = vmatprep.subr.mxu0 0.0
        %3416 = vmatpush2.msra.mxu0 0.0
        %3417 = vmatprep.mubr.f32.mxu0 0.0
        %3418 = vmatmul.mubr.f32.gmra.mxu0 %v3351
        %v3419 = vpop.f32.mrf.mxu0
        %v3420 = vadd.f32 0.0, %v3419
        %v3421 = vpop.f32.mrf.mxu0
        %v3422 = vadd.f32 0.0, %v3421
        %3423 = vdwg.mxu0
        %3424 = vmatprep.subr.mxu0 0.0
        %3425 = vmatpush1.msra.mxu0 0.0
        %3426 = vmatprep.subr.mxu0 0.0
        %3427 = vmatpush1.msra.mxu0 0.0
        %3428 = vmatprep.subr.mxu0 0.0
        %3429 = vmatpush1.msra.mxu0 0.0
        %3430 = vmatprep.subr.mxu0 0.0
        %3431 = vmatpush1.msra.mxu0 0.0
        %3432 = vmatprep.subr.mxu0 0.0
        %3433 = vmatpush1.msra.mxu0 0.0
        %3434 = vmatprep.subr.mxu0 0.0
        %3435 = vmatpush1.msra.mxu0 0.0
        %3436 = vmatprep.subr.mxu0 0.0
        %3437 = vmatpush1.msra.mxu0 0.0
        %3438 = vmatprep.subr.mxu0 0.0
        %3439 = vmatpush1.msra.mxu0 0.0
        %3440 = vmatprep.subr.mxu0 0.0
        %3441 = vmatpush1.msra.mxu0 0.0
        %3442 = vmatprep.subr.mxu0 0.0
        %3443 = vmatpush1.msra.mxu0 0.0
        %3444 = vmatprep.subr.mxu0 0.0
        %3445 = vmatpush1.msra.mxu0 0.0
        %3446 = vmatprep.subr.mxu0 0.0
        %3447 = vmatpush1.msra.mxu0 0.0
        %3448 = vmatprep.subr.mxu0 0.0
        %3449 = vmatpush1.msra.mxu0 0.0
        %3450 = vmatprep.subr.mxu0 0.0
        %3451 = vmatpush1.msra.mxu0 0.0
        %3452 = vmatprep.subr.mxu0 0.0
        %3453 = vmatpush1.msra.mxu0 0.0
        %3454 = vmatprep.subr.mxu0 %v3051
        %3455 = vmatpush1.msra.mxu0 %v3049
        %3456 = vmatprep.subr.mxu0 0.0
        %3457 = vmatpush2.msra.mxu0 0.0
        %3458 = vmatprep.subr.mxu0 0.0
        %3459 = vmatpush2.msra.mxu0 0.0
        %3460 = vmatprep.subr.mxu0 0.0
        %3461 = vmatpush2.msra.mxu0 0.0
        %3462 = vmatprep.subr.mxu0 0.0
        %3463 = vmatpush2.msra.mxu0 0.0
        %3464 = vmatprep.subr.mxu0 0.0
        %3465 = vmatpush2.msra.mxu0 0.0
        %3466 = vmatprep.subr.mxu0 0.0
        %3467 = vmatpush2.msra.mxu0 0.0
        %3468 = vmatprep.subr.mxu0 0.0
        %3469 = vmatpush2.msra.mxu0 0.0
        %3470 = vmatprep.subr.mxu0 0.0
        %3471 = vmatpush2.msra.mxu0 0.0
        %3472 = vmatprep.subr.mxu0 0.0
        %3473 = vmatpush2.msra.mxu0 0.0
        %3474 = vmatprep.subr.mxu0 0.0
        %3475 = vmatpush2.msra.mxu0 0.0
        %3476 = vmatprep.subr.mxu0 0.0
        %3477 = vmatpush2.msra.mxu0 0.0
        %3478 = vmatprep.subr.mxu0 0.0
        %3479 = vmatpush2.msra.mxu0 0.0
        %3480 = vmatprep.subr.mxu0 0.0
        %3481 = vmatpush2.msra.mxu0 0.0
        %3482 = vmatprep.subr.mxu0 0.0
        %3483 = vmatpush2.msra.mxu0 0.0
        %3484 = vmatprep.subr.mxu0 0.0
        %3485 = vmatpush2.msra.mxu0 0.0
        %3486 = vmatprep.subr.mxu0 0.0
        %3487 = vmatpush2.msra.mxu0 0.0
        %3488 = vmatprep.mubr.f32.mxu0 0.0
        %3489 = vmatmul.mubr.f32.gmra.mxu0 %v3351
        %v3490 = vpop.f32.mrf.mxu0
        %v3491 = vadd.f32 0.0, %v3490
        %v3492 = vpop.f32.mrf.mxu0
        %3493 = vdwg.mxu0
        %v3494 = vadd.f32 %v3025, %v3420
        %v3495 = vadd.f32 %v3026, %v3422
        %v3496 = vadd.f32 %v3027, %v3491
        %s3497 = scalar_lea.vmem %s2, 56
        %v3498 = vld [vmem:[%s3497] sm:$0xff]
        %3499 = vrot.lane.b32.xlu0 %v223, 105
        %v3500 = vpop.permute.xlu0 %3499
        %3501 = vrot.lane.b32.xlu0 %v232, 105
        %v3502 = vpop.permute.xlu0 %3501
        %3503 = vrot.lane.b32.xlu0 %v224, 105
        %v3504 = vpop.permute.xlu0 %3503
        %3505 = vrot.lane.b32.xlu0 %v233, 105
        %v3506 = vpop.permute.xlu0 %3505
        %vm3507 = vcmask 859136
        %v3508 = vsel %vm3507, %v3500, %v3502
        %v3509 = vsel %vm3507, %v3502, %v3504
        %v3510 = vsel %vm3507, %v3504, %v3506
        %v3512 = vsel %vm246, %v3498, 0
        %v3514 = vsel %vm250, %v3508, 0
        %v3516 = vsel %vm250, %v3509, 0
        %v3518 = vsel %vm250, %v3510, 0
        %v3520 = vsel %vm250, %v3506, 0
        %3522 = vmatprep.subr.mxu0 0.0
        %3523 = vmatpush1.msra.mxu0 0.0
        %3524 = vmatprep.subr.mxu0 0.0
        %3525 = vmatpush1.msra.mxu0 0.0
        %3526 = vmatprep.subr.mxu0 0.0
        %3527 = vmatpush1.msra.mxu0 0.0
        %3528 = vmatprep.subr.mxu0 0.0
        %3529 = vmatpush1.msra.mxu0 0.0
        %3530 = vmatprep.subr.mxu0 0.0
        %3531 = vmatpush1.msra.mxu0 0.0
        %3532 = vmatprep.subr.mxu0 0.0
        %3533 = vmatpush1.msra.mxu0 0.0
        %3534 = vmatprep.subr.mxu0 0.0
        %3535 = vmatpush1.msra.mxu0 0.0
        %3536 = vmatprep.subr.mxu0 0.0
        %3537 = vmatpush1.msra.mxu0 0.0
        %3538 = vmatprep.subr.mxu0 0.0
        %3539 = vmatpush1.msra.mxu0 0.0
        %3540 = vmatprep.subr.mxu0 0.0
        %3541 = vmatpush1.msra.mxu0 0.0
        %3542 = vmatprep.subr.mxu0 0.0
        %3543 = vmatpush1.msra.mxu0 0.0
        %3544 = vmatprep.subr.mxu0 0.0
        %3545 = vmatpush1.msra.mxu0 0.0
        %3546 = vmatprep.subr.mxu0 0.0
        %3547 = vmatpush1.msra.mxu0 0.0
        %3548 = vmatprep.subr.mxu0 0.0
        %3549 = vmatpush1.msra.mxu0 0.0
        %3550 = vmatprep.subr.mxu0 0.0
        %3551 = vmatpush1.msra.mxu0 0.0
        %3552 = vmatprep.subr.mxu0 %v3516
        %3553 = vmatpush1.msra.mxu0 %v3514
        %3554 = vmatprep.subr.mxu0 0.0
        %3555 = vmatpush2.msra.mxu0 0.0
        %3556 = vmatprep.subr.mxu0 0.0
        %3557 = vmatpush2.msra.mxu0 0.0
        %3558 = vmatprep.subr.mxu0 0.0
        %3559 = vmatpush2.msra.mxu0 0.0
        %3560 = vmatprep.subr.mxu0 0.0
        %3561 = vmatpush2.msra.mxu0 0.0
        %3562 = vmatprep.subr.mxu0 0.0
        %3563 = vmatpush2.msra.mxu0 0.0
        %3564 = vmatprep.subr.mxu0 0.0
        %3565 = vmatpush2.msra.mxu0 0.0
        %3566 = vmatprep.subr.mxu0 0.0
        %3567 = vmatpush2.msra.mxu0 0.0
        %3568 = vmatprep.subr.mxu0 0.0
        %3569 = vmatpush2.msra.mxu0 0.0
        %3570 = vmatprep.subr.mxu0 0.0
        %3571 = vmatpush2.msra.mxu0 0.0
        %3572 = vmatprep.subr.mxu0 0.0
        %3573 = vmatpush2.msra.mxu0 0.0
        %3574 = vmatprep.subr.mxu0 0.0
        %3575 = vmatpush2.msra.mxu0 0.0
        %3576 = vmatprep.subr.mxu0 0.0
        %3577 = vmatpush2.msra.mxu0 0.0
        %3578 = vmatprep.subr.mxu0 0.0
        %3579 = vmatpush2.msra.mxu0 0.0
        %3580 = vmatprep.subr.mxu0 0.0
        %3581 = vmatpush2.msra.mxu0 0.0
        %3582 = vmatprep.subr.mxu0 0.0
        %3583 = vmatpush2.msra.mxu0 0.0
        %3584 = vmatprep.subr.mxu0 0.0
        %3585 = vmatpush2.msra.mxu0 0.0
        %3586 = vmatprep.mubr.f32.mxu0 0.0
        %3587 = vmatmul.mubr.f32.gmra.mxu0 %v3512
        %v3588 = vpop.f32.mrf.mxu0
        %v3589 = vadd.f32 0.0, %v3588
        %v3590 = vpop.f32.mrf.mxu0
        %v3591 = vadd.f32 0.0, %v3590
        %3592 = vdwg.mxu0
        %3593 = vmatprep.subr.mxu0 0.0
        %3594 = vmatpush1.msra.mxu0 0.0
        %3595 = vmatprep.subr.mxu0 0.0
        %3596 = vmatpush1.msra.mxu0 0.0
        %3597 = vmatprep.subr.mxu0 0.0
        %3598 = vmatpush1.msra.mxu0 0.0
        %3599 = vmatprep.subr.mxu0 0.0
        %3600 = vmatpush1.msra.mxu0 0.0
        %3601 = vmatprep.subr.mxu0 0.0
        %3602 = vmatpush1.msra.mxu0 0.0
        %3603 = vmatprep.subr.mxu0 0.0
        %3604 = vmatpush1.msra.mxu0 0.0
        %3605 = vmatprep.subr.mxu0 0.0
        %3606 = vmatpush1.msra.mxu0 0.0
        %3607 = vmatprep.subr.mxu0 0.0
        %3608 = vmatpush1.msra.mxu0 0.0
        %3609 = vmatprep.subr.mxu0 0.0
        %3610 = vmatpush1.msra.mxu0 0.0
        %3611 = vmatprep.subr.mxu0 0.0
        %3612 = vmatpush1.msra.mxu0 0.0
        %3613 = vmatprep.subr.mxu0 0.0
        %3614 = vmatpush1.msra.mxu0 0.0
        %3615 = vmatprep.subr.mxu0 0.0
        %3616 = vmatpush1.msra.mxu0 0.0
        %3617 = vmatprep.subr.mxu0 0.0
        %3618 = vmatpush1.msra.mxu0 0.0
        %3619 = vmatprep.subr.mxu0 0.0
        %3620 = vmatpush1.msra.mxu0 0.0
        %3621 = vmatprep.subr.mxu0 0.0
        %3622 = vmatpush1.msra.mxu0 0.0
        %3623 = vmatprep.subr.mxu0 %v3520
        %3624 = vmatpush1.msra.mxu0 %v3518
        %3625 = vmatprep.subr.mxu0 0.0
        %3626 = vmatpush2.msra.mxu0 0.0
        %3627 = vmatprep.subr.mxu0 0.0
        %3628 = vmatpush2.msra.mxu0 0.0
        %3629 = vmatprep.subr.mxu0 0.0
        %3630 = vmatpush2.msra.mxu0 0.0
        %3631 = vmatprep.subr.mxu0 0.0
        %3632 = vmatpush2.msra.mxu0 0.0
        %3633 = vmatprep.subr.mxu0 0.0
        %3634 = vmatpush2.msra.mxu0 0.0
        %3635 = vmatprep.subr.mxu0 0.0
        %3636 = vmatpush2.msra.mxu0 0.0
        %3637 = vmatprep.subr.mxu0 0.0
        %3638 = vmatpush2.msra.mxu0 0.0
        %3639 = vmatprep.subr.mxu0 0.0
        %3640 = vmatpush2.msra.mxu0 0.0
        %3641 = vmatprep.subr.mxu0 0.0
        %3642 = vmatpush2.msra.mxu0 0.0
        %3643 = vmatprep.subr.mxu0 0.0
        %3644 = vmatpush2.msra.mxu0 0.0
        %3645 = vmatprep.subr.mxu0 0.0
        %3646 = vmatpush2.msra.mxu0 0.0
        %3647 = vmatprep.subr.mxu0 0.0
        %3648 = vmatpush2.msra.mxu0 0.0
        %3649 = vmatprep.subr.mxu0 0.0
        %3650 = vmatpush2.msra.mxu0 0.0
        %3651 = vmatprep.subr.mxu0 0.0
        %3652 = vmatpush2.msra.mxu0 0.0
        %3653 = vmatprep.subr.mxu0 0.0
        %3654 = vmatpush2.msra.mxu0 0.0
        %3655 = vmatprep.subr.mxu0 0.0
        %3656 = vmatpush2.msra.mxu0 0.0
        %3657 = vmatprep.mubr.f32.mxu0 0.0
        %3658 = vmatmul.mubr.f32.gmra.mxu0 %v3512
        %v3659 = vpop.f32.mrf.mxu0
        %v3660 = vadd.f32 0.0, %v3659
        %v3661 = vpop.f32.mrf.mxu0
        %3662 = vdwg.mxu0
        %v3663 = vadd.f32 %v3345, %v3589
        %v3664 = vadd.f32 %v3346, %v3591
        %v3665 = vadd.f32 %v3347, %v3660
        %s3666 = scalar_lea.vmem %s3, 64
        %v3667 = vld [vmem:[%s3666] sm:$0xff]
        %v3669 = vsel %vm246, %v3667, 0
        %3671 = vmatprep.subr.mxu0 0.0
        %3672 = vmatpush1.msra.mxu0 0.0
        %3673 = vmatprep.subr.mxu0 0.0
        %3674 = vmatpush1.msra.mxu0 0.0
        %3675 = vmatprep.subr.mxu0 0.0
        %3676 = vmatpush1.msra.mxu0 0.0
        %3677 = vmatprep.subr.mxu0 0.0
        %3678 = vmatpush1.msra.mxu0 0.0
        %3679 = vmatprep.subr.mxu0 0.0
        %3680 = vmatpush1.msra.mxu0 0.0
        %3681 = vmatprep.subr.mxu0 0.0
        %3682 = vmatpush1.msra.mxu0 0.0
        %3683 = vmatprep.subr.mxu0 0.0
        %3684 = vmatpush1.msra.mxu0 0.0
        %3685 = vmatprep.subr.mxu0 0.0
        %3686 = vmatpush1.msra.mxu0 0.0
        %3687 = vmatprep.subr.mxu0 0.0
        %3688 = vmatpush1.msra.mxu0 0.0
        %3689 = vmatprep.subr.mxu0 0.0
        %3690 = vmatpush1.msra.mxu0 0.0
        %3691 = vmatprep.subr.mxu0 0.0
        %3692 = vmatpush1.msra.mxu0 0.0
        %3693 = vmatprep.subr.mxu0 0.0
        %3694 = vmatpush1.msra.mxu0 0.0
        %3695 = vmatprep.subr.mxu0 0.0
        %3696 = vmatpush1.msra.mxu0 0.0
        %3697 = vmatprep.subr.mxu0 0.0
        %3698 = vmatpush1.msra.mxu0 0.0
        %3699 = vmatprep.subr.mxu0 0.0
        %3700 = vmatpush1.msra.mxu0 0.0
        %3701 = vmatprep.subr.mxu0 %v3516
        %3702 = vmatpush1.msra.mxu0 %v3514
        %3703 = vmatprep.subr.mxu0 0.0
        %3704 = vmatpush2.msra.mxu0 0.0
        %3705 = vmatprep.subr.mxu0 0.0
        %3706 = vmatpush2.msra.mxu0 0.0
        %3707 = vmatprep.subr.mxu0 0.0
        %3708 = vmatpush2.msra.mxu0 0.0
        %3709 = vmatprep.subr.mxu0 0.0
        %3710 = vmatpush2.msra.mxu0 0.0
        %3711 = vmatprep.subr.mxu0 0.0
        %3712 = vmatpush2.msra.mxu0 0.0
        %3713 = vmatprep.subr.mxu0 0.0
        %3714 = vmatpush2.msra.mxu0 0.0
        %3715 = vmatprep.subr.mxu0 0.0
        %3716 = vmatpush2.msra.mxu0 0.0
        %3717 = vmatprep.subr.mxu0 0.0
        %3718 = vmatpush2.msra.mxu0 0.0
        %3719 = vmatprep.subr.mxu0 0.0
        %3720 = vmatpush2.msra.mxu0 0.0
        %3721 = vmatprep.subr.mxu0 0.0
        %3722 = vmatpush2.msra.mxu0 0.0
        %3723 = vmatprep.subr.mxu0 0.0
        %3724 = vmatpush2.msra.mxu0 0.0
        %3725 = vmatprep.subr.mxu0 0.0
        %3726 = vmatpush2.msra.mxu0 0.0
        %3727 = vmatprep.subr.mxu0 0.0
        %3728 = vmatpush2.msra.mxu0 0.0
        %3729 = vmatprep.subr.mxu0 0.0
        %3730 = vmatpush2.msra.mxu0 0.0
        %3731 = vmatprep.subr.mxu0 0.0
        %3732 = vmatpush2.msra.mxu0 0.0
        %3733 = vmatprep.subr.mxu0 0.0
        %3734 = vmatpush2.msra.mxu0 0.0
        %3735 = vmatprep.mubr.f32.mxu0 0.0
        %3736 = vmatmul.mubr.f32.gmra.mxu0 %v3669
        %v3737 = vpop.f32.mrf.mxu0
        %v3738 = vadd.f32 0.0, %v3737
        %v3739 = vpop.f32.mrf.mxu0
        %v3740 = vadd.f32 0.0, %v3739
        %3741 = vdwg.mxu0
        %3742 = vmatprep.subr.mxu0 0.0
        %3743 = vmatpush1.msra.mxu0 0.0
        %3744 = vmatprep.subr.mxu0 0.0
        %3745 = vmatpush1.msra.mxu0 0.0
        %3746 = vmatprep.subr.mxu0 0.0
        %3747 = vmatpush1.msra.mxu0 0.0
        %3748 = vmatprep.subr.mxu0 0.0
        %3749 = vmatpush1.msra.mxu0 0.0
        %3750 = vmatprep.subr.mxu0 0.0
        %3751 = vmatpush1.msra.mxu0 0.0
        %3752 = vmatprep.subr.mxu0 0.0
        %3753 = vmatpush1.msra.mxu0 0.0
        %3754 = vmatprep.subr.mxu0 0.0
        %3755 = vmatpush1.msra.mxu0 0.0
        %3756 = vmatprep.subr.mxu0 0.0
        %3757 = vmatpush1.msra.mxu0 0.0
        %3758 = vmatprep.subr.mxu0 0.0
        %3759 = vmatpush1.msra.mxu0 0.0
        %3760 = vmatprep.subr.mxu0 0.0
        %3761 = vmatpush1.msra.mxu0 0.0
        %3762 = vmatprep.subr.mxu0 0.0
        %3763 = vmatpush1.msra.mxu0 0.0
        %3764 = vmatprep.subr.mxu0 0.0
        %3765 = vmatpush1.msra.mxu0 0.0
        %3766 = vmatprep.subr.mxu0 0.0
        %3767 = vmatpush1.msra.mxu0 0.0
        %3768 = vmatprep.subr.mxu0 0.0
        %3769 = vmatpush1.msra.mxu0 0.0
        %3770 = vmatprep.subr.mxu0 0.0
        %3771 = vmatpush1.msra.mxu0 0.0
        %3772 = vmatprep.subr.mxu0 %v3520
        %3773 = vmatpush1.msra.mxu0 %v3518
        %3774 = vmatprep.subr.mxu0 0.0
        %3775 = vmatpush2.msra.mxu0 0.0
        %3776 = vmatprep.subr.mxu0 0.0
        %3777 = vmatpush2.msra.mxu0 0.0
        %3778 = vmatprep.subr.mxu0 0.0
        %3779 = vmatpush2.msra.mxu0 0.0
        %3780 = vmatprep.subr.mxu0 0.0
        %3781 = vmatpush2.msra.mxu0 0.0
        %3782 = vmatprep.subr.mxu0 0.0
        %3783 = vmatpush2.msra.mxu0 0.0
        %3784 = vmatprep.subr.mxu0 0.0
        %3785 = vmatpush2.msra.mxu0 0.0
        %3786 = vmatprep.subr.mxu0 0.0
        %3787 = vmatpush2.msra.mxu0 0.0
        %3788 = vmatprep.subr.mxu0 0.0
        %3789 = vmatpush2.msra.mxu0 0.0
        %3790 = vmatprep.subr.mxu0 0.0
        %3791 = vmatpush2.msra.mxu0 0.0
        %3792 = vmatprep.subr.mxu0 0.0
        %3793 = vmatpush2.msra.mxu0 0.0
        %3794 = vmatprep.subr.mxu0 0.0
        %3795 = vmatpush2.msra.mxu0 0.0
        %3796 = vmatprep.subr.mxu0 0.0
        %3797 = vmatpush2.msra.mxu0 0.0
        %3798 = vmatprep.subr.mxu0 0.0
        %3799 = vmatpush2.msra.mxu0 0.0
        %3800 = vmatprep.subr.mxu0 0.0
        %3801 = vmatpush2.msra.mxu0 0.0
        %3802 = vmatprep.subr.mxu0 0.0
        %3803 = vmatpush2.msra.mxu0 0.0
        %3804 = vmatprep.subr.mxu0 0.0
        %3805 = vmatpush2.msra.mxu0 0.0
        %3806 = vmatprep.mubr.f32.mxu0 0.0
        %3807 = vmatmul.mubr.f32.gmra.mxu0 %v3669
        %v3808 = vpop.f32.mrf.mxu0
        %v3809 = vadd.f32 0.0, %v3808
        %v3810 = vpop.f32.mrf.mxu0
        %3811 = vdwg.mxu0
        %v3812 = vadd.f32 %v3494, %v3738
        %v3813 = vadd.f32 %v3495, %v3740
        %v3814 = vadd.f32 %v3496, %v3809
        %s3815 = scalar_lea.vmem %s3, 72
        %v3816 = vld [vmem:[%s3815] sm:$0xff]
        %3817 = vrot.lane.b32.xlu0 %v223, 104
        %v3818 = vpop.permute.xlu0 %3817
        %3819 = vrot.lane.b32.xlu0 %v232, 104
        %v3820 = vpop.permute.xlu0 %3819
        %3821 = vrot.lane.b32.xlu0 %v224, 104
        %v3822 = vpop.permute.xlu0 %3821
        %3823 = vrot.lane.b32.xlu0 %v233, 104
        %v3824 = vpop.permute.xlu0 %3823
        %vm3825 = vcmask 850944
        %v3826 = vsel %vm3825, %v3818, %v3820
        %v3827 = vsel %vm3825, %v3820, %v3822
        %v3828 = vsel %vm3825, %v3822, %v3824
        %v3830 = vsel %vm246, %v3816, 0
        %v3832 = vsel %vm250, %v3826, 0
        %v3834 = vsel %vm250, %v3827, 0
        %v3836 = vsel %vm250, %v3828, 0
        %v3838 = vsel %vm250, %v3824, 0
        %3840 = vmatprep.subr.mxu0 0.0
        %3841 = vmatpush1.msra.mxu0 0.0
        %3842 = vmatprep.subr.mxu0 0.0
        %3843 = vmatpush1.msra.mxu0 0.0
        %3844 = vmatprep.subr.mxu0 0.0
        %3845 = vmatpush1.msra.mxu0 0.0
        %3846 = vmatprep.subr.mxu0 0.0
        %3847 = vmatpush1.msra.mxu0 0.0
        %3848 = vmatprep.subr.mxu0 0.0
        %3849 = vmatpush1.msra.mxu0 0.0
        %3850 = vmatprep.subr.mxu0 0.0
        %3851 = vmatpush1.msra.mxu0 0.0
        %3852 = vmatprep.subr.mxu0 0.0
        %3853 = vmatpush1.msra.mxu0 0.0
        %3854 = vmatprep.subr.mxu0 0.0
        %3855 = vmatpush1.msra.mxu0 0.0
        %3856 = vmatprep.subr.mxu0 0.0
        %3857 = vmatpush1.msra.mxu0 0.0
        %3858 = vmatprep.subr.mxu0 0.0
        %3859 = vmatpush1.msra.mxu0 0.0
        %3860 = vmatprep.subr.mxu0 0.0
        %3861 = vmatpush1.msra.mxu0 0.0
        %3862 = vmatprep.subr.mxu0 0.0
        %3863 = vmatpush1.msra.mxu0 0.0
        %3864 = vmatprep.subr.mxu0 0.0
        %3865 = vmatpush1.msra.mxu0 0.0
        %3866 = vmatprep.subr.mxu0 0.0
        %3867 = vmatpush1.msra.mxu0 0.0
        %3868 = vmatprep.subr.mxu0 0.0
        %3869 = vmatpush1.msra.mxu0 0.0
        %3870 = vmatprep.subr.mxu0 %v3834
        %3871 = vmatpush1.msra.mxu0 %v3832
        %3872 = vmatprep.subr.mxu0 0.0
        %3873 = vmatpush2.msra.mxu0 0.0
        %3874 = vmatprep.subr.mxu0 0.0
        %3875 = vmatpush2.msra.mxu0 0.0
        %3876 = vmatprep.subr.mxu0 0.0
        %3877 = vmatpush2.msra.mxu0 0.0
        %3878 = vmatprep.subr.mxu0 0.0
        %3879 = vmatpush2.msra.mxu0 0.0
        %3880 = vmatprep.subr.mxu0 0.0
        %3881 = vmatpush2.msra.mxu0 0.0
        %3882 = vmatprep.subr.mxu0 0.0
        %3883 = vmatpush2.msra.mxu0 0.0
        %3884 = vmatprep.subr.mxu0 0.0
        %3885 = vmatpush2.msra.mxu0 0.0
        %3886 = vmatprep.subr.mxu0 0.0
        %3887 = vmatpush2.msra.mxu0 0.0
        %3888 = vmatprep.subr.mxu0 0.0
        %3889 = vmatpush2.msra.mxu0 0.0
        %3890 = vmatprep.subr.mxu0 0.0
        %3891 = vmatpush2.msra.mxu0 0.0
        %3892 = vmatprep.subr.mxu0 0.0
        %3893 = vmatpush2.msra.mxu0 0.0
        %3894 = vmatprep.subr.mxu0 0.0
        %3895 = vmatpush2.msra.mxu0 0.0
        %3896 = vmatprep.subr.mxu0 0.0
        %3897 = vmatpush2.msra.mxu0 0.0
        %3898 = vmatprep.subr.mxu0 0.0
        %3899 = vmatpush2.msra.mxu0 0.0
        %3900 = vmatprep.subr.mxu0 0.0
        %3901 = vmatpush2.msra.mxu0 0.0
        %3902 = vmatprep.subr.mxu0 0.0
        %3903 = vmatpush2.msra.mxu0 0.0
        %3904 = vmatprep.mubr.f32.mxu0 0.0
        %3905 = vmatmul.mubr.f32.gmra.mxu0 %v3830
        %v3906 = vpop.f32.mrf.mxu0
        %v3907 = vadd.f32 0.0, %v3906
        %v3908 = vpop.f32.mrf.mxu0
        %v3909 = vadd.f32 0.0, %v3908
        %3910 = vdwg.mxu0
        %3911 = vmatprep.subr.mxu0 0.0
        %3912 = vmatpush1.msra.mxu0 0.0
        %3913 = vmatprep.subr.mxu0 0.0
        %3914 = vmatpush1.msra.mxu0 0.0
        %3915 = vmatprep.subr.mxu0 0.0
        %3916 = vmatpush1.msra.mxu0 0.0
        %3917 = vmatprep.subr.mxu0 0.0
        %3918 = vmatpush1.msra.mxu0 0.0
        %3919 = vmatprep.subr.mxu0 0.0
        %3920 = vmatpush1.msra.mxu0 0.0
        %3921 = vmatprep.subr.mxu0 0.0
        %3922 = vmatpush1.msra.mxu0 0.0
        %3923 = vmatprep.subr.mxu0 0.0
        %3924 = vmatpush1.msra.mxu0 0.0
        %3925 = vmatprep.subr.mxu0 0.0
        %3926 = vmatpush1.msra.mxu0 0.0
        %3927 = vmatprep.subr.mxu0 0.0
        %3928 = vmatpush1.msra.mxu0 0.0
        %3929 = vmatprep.subr.mxu0 0.0
        %3930 = vmatpush1.msra.mxu0 0.0
        %3931 = vmatprep.subr.mxu0 0.0
        %3932 = vmatpush1.msra.mxu0 0.0
        %3933 = vmatprep.subr.mxu0 0.0
        %3934 = vmatpush1.msra.mxu0 0.0
        %3935 = vmatprep.subr.mxu0 0.0
        %3936 = vmatpush1.msra.mxu0 0.0
        %3937 = vmatprep.subr.mxu0 0.0
        %3938 = vmatpush1.msra.mxu0 0.0
        %3939 = vmatprep.subr.mxu0 0.0
        %3940 = vmatpush1.msra.mxu0 0.0
        %3941 = vmatprep.subr.mxu0 %v3838
        %3942 = vmatpush1.msra.mxu0 %v3836
        %3943 = vmatprep.subr.mxu0 0.0
        %3944 = vmatpush2.msra.mxu0 0.0
        %3945 = vmatprep.subr.mxu0 0.0
        %3946 = vmatpush2.msra.mxu0 0.0
        %3947 = vmatprep.subr.mxu0 0.0
        %3948 = vmatpush2.msra.mxu0 0.0
        %3949 = vmatprep.subr.mxu0 0.0
        %3950 = vmatpush2.msra.mxu0 0.0
        %3951 = vmatprep.subr.mxu0 0.0
        %3952 = vmatpush2.msra.mxu0 0.0
        %3953 = vmatprep.subr.mxu0 0.0
        %3954 = vmatpush2.msra.mxu0 0.0
        %3955 = vmatprep.subr.mxu0 0.0
        %3956 = vmatpush2.msra.mxu0 0.0
        %3957 = vmatprep.subr.mxu0 0.0
        %3958 = vmatpush2.msra.mxu0 0.0
        %3959 = vmatprep.subr.mxu0 0.0
        %3960 = vmatpush2.msra.mxu0 0.0
        %3961 = vmatprep.subr.mxu0 0.0
        %3962 = vmatpush2.msra.mxu0 0.0
        %3963 = vmatprep.subr.mxu0 0.0
        %3964 = vmatpush2.msra.mxu0 0.0
        %3965 = vmatprep.subr.mxu0 0.0
        %3966 = vmatpush2.msra.mxu0 0.0
        %3967 = vmatprep.subr.mxu0 0.0
        %3968 = vmatpush2.msra.mxu0 0.0
        %3969 = vmatprep.subr.mxu0 0.0
        %3970 = vmatpush2.msra.mxu0 0.0
        %3971 = vmatprep.subr.mxu0 0.0
        %3972 = vmatpush2.msra.mxu0 0.0
        %3973 = vmatprep.subr.mxu0 0.0
        %3974 = vmatpush2.msra.mxu0 0.0
        %3975 = vmatprep.mubr.f32.mxu0 0.0
        %3976 = vmatmul.mubr.f32.gmra.mxu0 %v3830
        %v3977 = vpop.f32.mrf.mxu0
        %v3978 = vadd.f32 0.0, %v3977
        %v3979 = vpop.f32.mrf.mxu0
        %3980 = vdwg.mxu0
        %v3981 = vadd.f32 %v3812, %v3907
        %v3982 = vadd.f32 %v3813, %v3909
        %v3983 = vadd.f32 %v3814, %v3978
        %s3984 = scalar_lea.vmem %s1, 48
        %v3985 = vld [vmem:[%s3984] sm:$0xff]
        %3986 = vrot.lane.b32.xlu0 %v223, 88
        %v3987 = vpop.permute.xlu0 %3986
        %3988 = vrot.lane.b32.xlu0 %v232, 88
        %v3989 = vpop.permute.xlu0 %3988
        %3990 = vrot.lane.b32.xlu0 %v224, 88
        %v3991 = vpop.permute.xlu0 %3990
        %3992 = vrot.lane.b32.xlu0 %v233, 88
        %v3993 = vpop.permute.xlu0 %3992
        %vm3994 = vcmask 719872
        %v3995 = vsel %vm3994, %v3987, %v3989
        %v3996 = vsel %vm3994, %v3989, %v3991
        %v3997 = vsel %vm3994, %v3991, %v3993
        %v3999 = vsel %vm246, %v3985, 0
        %v4001 = vsel %vm250, %v3995, 0
        %v4003 = vsel %vm250, %v3996, 0
        %v4005 = vsel %vm250, %v3997, 0
        %v4007 = vsel %vm250, %v3993, 0
        %4009 = vmatprep.subr.mxu0 0.0
        %4010 = vmatpush1.msra.mxu0 0.0
        %4011 = vmatprep.subr.mxu0 0.0
        %4012 = vmatpush1.msra.mxu0 0.0
        %4013 = vmatprep.subr.mxu0 0.0
        %4014 = vmatpush1.msra.mxu0 0.0
        %4015 = vmatprep.subr.mxu0 0.0
        %4016 = vmatpush1.msra.mxu0 0.0
        %4017 = vmatprep.subr.mxu0 0.0
        %4018 = vmatpush1.msra.mxu0 0.0
        %4019 = vmatprep.subr.mxu0 0.0
        %4020 = vmatpush1.msra.mxu0 0.0
        %4021 = vmatprep.subr.mxu0 0.0
        %4022 = vmatpush1.msra.mxu0 0.0
        %4023 = vmatprep.subr.mxu0 0.0
        %4024 = vmatpush1.msra.mxu0 0.0
        %4025 = vmatprep.subr.mxu0 0.0
        %4026 = vmatpush1.msra.mxu0 0.0
        %4027 = vmatprep.subr.mxu0 0.0
        %4028 = vmatpush1.msra.mxu0 0.0
        %4029 = vmatprep.subr.mxu0 0.0
        %4030 = vmatpush1.msra.mxu0 0.0
        %4031 = vmatprep.subr.mxu0 0.0
        %4032 = vmatpush1.msra.mxu0 0.0
        %4033 = vmatprep.subr.mxu0 0.0
        %4034 = vmatpush1.msra.mxu0 0.0
        %4035 = vmatprep.subr.mxu0 0.0
        %4036 = vmatpush1.msra.mxu0 0.0
        %4037 = vmatprep.subr.mxu0 0.0
        %4038 = vmatpush1.msra.mxu0 0.0
        %4039 = vmatprep.subr.mxu0 %v4003
        %4040 = vmatpush1.msra.mxu0 %v4001
        %4041 = vmatprep.subr.mxu0 0.0
        %4042 = vmatpush2.msra.mxu0 0.0
        %4043 = vmatprep.subr.mxu0 0.0
        %4044 = vmatpush2.msra.mxu0 0.0
        %4045 = vmatprep.subr.mxu0 0.0
        %4046 = vmatpush2.msra.mxu0 0.0
        %4047 = vmatprep.subr.mxu0 0.0
        %4048 = vmatpush2.msra.mxu0 0.0
        %4049 = vmatprep.subr.mxu0 0.0
        %4050 = vmatpush2.msra.mxu0 0.0
        %4051 = vmatprep.subr.mxu0 0.0
        %4052 = vmatpush2.msra.mxu0 0.0
        %4053 = vmatprep.subr.mxu0 0.0
        %4054 = vmatpush2.msra.mxu0 0.0
        %4055 = vmatprep.subr.mxu0 0.0
        %4056 = vmatpush2.msra.mxu0 0.0
        %4057 = vmatprep.subr.mxu0 0.0
        %4058 = vmatpush2.msra.mxu0 0.0
        %4059 = vmatprep.subr.mxu0 0.0
        %4060 = vmatpush2.msra.mxu0 0.0
        %4061 = vmatprep.subr.mxu0 0.0
        %4062 = vmatpush2.msra.mxu0 0.0
        %4063 = vmatprep.subr.mxu0 0.0
        %4064 = vmatpush2.msra.mxu0 0.0
        %4065 = vmatprep.subr.mxu0 0.0
        %4066 = vmatpush2.msra.mxu0 0.0
        %4067 = vmatprep.subr.mxu0 0.0
        %4068 = vmatpush2.msra.mxu0 0.0
        %4069 = vmatprep.subr.mxu0 0.0
        %4070 = vmatpush2.msra.mxu0 0.0
        %4071 = vmatprep.subr.mxu0 0.0
        %4072 = vmatpush2.msra.mxu0 0.0
        %4073 = vmatprep.mubr.f32.mxu0 0.0
        %4074 = vmatmul.mubr.f32.gmra.mxu0 %v3999
        %v4075 = vpop.f32.mrf.mxu0
        %v4076 = vadd.f32 0.0, %v4075
        %v4077 = vpop.f32.mrf.mxu0
        %v4078 = vadd.f32 0.0, %v4077
        %4079 = vdwg.mxu0
        %4080 = vmatprep.subr.mxu0 0.0
        %4081 = vmatpush1.msra.mxu0 0.0
        %4082 = vmatprep.subr.mxu0 0.0
        %4083 = vmatpush1.msra.mxu0 0.0
        %4084 = vmatprep.subr.mxu0 0.0
        %4085 = vmatpush1.msra.mxu0 0.0
        %4086 = vmatprep.subr.mxu0 0.0
        %4087 = vmatpush1.msra.mxu0 0.0
        %4088 = vmatprep.subr.mxu0 0.0
        %4089 = vmatpush1.msra.mxu0 0.0
        %4090 = vmatprep.subr.mxu0 0.0
        %4091 = vmatpush1.msra.mxu0 0.0
        %4092 = vmatprep.subr.mxu0 0.0
        %4093 = vmatpush1.msra.mxu0 0.0
        %4094 = vmatprep.subr.mxu0 0.0
        %4095 = vmatpush1.msra.mxu0 0.0
        %4096 = vmatprep.subr.mxu0 0.0
        %4097 = vmatpush1.msra.mxu0 0.0
        %4098 = vmatprep.subr.mxu0 0.0
        %4099 = vmatpush1.msra.mxu0 0.0
        %4100 = vmatprep.subr.mxu0 0.0
        %4101 = vmatpush1.msra.mxu0 0.0
        %4102 = vmatprep.subr.mxu0 0.0
        %4103 = vmatpush1.msra.mxu0 0.0
        %4104 = vmatprep.subr.mxu0 0.0
        %4105 = vmatpush1.msra.mxu0 0.0
        %4106 = vmatprep.subr.mxu0 0.0
        %4107 = vmatpush1.msra.mxu0 0.0
        %4108 = vmatprep.subr.mxu0 0.0
        %4109 = vmatpush1.msra.mxu0 0.0
        %4110 = vmatprep.subr.mxu0 %v4007
        %4111 = vmatpush1.msra.mxu0 %v4005
        %4112 = vmatprep.subr.mxu0 0.0
        %4113 = vmatpush2.msra.mxu0 0.0
        %4114 = vmatprep.subr.mxu0 0.0
        %4115 = vmatpush2.msra.mxu0 0.0
        %4116 = vmatprep.subr.mxu0 0.0
        %4117 = vmatpush2.msra.mxu0 0.0
        %4118 = vmatprep.subr.mxu0 0.0
        %4119 = vmatpush2.msra.mxu0 0.0
        %4120 = vmatprep.subr.mxu0 0.0
        %4121 = vmatpush2.msra.mxu0 0.0
        %4122 = vmatprep.subr.mxu0 0.0
        %4123 = vmatpush2.msra.mxu0 0.0
        %4124 = vmatprep.subr.mxu0 0.0
        %4125 = vmatpush2.msra.mxu0 0.0
        %4126 = vmatprep.subr.mxu0 0.0
        %4127 = vmatpush2.msra.mxu0 0.0
        %4128 = vmatprep.subr.mxu0 0.0
        %4129 = vmatpush2.msra.mxu0 0.0
        %4130 = vmatprep.subr.mxu0 0.0
        %4131 = vmatpush2.msra.mxu0 0.0
        %4132 = vmatprep.subr.mxu0 0.0
        %4133 = vmatpush2.msra.mxu0 0.0
        %4134 = vmatprep.subr.mxu0 0.0
        %4135 = vmatpush2.msra.mxu0 0.0
        %4136 = vmatprep.subr.mxu0 0.0
        %4137 = vmatpush2.msra.mxu0 0.0
        %4138 = vmatprep.subr.mxu0 0.0
        %4139 = vmatpush2.msra.mxu0 0.0
        %4140 = vmatprep.subr.mxu0 0.0
        %4141 = vmatpush2.msra.mxu0 0.0
        %4142 = vmatprep.subr.mxu0 0.0
        %4143 = vmatpush2.msra.mxu0 0.0
        %4144 = vmatprep.mubr.f32.mxu0 0.0
        %4145 = vmatmul.mubr.f32.gmra.mxu0 %v3999
        %v4146 = vpop.f32.mrf.mxu0
        %v4147 = vadd.f32 0.0, %v4146
        %v4148 = vpop.f32.mrf.mxu0
        %v4149 = vadd.f32 0.0, %v4148
        %4150 = vdwg.mxu0
        %v4151 = vadd.f32 %v3195, %v4076
        %v4152 = vadd.f32 %v3196, %v4078
        %v4153 = vadd.f32 %v3197, %v4147
        %v4154 = vadd.f32 %v3198, %v4149
        %s4155 = scalar_lea.vmem %s2, 64
        %v4156 = vld [vmem:[%s4155] sm:$0xff]
        %v4158 = vsel %vm246, %v4156, 0
        %4160 = vmatprep.subr.mxu0 0.0
        %4161 = vmatpush1.msra.mxu0 0.0
        %4162 = vmatprep.subr.mxu0 0.0
        %4163 = vmatpush1.msra.mxu0 0.0
        %4164 = vmatprep.subr.mxu0 0.0
        %4165 = vmatpush1.msra.mxu0 0.0
        %4166 = vmatprep.subr.mxu0 0.0
        %4167 = vmatpush1.msra.mxu0 0.0
        %4168 = vmatprep.subr.mxu0 0.0
        %4169 = vmatpush1.msra.mxu0 0.0
        %4170 = vmatprep.subr.mxu0 0.0
        %4171 = vmatpush1.msra.mxu0 0.0
        %4172 = vmatprep.subr.mxu0 0.0
        %4173 = vmatpush1.msra.mxu0 0.0
        %4174 = vmatprep.subr.mxu0 0.0
        %4175 = vmatpush1.msra.mxu0 0.0
        %4176 = vmatprep.subr.mxu0 0.0
        %4177 = vmatpush1.msra.mxu0 0.0
        %4178 = vmatprep.subr.mxu0 0.0
        %4179 = vmatpush1.msra.mxu0 0.0
        %4180 = vmatprep.subr.mxu0 0.0
        %4181 = vmatpush1.msra.mxu0 0.0
        %4182 = vmatprep.subr.mxu0 0.0
        %4183 = vmatpush1.msra.mxu0 0.0
        %4184 = vmatprep.subr.mxu0 0.0
        %4185 = vmatpush1.msra.mxu0 0.0
        %4186 = vmatprep.subr.mxu0 0.0
        %4187 = vmatpush1.msra.mxu0 0.0
        %4188 = vmatprep.subr.mxu0 0.0
        %4189 = vmatpush1.msra.mxu0 0.0
        %4190 = vmatprep.subr.mxu0 %v4003
        %4191 = vmatpush1.msra.mxu0 %v4001
        %4192 = vmatprep.subr.mxu0 0.0
        %4193 = vmatpush2.msra.mxu0 0.0
        %4194 = vmatprep.subr.mxu0 0.0
        %4195 = vmatpush2.msra.mxu0 0.0
        %4196 = vmatprep.subr.mxu0 0.0
        %4197 = vmatpush2.msra.mxu0 0.0
        %4198 = vmatprep.subr.mxu0 0.0
        %4199 = vmatpush2.msra.mxu0 0.0
        %4200 = vmatprep.subr.mxu0 0.0
        %4201 = vmatpush2.msra.mxu0 0.0
        %4202 = vmatprep.subr.mxu0 0.0
        %4203 = vmatpush2.msra.mxu0 0.0
        %4204 = vmatprep.subr.mxu0 0.0
        %4205 = vmatpush2.msra.mxu0 0.0
        %4206 = vmatprep.subr.mxu0 0.0
        %4207 = vmatpush2.msra.mxu0 0.0
        %4208 = vmatprep.subr.mxu0 0.0
        %4209 = vmatpush2.msra.mxu0 0.0
        %4210 = vmatprep.subr.mxu0 0.0
        %4211 = vmatpush2.msra.mxu0 0.0
        %4212 = vmatprep.subr.mxu0 0.0
        %4213 = vmatpush2.msra.mxu0 0.0
        %4214 = vmatprep.subr.mxu0 0.0
        %4215 = vmatpush2.msra.mxu0 0.0
        %4216 = vmatprep.subr.mxu0 0.0
        %4217 = vmatpush2.msra.mxu0 0.0
        %4218 = vmatprep.subr.mxu0 0.0
        %4219 = vmatpush2.msra.mxu0 0.0
        %4220 = vmatprep.subr.mxu0 0.0
        %4221 = vmatpush2.msra.mxu0 0.0
        %4222 = vmatprep.subr.mxu0 0.0
        %4223 = vmatpush2.msra.mxu0 0.0
        %4224 = vmatprep.mubr.f32.mxu0 0.0
        %4225 = vmatmul.mubr.f32.gmra.mxu0 %v4158
        %v4226 = vpop.f32.mrf.mxu0
        %v4227 = vadd.f32 0.0, %v4226
        %v4228 = vpop.f32.mrf.mxu0
        %v4229 = vadd.f32 0.0, %v4228
        %4230 = vdwg.mxu0
        %4231 = vmatprep.subr.mxu0 0.0
        %4232 = vmatpush1.msra.mxu0 0.0
        %4233 = vmatprep.subr.mxu0 0.0
        %4234 = vmatpush1.msra.mxu0 0.0
        %4235 = vmatprep.subr.mxu0 0.0
        %4236 = vmatpush1.msra.mxu0 0.0
        %4237 = vmatprep.subr.mxu0 0.0
        %4238 = vmatpush1.msra.mxu0 0.0
        %4239 = vmatprep.subr.mxu0 0.0
        %4240 = vmatpush1.msra.mxu0 0.0
        %4241 = vmatprep.subr.mxu0 0.0
        %4242 = vmatpush1.msra.mxu0 0.0
        %4243 = vmatprep.subr.mxu0 0.0
        %4244 = vmatpush1.msra.mxu0 0.0
        %4245 = vmatprep.subr.mxu0 0.0
        %4246 = vmatpush1.msra.mxu0 0.0
        %4247 = vmatprep.subr.mxu0 0.0
        %4248 = vmatpush1.msra.mxu0 0.0
        %4249 = vmatprep.subr.mxu0 0.0
        %4250 = vmatpush1.msra.mxu0 0.0
        %4251 = vmatprep.subr.mxu0 0.0
        %4252 = vmatpush1.msra.mxu0 0.0
        %4253 = vmatprep.subr.mxu0 0.0
        %4254 = vmatpush1.msra.mxu0 0.0
        %4255 = vmatprep.subr.mxu0 0.0
        %4256 = vmatpush1.msra.mxu0 0.0
        %4257 = vmatprep.subr.mxu0 0.0
        %4258 = vmatpush1.msra.mxu0 0.0
        %4259 = vmatprep.subr.mxu0 0.0
        %4260 = vmatpush1.msra.mxu0 0.0
        %4261 = vmatprep.subr.mxu0 %v4007
        %4262 = vmatpush1.msra.mxu0 %v4005
        %4263 = vmatprep.subr.mxu0 0.0
        %4264 = vmatpush2.msra.mxu0 0.0
        %4265 = vmatprep.subr.mxu0 0.0
        %4266 = vmatpush2.msra.mxu0 0.0
        %4267 = vmatprep.subr.mxu0 0.0
        %4268 = vmatpush2.msra.mxu0 0.0
        %4269 = vmatprep.subr.mxu0 0.0
        %4270 = vmatpush2.msra.mxu0 0.0
        %4271 = vmatprep.subr.mxu0 0.0
        %4272 = vmatpush2.msra.mxu0 0.0
        %4273 = vmatprep.subr.mxu0 0.0
        %4274 = vmatpush2.msra.mxu0 0.0
        %4275 = vmatprep.subr.mxu0 0.0
        %4276 = vmatpush2.msra.mxu0 0.0
        %4277 = vmatprep.subr.mxu0 0.0
        %4278 = vmatpush2.msra.mxu0 0.0
        %4279 = vmatprep.subr.mxu0 0.0
        %4280 = vmatpush2.msra.mxu0 0.0
        %4281 = vmatprep.subr.mxu0 0.0
        %4282 = vmatpush2.msra.mxu0 0.0
        %4283 = vmatprep.subr.mxu0 0.0
        %4284 = vmatpush2.msra.mxu0 0.0
        %4285 = vmatprep.subr.mxu0 0.0
        %4286 = vmatpush2.msra.mxu0 0.0
        %4287 = vmatprep.subr.mxu0 0.0
        %4288 = vmatpush2.msra.mxu0 0.0
        %4289 = vmatprep.subr.mxu0 0.0
        %4290 = vmatpush2.msra.mxu0 0.0
        %4291 = vmatprep.subr.mxu0 0.0
        %4292 = vmatpush2.msra.mxu0 0.0
        %4293 = vmatprep.subr.mxu0 0.0
        %4294 = vmatpush2.msra.mxu0 0.0
        %4295 = vmatprep.mubr.f32.mxu0 0.0
        %4296 = vmatmul.mubr.f32.gmra.mxu0 %v4158
        %v4297 = vpop.f32.mrf.mxu0
        %v4298 = vadd.f32 0.0, %v4297
        %v4299 = vpop.f32.mrf.mxu0
        %4300 = vdwg.mxu0
        %v4301 = vadd.f32 %v3663, %v4227
        %v4302 = vadd.f32 %v3664, %v4229
        %v4303 = vadd.f32 %v3665, %v4298
        %s4304 = scalar_lea.vmem %s3, 80
        %v4305 = vld [vmem:[%s4304] sm:$0xff]
        %v4307 = vsel %vm246, %v4305, 0
        %4309 = vmatprep.subr.mxu0 0.0
        %4310 = vmatpush1.msra.mxu0 0.0
        %4311 = vmatprep.subr.mxu0 0.0
        %4312 = vmatpush1.msra.mxu0 0.0
        %4313 = vmatprep.subr.mxu0 0.0
        %4314 = vmatpush1.msra.mxu0 0.0
        %4315 = vmatprep.subr.mxu0 0.0
        %4316 = vmatpush1.msra.mxu0 0.0
        %4317 = vmatprep.subr.mxu0 0.0
        %4318 = vmatpush1.msra.mxu0 0.0
        %4319 = vmatprep.subr.mxu0 0.0
        %4320 = vmatpush1.msra.mxu0 0.0
        %4321 = vmatprep.subr.mxu0 0.0
        %4322 = vmatpush1.msra.mxu0 0.0
        %4323 = vmatprep.subr.mxu0 0.0
        %4324 = vmatpush1.msra.mxu0 0.0
        %4325 = vmatprep.subr.mxu0 0.0
        %4326 = vmatpush1.msra.mxu0 0.0
        %4327 = vmatprep.subr.mxu0 0.0
        %4328 = vmatpush1.msra.mxu0 0.0
        %4329 = vmatprep.subr.mxu0 0.0
        %4330 = vmatpush1.msra.mxu0 0.0
        %4331 = vmatprep.subr.mxu0 0.0
        %4332 = vmatpush1.msra.mxu0 0.0
        %4333 = vmatprep.subr.mxu0 0.0
        %4334 = vmatpush1.msra.mxu0 0.0
        %4335 = vmatprep.subr.mxu0 0.0
        %4336 = vmatpush1.msra.mxu0 0.0
        %4337 = vmatprep.subr.mxu0 0.0
        %4338 = vmatpush1.msra.mxu0 0.0
        %4339 = vmatprep.subr.mxu0 %v4003
        %4340 = vmatpush1.msra.mxu0 %v4001
        %4341 = vmatprep.subr.mxu0 0.0
        %4342 = vmatpush2.msra.mxu0 0.0
        %4343 = vmatprep.subr.mxu0 0.0
        %4344 = vmatpush2.msra.mxu0 0.0
        %4345 = vmatprep.subr.mxu0 0.0
        %4346 = vmatpush2.msra.mxu0 0.0
        %4347 = vmatprep.subr.mxu0 0.0
        %4348 = vmatpush2.msra.mxu0 0.0
        %4349 = vmatprep.subr.mxu0 0.0
        %4350 = vmatpush2.msra.mxu0 0.0
        %4351 = vmatprep.subr.mxu0 0.0
        %4352 = vmatpush2.msra.mxu0 0.0
        %4353 = vmatprep.subr.mxu0 0.0
        %4354 = vmatpush2.msra.mxu0 0.0
        %4355 = vmatprep.subr.mxu0 0.0
        %4356 = vmatpush2.msra.mxu0 0.0
        %4357 = vmatprep.subr.mxu0 0.0
        %4358 = vmatpush2.msra.mxu0 0.0
        %4359 = vmatprep.subr.mxu0 0.0
        %4360 = vmatpush2.msra.mxu0 0.0
        %4361 = vmatprep.subr.mxu0 0.0
        %4362 = vmatpush2.msra.mxu0 0.0
        %4363 = vmatprep.subr.mxu0 0.0
        %4364 = vmatpush2.msra.mxu0 0.0
        %4365 = vmatprep.subr.mxu0 0.0
        %4366 = vmatpush2.msra.mxu0 0.0
        %4367 = vmatprep.subr.mxu0 0.0
        %4368 = vmatpush2.msra.mxu0 0.0
        %4369 = vmatprep.subr.mxu0 0.0
        %4370 = vmatpush2.msra.mxu0 0.0
        %4371 = vmatprep.subr.mxu0 0.0
        %4372 = vmatpush2.msra.mxu0 0.0
        %4373 = vmatprep.mubr.f32.mxu0 0.0
        %4374 = vmatmul.mubr.f32.gmra.mxu0 %v4307
        %v4375 = vpop.f32.mrf.mxu0
        %v4376 = vadd.f32 0.0, %v4375
        %v4377 = vpop.f32.mrf.mxu0
        %v4378 = vadd.f32 0.0, %v4377
        %4379 = vdwg.mxu0
        %4380 = vmatprep.subr.mxu0 0.0
        %4381 = vmatpush1.msra.mxu0 0.0
        %4382 = vmatprep.subr.mxu0 0.0
        %4383 = vmatpush1.msra.mxu0 0.0
        %4384 = vmatprep.subr.mxu0 0.0
        %4385 = vmatpush1.msra.mxu0 0.0
        %4386 = vmatprep.subr.mxu0 0.0
        %4387 = vmatpush1.msra.mxu0 0.0
        %4388 = vmatprep.subr.mxu0 0.0
        %4389 = vmatpush1.msra.mxu0 0.0
        %4390 = vmatprep.subr.mxu0 0.0
        %4391 = vmatpush1.msra.mxu0 0.0
        %4392 = vmatprep.subr.mxu0 0.0
        %4393 = vmatpush1.msra.mxu0 0.0
        %4394 = vmatprep.subr.mxu0 0.0
        %4395 = vmatpush1.msra.mxu0 0.0
        %4396 = vmatprep.subr.mxu0 0.0
        %4397 = vmatpush1.msra.mxu0 0.0
        %4398 = vmatprep.subr.mxu0 0.0
        %4399 = vmatpush1.msra.mxu0 0.0
        %4400 = vmatprep.subr.mxu0 0.0
        %4401 = vmatpush1.msra.mxu0 0.0
        %4402 = vmatprep.subr.mxu0 0.0
        %4403 = vmatpush1.msra.mxu0 0.0
        %4404 = vmatprep.subr.mxu0 0.0
        %4405 = vmatpush1.msra.mxu0 0.0
        %4406 = vmatprep.subr.mxu0 0.0
        %4407 = vmatpush1.msra.mxu0 0.0
        %4408 = vmatprep.subr.mxu0 0.0
        %4409 = vmatpush1.msra.mxu0 0.0
        %4410 = vmatprep.subr.mxu0 %v4007
        %4411 = vmatpush1.msra.mxu0 %v4005
        %4412 = vmatprep.subr.mxu0 0.0
        %4413 = vmatpush2.msra.mxu0 0.0
        %4414 = vmatprep.subr.mxu0 0.0
        %4415 = vmatpush2.msra.mxu0 0.0
        %4416 = vmatprep.subr.mxu0 0.0
        %4417 = vmatpush2.msra.mxu0 0.0
        %4418 = vmatprep.subr.mxu0 0.0
        %4419 = vmatpush2.msra.mxu0 0.0
        %4420 = vmatprep.subr.mxu0 0.0
        %4421 = vmatpush2.msra.mxu0 0.0
        %4422 = vmatprep.subr.mxu0 0.0
        %4423 = vmatpush2.msra.mxu0 0.0
        %4424 = vmatprep.subr.mxu0 0.0
        %4425 = vmatpush2.msra.mxu0 0.0
        %4426 = vmatprep.subr.mxu0 0.0
        %4427 = vmatpush2.msra.mxu0 0.0
        %4428 = vmatprep.subr.mxu0 0.0
        %4429 = vmatpush2.msra.mxu0 0.0
        %4430 = vmatprep.subr.mxu0 0.0
        %4431 = vmatpush2.msra.mxu0 0.0
        %4432 = vmatprep.subr.mxu0 0.0
        %4433 = vmatpush2.msra.mxu0 0.0
        %4434 = vmatprep.subr.mxu0 0.0
        %4435 = vmatpush2.msra.mxu0 0.0
        %4436 = vmatprep.subr.mxu0 0.0
        %4437 = vmatpush2.msra.mxu0 0.0
        %4438 = vmatprep.subr.mxu0 0.0
        %4439 = vmatpush2.msra.mxu0 0.0
        %4440 = vmatprep.subr.mxu0 0.0
        %4441 = vmatpush2.msra.mxu0 0.0
        %4442 = vmatprep.subr.mxu0 0.0
        %4443 = vmatpush2.msra.mxu0 0.0
        %4444 = vmatprep.mubr.f32.mxu0 0.0
        %4445 = vmatmul.mubr.f32.gmra.mxu0 %v4307
        %v4446 = vpop.f32.mrf.mxu0
        %v4447 = vadd.f32 0.0, %v4446
        %v4448 = vpop.f32.mrf.mxu0
        %4449 = vdwg.mxu0
        %v4450 = vadd.f32 %v3981, %v4376
        %v4451 = vadd.f32 %v3982, %v4378
        %v4452 = vadd.f32 %v3983, %v4447
        %s4453 = scalar_lea.vmem %s1, 56
        %v4454 = vld [vmem:[%s4453] sm:$0xff]
        %4455 = vrot.lane.b32.xlu0 %v223, 87
        %v4456 = vpop.permute.xlu0 %4455
        %4457 = vrot.lane.b32.xlu0 %v232, 87
        %v4458 = vpop.permute.xlu0 %4457
        %4459 = vrot.lane.b32.xlu0 %v224, 87
        %v4460 = vpop.permute.xlu0 %4459
        %4461 = vrot.lane.b32.xlu0 %v233, 87
        %v4462 = vpop.permute.xlu0 %4461
        %vm4463 = vcmask 711680
        %v4464 = vsel %vm4463, %v4456, %v4458
        %v4465 = vsel %vm4463, %v4458, %v4460
        %v4466 = vsel %vm4463, %v4460, %v4462
        %v4468 = vsel %vm246, %v4454, 0
        %v4470 = vsel %vm250, %v4464, 0
        %v4472 = vsel %vm250, %v4465, 0
        %v4474 = vsel %vm250, %v4466, 0
        %v4476 = vsel %vm250, %v4462, 0
        %4478 = vmatprep.subr.mxu0 0.0
        %4479 = vmatpush1.msra.mxu0 0.0
        %4480 = vmatprep.subr.mxu0 0.0
        %4481 = vmatpush1.msra.mxu0 0.0
        %4482 = vmatprep.subr.mxu0 0.0
        %4483 = vmatpush1.msra.mxu0 0.0
        %4484 = vmatprep.subr.mxu0 0.0
        %4485 = vmatpush1.msra.mxu0 0.0
        %4486 = vmatprep.subr.mxu0 0.0
        %4487 = vmatpush1.msra.mxu0 0.0
        %4488 = vmatprep.subr.mxu0 0.0
        %4489 = vmatpush1.msra.mxu0 0.0
        %4490 = vmatprep.subr.mxu0 0.0
        %4491 = vmatpush1.msra.mxu0 0.0
        %4492 = vmatprep.subr.mxu0 0.0
        %4493 = vmatpush1.msra.mxu0 0.0
        %4494 = vmatprep.subr.mxu0 0.0
        %4495 = vmatpush1.msra.mxu0 0.0
        %4496 = vmatprep.subr.mxu0 0.0
        %4497 = vmatpush1.msra.mxu0 0.0
        %4498 = vmatprep.subr.mxu0 0.0
        %4499 = vmatpush1.msra.mxu0 0.0
        %4500 = vmatprep.subr.mxu0 0.0
        %4501 = vmatpush1.msra.mxu0 0.0
        %4502 = vmatprep.subr.mxu0 0.0
        %4503 = vmatpush1.msra.mxu0 0.0
        %4504 = vmatprep.subr.mxu0 0.0
        %4505 = vmatpush1.msra.mxu0 0.0
        %4506 = vmatprep.subr.mxu0 0.0
        %4507 = vmatpush1.msra.mxu0 0.0
        %4508 = vmatprep.subr.mxu0 %v4472
        %4509 = vmatpush1.msra.mxu0 %v4470
        %4510 = vmatprep.subr.mxu0 0.0
        %4511 = vmatpush2.msra.mxu0 0.0
        %4512 = vmatprep.subr.mxu0 0.0
        %4513 = vmatpush2.msra.mxu0 0.0
        %4514 = vmatprep.subr.mxu0 0.0
        %4515 = vmatpush2.msra.mxu0 0.0
        %4516 = vmatprep.subr.mxu0 0.0
        %4517 = vmatpush2.msra.mxu0 0.0
        %4518 = vmatprep.subr.mxu0 0.0
        %4519 = vmatpush2.msra.mxu0 0.0
        %4520 = vmatprep.subr.mxu0 0.0
        %4521 = vmatpush2.msra.mxu0 0.0
        %4522 = vmatprep.subr.mxu0 0.0
        %4523 = vmatpush2.msra.mxu0 0.0
        %4524 = vmatprep.subr.mxu0 0.0
        %4525 = vmatpush2.msra.mxu0 0.0
        %4526 = vmatprep.subr.mxu0 0.0
        %4527 = vmatpush2.msra.mxu0 0.0
        %4528 = vmatprep.subr.mxu0 0.0
        %4529 = vmatpush2.msra.mxu0 0.0
        %4530 = vmatprep.subr.mxu0 0.0
        %4531 = vmatpush2.msra.mxu0 0.0
        %4532 = vmatprep.subr.mxu0 0.0
        %4533 = vmatpush2.msra.mxu0 0.0
        %4534 = vmatprep.subr.mxu0 0.0
        %4535 = vmatpush2.msra.mxu0 0.0
        %4536 = vmatprep.subr.mxu0 0.0
        %4537 = vmatpush2.msra.mxu0 0.0
        %4538 = vmatprep.subr.mxu0 0.0
        %4539 = vmatpush2.msra.mxu0 0.0
        %4540 = vmatprep.subr.mxu0 0.0
        %4541 = vmatpush2.msra.mxu0 0.0
        %4542 = vmatprep.mubr.f32.mxu0 0.0
        %4543 = vmatmul.mubr.f32.gmra.mxu0 %v4468
        %v4544 = vpop.f32.mrf.mxu0
        %v4545 = vadd.f32 0.0, %v4544
        %v4546 = vpop.f32.mrf.mxu0
        %v4547 = vadd.f32 0.0, %v4546
        %4548 = vdwg.mxu0
        %4549 = vmatprep.subr.mxu0 0.0
        %4550 = vmatpush1.msra.mxu0 0.0
        %4551 = vmatprep.subr.mxu0 0.0
        %4552 = vmatpush1.msra.mxu0 0.0
        %4553 = vmatprep.subr.mxu0 0.0
        %4554 = vmatpush1.msra.mxu0 0.0
        %4555 = vmatprep.subr.mxu0 0.0
        %4556 = vmatpush1.msra.mxu0 0.0
        %4557 = vmatprep.subr.mxu0 0.0
        %4558 = vmatpush1.msra.mxu0 0.0
        %4559 = vmatprep.subr.mxu0 0.0
        %4560 = vmatpush1.msra.mxu0 0.0
        %4561 = vmatprep.subr.mxu0 0.0
        %4562 = vmatpush1.msra.mxu0 0.0
        %4563 = vmatprep.subr.mxu0 0.0
        %4564 = vmatpush1.msra.mxu0 0.0
        %4565 = vmatprep.subr.mxu0 0.0
        %4566 = vmatpush1.msra.mxu0 0.0
        %4567 = vmatprep.subr.mxu0 0.0
        %4568 = vmatpush1.msra.mxu0 0.0
        %4569 = vmatprep.subr.mxu0 0.0
        %4570 = vmatpush1.msra.mxu0 0.0
        %4571 = vmatprep.subr.mxu0 0.0
        %4572 = vmatpush1.msra.mxu0 0.0
        %4573 = vmatprep.subr.mxu0 0.0
        %4574 = vmatpush1.msra.mxu0 0.0
        %4575 = vmatprep.subr.mxu0 0.0
        %4576 = vmatpush1.msra.mxu0 0.0
        %4577 = vmatprep.subr.mxu0 0.0
        %4578 = vmatpush1.msra.mxu0 0.0
        %4579 = vmatprep.subr.mxu0 %v4476
        %4580 = vmatpush1.msra.mxu0 %v4474
        %4581 = vmatprep.subr.mxu0 0.0
        %4582 = vmatpush2.msra.mxu0 0.0
        %4583 = vmatprep.subr.mxu0 0.0
        %4584 = vmatpush2.msra.mxu0 0.0
        %4585 = vmatprep.subr.mxu0 0.0
        %4586 = vmatpush2.msra.mxu0 0.0
        %4587 = vmatprep.subr.mxu0 0.0
        %4588 = vmatpush2.msra.mxu0 0.0
        %4589 = vmatprep.subr.mxu0 0.0
        %4590 = vmatpush2.msra.mxu0 0.0
        %4591 = vmatprep.subr.mxu0 0.0
        %4592 = vmatpush2.msra.mxu0 0.0
        %4593 = vmatprep.subr.mxu0 0.0
        %4594 = vmatpush2.msra.mxu0 0.0
        %4595 = vmatprep.subr.mxu0 0.0
        %4596 = vmatpush2.msra.mxu0 0.0
        %4597 = vmatprep.subr.mxu0 0.0
        %4598 = vmatpush2.msra.mxu0 0.0
        %4599 = vmatprep.subr.mxu0 0.0
        %4600 = vmatpush2.msra.mxu0 0.0
        %4601 = vmatprep.subr.mxu0 0.0
        %4602 = vmatpush2.msra.mxu0 0.0
        %4603 = vmatprep.subr.mxu0 0.0
        %4604 = vmatpush2.msra.mxu0 0.0
        %4605 = vmatprep.subr.mxu0 0.0
        %4606 = vmatpush2.msra.mxu0 0.0
        %4607 = vmatprep.subr.mxu0 0.0
        %4608 = vmatpush2.msra.mxu0 0.0
        %4609 = vmatprep.subr.mxu0 0.0
        %4610 = vmatpush2.msra.mxu0 0.0
        %4611 = vmatprep.subr.mxu0 0.0
        %4612 = vmatpush2.msra.mxu0 0.0
        %4613 = vmatprep.mubr.f32.mxu0 0.0
        %4614 = vmatmul.mubr.f32.gmra.mxu0 %v4468
        %v4615 = vpop.f32.mrf.mxu0
        %v4616 = vadd.f32 0.0, %v4615
        %v4617 = vpop.f32.mrf.mxu0
        %v4618 = vadd.f32 0.0, %v4617
        %4619 = vdwg.mxu0
        %v4620 = vadd.f32 %v4151, %v4545
        %v4621 = vadd.f32 %v4152, %v4547
        %v4622 = vadd.f32 %v4153, %v4616
        %v4623 = vadd.f32 %v4154, %v4618
        %s4624 = scalar_lea.vmem %s2, 72
        %v4625 = vld [vmem:[%s4624] sm:$0xff]
        %v4627 = vsel %vm246, %v4625, 0
        %4629 = vmatprep.subr.mxu0 0.0
        %4630 = vmatpush1.msra.mxu0 0.0
        %4631 = vmatprep.subr.mxu0 0.0
        %4632 = vmatpush1.msra.mxu0 0.0
        %4633 = vmatprep.subr.mxu0 0.0
        %4634 = vmatpush1.msra.mxu0 0.0
        %4635 = vmatprep.subr.mxu0 0.0
        %4636 = vmatpush1.msra.mxu0 0.0
        %4637 = vmatprep.subr.mxu0 0.0
        %4638 = vmatpush1.msra.mxu0 0.0
        %4639 = vmatprep.subr.mxu0 0.0
        %4640 = vmatpush1.msra.mxu0 0.0
        %4641 = vmatprep.subr.mxu0 0.0
        %4642 = vmatpush1.msra.mxu0 0.0
        %4643 = vmatprep.subr.mxu0 0.0
        %4644 = vmatpush1.msra.mxu0 0.0
        %4645 = vmatprep.subr.mxu0 0.0
        %4646 = vmatpush1.msra.mxu0 0.0
        %4647 = vmatprep.subr.mxu0 0.0
        %4648 = vmatpush1.msra.mxu0 0.0
        %4649 = vmatprep.subr.mxu0 0.0
        %4650 = vmatpush1.msra.mxu0 0.0
        %4651 = vmatprep.subr.mxu0 0.0
        %4652 = vmatpush1.msra.mxu0 0.0
        %4653 = vmatprep.subr.mxu0 0.0
        %4654 = vmatpush1.msra.mxu0 0.0
        %4655 = vmatprep.subr.mxu0 0.0
        %4656 = vmatpush1.msra.mxu0 0.0
        %4657 = vmatprep.subr.mxu0 0.0
        %4658 = vmatpush1.msra.mxu0 0.0
        %4659 = vmatprep.subr.mxu0 %v4472
        %4660 = vmatpush1.msra.mxu0 %v4470
        %4661 = vmatprep.subr.mxu0 0.0
        %4662 = vmatpush2.msra.mxu0 0.0
        %4663 = vmatprep.subr.mxu0 0.0
        %4664 = vmatpush2.msra.mxu0 0.0
        %4665 = vmatprep.subr.mxu0 0.0
        %4666 = vmatpush2.msra.mxu0 0.0
        %4667 = vmatprep.subr.mxu0 0.0
        %4668 = vmatpush2.msra.mxu0 0.0
        %4669 = vmatprep.subr.mxu0 0.0
        %4670 = vmatpush2.msra.mxu0 0.0
        %4671 = vmatprep.subr.mxu0 0.0
        %4672 = vmatpush2.msra.mxu0 0.0
        %4673 = vmatprep.subr.mxu0 0.0
        %4674 = vmatpush2.msra.mxu0 0.0
        %4675 = vmatprep.subr.mxu0 0.0
        %4676 = vmatpush2.msra.mxu0 0.0
        %4677 = vmatprep.subr.mxu0 0.0
        %4678 = vmatpush2.msra.mxu0 0.0
        %4679 = vmatprep.subr.mxu0 0.0
        %4680 = vmatpush2.msra.mxu0 0.0
        %4681 = vmatprep.subr.mxu0 0.0
        %4682 = vmatpush2.msra.mxu0 0.0
        %4683 = vmatprep.subr.mxu0 0.0
        %4684 = vmatpush2.msra.mxu0 0.0
        %4685 = vmatprep.subr.mxu0 0.0
        %4686 = vmatpush2.msra.mxu0 0.0
        %4687 = vmatprep.subr.mxu0 0.0
        %4688 = vmatpush2.msra.mxu0 0.0
        %4689 = vmatprep.subr.mxu0 0.0
        %4690 = vmatpush2.msra.mxu0 0.0
        %4691 = vmatprep.subr.mxu0 0.0
        %4692 = vmatpush2.msra.mxu0 0.0
        %4693 = vmatprep.mubr.f32.mxu0 0.0
        %4694 = vmatmul.mubr.f32.gmra.mxu0 %v4627
        %v4695 = vpop.f32.mrf.mxu0
        %v4696 = vadd.f32 0.0, %v4695
        %v4697 = vpop.f32.mrf.mxu0
        %v4698 = vadd.f32 0.0, %v4697
        %4699 = vdwg.mxu0
        %4700 = vmatprep.subr.mxu0 0.0
        %4701 = vmatpush1.msra.mxu0 0.0
        %4702 = vmatprep.subr.mxu0 0.0
        %4703 = vmatpush1.msra.mxu0 0.0
        %4704 = vmatprep.subr.mxu0 0.0
        %4705 = vmatpush1.msra.mxu0 0.0
        %4706 = vmatprep.subr.mxu0 0.0
        %4707 = vmatpush1.msra.mxu0 0.0
        %4708 = vmatprep.subr.mxu0 0.0
        %4709 = vmatpush1.msra.mxu0 0.0
        %4710 = vmatprep.subr.mxu0 0.0
        %4711 = vmatpush1.msra.mxu0 0.0
        %4712 = vmatprep.subr.mxu0 0.0
        %4713 = vmatpush1.msra.mxu0 0.0
        %4714 = vmatprep.subr.mxu0 0.0
        %4715 = vmatpush1.msra.mxu0 0.0
        %4716 = vmatprep.subr.mxu0 0.0
        %4717 = vmatpush1.msra.mxu0 0.0
        %4718 = vmatprep.subr.mxu0 0.0
        %4719 = vmatpush1.msra.mxu0 0.0
        %4720 = vmatprep.subr.mxu0 0.0
        %4721 = vmatpush1.msra.mxu0 0.0
        %4722 = vmatprep.subr.mxu0 0.0
        %4723 = vmatpush1.msra.mxu0 0.0
        %4724 = vmatprep.subr.mxu0 0.0
        %4725 = vmatpush1.msra.mxu0 0.0
        %4726 = vmatprep.subr.mxu0 0.0
        %4727 = vmatpush1.msra.mxu0 0.0
        %4728 = vmatprep.subr.mxu0 0.0
        %4729 = vmatpush1.msra.mxu0 0.0
        %4730 = vmatprep.subr.mxu0 %v4476
        %4731 = vmatpush1.msra.mxu0 %v4474
        %4732 = vmatprep.subr.mxu0 0.0
        %4733 = vmatpush2.msra.mxu0 0.0
        %4734 = vmatprep.subr.mxu0 0.0
        %4735 = vmatpush2.msra.mxu0 0.0
        %4736 = vmatprep.subr.mxu0 0.0
        %4737 = vmatpush2.msra.mxu0 0.0
        %4738 = vmatprep.subr.mxu0 0.0
        %4739 = vmatpush2.msra.mxu0 0.0
        %4740 = vmatprep.subr.mxu0 0.0
        %4741 = vmatpush2.msra.mxu0 0.0
        %4742 = vmatprep.subr.mxu0 0.0
        %4743 = vmatpush2.msra.mxu0 0.0
        %4744 = vmatprep.subr.mxu0 0.0
        %4745 = vmatpush2.msra.mxu0 0.0
        %4746 = vmatprep.subr.mxu0 0.0
        %4747 = vmatpush2.msra.mxu0 0.0
        %4748 = vmatprep.subr.mxu0 0.0
        %4749 = vmatpush2.msra.mxu0 0.0
        %4750 = vmatprep.subr.mxu0 0.0
        %4751 = vmatpush2.msra.mxu0 0.0
        %4752 = vmatprep.subr.mxu0 0.0
        %4753 = vmatpush2.msra.mxu0 0.0
        %4754 = vmatprep.subr.mxu0 0.0
        %4755 = vmatpush2.msra.mxu0 0.0
        %4756 = vmatprep.subr.mxu0 0.0
        %4757 = vmatpush2.msra.mxu0 0.0
        %4758 = vmatprep.subr.mxu0 0.0
        %4759 = vmatpush2.msra.mxu0 0.0
        %4760 = vmatprep.subr.mxu0 0.0
        %4761 = vmatpush2.msra.mxu0 0.0
        %4762 = vmatprep.subr.mxu0 0.0
        %4763 = vmatpush2.msra.mxu0 0.0
        %4764 = vmatprep.mubr.f32.mxu0 0.0
        %4765 = vmatmul.mubr.f32.gmra.mxu0 %v4627
        %v4766 = vpop.f32.mrf.mxu0
        %v4767 = vadd.f32 0.0, %v4766
        %v4768 = vpop.f32.mrf.mxu0
        %4769 = vdwg.mxu0
        %v4770 = vadd.f32 %v4301, %v4696
        %v4771 = vadd.f32 %v4302, %v4698
        %v4772 = vadd.f32 %v4303, %v4767
        %s4773 = scalar_lea.vmem %s3, 88
        %v4774 = vld [vmem:[%s4773] sm:$0xff]
        %v4776 = vsel %vm246, %v4774, 0
        %4778 = vmatprep.subr.mxu0 0.0
        %4779 = vmatpush1.msra.mxu0 0.0
        %4780 = vmatprep.subr.mxu0 0.0
        %4781 = vmatpush1.msra.mxu0 0.0
        %4782 = vmatprep.subr.mxu0 0.0
        %4783 = vmatpush1.msra.mxu0 0.0
        %4784 = vmatprep.subr.mxu0 0.0
        %4785 = vmatpush1.msra.mxu0 0.0
        %4786 = vmatprep.subr.mxu0 0.0
        %4787 = vmatpush1.msra.mxu0 0.0
        %4788 = vmatprep.subr.mxu0 0.0
        %4789 = vmatpush1.msra.mxu0 0.0
        %4790 = vmatprep.subr.mxu0 0.0
        %4791 = vmatpush1.msra.mxu0 0.0
        %4792 = vmatprep.subr.mxu0 0.0
        %4793 = vmatpush1.msra.mxu0 0.0
        %4794 = vmatprep.subr.mxu0 0.0
        %4795 = vmatpush1.msra.mxu0 0.0
        %4796 = vmatprep.subr.mxu0 0.0
        %4797 = vmatpush1.msra.mxu0 0.0
        %4798 = vmatprep.subr.mxu0 0.0
        %4799 = vmatpush1.msra.mxu0 0.0
        %4800 = vmatprep.subr.mxu0 0.0
        %4801 = vmatpush1.msra.mxu0 0.0
        %4802 = vmatprep.subr.mxu0 0.0
        %4803 = vmatpush1.msra.mxu0 0.0
        %4804 = vmatprep.subr.mxu0 0.0
        %4805 = vmatpush1.msra.mxu0 0.0
        %4806 = vmatprep.subr.mxu0 0.0
        %4807 = vmatpush1.msra.mxu0 0.0
        %4808 = vmatprep.subr.mxu0 %v4472
        %4809 = vmatpush1.msra.mxu0 %v4470
        %4810 = vmatprep.subr.mxu0 0.0
        %4811 = vmatpush2.msra.mxu0 0.0
        %4812 = vmatprep.subr.mxu0 0.0
        %4813 = vmatpush2.msra.mxu0 0.0
        %4814 = vmatprep.subr.mxu0 0.0
        %4815 = vmatpush2.msra.mxu0 0.0
        %4816 = vmatprep.subr.mxu0 0.0
        %4817 = vmatpush2.msra.mxu0 0.0
        %4818 = vmatprep.subr.mxu0 0.0
        %4819 = vmatpush2.msra.mxu0 0.0
        %4820 = vmatprep.subr.mxu0 0.0
        %4821 = vmatpush2.msra.mxu0 0.0
        %4822 = vmatprep.subr.mxu0 0.0
        %4823 = vmatpush2.msra.mxu0 0.0
        %4824 = vmatprep.subr.mxu0 0.0
        %4825 = vmatpush2.msra.mxu0 0.0
        %4826 = vmatprep.subr.mxu0 0.0
        %4827 = vmatpush2.msra.mxu0 0.0
        %4828 = vmatprep.subr.mxu0 0.0
        %4829 = vmatpush2.msra.mxu0 0.0
        %4830 = vmatprep.subr.mxu0 0.0
        %4831 = vmatpush2.msra.mxu0 0.0
        %4832 = vmatprep.subr.mxu0 0.0
        %4833 = vmatpush2.msra.mxu0 0.0
        %4834 = vmatprep.subr.mxu0 0.0
        %4835 = vmatpush2.msra.mxu0 0.0
        %4836 = vmatprep.subr.mxu0 0.0
        %4837 = vmatpush2.msra.mxu0 0.0
        %4838 = vmatprep.subr.mxu0 0.0
        %4839 = vmatpush2.msra.mxu0 0.0
        %4840 = vmatprep.subr.mxu0 0.0
        %4841 = vmatpush2.msra.mxu0 0.0
        %4842 = vmatprep.mubr.f32.mxu0 0.0
        %4843 = vmatmul.mubr.f32.gmra.mxu0 %v4776
        %v4844 = vpop.f32.mrf.mxu0
        %v4845 = vadd.f32 0.0, %v4844
        %v4846 = vpop.f32.mrf.mxu0
        %v4847 = vadd.f32 0.0, %v4846
        %4848 = vdwg.mxu0
        %4849 = vmatprep.subr.mxu0 0.0
        %4850 = vmatpush1.msra.mxu0 0.0
        %4851 = vmatprep.subr.mxu0 0.0
        %4852 = vmatpush1.msra.mxu0 0.0
        %4853 = vmatprep.subr.mxu0 0.0
        %4854 = vmatpush1.msra.mxu0 0.0
        %4855 = vmatprep.subr.mxu0 0.0
        %4856 = vmatpush1.msra.mxu0 0.0
        %4857 = vmatprep.subr.mxu0 0.0
        %4858 = vmatpush1.msra.mxu0 0.0
        %4859 = vmatprep.subr.mxu0 0.0
        %4860 = vmatpush1.msra.mxu0 0.0
        %4861 = vmatprep.subr.mxu0 0.0
        %4862 = vmatpush1.msra.mxu0 0.0
        %4863 = vmatprep.subr.mxu0 0.0
        %4864 = vmatpush1.msra.mxu0 0.0
        %4865 = vmatprep.subr.mxu0 0.0
        %4866 = vmatpush1.msra.mxu0 0.0
        %4867 = vmatprep.subr.mxu0 0.0
        %4868 = vmatpush1.msra.mxu0 0.0
        %4869 = vmatprep.subr.mxu0 0.0
        %4870 = vmatpush1.msra.mxu0 0.0
        %4871 = vmatprep.subr.mxu0 0.0
        %4872 = vmatpush1.msra.mxu0 0.0
        %4873 = vmatprep.subr.mxu0 0.0
        %4874 = vmatpush1.msra.mxu0 0.0
        %4875 = vmatprep.subr.mxu0 0.0
        %4876 = vmatpush1.msra.mxu0 0.0
        %4877 = vmatprep.subr.mxu0 0.0
        %4878 = vmatpush1.msra.mxu0 0.0
        %4879 = vmatprep.subr.mxu0 %v4476
        %4880 = vmatpush1.msra.mxu0 %v4474
        %4881 = vmatprep.subr.mxu0 0.0
        %4882 = vmatpush2.msra.mxu0 0.0
        %4883 = vmatprep.subr.mxu0 0.0
        %4884 = vmatpush2.msra.mxu0 0.0
        %4885 = vmatprep.subr.mxu0 0.0
        %4886 = vmatpush2.msra.mxu0 0.0
        %4887 = vmatprep.subr.mxu0 0.0
        %4888 = vmatpush2.msra.mxu0 0.0
        %4889 = vmatprep.subr.mxu0 0.0
        %4890 = vmatpush2.msra.mxu0 0.0
        %4891 = vmatprep.subr.mxu0 0.0
        %4892 = vmatpush2.msra.mxu0 0.0
        %4893 = vmatprep.subr.mxu0 0.0
        %4894 = vmatpush2.msra.mxu0 0.0
        %4895 = vmatprep.subr.mxu0 0.0
        %4896 = vmatpush2.msra.mxu0 0.0
        %4897 = vmatprep.subr.mxu0 0.0
        %4898 = vmatpush2.msra.mxu0 0.0
        %4899 = vmatprep.subr.mxu0 0.0
        %4900 = vmatpush2.msra.mxu0 0.0
        %4901 = vmatprep.subr.mxu0 0.0
        %4902 = vmatpush2.msra.mxu0 0.0
        %4903 = vmatprep.subr.mxu0 0.0
        %4904 = vmatpush2.msra.mxu0 0.0
        %4905 = vmatprep.subr.mxu0 0.0
        %4906 = vmatpush2.msra.mxu0 0.0
        %4907 = vmatprep.subr.mxu0 0.0
        %4908 = vmatpush2.msra.mxu0 0.0
        %4909 = vmatprep.subr.mxu0 0.0
        %4910 = vmatpush2.msra.mxu0 0.0
        %4911 = vmatprep.subr.mxu0 0.0
        %4912 = vmatpush2.msra.mxu0 0.0
        %4913 = vmatprep.mubr.f32.mxu0 0.0
        %4914 = vmatmul.mubr.f32.gmra.mxu0 %v4776
        %v4915 = vpop.f32.mrf.mxu0
        %v4916 = vadd.f32 0.0, %v4915
        %v4917 = vpop.f32.mrf.mxu0
        %4918 = vdwg.mxu0
        %v4919 = vadd.f32 %v4450, %v4845
        %v4920 = vadd.f32 %v4451, %v4847
        %v4921 = vadd.f32 %v4452, %v4916
        %s4922 = scalar_lea.vmem %s1, 64
        %v4923 = vld [vmem:[%s4922] sm:$0xff]
        %4924 = vrot.lane.b32.xlu0 %v223, 86
        %v4925 = vpop.permute.xlu0 %4924
        %4926 = vrot.lane.b32.xlu0 %v232, 86
        %v4927 = vpop.permute.xlu0 %4926
        %4928 = vrot.lane.b32.xlu0 %v224, 86
        %v4929 = vpop.permute.xlu0 %4928
        %4930 = vrot.lane.b32.xlu0 %v233, 86
        %v4931 = vpop.permute.xlu0 %4930
        %vm4932 = vcmask 703488
        %v4933 = vsel %vm4932, %v4925, %v4927
        %v4934 = vsel %vm4932, %v4927, %v4929
        %v4935 = vsel %vm4932, %v4929, %v4931
        %v4937 = vsel %vm246, %v4923, 0
        %v4939 = vsel %vm250, %v4933, 0
        %v4941 = vsel %vm250, %v4934, 0
        %v4943 = vsel %vm250, %v4935, 0
        %v4945 = vsel %vm250, %v4931, 0
        %4947 = vmatprep.subr.mxu0 0.0
        %4948 = vmatpush1.msra.mxu0 0.0
        %4949 = vmatprep.subr.mxu0 0.0
        %4950 = vmatpush1.msra.mxu0 0.0
        %4951 = vmatprep.subr.mxu0 0.0
        %4952 = vmatpush1.msra.mxu0 0.0
        %4953 = vmatprep.subr.mxu0 0.0
        %4954 = vmatpush1.msra.mxu0 0.0
        %4955 = vmatprep.subr.mxu0 0.0
        %4956 = vmatpush1.msra.mxu0 0.0
        %4957 = vmatprep.subr.mxu0 0.0
        %4958 = vmatpush1.msra.mxu0 0.0
        %4959 = vmatprep.subr.mxu0 0.0
        %4960 = vmatpush1.msra.mxu0 0.0
        %4961 = vmatprep.subr.mxu0 0.0
        %4962 = vmatpush1.msra.mxu0 0.0
        %4963 = vmatprep.subr.mxu0 0.0
        %4964 = vmatpush1.msra.mxu0 0.0
        %4965 = vmatprep.subr.mxu0 0.0
        %4966 = vmatpush1.msra.mxu0 0.0
        %4967 = vmatprep.subr.mxu0 0.0
        %4968 = vmatpush1.msra.mxu0 0.0
        %4969 = vmatprep.subr.mxu0 0.0
        %4970 = vmatpush1.msra.mxu0 0.0
        %4971 = vmatprep.subr.mxu0 0.0
        %4972 = vmatpush1.msra.mxu0 0.0
        %4973 = vmatprep.subr.mxu0 0.0
        %4974 = vmatpush1.msra.mxu0 0.0
        %4975 = vmatprep.subr.mxu0 0.0
        %4976 = vmatpush1.msra.mxu0 0.0
        %4977 = vmatprep.subr.mxu0 %v4941
        %4978 = vmatpush1.msra.mxu0 %v4939
        %4979 = vmatprep.subr.mxu0 0.0
        %4980 = vmatpush2.msra.mxu0 0.0
        %4981 = vmatprep.subr.mxu0 0.0
        %4982 = vmatpush2.msra.mxu0 0.0
        %4983 = vmatprep.subr.mxu0 0.0
        %4984 = vmatpush2.msra.mxu0 0.0
        %4985 = vmatprep.subr.mxu0 0.0
        %4986 = vmatpush2.msra.mxu0 0.0
        %4987 = vmatprep.subr.mxu0 0.0
        %4988 = vmatpush2.msra.mxu0 0.0
        %4989 = vmatprep.subr.mxu0 0.0
        %4990 = vmatpush2.msra.mxu0 0.0
        %4991 = vmatprep.subr.mxu0 0.0
        %4992 = vmatpush2.msra.mxu0 0.0
        %4993 = vmatprep.subr.mxu0 0.0
        %4994 = vmatpush2.msra.mxu0 0.0
        %4995 = vmatprep.subr.mxu0 0.0
        %4996 = vmatpush2.msra.mxu0 0.0
        %4997 = vmatprep.subr.mxu0 0.0
        %4998 = vmatpush2.msra.mxu0 0.0
        %4999 = vmatprep.subr.mxu0 0.0
        %5000 = vmatpush2.msra.mxu0 0.0
        %5001 = vmatprep.subr.mxu0 0.0
        %5002 = vmatpush2.msra.mxu0 0.0
        %5003 = vmatprep.subr.mxu0 0.0
        %5004 = vmatpush2.msra.mxu0 0.0
        %5005 = vmatprep.subr.mxu0 0.0
        %5006 = vmatpush2.msra.mxu0 0.0
        %5007 = vmatprep.subr.mxu0 0.0
        %5008 = vmatpush2.msra.mxu0 0.0
        %5009 = vmatprep.subr.mxu0 0.0
        %5010 = vmatpush2.msra.mxu0 0.0
        %5011 = vmatprep.mubr.f32.mxu0 0.0
        %5012 = vmatmul.mubr.f32.gmra.mxu0 %v4937
        %v5013 = vpop.f32.mrf.mxu0
        %v5014 = vadd.f32 0.0, %v5013
        %v5015 = vpop.f32.mrf.mxu0
        %v5016 = vadd.f32 0.0, %v5015
        %5017 = vdwg.mxu0
        %5018 = vmatprep.subr.mxu0 0.0
        %5019 = vmatpush1.msra.mxu0 0.0
        %5020 = vmatprep.subr.mxu0 0.0
        %5021 = vmatpush1.msra.mxu0 0.0
        %5022 = vmatprep.subr.mxu0 0.0
        %5023 = vmatpush1.msra.mxu0 0.0
        %5024 = vmatprep.subr.mxu0 0.0
        %5025 = vmatpush1.msra.mxu0 0.0
        %5026 = vmatprep.subr.mxu0 0.0
        %5027 = vmatpush1.msra.mxu0 0.0
        %5028 = vmatprep.subr.mxu0 0.0
        %5029 = vmatpush1.msra.mxu0 0.0
        %5030 = vmatprep.subr.mxu0 0.0
        %5031 = vmatpush1.msra.mxu0 0.0
        %5032 = vmatprep.subr.mxu0 0.0
        %5033 = vmatpush1.msra.mxu0 0.0
        %5034 = vmatprep.subr.mxu0 0.0
        %5035 = vmatpush1.msra.mxu0 0.0
        %5036 = vmatprep.subr.mxu0 0.0
        %5037 = vmatpush1.msra.mxu0 0.0
        %5038 = vmatprep.subr.mxu0 0.0
        %5039 = vmatpush1.msra.mxu0 0.0
        %5040 = vmatprep.subr.mxu0 0.0
        %5041 = vmatpush1.msra.mxu0 0.0
        %5042 = vmatprep.subr.mxu0 0.0
        %5043 = vmatpush1.msra.mxu0 0.0
        %5044 = vmatprep.subr.mxu0 0.0
        %5045 = vmatpush1.msra.mxu0 0.0
        %5046 = vmatprep.subr.mxu0 0.0
        %5047 = vmatpush1.msra.mxu0 0.0
        %5048 = vmatprep.subr.mxu0 %v4945
        %5049 = vmatpush1.msra.mxu0 %v4943
        %5050 = vmatprep.subr.mxu0 0.0
        %5051 = vmatpush2.msra.mxu0 0.0
        %5052 = vmatprep.subr.mxu0 0.0
        %5053 = vmatpush2.msra.mxu0 0.0
        %5054 = vmatprep.subr.mxu0 0.0
        %5055 = vmatpush2.msra.mxu0 0.0
        %5056 = vmatprep.subr.mxu0 0.0
        %5057 = vmatpush2.msra.mxu0 0.0
        %5058 = vmatprep.subr.mxu0 0.0
        %5059 = vmatpush2.msra.mxu0 0.0
        %5060 = vmatprep.subr.mxu0 0.0
        %5061 = vmatpush2.msra.mxu0 0.0
        %5062 = vmatprep.subr.mxu0 0.0
        %5063 = vmatpush2.msra.mxu0 0.0
        %5064 = vmatprep.subr.mxu0 0.0
        %5065 = vmatpush2.msra.mxu0 0.0
        %5066 = vmatprep.subr.mxu0 0.0
        %5067 = vmatpush2.msra.mxu0 0.0
        %5068 = vmatprep.subr.mxu0 0.0
        %5069 = vmatpush2.msra.mxu0 0.0
        %5070 = vmatprep.subr.mxu0 0.0
        %5071 = vmatpush2.msra.mxu0 0.0
        %5072 = vmatprep.subr.mxu0 0.0
        %5073 = vmatpush2.msra.mxu0 0.0
        %5074 = vmatprep.subr.mxu0 0.0
        %5075 = vmatpush2.msra.mxu0 0.0
        %5076 = vmatprep.subr.mxu0 0.0
        %5077 = vmatpush2.msra.mxu0 0.0
        %5078 = vmatprep.subr.mxu0 0.0
        %5079 = vmatpush2.msra.mxu0 0.0
        %5080 = vmatprep.subr.mxu0 0.0
        %5081 = vmatpush2.msra.mxu0 0.0
        %5082 = vmatprep.mubr.f32.mxu0 0.0
        %5083 = vmatmul.mubr.f32.gmra.mxu0 %v4937
        %v5084 = vpop.f32.mrf.mxu0
        %v5085 = vadd.f32 0.0, %v5084
        %v5086 = vpop.f32.mrf.mxu0
        %v5087 = vadd.f32 0.0, %v5086
        %5088 = vdwg.mxu0
        %v5089 = vadd.f32 %v4620, %v5014
        %v5090 = vadd.f32 %v4621, %v5016
        %v5091 = vadd.f32 %v4622, %v5085
        %v5092 = vadd.f32 %v4623, %v5087
        %s5093 = scalar_lea.vmem %s2, 80
        %v5094 = vld [vmem:[%s5093] sm:$0xff]
        %v5096 = vsel %vm246, %v5094, 0
        %5098 = vmatprep.subr.mxu0 0.0
        %5099 = vmatpush1.msra.mxu0 0.0
        %5100 = vmatprep.subr.mxu0 0.0
        %5101 = vmatpush1.msra.mxu0 0.0
        %5102 = vmatprep.subr.mxu0 0.0
        %5103 = vmatpush1.msra.mxu0 0.0
        %5104 = vmatprep.subr.mxu0 0.0
        %5105 = vmatpush1.msra.mxu0 0.0
        %5106 = vmatprep.subr.mxu0 0.0
        %5107 = vmatpush1.msra.mxu0 0.0
        %5108 = vmatprep.subr.mxu0 0.0
        %5109 = vmatpush1.msra.mxu0 0.0
        %5110 = vmatprep.subr.mxu0 0.0
        %5111 = vmatpush1.msra.mxu0 0.0
        %5112 = vmatprep.subr.mxu0 0.0
        %5113 = vmatpush1.msra.mxu0 0.0
        %5114 = vmatprep.subr.mxu0 0.0
        %5115 = vmatpush1.msra.mxu0 0.0
        %5116 = vmatprep.subr.mxu0 0.0
        %5117 = vmatpush1.msra.mxu0 0.0
        %5118 = vmatprep.subr.mxu0 0.0
        %5119 = vmatpush1.msra.mxu0 0.0
        %5120 = vmatprep.subr.mxu0 0.0
        %5121 = vmatpush1.msra.mxu0 0.0
        %5122 = vmatprep.subr.mxu0 0.0
        %5123 = vmatpush1.msra.mxu0 0.0
        %5124 = vmatprep.subr.mxu0 0.0
        %5125 = vmatpush1.msra.mxu0 0.0
        %5126 = vmatprep.subr.mxu0 0.0
        %5127 = vmatpush1.msra.mxu0 0.0
        %5128 = vmatprep.subr.mxu0 %v4941
        %5129 = vmatpush1.msra.mxu0 %v4939
        %5130 = vmatprep.subr.mxu0 0.0
        %5131 = vmatpush2.msra.mxu0 0.0
        %5132 = vmatprep.subr.mxu0 0.0
        %5133 = vmatpush2.msra.mxu0 0.0
        %5134 = vmatprep.subr.mxu0 0.0
        %5135 = vmatpush2.msra.mxu0 0.0
        %5136 = vmatprep.subr.mxu0 0.0
        %5137 = vmatpush2.msra.mxu0 0.0
        %5138 = vmatprep.subr.mxu0 0.0
        %5139 = vmatpush2.msra.mxu0 0.0
        %5140 = vmatprep.subr.mxu0 0.0
        %5141 = vmatpush2.msra.mxu0 0.0
        %5142 = vmatprep.subr.mxu0 0.0
        %5143 = vmatpush2.msra.mxu0 0.0
        %5144 = vmatprep.subr.mxu0 0.0
        %5145 = vmatpush2.msra.mxu0 0.0
        %5146 = vmatprep.subr.mxu0 0.0
        %5147 = vmatpush2.msra.mxu0 0.0
        %5148 = vmatprep.subr.mxu0 0.0
        %5149 = vmatpush2.msra.mxu0 0.0
        %5150 = vmatprep.subr.mxu0 0.0
        %5151 = vmatpush2.msra.mxu0 0.0
        %5152 = vmatprep.subr.mxu0 0.0
        %5153 = vmatpush2.msra.mxu0 0.0
        %5154 = vmatprep.subr.mxu0 0.0
        %5155 = vmatpush2.msra.mxu0 0.0
        %5156 = vmatprep.subr.mxu0 0.0
        %5157 = vmatpush2.msra.mxu0 0.0
        %5158 = vmatprep.subr.mxu0 0.0
        %5159 = vmatpush2.msra.mxu0 0.0
        %5160 = vmatprep.subr.mxu0 0.0
        %5161 = vmatpush2.msra.mxu0 0.0
        %5162 = vmatprep.mubr.f32.mxu0 0.0
        %5163 = vmatmul.mubr.f32.gmra.mxu0 %v5096
        %v5164 = vpop.f32.mrf.mxu0
        %v5165 = vadd.f32 0.0, %v5164
        %v5166 = vpop.f32.mrf.mxu0
        %v5167 = vadd.f32 0.0, %v5166
        %5168 = vdwg.mxu0
        %5169 = vmatprep.subr.mxu0 0.0
        %5170 = vmatpush1.msra.mxu0 0.0
        %5171 = vmatprep.subr.mxu0 0.0
        %5172 = vmatpush1.msra.mxu0 0.0
        %5173 = vmatprep.subr.mxu0 0.0
        %5174 = vmatpush1.msra.mxu0 0.0
        %5175 = vmatprep.subr.mxu0 0.0
        %5176 = vmatpush1.msra.mxu0 0.0
        %5177 = vmatprep.subr.mxu0 0.0
        %5178 = vmatpush1.msra.mxu0 0.0
        %5179 = vmatprep.subr.mxu0 0.0
        %5180 = vmatpush1.msra.mxu0 0.0
        %5181 = vmatprep.subr.mxu0 0.0
        %5182 = vmatpush1.msra.mxu0 0.0
        %5183 = vmatprep.subr.mxu0 0.0
        %5184 = vmatpush1.msra.mxu0 0.0
        %5185 = vmatprep.subr.mxu0 0.0
        %5186 = vmatpush1.msra.mxu0 0.0
        %5187 = vmatprep.subr.mxu0 0.0
        %5188 = vmatpush1.msra.mxu0 0.0
        %5189 = vmatprep.subr.mxu0 0.0
        %5190 = vmatpush1.msra.mxu0 0.0
        %5191 = vmatprep.subr.mxu0 0.0
        %5192 = vmatpush1.msra.mxu0 0.0
        %5193 = vmatprep.subr.mxu0 0.0
        %5194 = vmatpush1.msra.mxu0 0.0
        %5195 = vmatprep.subr.mxu0 0.0
        %5196 = vmatpush1.msra.mxu0 0.0
        %5197 = vmatprep.subr.mxu0 0.0
        %5198 = vmatpush1.msra.mxu0 0.0
        %5199 = vmatprep.subr.mxu0 %v4945
        %5200 = vmatpush1.msra.mxu0 %v4943
        %5201 = vmatprep.subr.mxu0 0.0
        %5202 = vmatpush2.msra.mxu0 0.0
        %5203 = vmatprep.subr.mxu0 0.0
        %5204 = vmatpush2.msra.mxu0 0.0
        %5205 = vmatprep.subr.mxu0 0.0
        %5206 = vmatpush2.msra.mxu0 0.0
        %5207 = vmatprep.subr.mxu0 0.0
        %5208 = vmatpush2.msra.mxu0 0.0
        %5209 = vmatprep.subr.mxu0 0.0
        %5210 = vmatpush2.msra.mxu0 0.0
        %5211 = vmatprep.subr.mxu0 0.0
        %5212 = vmatpush2.msra.mxu0 0.0
        %5213 = vmatprep.subr.mxu0 0.0
        %5214 = vmatpush2.msra.mxu0 0.0
        %5215 = vmatprep.subr.mxu0 0.0
        %5216 = vmatpush2.msra.mxu0 0.0
        %5217 = vmatprep.subr.mxu0 0.0
        %5218 = vmatpush2.msra.mxu0 0.0
        %5219 = vmatprep.subr.mxu0 0.0
        %5220 = vmatpush2.msra.mxu0 0.0
        %5221 = vmatprep.subr.mxu0 0.0
        %5222 = vmatpush2.msra.mxu0 0.0
        %5223 = vmatprep.subr.mxu0 0.0
        %5224 = vmatpush2.msra.mxu0 0.0
        %5225 = vmatprep.subr.mxu0 0.0
        %5226 = vmatpush2.msra.mxu0 0.0
        %5227 = vmatprep.subr.mxu0 0.0
        %5228 = vmatpush2.msra.mxu0 0.0
        %5229 = vmatprep.subr.mxu0 0.0
        %5230 = vmatpush2.msra.mxu0 0.0
        %5231 = vmatprep.subr.mxu0 0.0
        %5232 = vmatpush2.msra.mxu0 0.0
        %5233 = vmatprep.mubr.f32.mxu0 0.0
        %5234 = vmatmul.mubr.f32.gmra.mxu0 %v5096
        %v5235 = vpop.f32.mrf.mxu0
        %v5236 = vadd.f32 0.0, %v5235
        %v5237 = vpop.f32.mrf.mxu0
        %5238 = vdwg.mxu0
        %v5239 = vadd.f32 %v4770, %v5165
        %v5240 = vadd.f32 %v4771, %v5167
        %v5241 = vadd.f32 %v4772, %v5236
        %s5242 = scalar_lea.vmem %s3, 96
        %v5243 = vld [vmem:[%s5242] sm:$0xff]
        %v5245 = vsel %vm246, %v5243, 0
        %5247 = vmatprep.subr.mxu0 0.0
        %5248 = vmatpush1.msra.mxu0 0.0
        %5249 = vmatprep.subr.mxu0 0.0
        %5250 = vmatpush1.msra.mxu0 0.0
        %5251 = vmatprep.subr.mxu0 0.0
        %5252 = vmatpush1.msra.mxu0 0.0
        %5253 = vmatprep.subr.mxu0 0.0
        %5254 = vmatpush1.msra.mxu0 0.0
        %5255 = vmatprep.subr.mxu0 0.0
        %5256 = vmatpush1.msra.mxu0 0.0
        %5257 = vmatprep.subr.mxu0 0.0
        %5258 = vmatpush1.msra.mxu0 0.0
        %5259 = vmatprep.subr.mxu0 0.0
        %5260 = vmatpush1.msra.mxu0 0.0
        %5261 = vmatprep.subr.mxu0 0.0
        %5262 = vmatpush1.msra.mxu0 0.0
        %5263 = vmatprep.subr.mxu0 0.0
        %5264 = vmatpush1.msra.mxu0 0.0
        %5265 = vmatprep.subr.mxu0 0.0
        %5266 = vmatpush1.msra.mxu0 0.0
        %5267 = vmatprep.subr.mxu0 0.0
        %5268 = vmatpush1.msra.mxu0 0.0
        %5269 = vmatprep.subr.mxu0 0.0
        %5270 = vmatpush1.msra.mxu0 0.0
        %5271 = vmatprep.subr.mxu0 0.0
        %5272 = vmatpush1.msra.mxu0 0.0
        %5273 = vmatprep.subr.mxu0 0.0
        %5274 = vmatpush1.msra.mxu0 0.0
        %5275 = vmatprep.subr.mxu0 0.0
        %5276 = vmatpush1.msra.mxu0 0.0
        %5277 = vmatprep.subr.mxu0 %v4941
        %5278 = vmatpush1.msra.mxu0 %v4939
        %5279 = vmatprep.subr.mxu0 0.0
        %5280 = vmatpush2.msra.mxu0 0.0
        %5281 = vmatprep.subr.mxu0 0.0
        %5282 = vmatpush2.msra.mxu0 0.0
        %5283 = vmatprep.subr.mxu0 0.0
        %5284 = vmatpush2.msra.mxu0 0.0
        %5285 = vmatprep.subr.mxu0 0.0
        %5286 = vmatpush2.msra.mxu0 0.0
        %5287 = vmatprep.subr.mxu0 0.0
        %5288 = vmatpush2.msra.mxu0 0.0
        %5289 = vmatprep.subr.mxu0 0.0
        %5290 = vmatpush2.msra.mxu0 0.0
        %5291 = vmatprep.subr.mxu0 0.0
        %5292 = vmatpush2.msra.mxu0 0.0
        %5293 = vmatprep.subr.mxu0 0.0
        %5294 = vmatpush2.msra.mxu0 0.0
        %5295 = vmatprep.subr.mxu0 0.0
        %5296 = vmatpush2.msra.mxu0 0.0
        %5297 = vmatprep.subr.mxu0 0.0
        %5298 = vmatpush2.msra.mxu0 0.0
        %5299 = vmatprep.subr.mxu0 0.0
        %5300 = vmatpush2.msra.mxu0 0.0
        %5301 = vmatprep.subr.mxu0 0.0
        %5302 = vmatpush2.msra.mxu0 0.0
        %5303 = vmatprep.subr.mxu0 0.0
        %5304 = vmatpush2.msra.mxu0 0.0
        %5305 = vmatprep.subr.mxu0 0.0
        %5306 = vmatpush2.msra.mxu0 0.0
        %5307 = vmatprep.subr.mxu0 0.0
        %5308 = vmatpush2.msra.mxu0 0.0
        %5309 = vmatprep.subr.mxu0 0.0
        %5310 = vmatpush2.msra.mxu0 0.0
        %5311 = vmatprep.mubr.f32.mxu0 0.0
        %5312 = vmatmul.mubr.f32.gmra.mxu0 %v5245
        %v5313 = vpop.f32.mrf.mxu0
        %v5314 = vadd.f32 0.0, %v5313
        %v5315 = vpop.f32.mrf.mxu0
        %v5316 = vadd.f32 0.0, %v5315
        %5317 = vdwg.mxu0
        %5318 = vmatprep.subr.mxu0 0.0
        %5319 = vmatpush1.msra.mxu0 0.0
        %5320 = vmatprep.subr.mxu0 0.0
        %5321 = vmatpush1.msra.mxu0 0.0
        %5322 = vmatprep.subr.mxu0 0.0
        %5323 = vmatpush1.msra.mxu0 0.0
        %5324 = vmatprep.subr.mxu0 0.0
        %5325 = vmatpush1.msra.mxu0 0.0
        %5326 = vmatprep.subr.mxu0 0.0
        %5327 = vmatpush1.msra.mxu0 0.0
        %5328 = vmatprep.subr.mxu0 0.0
        %5329 = vmatpush1.msra.mxu0 0.0
        %5330 = vmatprep.subr.mxu0 0.0
        %5331 = vmatpush1.msra.mxu0 0.0
        %5332 = vmatprep.subr.mxu0 0.0
        %5333 = vmatpush1.msra.mxu0 0.0
        %5334 = vmatprep.subr.mxu0 0.0
        %5335 = vmatpush1.msra.mxu0 0.0
        %5336 = vmatprep.subr.mxu0 0.0
        %5337 = vmatpush1.msra.mxu0 0.0
        %5338 = vmatprep.subr.mxu0 0.0
        %5339 = vmatpush1.msra.mxu0 0.0
        %5340 = vmatprep.subr.mxu0 0.0
        %5341 = vmatpush1.msra.mxu0 0.0
        %5342 = vmatprep.subr.mxu0 0.0
        %5343 = vmatpush1.msra.mxu0 0.0
        %5344 = vmatprep.subr.mxu0 0.0
        %5345 = vmatpush1.msra.mxu0 0.0
        %5346 = vmatprep.subr.mxu0 0.0
        %5347 = vmatpush1.msra.mxu0 0.0
        %5348 = vmatprep.subr.mxu0 %v4945
        %5349 = vmatpush1.msra.mxu0 %v4943
        %5350 = vmatprep.subr.mxu0 0.0
        %5351 = vmatpush2.msra.mxu0 0.0
        %5352 = vmatprep.subr.mxu0 0.0
        %5353 = vmatpush2.msra.mxu0 0.0
        %5354 = vmatprep.subr.mxu0 0.0
        %5355 = vmatpush2.msra.mxu0 0.0
        %5356 = vmatprep.subr.mxu0 0.0
        %5357 = vmatpush2.msra.mxu0 0.0
        %5358 = vmatprep.subr.mxu0 0.0
        %5359 = vmatpush2.msra.mxu0 0.0
        %5360 = vmatprep.subr.mxu0 0.0
        %5361 = vmatpush2.msra.mxu0 0.0
        %5362 = vmatprep.subr.mxu0 0.0
        %5363 = vmatpush2.msra.mxu0 0.0
        %5364 = vmatprep.subr.mxu0 0.0
        %5365 = vmatpush2.msra.mxu0 0.0
        %5366 = vmatprep.subr.mxu0 0.0
        %5367 = vmatpush2.msra.mxu0 0.0
        %5368 = vmatprep.subr.mxu0 0.0
        %5369 = vmatpush2.msra.mxu0 0.0
        %5370 = vmatprep.subr.mxu0 0.0
        %5371 = vmatpush2.msra.mxu0 0.0
        %5372 = vmatprep.subr.mxu0 0.0
        %5373 = vmatpush2.msra.mxu0 0.0
        %5374 = vmatprep.subr.mxu0 0.0
        %5375 = vmatpush2.msra.mxu0 0.0
        %5376 = vmatprep.subr.mxu0 0.0
        %5377 = vmatpush2.msra.mxu0 0.0
        %5378 = vmatprep.subr.mxu0 0.0
        %5379 = vmatpush2.msra.mxu0 0.0
        %5380 = vmatprep.subr.mxu0 0.0
        %5381 = vmatpush2.msra.mxu0 0.0
        %5382 = vmatprep.mubr.f32.mxu0 0.0
        %5383 = vmatmul.mubr.f32.gmra.mxu0 %v5245
        %v5384 = vpop.f32.mrf.mxu0
        %v5385 = vadd.f32 0.0, %v5384
        %v5386 = vpop.f32.mrf.mxu0
        %5387 = vdwg.mxu0
        %v5388 = vadd.f32 %v4919, %v5314
        %v5389 = vadd.f32 %v4920, %v5316
        %v5390 = vadd.f32 %v4921, %v5385
        %s5391 = scalar_lea.vmem %s2, 88
        %v5392 = vld [vmem:[%s5391] sm:$0xff]
        %5393 = vrot.lane.b32.xlu0 %v223, 85
        %v5394 = vpop.permute.xlu0 %5393
        %5395 = vrot.lane.b32.xlu0 %v232, 85
        %v5396 = vpop.permute.xlu0 %5395
        %5397 = vrot.lane.b32.xlu0 %v224, 85
        %v5398 = vpop.permute.xlu0 %5397
        %5399 = vrot.lane.b32.xlu0 %v233, 85
        %v5400 = vpop.permute.xlu0 %5399
        %vm5401 = vcmask 695296
        %v5402 = vsel %vm5401, %v5394, %v5396
        %v5403 = vsel %vm5401, %v5396, %v5398
        %v5404 = vsel %vm5401, %v5398, %v5400
        %v5406 = vsel %vm246, %v5392, 0
        %v5408 = vsel %vm250, %v5402, 0
        %v5410 = vsel %vm250, %v5403, 0
        %v5412 = vsel %vm250, %v5404, 0
        %v5414 = vsel %vm250, %v5400, 0
        %5416 = vmatprep.subr.mxu0 0.0
        %5417 = vmatpush1.msra.mxu0 0.0
        %5418 = vmatprep.subr.mxu0 0.0
        %5419 = vmatpush1.msra.mxu0 0.0
        %5420 = vmatprep.subr.mxu0 0.0
        %5421 = vmatpush1.msra.mxu0 0.0
        %5422 = vmatprep.subr.mxu0 0.0
        %5423 = vmatpush1.msra.mxu0 0.0
        %5424 = vmatprep.subr.mxu0 0.0
        %5425 = vmatpush1.msra.mxu0 0.0
        %5426 = vmatprep.subr.mxu0 0.0
        %5427 = vmatpush1.msra.mxu0 0.0
        %5428 = vmatprep.subr.mxu0 0.0
        %5429 = vmatpush1.msra.mxu0 0.0
        %5430 = vmatprep.subr.mxu0 0.0
        %5431 = vmatpush1.msra.mxu0 0.0
        %5432 = vmatprep.subr.mxu0 0.0
        %5433 = vmatpush1.msra.mxu0 0.0
        %5434 = vmatprep.subr.mxu0 0.0
        %5435 = vmatpush1.msra.mxu0 0.0
        %5436 = vmatprep.subr.mxu0 0.0
        %5437 = vmatpush1.msra.mxu0 0.0
        %5438 = vmatprep.subr.mxu0 0.0
        %5439 = vmatpush1.msra.mxu0 0.0
        %5440 = vmatprep.subr.mxu0 0.0
        %5441 = vmatpush1.msra.mxu0 0.0
        %5442 = vmatprep.subr.mxu0 0.0
        %5443 = vmatpush1.msra.mxu0 0.0
        %5444 = vmatprep.subr.mxu0 0.0
        %5445 = vmatpush1.msra.mxu0 0.0
        %5446 = vmatprep.subr.mxu0 %v5410
        %5447 = vmatpush1.msra.mxu0 %v5408
        %5448 = vmatprep.subr.mxu0 0.0
        %5449 = vmatpush2.msra.mxu0 0.0
        %5450 = vmatprep.subr.mxu0 0.0
        %5451 = vmatpush2.msra.mxu0 0.0
        %5452 = vmatprep.subr.mxu0 0.0
        %5453 = vmatpush2.msra.mxu0 0.0
        %5454 = vmatprep.subr.mxu0 0.0
        %5455 = vmatpush2.msra.mxu0 0.0
        %5456 = vmatprep.subr.mxu0 0.0
        %5457 = vmatpush2.msra.mxu0 0.0
        %5458 = vmatprep.subr.mxu0 0.0
        %5459 = vmatpush2.msra.mxu0 0.0
        %5460 = vmatprep.subr.mxu0 0.0
        %5461 = vmatpush2.msra.mxu0 0.0
        %5462 = vmatprep.subr.mxu0 0.0
        %5463 = vmatpush2.msra.mxu0 0.0
        %5464 = vmatprep.subr.mxu0 0.0
        %5465 = vmatpush2.msra.mxu0 0.0
        %5466 = vmatprep.subr.mxu0 0.0
        %5467 = vmatpush2.msra.mxu0 0.0
        %5468 = vmatprep.subr.mxu0 0.0
        %5469 = vmatpush2.msra.mxu0 0.0
        %5470 = vmatprep.subr.mxu0 0.0
        %5471 = vmatpush2.msra.mxu0 0.0
        %5472 = vmatprep.subr.mxu0 0.0
        %5473 = vmatpush2.msra.mxu0 0.0
        %5474 = vmatprep.subr.mxu0 0.0
        %5475 = vmatpush2.msra.mxu0 0.0
        %5476 = vmatprep.subr.mxu0 0.0
        %5477 = vmatpush2.msra.mxu0 0.0
        %5478 = vmatprep.subr.mxu0 0.0
        %5479 = vmatpush2.msra.mxu0 0.0
        %5480 = vmatprep.mubr.f32.mxu0 0.0
        %5481 = vmatmul.mubr.f32.gmra.mxu0 %v5406
        %v5482 = vpop.f32.mrf.mxu0
        %v5483 = vadd.f32 0.0, %v5482
        %v5484 = vpop.f32.mrf.mxu0
        %v5485 = vadd.f32 0.0, %v5484
        %5486 = vdwg.mxu0
        %5487 = vmatprep.subr.mxu0 0.0
        %5488 = vmatpush1.msra.mxu0 0.0
        %5489 = vmatprep.subr.mxu0 0.0
        %5490 = vmatpush1.msra.mxu0 0.0
        %5491 = vmatprep.subr.mxu0 0.0
        %5492 = vmatpush1.msra.mxu0 0.0
        %5493 = vmatprep.subr.mxu0 0.0
        %5494 = vmatpush1.msra.mxu0 0.0
        %5495 = vmatprep.subr.mxu0 0.0
        %5496 = vmatpush1.msra.mxu0 0.0
        %5497 = vmatprep.subr.mxu0 0.0
        %5498 = vmatpush1.msra.mxu0 0.0
        %5499 = vmatprep.subr.mxu0 0.0
        %5500 = vmatpush1.msra.mxu0 0.0
        %5501 = vmatprep.subr.mxu0 0.0
        %5502 = vmatpush1.msra.mxu0 0.0
        %5503 = vmatprep.subr.mxu0 0.0
        %5504 = vmatpush1.msra.mxu0 0.0
        %5505 = vmatprep.subr.mxu0 0.0
        %5506 = vmatpush1.msra.mxu0 0.0
        %5507 = vmatprep.subr.mxu0 0.0
        %5508 = vmatpush1.msra.mxu0 0.0
        %5509 = vmatprep.subr.mxu0 0.0
        %5510 = vmatpush1.msra.mxu0 0.0
        %5511 = vmatprep.subr.mxu0 0.0
        %5512 = vmatpush1.msra.mxu0 0.0
        %5513 = vmatprep.subr.mxu0 0.0
        %5514 = vmatpush1.msra.mxu0 0.0
        %5515 = vmatprep.subr.mxu0 0.0
        %5516 = vmatpush1.msra.mxu0 0.0
        %5517 = vmatprep.subr.mxu0 %v5414
        %5518 = vmatpush1.msra.mxu0 %v5412
        %5519 = vmatprep.subr.mxu0 0.0
        %5520 = vmatpush2.msra.mxu0 0.0
        %5521 = vmatprep.subr.mxu0 0.0
        %5522 = vmatpush2.msra.mxu0 0.0
        %5523 = vmatprep.subr.mxu0 0.0
        %5524 = vmatpush2.msra.mxu0 0.0
        %5525 = vmatprep.subr.mxu0 0.0
        %5526 = vmatpush2.msra.mxu0 0.0
        %5527 = vmatprep.subr.mxu0 0.0
        %5528 = vmatpush2.msra.mxu0 0.0
        %5529 = vmatprep.subr.mxu0 0.0
        %5530 = vmatpush2.msra.mxu0 0.0
        %5531 = vmatprep.subr.mxu0 0.0
        %5532 = vmatpush2.msra.mxu0 0.0
        %5533 = vmatprep.subr.mxu0 0.0
        %5534 = vmatpush2.msra.mxu0 0.0
        %5535 = vmatprep.subr.mxu0 0.0
        %5536 = vmatpush2.msra.mxu0 0.0
        %5537 = vmatprep.subr.mxu0 0.0
        %5538 = vmatpush2.msra.mxu0 0.0
        %5539 = vmatprep.subr.mxu0 0.0
        %5540 = vmatpush2.msra.mxu0 0.0
        %5541 = vmatprep.subr.mxu0 0.0
        %5542 = vmatpush2.msra.mxu0 0.0
        %5543 = vmatprep.subr.mxu0 0.0
        %5544 = vmatpush2.msra.mxu0 0.0
        %5545 = vmatprep.subr.mxu0 0.0
        %5546 = vmatpush2.msra.mxu0 0.0
        %5547 = vmatprep.subr.mxu0 0.0
        %5548 = vmatpush2.msra.mxu0 0.0
        %5549 = vmatprep.subr.mxu0 0.0
        %5550 = vmatpush2.msra.mxu0 0.0
        %5551 = vmatprep.mubr.f32.mxu0 0.0
        %5552 = vmatmul.mubr.f32.gmra.mxu0 %v5406
        %v5553 = vpop.f32.mrf.mxu0
        %v5554 = vadd.f32 0.0, %v5553
        %v5555 = vpop.f32.mrf.mxu0
        %5556 = vdwg.mxu0
        %v5557 = vadd.f32 %v5239, %v5483
        %v5558 = vadd.f32 %v5240, %v5485
        %v5559 = vadd.f32 %v5241, %v5554
        %s5560 = scalar_lea.vmem %s3, 104
        %v5561 = vld [vmem:[%s5560] sm:$0xff]
        %v5563 = vsel %vm246, %v5561, 0
        %5565 = vmatprep.subr.mxu0 0.0
        %5566 = vmatpush1.msra.mxu0 0.0
        %5567 = vmatprep.subr.mxu0 0.0
        %5568 = vmatpush1.msra.mxu0 0.0
        %5569 = vmatprep.subr.mxu0 0.0
        %5570 = vmatpush1.msra.mxu0 0.0
        %5571 = vmatprep.subr.mxu0 0.0
        %5572 = vmatpush1.msra.mxu0 0.0
        %5573 = vmatprep.subr.mxu0 0.0
        %5574 = vmatpush1.msra.mxu0 0.0
        %5575 = vmatprep.subr.mxu0 0.0
        %5576 = vmatpush1.msra.mxu0 0.0
        %5577 = vmatprep.subr.mxu0 0.0
        %5578 = vmatpush1.msra.mxu0 0.0
        %5579 = vmatprep.subr.mxu0 0.0
        %5580 = vmatpush1.msra.mxu0 0.0
        %5581 = vmatprep.subr.mxu0 0.0
        %5582 = vmatpush1.msra.mxu0 0.0
        %5583 = vmatprep.subr.mxu0 0.0
        %5584 = vmatpush1.msra.mxu0 0.0
        %5585 = vmatprep.subr.mxu0 0.0
        %5586 = vmatpush1.msra.mxu0 0.0
        %5587 = vmatprep.subr.mxu0 0.0
        %5588 = vmatpush1.msra.mxu0 0.0
        %5589 = vmatprep.subr.mxu0 0.0
        %5590 = vmatpush1.msra.mxu0 0.0
        %5591 = vmatprep.subr.mxu0 0.0
        %5592 = vmatpush1.msra.mxu0 0.0
        %5593 = vmatprep.subr.mxu0 0.0
        %5594 = vmatpush1.msra.mxu0 0.0
        %5595 = vmatprep.subr.mxu0 %v5410
        %5596 = vmatpush1.msra.mxu0 %v5408
        %5597 = vmatprep.subr.mxu0 0.0
        %5598 = vmatpush2.msra.mxu0 0.0
        %5599 = vmatprep.subr.mxu0 0.0
        %5600 = vmatpush2.msra.mxu0 0.0
        %5601 = vmatprep.subr.mxu0 0.0
        %5602 = vmatpush2.msra.mxu0 0.0
        %5603 = vmatprep.subr.mxu0 0.0
        %5604 = vmatpush2.msra.mxu0 0.0
        %5605 = vmatprep.subr.mxu0 0.0
        %5606 = vmatpush2.msra.mxu0 0.0
        %5607 = vmatprep.subr.mxu0 0.0
        %5608 = vmatpush2.msra.mxu0 0.0
        %5609 = vmatprep.subr.mxu0 0.0
        %5610 = vmatpush2.msra.mxu0 0.0
        %5611 = vmatprep.subr.mxu0 0.0
        %5612 = vmatpush2.msra.mxu0 0.0
        %5613 = vmatprep.subr.mxu0 0.0
        %5614 = vmatpush2.msra.mxu0 0.0
        %5615 = vmatprep.subr.mxu0 0.0
        %5616 = vmatpush2.msra.mxu0 0.0
        %5617 = vmatprep.subr.mxu0 0.0
        %5618 = vmatpush2.msra.mxu0 0.0
        %5619 = vmatprep.subr.mxu0 0.0
        %5620 = vmatpush2.msra.mxu0 0.0
        %5621 = vmatprep.subr.mxu0 0.0
        %5622 = vmatpush2.msra.mxu0 0.0
        %5623 = vmatprep.subr.mxu0 0.0
        %5624 = vmatpush2.msra.mxu0 0.0
        %5625 = vmatprep.subr.mxu0 0.0
        %5626 = vmatpush2.msra.mxu0 0.0
        %5627 = vmatprep.subr.mxu0 0.0
        %5628 = vmatpush2.msra.mxu0 0.0
        %5629 = vmatprep.mubr.f32.mxu0 0.0
        %5630 = vmatmul.mubr.f32.gmra.mxu0 %v5563
        %v5631 = vpop.f32.mrf.mxu0
        %v5632 = vadd.f32 0.0, %v5631
        %v5633 = vpop.f32.mrf.mxu0
        %v5634 = vadd.f32 0.0, %v5633
        %5635 = vdwg.mxu0
        %5636 = vmatprep.subr.mxu0 0.0
        %5637 = vmatpush1.msra.mxu0 0.0
        %5638 = vmatprep.subr.mxu0 0.0
        %5639 = vmatpush1.msra.mxu0 0.0
        %5640 = vmatprep.subr.mxu0 0.0
        %5641 = vmatpush1.msra.mxu0 0.0
        %5642 = vmatprep.subr.mxu0 0.0
        %5643 = vmatpush1.msra.mxu0 0.0
        %5644 = vmatprep.subr.mxu0 0.0
        %5645 = vmatpush1.msra.mxu0 0.0
        %5646 = vmatprep.subr.mxu0 0.0
        %5647 = vmatpush1.msra.mxu0 0.0
        %5648 = vmatprep.subr.mxu0 0.0
        %5649 = vmatpush1.msra.mxu0 0.0
        %5650 = vmatprep.subr.mxu0 0.0
        %5651 = vmatpush1.msra.mxu0 0.0
        %5652 = vmatprep.subr.mxu0 0.0
        %5653 = vmatpush1.msra.mxu0 0.0
        %5654 = vmatprep.subr.mxu0 0.0
        %5655 = vmatpush1.msra.mxu0 0.0
        %5656 = vmatprep.subr.mxu0 0.0
        %5657 = vmatpush1.msra.mxu0 0.0
        %5658 = vmatprep.subr.mxu0 0.0
        %5659 = vmatpush1.msra.mxu0 0.0
        %5660 = vmatprep.subr.mxu0 0.0
        %5661 = vmatpush1.msra.mxu0 0.0
        %5662 = vmatprep.subr.mxu0 0.0
        %5663 = vmatpush1.msra.mxu0 0.0
        %5664 = vmatprep.subr.mxu0 0.0
        %5665 = vmatpush1.msra.mxu0 0.0
        %5666 = vmatprep.subr.mxu0 %v5414
        %5667 = vmatpush1.msra.mxu0 %v5412
        %5668 = vmatprep.subr.mxu0 0.0
        %5669 = vmatpush2.msra.mxu0 0.0
        %5670 = vmatprep.subr.mxu0 0.0
        %5671 = vmatpush2.msra.mxu0 0.0
        %5672 = vmatprep.subr.mxu0 0.0
        %5673 = vmatpush2.msra.mxu0 0.0
        %5674 = vmatprep.subr.mxu0 0.0
        %5675 = vmatpush2.msra.mxu0 0.0
        %5676 = vmatprep.subr.mxu0 0.0
        %5677 = vmatpush2.msra.mxu0 0.0
        %5678 = vmatprep.subr.mxu0 0.0
        %5679 = vmatpush2.msra.mxu0 0.0
        %5680 = vmatprep.subr.mxu0 0.0
        %5681 = vmatpush2.msra.mxu0 0.0
        %5682 = vmatprep.subr.mxu0 0.0
        %5683 = vmatpush2.msra.mxu0 0.0
        %5684 = vmatprep.subr.mxu0 0.0
        %5685 = vmatpush2.msra.mxu0 0.0
        %5686 = vmatprep.subr.mxu0 0.0
        %5687 = vmatpush2.msra.mxu0 0.0
        %5688 = vmatprep.subr.mxu0 0.0
        %5689 = vmatpush2.msra.mxu0 0.0
        %5690 = vmatprep.subr.mxu0 0.0
        %5691 = vmatpush2.msra.mxu0 0.0
        %5692 = vmatprep.subr.mxu0 0.0
        %5693 = vmatpush2.msra.mxu0 0.0
        %5694 = vmatprep.subr.mxu0 0.0
        %5695 = vmatpush2.msra.mxu0 0.0
        %5696 = vmatprep.subr.mxu0 0.0
        %5697 = vmatpush2.msra.mxu0 0.0
        %5698 = vmatprep.subr.mxu0 0.0
        %5699 = vmatpush2.msra.mxu0 0.0
        %5700 = vmatprep.mubr.f32.mxu0 0.0
        %5701 = vmatmul.mubr.f32.gmra.mxu0 %v5563
        %v5702 = vpop.f32.mrf.mxu0
        %v5703 = vadd.f32 0.0, %v5702
        %v5704 = vpop.f32.mrf.mxu0
        %5705 = vdwg.mxu0
        %v5706 = vadd.f32 %v5388, %v5632
        %v5707 = vadd.f32 %v5389, %v5634
        %v5708 = vadd.f32 %v5390, %v5703
        %s5709 = scalar_lea.vmem %s3, 112
        %v5710 = vld [vmem:[%s5709] sm:$0xff]
        %5711 = vrot.lane.b32.xlu0 %v223, 84
        %v5712 = vpop.permute.xlu0 %5711
        %5713 = vrot.lane.b32.xlu0 %v232, 84
        %v5714 = vpop.permute.xlu0 %5713
        %5715 = vrot.lane.b32.xlu0 %v224, 84
        %v5716 = vpop.permute.xlu0 %5715
        %5717 = vrot.lane.b32.xlu0 %v233, 84
        %v5718 = vpop.permute.xlu0 %5717
        %vm5719 = vcmask 687104
        %v5720 = vsel %vm5719, %v5712, %v5714
        %v5721 = vsel %vm5719, %v5714, %v5716
        %v5722 = vsel %vm5719, %v5716, %v5718
        %v5724 = vsel %vm246, %v5710, 0
        %v5726 = vsel %vm250, %v5720, 0
        %v5728 = vsel %vm250, %v5721, 0
        %v5730 = vsel %vm250, %v5722, 0
        %v5732 = vsel %vm250, %v5718, 0
        %5734 = vmatprep.subr.mxu0 0.0
        %5735 = vmatpush1.msra.mxu0 0.0
        %5736 = vmatprep.subr.mxu0 0.0
        %5737 = vmatpush1.msra.mxu0 0.0
        %5738 = vmatprep.subr.mxu0 0.0
        %5739 = vmatpush1.msra.mxu0 0.0
        %5740 = vmatprep.subr.mxu0 0.0
        %5741 = vmatpush1.msra.mxu0 0.0
        %5742 = vmatprep.subr.mxu0 0.0
        %5743 = vmatpush1.msra.mxu0 0.0
        %5744 = vmatprep.subr.mxu0 0.0
        %5745 = vmatpush1.msra.mxu0 0.0
        %5746 = vmatprep.subr.mxu0 0.0
        %5747 = vmatpush1.msra.mxu0 0.0
        %5748 = vmatprep.subr.mxu0 0.0
        %5749 = vmatpush1.msra.mxu0 0.0
        %5750 = vmatprep.subr.mxu0 0.0
        %5751 = vmatpush1.msra.mxu0 0.0
        %5752 = vmatprep.subr.mxu0 0.0
        %5753 = vmatpush1.msra.mxu0 0.0
        %5754 = vmatprep.subr.mxu0 0.0
        %5755 = vmatpush1.msra.mxu0 0.0
        %5756 = vmatprep.subr.mxu0 0.0
        %5757 = vmatpush1.msra.mxu0 0.0
        %5758 = vmatprep.subr.mxu0 0.0
        %5759 = vmatpush1.msra.mxu0 0.0
        %5760 = vmatprep.subr.mxu0 0.0
        %5761 = vmatpush1.msra.mxu0 0.0
        %5762 = vmatprep.subr.mxu0 0.0
        %5763 = vmatpush1.msra.mxu0 0.0
        %5764 = vmatprep.subr.mxu0 %v5728
        %5765 = vmatpush1.msra.mxu0 %v5726
        %5766 = vmatprep.subr.mxu0 0.0
        %5767 = vmatpush2.msra.mxu0 0.0
        %5768 = vmatprep.subr.mxu0 0.0
        %5769 = vmatpush2.msra.mxu0 0.0
        %5770 = vmatprep.subr.mxu0 0.0
        %5771 = vmatpush2.msra.mxu0 0.0
        %5772 = vmatprep.subr.mxu0 0.0
        %5773 = vmatpush2.msra.mxu0 0.0
        %5774 = vmatprep.subr.mxu0 0.0
        %5775 = vmatpush2.msra.mxu0 0.0
        %5776 = vmatprep.subr.mxu0 0.0
        %5777 = vmatpush2.msra.mxu0 0.0
        %5778 = vmatprep.subr.mxu0 0.0
        %5779 = vmatpush2.msra.mxu0 0.0
        %5780 = vmatprep.subr.mxu0 0.0
        %5781 = vmatpush2.msra.mxu0 0.0
        %5782 = vmatprep.subr.mxu0 0.0
        %5783 = vmatpush2.msra.mxu0 0.0
        %5784 = vmatprep.subr.mxu0 0.0
        %5785 = vmatpush2.msra.mxu0 0.0
        %5786 = vmatprep.subr.mxu0 0.0
        %5787 = vmatpush2.msra.mxu0 0.0
        %5788 = vmatprep.subr.mxu0 0.0
        %5789 = vmatpush2.msra.mxu0 0.0
        %5790 = vmatprep.subr.mxu0 0.0
        %5791 = vmatpush2.msra.mxu0 0.0
        %5792 = vmatprep.subr.mxu0 0.0
        %5793 = vmatpush2.msra.mxu0 0.0
        %5794 = vmatprep.subr.mxu0 0.0
        %5795 = vmatpush2.msra.mxu0 0.0
        %5796 = vmatprep.subr.mxu0 0.0
        %5797 = vmatpush2.msra.mxu0 0.0
        %5798 = vmatprep.mubr.f32.mxu0 0.0
        %5799 = vmatmul.mubr.f32.gmra.mxu0 %v5724
        %v5800 = vpop.f32.mrf.mxu0
        %v5801 = vadd.f32 0.0, %v5800
        %v5802 = vpop.f32.mrf.mxu0
        %v5803 = vadd.f32 0.0, %v5802
        %5804 = vdwg.mxu0
        %5805 = vmatprep.subr.mxu0 0.0
        %5806 = vmatpush1.msra.mxu0 0.0
        %5807 = vmatprep.subr.mxu0 0.0
        %5808 = vmatpush1.msra.mxu0 0.0
        %5809 = vmatprep.subr.mxu0 0.0
        %5810 = vmatpush1.msra.mxu0 0.0
        %5811 = vmatprep.subr.mxu0 0.0
        %5812 = vmatpush1.msra.mxu0 0.0
        %5813 = vmatprep.subr.mxu0 0.0
        %5814 = vmatpush1.msra.mxu0 0.0
        %5815 = vmatprep.subr.mxu0 0.0
        %5816 = vmatpush1.msra.mxu0 0.0
        %5817 = vmatprep.subr.mxu0 0.0
        %5818 = vmatpush1.msra.mxu0 0.0
        %5819 = vmatprep.subr.mxu0 0.0
        %5820 = vmatpush1.msra.mxu0 0.0
        %5821 = vmatprep.subr.mxu0 0.0
        %5822 = vmatpush1.msra.mxu0 0.0
        %5823 = vmatprep.subr.mxu0 0.0
        %5824 = vmatpush1.msra.mxu0 0.0
        %5825 = vmatprep.subr.mxu0 0.0
        %5826 = vmatpush1.msra.mxu0 0.0
        %5827 = vmatprep.subr.mxu0 0.0
        %5828 = vmatpush1.msra.mxu0 0.0
        %5829 = vmatprep.subr.mxu0 0.0
        %5830 = vmatpush1.msra.mxu0 0.0
        %5831 = vmatprep.subr.mxu0 0.0
        %5832 = vmatpush1.msra.mxu0 0.0
        %5833 = vmatprep.subr.mxu0 0.0
        %5834 = vmatpush1.msra.mxu0 0.0
        %5835 = vmatprep.subr.mxu0 %v5732
        %5836 = vmatpush1.msra.mxu0 %v5730
        %5837 = vmatprep.subr.mxu0 0.0
        %5838 = vmatpush2.msra.mxu0 0.0
        %5839 = vmatprep.subr.mxu0 0.0
        %5840 = vmatpush2.msra.mxu0 0.0
        %5841 = vmatprep.subr.mxu0 0.0
        %5842 = vmatpush2.msra.mxu0 0.0
        %5843 = vmatprep.subr.mxu0 0.0
        %5844 = vmatpush2.msra.mxu0 0.0
        %5845 = vmatprep.subr.mxu0 0.0
        %5846 = vmatpush2.msra.mxu0 0.0
        %5847 = vmatprep.subr.mxu0 0.0
        %5848 = vmatpush2.msra.mxu0 0.0
        %5849 = vmatprep.subr.mxu0 0.0
        %5850 = vmatpush2.msra.mxu0 0.0
        %5851 = vmatprep.subr.mxu0 0.0
        %5852 = vmatpush2.msra.mxu0 0.0
        %5853 = vmatprep.subr.mxu0 0.0
        %5854 = vmatpush2.msra.mxu0 0.0
        %5855 = vmatprep.subr.mxu0 0.0
        %5856 = vmatpush2.msra.mxu0 0.0
        %5857 = vmatprep.subr.mxu0 0.0
        %5858 = vmatpush2.msra.mxu0 0.0
        %5859 = vmatprep.subr.mxu0 0.0
        %5860 = vmatpush2.msra.mxu0 0.0
        %5861 = vmatprep.subr.mxu0 0.0
        %5862 = vmatpush2.msra.mxu0 0.0
        %5863 = vmatprep.subr.mxu0 0.0
        %5864 = vmatpush2.msra.mxu0 0.0
        %5865 = vmatprep.subr.mxu0 0.0
        %5866 = vmatpush2.msra.mxu0 0.0
        %5867 = vmatprep.subr.mxu0 0.0
        %5868 = vmatpush2.msra.mxu0 0.0
        %5869 = vmatprep.mubr.f32.mxu0 0.0
        %5870 = vmatmul.mubr.f32.gmra.mxu0 %v5724
        %v5871 = vpop.f32.mrf.mxu0
        %v5872 = vadd.f32 0.0, %v5871
        %v5873 = vpop.f32.mrf.mxu0
        %5874 = vdwg.mxu0
        %v5875 = vadd.f32 %v5706, %v5801
        %v5876 = vadd.f32 %v5707, %v5803
        %v5877 = vadd.f32 %v5708, %v5872
        %s5878 = scalar_lea.vmem %s2, 96
        %v5879 = vld [vmem:[%s5878] sm:$0xff]
        %5880 = vrot.lane.b32.xlu0 %v223, 68
        %v5881 = vpop.permute.xlu0 %5880
        %5882 = vrot.lane.b32.xlu0 %v232, 68
        %v5883 = vpop.permute.xlu0 %5882
        %5884 = vrot.lane.b32.xlu0 %v224, 68
        %v5885 = vpop.permute.xlu0 %5884
        %5886 = vrot.lane.b32.xlu0 %v233, 68
        %v5887 = vpop.permute.xlu0 %5886
        %vm5888 = vcmask 556032
        %v5889 = vsel %vm5888, %v5881, %v5883
        %v5890 = vsel %vm5888, %v5883, %v5885
        %v5891 = vsel %vm5888, %v5885, %v5887
        %v5893 = vsel %vm246, %v5879, 0
        %v5895 = vsel %vm250, %v5889, 0
        %v5897 = vsel %vm250, %v5890, 0
        %v5899 = vsel %vm250, %v5891, 0
        %v5901 = vsel %vm250, %v5887, 0
        %5903 = vmatprep.subr.mxu0 0.0
        %5904 = vmatpush1.msra.mxu0 0.0
        %5905 = vmatprep.subr.mxu0 0.0
        %5906 = vmatpush1.msra.mxu0 0.0
        %5907 = vmatprep.subr.mxu0 0.0
        %5908 = vmatpush1.msra.mxu0 0.0
        %5909 = vmatprep.subr.mxu0 0.0
        %5910 = vmatpush1.msra.mxu0 0.0
        %5911 = vmatprep.subr.mxu0 0.0
        %5912 = vmatpush1.msra.mxu0 0.0
        %5913 = vmatprep.subr.mxu0 0.0
        %5914 = vmatpush1.msra.mxu0 0.0
        %5915 = vmatprep.subr.mxu0 0.0
        %5916 = vmatpush1.msra.mxu0 0.0
        %5917 = vmatprep.subr.mxu0 0.0
        %5918 = vmatpush1.msra.mxu0 0.0
        %5919 = vmatprep.subr.mxu0 0.0
        %5920 = vmatpush1.msra.mxu0 0.0
        %5921 = vmatprep.subr.mxu0 0.0
        %5922 = vmatpush1.msra.mxu0 0.0
        %5923 = vmatprep.subr.mxu0 0.0
        %5924 = vmatpush1.msra.mxu0 0.0
        %5925 = vmatprep.subr.mxu0 0.0
        %5926 = vmatpush1.msra.mxu0 0.0
        %5927 = vmatprep.subr.mxu0 0.0
        %5928 = vmatpush1.msra.mxu0 0.0
        %5929 = vmatprep.subr.mxu0 0.0
        %5930 = vmatpush1.msra.mxu0 0.0
        %5931 = vmatprep.subr.mxu0 0.0
        %5932 = vmatpush1.msra.mxu0 0.0
        %5933 = vmatprep.subr.mxu0 %v5897
        %5934 = vmatpush1.msra.mxu0 %v5895
        %5935 = vmatprep.subr.mxu0 0.0
        %5936 = vmatpush2.msra.mxu0 0.0
        %5937 = vmatprep.subr.mxu0 0.0
        %5938 = vmatpush2.msra.mxu0 0.0
        %5939 = vmatprep.subr.mxu0 0.0
        %5940 = vmatpush2.msra.mxu0 0.0
        %5941 = vmatprep.subr.mxu0 0.0
        %5942 = vmatpush2.msra.mxu0 0.0
        %5943 = vmatprep.subr.mxu0 0.0
        %5944 = vmatpush2.msra.mxu0 0.0
        %5945 = vmatprep.subr.mxu0 0.0
        %5946 = vmatpush2.msra.mxu0 0.0
        %5947 = vmatprep.subr.mxu0 0.0
        %5948 = vmatpush2.msra.mxu0 0.0
        %5949 = vmatprep.subr.mxu0 0.0
        %5950 = vmatpush2.msra.mxu0 0.0
        %5951 = vmatprep.subr.mxu0 0.0
        %5952 = vmatpush2.msra.mxu0 0.0
        %5953 = vmatprep.subr.mxu0 0.0
        %5954 = vmatpush2.msra.mxu0 0.0
        %5955 = vmatprep.subr.mxu0 0.0
        %5956 = vmatpush2.msra.mxu0 0.0
        %5957 = vmatprep.subr.mxu0 0.0
        %5958 = vmatpush2.msra.mxu0 0.0
        %5959 = vmatprep.subr.mxu0 0.0
        %5960 = vmatpush2.msra.mxu0 0.0
        %5961 = vmatprep.subr.mxu0 0.0
        %5962 = vmatpush2.msra.mxu0 0.0
        %5963 = vmatprep.subr.mxu0 0.0
        %5964 = vmatpush2.msra.mxu0 0.0
        %5965 = vmatprep.subr.mxu0 0.0
        %5966 = vmatpush2.msra.mxu0 0.0
        %5967 = vmatprep.mubr.f32.mxu0 0.0
        %5968 = vmatmul.mubr.f32.gmra.mxu0 %v5893
        %v5969 = vpop.f32.mrf.mxu0
        %v5970 = vadd.f32 0.0, %v5969
        %v5971 = vpop.f32.mrf.mxu0
        %v5972 = vadd.f32 0.0, %v5971
        %5973 = vdwg.mxu0
        %5974 = vmatprep.subr.mxu0 0.0
        %5975 = vmatpush1.msra.mxu0 0.0
        %5976 = vmatprep.subr.mxu0 0.0
        %5977 = vmatpush1.msra.mxu0 0.0
        %5978 = vmatprep.subr.mxu0 0.0
        %5979 = vmatpush1.msra.mxu0 0.0
        %5980 = vmatprep.subr.mxu0 0.0
        %5981 = vmatpush1.msra.mxu0 0.0
        %5982 = vmatprep.subr.mxu0 0.0
        %5983 = vmatpush1.msra.mxu0 0.0
        %5984 = vmatprep.subr.mxu0 0.0
        %5985 = vmatpush1.msra.mxu0 0.0
        %5986 = vmatprep.subr.mxu0 0.0
        %5987 = vmatpush1.msra.mxu0 0.0
        %5988 = vmatprep.subr.mxu0 0.0
        %5989 = vmatpush1.msra.mxu0 0.0
        %5990 = vmatprep.subr.mxu0 0.0
        %5991 = vmatpush1.msra.mxu0 0.0
        %5992 = vmatprep.subr.mxu0 0.0
        %5993 = vmatpush1.msra.mxu0 0.0
        %5994 = vmatprep.subr.mxu0 0.0
        %5995 = vmatpush1.msra.mxu0 0.0
        %5996 = vmatprep.subr.mxu0 0.0
        %5997 = vmatpush1.msra.mxu0 0.0
        %5998 = vmatprep.subr.mxu0 0.0
        %5999 = vmatpush1.msra.mxu0 0.0
        %6000 = vmatprep.subr.mxu0 0.0
        %6001 = vmatpush1.msra.mxu0 0.0
        %6002 = vmatprep.subr.mxu0 0.0
        %6003 = vmatpush1.msra.mxu0 0.0
        %6004 = vmatprep.subr.mxu0 %v5901
        %6005 = vmatpush1.msra.mxu0 %v5899
        %6006 = vmatprep.subr.mxu0 0.0
        %6007 = vmatpush2.msra.mxu0 0.0
        %6008 = vmatprep.subr.mxu0 0.0
        %6009 = vmatpush2.msra.mxu0 0.0
        %6010 = vmatprep.subr.mxu0 0.0
        %6011 = vmatpush2.msra.mxu0 0.0
        %6012 = vmatprep.subr.mxu0 0.0
        %6013 = vmatpush2.msra.mxu0 0.0
        %6014 = vmatprep.subr.mxu0 0.0
        %6015 = vmatpush2.msra.mxu0 0.0
        %6016 = vmatprep.subr.mxu0 0.0
        %6017 = vmatpush2.msra.mxu0 0.0
        %6018 = vmatprep.subr.mxu0 0.0
        %6019 = vmatpush2.msra.mxu0 0.0
        %6020 = vmatprep.subr.mxu0 0.0
        %6021 = vmatpush2.msra.mxu0 0.0
        %6022 = vmatprep.subr.mxu0 0.0
        %6023 = vmatpush2.msra.mxu0 0.0
        %6024 = vmatprep.subr.mxu0 0.0
        %6025 = vmatpush2.msra.mxu0 0.0
        %6026 = vmatprep.subr.mxu0 0.0
        %6027 = vmatpush2.msra.mxu0 0.0
        %6028 = vmatprep.subr.mxu0 0.0
        %6029 = vmatpush2.msra.mxu0 0.0
        %6030 = vmatprep.subr.mxu0 0.0
        %6031 = vmatpush2.msra.mxu0 0.0
        %6032 = vmatprep.subr.mxu0 0.0
        %6033 = vmatpush2.msra.mxu0 0.0
        %6034 = vmatprep.subr.mxu0 0.0
        %6035 = vmatpush2.msra.mxu0 0.0
        %6036 = vmatprep.subr.mxu0 0.0
        %6037 = vmatpush2.msra.mxu0 0.0
        %6038 = vmatprep.mubr.f32.mxu0 0.0
        %6039 = vmatmul.mubr.f32.gmra.mxu0 %v5893
        %v6040 = vpop.f32.mrf.mxu0
        %v6041 = vadd.f32 0.0, %v6040
        %v6042 = vpop.f32.mrf.mxu0
        %6043 = vdwg.mxu0
        %v6044 = vadd.f32 %v5557, %v5970
        %v6045 = vadd.f32 %v5558, %v5972
        %v6046 = vadd.f32 %v5559, %v6041
        %s6047 = scalar_lea.vmem %s3, 120
        %v6048 = vld [vmem:[%s6047] sm:$0xff]
        %v6050 = vsel %vm246, %v6048, 0
        %6052 = vmatprep.subr.mxu0 0.0
        %6053 = vmatpush1.msra.mxu0 0.0
        %6054 = vmatprep.subr.mxu0 0.0
        %6055 = vmatpush1.msra.mxu0 0.0
        %6056 = vmatprep.subr.mxu0 0.0
        %6057 = vmatpush1.msra.mxu0 0.0
        %6058 = vmatprep.subr.mxu0 0.0
        %6059 = vmatpush1.msra.mxu0 0.0
        %6060 = vmatprep.subr.mxu0 0.0
        %6061 = vmatpush1.msra.mxu0 0.0
        %6062 = vmatprep.subr.mxu0 0.0
        %6063 = vmatpush1.msra.mxu0 0.0
        %6064 = vmatprep.subr.mxu0 0.0
        %6065 = vmatpush1.msra.mxu0 0.0
        %6066 = vmatprep.subr.mxu0 0.0
        %6067 = vmatpush1.msra.mxu0 0.0
        %6068 = vmatprep.subr.mxu0 0.0
        %6069 = vmatpush1.msra.mxu0 0.0
        %6070 = vmatprep.subr.mxu0 0.0
        %6071 = vmatpush1.msra.mxu0 0.0
        %6072 = vmatprep.subr.mxu0 0.0
        %6073 = vmatpush1.msra.mxu0 0.0
        %6074 = vmatprep.subr.mxu0 0.0
        %6075 = vmatpush1.msra.mxu0 0.0
        %6076 = vmatprep.subr.mxu0 0.0
        %6077 = vmatpush1.msra.mxu0 0.0
        %6078 = vmatprep.subr.mxu0 0.0
        %6079 = vmatpush1.msra.mxu0 0.0
        %6080 = vmatprep.subr.mxu0 0.0
        %6081 = vmatpush1.msra.mxu0 0.0
        %6082 = vmatprep.subr.mxu0 %v5897
        %6083 = vmatpush1.msra.mxu0 %v5895
        %6084 = vmatprep.subr.mxu0 0.0
        %6085 = vmatpush2.msra.mxu0 0.0
        %6086 = vmatprep.subr.mxu0 0.0
        %6087 = vmatpush2.msra.mxu0 0.0
        %6088 = vmatprep.subr.mxu0 0.0
        %6089 = vmatpush2.msra.mxu0 0.0
        %6090 = vmatprep.subr.mxu0 0.0
        %6091 = vmatpush2.msra.mxu0 0.0
        %6092 = vmatprep.subr.mxu0 0.0
        %6093 = vmatpush2.msra.mxu0 0.0
        %6094 = vmatprep.subr.mxu0 0.0
        %6095 = vmatpush2.msra.mxu0 0.0
        %6096 = vmatprep.subr.mxu0 0.0
        %6097 = vmatpush2.msra.mxu0 0.0
        %6098 = vmatprep.subr.mxu0 0.0
        %6099 = vmatpush2.msra.mxu0 0.0
        %6100 = vmatprep.subr.mxu0 0.0
        %6101 = vmatpush2.msra.mxu0 0.0
        %6102 = vmatprep.subr.mxu0 0.0
        %6103 = vmatpush2.msra.mxu0 0.0
        %6104 = vmatprep.subr.mxu0 0.0
        %6105 = vmatpush2.msra.mxu0 0.0
        %6106 = vmatprep.subr.mxu0 0.0
        %6107 = vmatpush2.msra.mxu0 0.0
        %6108 = vmatprep.subr.mxu0 0.0
        %6109 = vmatpush2.msra.mxu0 0.0
        %6110 = vmatprep.subr.mxu0 0.0
        %6111 = vmatpush2.msra.mxu0 0.0
        %6112 = vmatprep.subr.mxu0 0.0
        %6113 = vmatpush2.msra.mxu0 0.0
        %6114 = vmatprep.subr.mxu0 0.0
        %6115 = vmatpush2.msra.mxu0 0.0
        %6116 = vmatprep.mubr.f32.mxu0 0.0
        %6117 = vmatmul.mubr.f32.gmra.mxu0 %v6050
        %v6118 = vpop.f32.mrf.mxu0
        %v6119 = vadd.f32 0.0, %v6118
        %v6120 = vpop.f32.mrf.mxu0
        %v6121 = vadd.f32 0.0, %v6120
        %6122 = vdwg.mxu0
        %6123 = vmatprep.subr.mxu0 0.0
        %6124 = vmatpush1.msra.mxu0 0.0
        %6125 = vmatprep.subr.mxu0 0.0
        %6126 = vmatpush1.msra.mxu0 0.0
        %6127 = vmatprep.subr.mxu0 0.0
        %6128 = vmatpush1.msra.mxu0 0.0
        %6129 = vmatprep.subr.mxu0 0.0
        %6130 = vmatpush1.msra.mxu0 0.0
        %6131 = vmatprep.subr.mxu0 0.0
        %6132 = vmatpush1.msra.mxu0 0.0
        %6133 = vmatprep.subr.mxu0 0.0
        %6134 = vmatpush1.msra.mxu0 0.0
        %6135 = vmatprep.subr.mxu0 0.0
        %6136 = vmatpush1.msra.mxu0 0.0
        %6137 = vmatprep.subr.mxu0 0.0
        %6138 = vmatpush1.msra.mxu0 0.0
        %6139 = vmatprep.subr.mxu0 0.0
        %6140 = vmatpush1.msra.mxu0 0.0
        %6141 = vmatprep.subr.mxu0 0.0
        %6142 = vmatpush1.msra.mxu0 0.0
        %6143 = vmatprep.subr.mxu0 0.0
        %6144 = vmatpush1.msra.mxu0 0.0
        %6145 = vmatprep.subr.mxu0 0.0
        %6146 = vmatpush1.msra.mxu0 0.0
        %6147 = vmatprep.subr.mxu0 0.0
        %6148 = vmatpush1.msra.mxu0 0.0
        %6149 = vmatprep.subr.mxu0 0.0
        %6150 = vmatpush1.msra.mxu0 0.0
        %6151 = vmatprep.subr.mxu0 0.0
        %6152 = vmatpush1.msra.mxu0 0.0
        %6153 = vmatprep.subr.mxu0 %v5901
        %6154 = vmatpush1.msra.mxu0 %v5899
        %6155 = vmatprep.subr.mxu0 0.0
        %6156 = vmatpush2.msra.mxu0 0.0
        %6157 = vmatprep.subr.mxu0 0.0
        %6158 = vmatpush2.msra.mxu0 0.0
        %6159 = vmatprep.subr.mxu0 0.0
        %6160 = vmatpush2.msra.mxu0 0.0
        %6161 = vmatprep.subr.mxu0 0.0
        %6162 = vmatpush2.msra.mxu0 0.0
        %6163 = vmatprep.subr.mxu0 0.0
        %6164 = vmatpush2.msra.mxu0 0.0
        %6165 = vmatprep.subr.mxu0 0.0
        %6166 = vmatpush2.msra.mxu0 0.0
        %6167 = vmatprep.subr.mxu0 0.0
        %6168 = vmatpush2.msra.mxu0 0.0
        %6169 = vmatprep.subr.mxu0 0.0
        %6170 = vmatpush2.msra.mxu0 0.0
        %6171 = vmatprep.subr.mxu0 0.0
        %6172 = vmatpush2.msra.mxu0 0.0
        %6173 = vmatprep.subr.mxu0 0.0
        %6174 = vmatpush2.msra.mxu0 0.0
        %6175 = vmatprep.subr.mxu0 0.0
        %6176 = vmatpush2.msra.mxu0 0.0
        %6177 = vmatprep.subr.mxu0 0.0
        %6178 = vmatpush2.msra.mxu0 0.0
        %6179 = vmatprep.subr.mxu0 0.0
        %6180 = vmatpush2.msra.mxu0 0.0
        %6181 = vmatprep.subr.mxu0 0.0
        %6182 = vmatpush2.msra.mxu0 0.0
        %6183 = vmatprep.subr.mxu0 0.0
        %6184 = vmatpush2.msra.mxu0 0.0
        %6185 = vmatprep.subr.mxu0 0.0
        %6186 = vmatpush2.msra.mxu0 0.0
        %6187 = vmatprep.mubr.f32.mxu0 0.0
        %6188 = vmatmul.mubr.f32.gmra.mxu0 %v6050
        %v6189 = vpop.f32.mrf.mxu0
        %v6190 = vadd.f32 0.0, %v6189
        %v6191 = vpop.f32.mrf.mxu0
        %6192 = vdwg.mxu0
        %v6193 = vadd.f32 %v5875, %v6119
        %v6194 = vadd.f32 %v5876, %v6121
        %v6195 = vadd.f32 %v5877, %v6190
        %s6196 = scalar_lea.vmem %s2, 104
        %v6197 = vld [vmem:[%s6196] sm:$0xff]
        %6198 = vrot.lane.b32.xlu0 %v223, 67
        %v6199 = vpop.permute.xlu0 %6198
        %6200 = vrot.lane.b32.xlu0 %v232, 67
        %v6201 = vpop.permute.xlu0 %6200
        %6202 = vrot.lane.b32.xlu0 %v224, 67
        %v6203 = vpop.permute.xlu0 %6202
        %6204 = vrot.lane.b32.xlu0 %v233, 67
        %v6205 = vpop.permute.xlu0 %6204
        %vm6206 = vcmask 547840
        %v6207 = vsel %vm6206, %v6199, %v6201
        %v6208 = vsel %vm6206, %v6201, %v6203
        %v6209 = vsel %vm6206, %v6203, %v6205
        %v6211 = vsel %vm246, %v6197, 0
        %v6213 = vsel %vm250, %v6207, 0
        %v6215 = vsel %vm250, %v6208, 0
        %v6217 = vsel %vm250, %v6209, 0
        %v6219 = vsel %vm250, %v6205, 0
        %6221 = vmatprep.subr.mxu0 0.0
        %6222 = vmatpush1.msra.mxu0 0.0
        %6223 = vmatprep.subr.mxu0 0.0
        %6224 = vmatpush1.msra.mxu0 0.0
        %6225 = vmatprep.subr.mxu0 0.0
        %6226 = vmatpush1.msra.mxu0 0.0
        %6227 = vmatprep.subr.mxu0 0.0
        %6228 = vmatpush1.msra.mxu0 0.0
        %6229 = vmatprep.subr.mxu0 0.0
        %6230 = vmatpush1.msra.mxu0 0.0
        %6231 = vmatprep.subr.mxu0 0.0
        %6232 = vmatpush1.msra.mxu0 0.0
        %6233 = vmatprep.subr.mxu0 0.0
        %6234 = vmatpush1.msra.mxu0 0.0
        %6235 = vmatprep.subr.mxu0 0.0
        %6236 = vmatpush1.msra.mxu0 0.0
        %6237 = vmatprep.subr.mxu0 0.0
        %6238 = vmatpush1.msra.mxu0 0.0
        %6239 = vmatprep.subr.mxu0 0.0
        %6240 = vmatpush1.msra.mxu0 0.0
        %6241 = vmatprep.subr.mxu0 0.0
        %6242 = vmatpush1.msra.mxu0 0.0
        %6243 = vmatprep.subr.mxu0 0.0
        %6244 = vmatpush1.msra.mxu0 0.0
        %6245 = vmatprep.subr.mxu0 0.0
        %6246 = vmatpush1.msra.mxu0 0.0
        %6247 = vmatprep.subr.mxu0 0.0
        %6248 = vmatpush1.msra.mxu0 0.0
        %6249 = vmatprep.subr.mxu0 0.0
        %6250 = vmatpush1.msra.mxu0 0.0
        %6251 = vmatprep.subr.mxu0 %v6215
        %6252 = vmatpush1.msra.mxu0 %v6213
        %6253 = vmatprep.subr.mxu0 0.0
        %6254 = vmatpush2.msra.mxu0 0.0
        %6255 = vmatprep.subr.mxu0 0.0
        %6256 = vmatpush2.msra.mxu0 0.0
        %6257 = vmatprep.subr.mxu0 0.0
        %6258 = vmatpush2.msra.mxu0 0.0
        %6259 = vmatprep.subr.mxu0 0.0
        %6260 = vmatpush2.msra.mxu0 0.0
        %6261 = vmatprep.subr.mxu0 0.0
        %6262 = vmatpush2.msra.mxu0 0.0
        %6263 = vmatprep.subr.mxu0 0.0
        %6264 = vmatpush2.msra.mxu0 0.0
        %6265 = vmatprep.subr.mxu0 0.0
        %6266 = vmatpush2.msra.mxu0 0.0
        %6267 = vmatprep.subr.mxu0 0.0
        %6268 = vmatpush2.msra.mxu0 0.0
        %6269 = vmatprep.subr.mxu0 0.0
        %6270 = vmatpush2.msra.mxu0 0.0
        %6271 = vmatprep.subr.mxu0 0.0
        %6272 = vmatpush2.msra.mxu0 0.0
        %6273 = vmatprep.subr.mxu0 0.0
        %6274 = vmatpush2.msra.mxu0 0.0
        %6275 = vmatprep.subr.mxu0 0.0
        %6276 = vmatpush2.msra.mxu0 0.0
        %6277 = vmatprep.subr.mxu0 0.0
        %6278 = vmatpush2.msra.mxu0 0.0
        %6279 = vmatprep.subr.mxu0 0.0
        %6280 = vmatpush2.msra.mxu0 0.0
        %6281 = vmatprep.subr.mxu0 0.0
        %6282 = vmatpush2.msra.mxu0 0.0
        %6283 = vmatprep.subr.mxu0 0.0
        %6284 = vmatpush2.msra.mxu0 0.0
        %6285 = vmatprep.mubr.f32.mxu0 0.0
        %6286 = vmatmul.mubr.f32.gmra.mxu0 %v6211
        %v6287 = vpop.f32.mrf.mxu0
        %v6288 = vadd.f32 0.0, %v6287
        %v6289 = vpop.f32.mrf.mxu0
        %v6290 = vadd.f32 0.0, %v6289
        %6291 = vdwg.mxu0
        %6292 = vmatprep.subr.mxu0 0.0
        %6293 = vmatpush1.msra.mxu0 0.0
        %6294 = vmatprep.subr.mxu0 0.0
        %6295 = vmatpush1.msra.mxu0 0.0
        %6296 = vmatprep.subr.mxu0 0.0
        %6297 = vmatpush1.msra.mxu0 0.0
        %6298 = vmatprep.subr.mxu0 0.0
        %6299 = vmatpush1.msra.mxu0 0.0
        %6300 = vmatprep.subr.mxu0 0.0
        %6301 = vmatpush1.msra.mxu0 0.0
        %6302 = vmatprep.subr.mxu0 0.0
        %6303 = vmatpush1.msra.mxu0 0.0
        %6304 = vmatprep.subr.mxu0 0.0
        %6305 = vmatpush1.msra.mxu0 0.0
        %6306 = vmatprep.subr.mxu0 0.0
        %6307 = vmatpush1.msra.mxu0 0.0
        %6308 = vmatprep.subr.mxu0 0.0
        %6309 = vmatpush1.msra.mxu0 0.0
        %6310 = vmatprep.subr.mxu0 0.0
        %6311 = vmatpush1.msra.mxu0 0.0
        %6312 = vmatprep.subr.mxu0 0.0
        %6313 = vmatpush1.msra.mxu0 0.0
        %6314 = vmatprep.subr.mxu0 0.0
        %6315 = vmatpush1.msra.mxu0 0.0
        %6316 = vmatprep.subr.mxu0 0.0
        %6317 = vmatpush1.msra.mxu0 0.0
        %6318 = vmatprep.subr.mxu0 0.0
        %6319 = vmatpush1.msra.mxu0 0.0
        %6320 = vmatprep.subr.mxu0 0.0
        %6321 = vmatpush1.msra.mxu0 0.0
        %6322 = vmatprep.subr.mxu0 %v6219
        %6323 = vmatpush1.msra.mxu0 %v6217
        %6324 = vmatprep.subr.mxu0 0.0
        %6325 = vmatpush2.msra.mxu0 0.0
        %6326 = vmatprep.subr.mxu0 0.0
        %6327 = vmatpush2.msra.mxu0 0.0
        %6328 = vmatprep.subr.mxu0 0.0
        %6329 = vmatpush2.msra.mxu0 0.0
        %6330 = vmatprep.subr.mxu0 0.0
        %6331 = vmatpush2.msra.mxu0 0.0
        %6332 = vmatprep.subr.mxu0 0.0
        %6333 = vmatpush2.msra.mxu0 0.0
        %6334 = vmatprep.subr.mxu0 0.0
        %6335 = vmatpush2.msra.mxu0 0.0
        %6336 = vmatprep.subr.mxu0 0.0
        %6337 = vmatpush2.msra.mxu0 0.0
        %6338 = vmatprep.subr.mxu0 0.0
        %6339 = vmatpush2.msra.mxu0 0.0
        %6340 = vmatprep.subr.mxu0 0.0
        %6341 = vmatpush2.msra.mxu0 0.0
        %6342 = vmatprep.subr.mxu0 0.0
        %6343 = vmatpush2.msra.mxu0 0.0
        %6344 = vmatprep.subr.mxu0 0.0
        %6345 = vmatpush2.msra.mxu0 0.0
        %6346 = vmatprep.subr.mxu0 0.0
        %6347 = vmatpush2.msra.mxu0 0.0
        %6348 = vmatprep.subr.mxu0 0.0
        %6349 = vmatpush2.msra.mxu0 0.0
        %6350 = vmatprep.subr.mxu0 0.0
        %6351 = vmatpush2.msra.mxu0 0.0
        %6352 = vmatprep.subr.mxu0 0.0
        %6353 = vmatpush2.msra.mxu0 0.0
        %6354 = vmatprep.subr.mxu0 0.0
        %6355 = vmatpush2.msra.mxu0 0.0
        %6356 = vmatprep.mubr.f32.mxu0 0.0
        %6357 = vmatmul.mubr.f32.gmra.mxu0 %v6211
        %v6358 = vpop.f32.mrf.mxu0
        %v6359 = vadd.f32 0.0, %v6358
        %v6360 = vpop.f32.mrf.mxu0
        %6361 = vdwg.mxu0
        %v6362 = vadd.f32 %v6044, %v6288
        %v6363 = vadd.f32 %v6045, %v6290
        %v6364 = vadd.f32 %v6046, %v6359
        %s6365 = scalar_lea.vmem %s3, 128
        %v6366 = vld [vmem:[%s6365] sm:$0xff]
        %v6368 = vsel %vm246, %v6366, 0
        %6370 = vmatprep.subr.mxu0 0.0
        %6371 = vmatpush1.msra.mxu0 0.0
        %6372 = vmatprep.subr.mxu0 0.0
        %6373 = vmatpush1.msra.mxu0 0.0
        %6374 = vmatprep.subr.mxu0 0.0
        %6375 = vmatpush1.msra.mxu0 0.0
        %6376 = vmatprep.subr.mxu0 0.0
        %6377 = vmatpush1.msra.mxu0 0.0
        %6378 = vmatprep.subr.mxu0 0.0
        %6379 = vmatpush1.msra.mxu0 0.0
        %6380 = vmatprep.subr.mxu0 0.0
        %6381 = vmatpush1.msra.mxu0 0.0
        %6382 = vmatprep.subr.mxu0 0.0
        %6383 = vmatpush1.msra.mxu0 0.0
        %6384 = vmatprep.subr.mxu0 0.0
        %6385 = vmatpush1.msra.mxu0 0.0
        %6386 = vmatprep.subr.mxu0 0.0
        %6387 = vmatpush1.msra.mxu0 0.0
        %6388 = vmatprep.subr.mxu0 0.0
        %6389 = vmatpush1.msra.mxu0 0.0
        %6390 = vmatprep.subr.mxu0 0.0
        %6391 = vmatpush1.msra.mxu0 0.0
        %6392 = vmatprep.subr.mxu0 0.0
        %6393 = vmatpush1.msra.mxu0 0.0
        %6394 = vmatprep.subr.mxu0 0.0
        %6395 = vmatpush1.msra.mxu0 0.0
        %6396 = vmatprep.subr.mxu0 0.0
        %6397 = vmatpush1.msra.mxu0 0.0
        %6398 = vmatprep.subr.mxu0 0.0
        %6399 = vmatpush1.msra.mxu0 0.0
        %6400 = vmatprep.subr.mxu0 %v6215
        %6401 = vmatpush1.msra.mxu0 %v6213
        %6402 = vmatprep.subr.mxu0 0.0
        %6403 = vmatpush2.msra.mxu0 0.0
        %6404 = vmatprep.subr.mxu0 0.0
        %6405 = vmatpush2.msra.mxu0 0.0
        %6406 = vmatprep.subr.mxu0 0.0
        %6407 = vmatpush2.msra.mxu0 0.0
        %6408 = vmatprep.subr.mxu0 0.0
        %6409 = vmatpush2.msra.mxu0 0.0
        %6410 = vmatprep.subr.mxu0 0.0
        %6411 = vmatpush2.msra.mxu0 0.0
        %6412 = vmatprep.subr.mxu0 0.0
        %6413 = vmatpush2.msra.mxu0 0.0
        %6414 = vmatprep.subr.mxu0 0.0
        %6415 = vmatpush2.msra.mxu0 0.0
        %6416 = vmatprep.subr.mxu0 0.0
        %6417 = vmatpush2.msra.mxu0 0.0
        %6418 = vmatprep.subr.mxu0 0.0
        %6419 = vmatpush2.msra.mxu0 0.0
        %6420 = vmatprep.subr.mxu0 0.0
        %6421 = vmatpush2.msra.mxu0 0.0
        %6422 = vmatprep.subr.mxu0 0.0
        %6423 = vmatpush2.msra.mxu0 0.0
        %6424 = vmatprep.subr.mxu0 0.0
        %6425 = vmatpush2.msra.mxu0 0.0
        %6426 = vmatprep.subr.mxu0 0.0
        %6427 = vmatpush2.msra.mxu0 0.0
        %6428 = vmatprep.subr.mxu0 0.0
        %6429 = vmatpush2.msra.mxu0 0.0
        %6430 = vmatprep.subr.mxu0 0.0
        %6431 = vmatpush2.msra.mxu0 0.0
        %6432 = vmatprep.subr.mxu0 0.0
        %6433 = vmatpush2.msra.mxu0 0.0
        %6434 = vmatprep.mubr.f32.mxu0 0.0
        %6435 = vmatmul.mubr.f32.gmra.mxu0 %v6368
        %v6436 = vpop.f32.mrf.mxu0
        %v6437 = vadd.f32 0.0, %v6436
        %v6438 = vpop.f32.mrf.mxu0
        %v6439 = vadd.f32 0.0, %v6438
        %6440 = vdwg.mxu0
        %6441 = vmatprep.subr.mxu0 0.0
        %6442 = vmatpush1.msra.mxu0 0.0
        %6443 = vmatprep.subr.mxu0 0.0
        %6444 = vmatpush1.msra.mxu0 0.0
        %6445 = vmatprep.subr.mxu0 0.0
        %6446 = vmatpush1.msra.mxu0 0.0
        %6447 = vmatprep.subr.mxu0 0.0
        %6448 = vmatpush1.msra.mxu0 0.0
        %6449 = vmatprep.subr.mxu0 0.0
        %6450 = vmatpush1.msra.mxu0 0.0
        %6451 = vmatprep.subr.mxu0 0.0
        %6452 = vmatpush1.msra.mxu0 0.0
        %6453 = vmatprep.subr.mxu0 0.0
        %6454 = vmatpush1.msra.mxu0 0.0
        %6455 = vmatprep.subr.mxu0 0.0
        %6456 = vmatpush1.msra.mxu0 0.0
        %6457 = vmatprep.subr.mxu0 0.0
        %6458 = vmatpush1.msra.mxu0 0.0
        %6459 = vmatprep.subr.mxu0 0.0
        %6460 = vmatpush1.msra.mxu0 0.0
        %6461 = vmatprep.subr.mxu0 0.0
        %6462 = vmatpush1.msra.mxu0 0.0
        %6463 = vmatprep.subr.mxu0 0.0
        %6464 = vmatpush1.msra.mxu0 0.0
        %6465 = vmatprep.subr.mxu0 0.0
        %6466 = vmatpush1.msra.mxu0 0.0
        %6467 = vmatprep.subr.mxu0 0.0
        %6468 = vmatpush1.msra.mxu0 0.0
        %6469 = vmatprep.subr.mxu0 0.0
        %6470 = vmatpush1.msra.mxu0 0.0
        %6471 = vmatprep.subr.mxu0 %v6219
        %6472 = vmatpush1.msra.mxu0 %v6217
        %6473 = vmatprep.subr.mxu0 0.0
        %6474 = vmatpush2.msra.mxu0 0.0
        %6475 = vmatprep.subr.mxu0 0.0
        %6476 = vmatpush2.msra.mxu0 0.0
        %6477 = vmatprep.subr.mxu0 0.0
        %6478 = vmatpush2.msra.mxu0 0.0
        %6479 = vmatprep.subr.mxu0 0.0
        %6480 = vmatpush2.msra.mxu0 0.0
        %6481 = vmatprep.subr.mxu0 0.0
        %6482 = vmatpush2.msra.mxu0 0.0
        %6483 = vmatprep.subr.mxu0 0.0
        %6484 = vmatpush2.msra.mxu0 0.0
        %6485 = vmatprep.subr.mxu0 0.0
        %6486 = vmatpush2.msra.mxu0 0.0
        %6487 = vmatprep.subr.mxu0 0.0
        %6488 = vmatpush2.msra.mxu0 0.0
        %6489 = vmatprep.subr.mxu0 0.0
        %6490 = vmatpush2.msra.mxu0 0.0
        %6491 = vmatprep.subr.mxu0 0.0
        %6492 = vmatpush2.msra.mxu0 0.0
        %6493 = vmatprep.subr.mxu0 0.0
        %6494 = vmatpush2.msra.mxu0 0.0
        %6495 = vmatprep.subr.mxu0 0.0
        %6496 = vmatpush2.msra.mxu0 0.0
        %6497 = vmatprep.subr.mxu0 0.0
        %6498 = vmatpush2.msra.mxu0 0.0
        %6499 = vmatprep.subr.mxu0 0.0
        %6500 = vmatpush2.msra.mxu0 0.0
        %6501 = vmatprep.subr.mxu0 0.0
        %6502 = vmatpush2.msra.mxu0 0.0
        %6503 = vmatprep.subr.mxu0 0.0
        %6504 = vmatpush2.msra.mxu0 0.0
        %6505 = vmatprep.mubr.f32.mxu0 0.0
        %6506 = vmatmul.mubr.f32.gmra.mxu0 %v6368
        %v6507 = vpop.f32.mrf.mxu0
        %v6508 = vadd.f32 0.0, %v6507
        %v6509 = vpop.f32.mrf.mxu0
        %6510 = vdwg.mxu0
        %v6511 = vadd.f32 %v6193, %v6437
        %v6512 = vadd.f32 %v6194, %v6439
        %v6513 = vadd.f32 %v6195, %v6508
        %s6514 = scalar_lea.vmem %s2, 112
        %v6515 = vld [vmem:[%s6514] sm:$0xff]
        %6516 = vrot.lane.b32.xlu0 %v223, 66
        %v6517 = vpop.permute.xlu0 %6516
        %6518 = vrot.lane.b32.xlu0 %v232, 66
        %v6519 = vpop.permute.xlu0 %6518
        %6520 = vrot.lane.b32.xlu0 %v224, 66
        %v6521 = vpop.permute.xlu0 %6520
        %6522 = vrot.lane.b32.xlu0 %v233, 66
        %v6523 = vpop.permute.xlu0 %6522
        %vm6524 = vcmask 539648
        %v6525 = vsel %vm6524, %v6517, %v6519
        %v6526 = vsel %vm6524, %v6519, %v6521
        %v6527 = vsel %vm6524, %v6521, %v6523
        %v6529 = vsel %vm246, %v6515, 0
        %v6531 = vsel %vm250, %v6525, 0
        %v6533 = vsel %vm250, %v6526, 0
        %v6535 = vsel %vm250, %v6527, 0
        %v6537 = vsel %vm250, %v6523, 0
        %6539 = vmatprep.subr.mxu0 0.0
        %6540 = vmatpush1.msra.mxu0 0.0
        %6541 = vmatprep.subr.mxu0 0.0
        %6542 = vmatpush1.msra.mxu0 0.0
        %6543 = vmatprep.subr.mxu0 0.0
        %6544 = vmatpush1.msra.mxu0 0.0
        %6545 = vmatprep.subr.mxu0 0.0
        %6546 = vmatpush1.msra.mxu0 0.0
        %6547 = vmatprep.subr.mxu0 0.0
        %6548 = vmatpush1.msra.mxu0 0.0
        %6549 = vmatprep.subr.mxu0 0.0
        %6550 = vmatpush1.msra.mxu0 0.0
        %6551 = vmatprep.subr.mxu0 0.0
        %6552 = vmatpush1.msra.mxu0 0.0
        %6553 = vmatprep.subr.mxu0 0.0
        %6554 = vmatpush1.msra.mxu0 0.0
        %6555 = vmatprep.subr.mxu0 0.0
        %6556 = vmatpush1.msra.mxu0 0.0
        %6557 = vmatprep.subr.mxu0 0.0
        %6558 = vmatpush1.msra.mxu0 0.0
        %6559 = vmatprep.subr.mxu0 0.0
        %6560 = vmatpush1.msra.mxu0 0.0
        %6561 = vmatprep.subr.mxu0 0.0
        %6562 = vmatpush1.msra.mxu0 0.0
        %6563 = vmatprep.subr.mxu0 0.0
        %6564 = vmatpush1.msra.mxu0 0.0
        %6565 = vmatprep.subr.mxu0 0.0
        %6566 = vmatpush1.msra.mxu0 0.0
        %6567 = vmatprep.subr.mxu0 0.0
        %6568 = vmatpush1.msra.mxu0 0.0
        %6569 = vmatprep.subr.mxu0 %v6533
        %6570 = vmatpush1.msra.mxu0 %v6531
        %6571 = vmatprep.subr.mxu0 0.0
        %6572 = vmatpush2.msra.mxu0 0.0
        %6573 = vmatprep.subr.mxu0 0.0
        %6574 = vmatpush2.msra.mxu0 0.0
        %6575 = vmatprep.subr.mxu0 0.0
        %6576 = vmatpush2.msra.mxu0 0.0
        %6577 = vmatprep.subr.mxu0 0.0
        %6578 = vmatpush2.msra.mxu0 0.0
        %6579 = vmatprep.subr.mxu0 0.0
        %6580 = vmatpush2.msra.mxu0 0.0
        %6581 = vmatprep.subr.mxu0 0.0
        %6582 = vmatpush2.msra.mxu0 0.0
        %6583 = vmatprep.subr.mxu0 0.0
        %6584 = vmatpush2.msra.mxu0 0.0
        %6585 = vmatprep.subr.mxu0 0.0
        %6586 = vmatpush2.msra.mxu0 0.0
        %6587 = vmatprep.subr.mxu0 0.0
        %6588 = vmatpush2.msra.mxu0 0.0
        %6589 = vmatprep.subr.mxu0 0.0
        %6590 = vmatpush2.msra.mxu0 0.0
        %6591 = vmatprep.subr.mxu0 0.0
        %6592 = vmatpush2.msra.mxu0 0.0
        %6593 = vmatprep.subr.mxu0 0.0
        %6594 = vmatpush2.msra.mxu0 0.0
        %6595 = vmatprep.subr.mxu0 0.0
        %6596 = vmatpush2.msra.mxu0 0.0
        %6597 = vmatprep.subr.mxu0 0.0
        %6598 = vmatpush2.msra.mxu0 0.0
        %6599 = vmatprep.subr.mxu0 0.0
        %6600 = vmatpush2.msra.mxu0 0.0
        %6601 = vmatprep.subr.mxu0 0.0
        %6602 = vmatpush2.msra.mxu0 0.0
        %6603 = vmatprep.mubr.f32.mxu0 0.0
        %6604 = vmatmul.mubr.f32.gmra.mxu0 %v6529
        %v6605 = vpop.f32.mrf.mxu0
        %v6606 = vadd.f32 0.0, %v6605
        %v6607 = vpop.f32.mrf.mxu0
        %v6608 = vadd.f32 0.0, %v6607
        %6609 = vdwg.mxu0
        %6610 = vmatprep.subr.mxu0 0.0
        %6611 = vmatpush1.msra.mxu0 0.0
        %6612 = vmatprep.subr.mxu0 0.0
        %6613 = vmatpush1.msra.mxu0 0.0
        %6614 = vmatprep.subr.mxu0 0.0
        %6615 = vmatpush1.msra.mxu0 0.0
        %6616 = vmatprep.subr.mxu0 0.0
        %6617 = vmatpush1.msra.mxu0 0.0
        %6618 = vmatprep.subr.mxu0 0.0
        %6619 = vmatpush1.msra.mxu0 0.0
        %6620 = vmatprep.subr.mxu0 0.0
        %6621 = vmatpush1.msra.mxu0 0.0
        %6622 = vmatprep.subr.mxu0 0.0
        %6623 = vmatpush1.msra.mxu0 0.0
        %6624 = vmatprep.subr.mxu0 0.0
        %6625 = vmatpush1.msra.mxu0 0.0
        %6626 = vmatprep.subr.mxu0 0.0
        %6627 = vmatpush1.msra.mxu0 0.0
        %6628 = vmatprep.subr.mxu0 0.0
        %6629 = vmatpush1.msra.mxu0 0.0
        %6630 = vmatprep.subr.mxu0 0.0
        %6631 = vmatpush1.msra.mxu0 0.0
        %6632 = vmatprep.subr.mxu0 0.0
        %6633 = vmatpush1.msra.mxu0 0.0
        %6634 = vmatprep.subr.mxu0 0.0
        %6635 = vmatpush1.msra.mxu0 0.0
        %6636 = vmatprep.subr.mxu0 0.0
        %6637 = vmatpush1.msra.mxu0 0.0
        %6638 = vmatprep.subr.mxu0 0.0
        %6639 = vmatpush1.msra.mxu0 0.0
        %6640 = vmatprep.subr.mxu0 %v6537
        %6641 = vmatpush1.msra.mxu0 %v6535
        %6642 = vmatprep.subr.mxu0 0.0
        %6643 = vmatpush2.msra.mxu0 0.0
        %6644 = vmatprep.subr.mxu0 0.0
        %6645 = vmatpush2.msra.mxu0 0.0
        %6646 = vmatprep.subr.mxu0 0.0
        %6647 = vmatpush2.msra.mxu0 0.0
        %6648 = vmatprep.subr.mxu0 0.0
        %6649 = vmatpush2.msra.mxu0 0.0
        %6650 = vmatprep.subr.mxu0 0.0
        %6651 = vmatpush2.msra.mxu0 0.0
        %6652 = vmatprep.subr.mxu0 0.0
        %6653 = vmatpush2.msra.mxu0 0.0
        %6654 = vmatprep.subr.mxu0 0.0
        %6655 = vmatpush2.msra.mxu0 0.0
        %6656 = vmatprep.subr.mxu0 0.0
        %6657 = vmatpush2.msra.mxu0 0.0
        %6658 = vmatprep.subr.mxu0 0.0
        %6659 = vmatpush2.msra.mxu0 0.0
        %6660 = vmatprep.subr.mxu0 0.0
        %6661 = vmatpush2.msra.mxu0 0.0
        %6662 = vmatprep.subr.mxu0 0.0
        %6663 = vmatpush2.msra.mxu0 0.0
        %6664 = vmatprep.subr.mxu0 0.0
        %6665 = vmatpush2.msra.mxu0 0.0
        %6666 = vmatprep.subr.mxu0 0.0
        %6667 = vmatpush2.msra.mxu0 0.0
        %6668 = vmatprep.subr.mxu0 0.0
        %6669 = vmatpush2.msra.mxu0 0.0
        %6670 = vmatprep.subr.mxu0 0.0
        %6671 = vmatpush2.msra.mxu0 0.0
        %6672 = vmatprep.subr.mxu0 0.0
        %6673 = vmatpush2.msra.mxu0 0.0
        %6674 = vmatprep.mubr.f32.mxu0 0.0
        %6675 = vmatmul.mubr.f32.gmra.mxu0 %v6529
        %v6676 = vpop.f32.mrf.mxu0
        %v6677 = vadd.f32 0.0, %v6676
        %v6678 = vpop.f32.mrf.mxu0
        %6679 = vdwg.mxu0
        %v6680 = vadd.f32 %v6362, %v6606
        %v6681 = vadd.f32 %v6363, %v6608
        %v6682 = vadd.f32 %v6364, %v6677
        %s6683 = scalar_lea.vmem %s3, 136
        %v6684 = vld [vmem:[%s6683] sm:$0xff]
        %v6686 = vsel %vm246, %v6684, 0
        %6688 = vmatprep.subr.mxu0 0.0
        %6689 = vmatpush1.msra.mxu0 0.0
        %6690 = vmatprep.subr.mxu0 0.0
        %6691 = vmatpush1.msra.mxu0 0.0
        %6692 = vmatprep.subr.mxu0 0.0
        %6693 = vmatpush1.msra.mxu0 0.0
        %6694 = vmatprep.subr.mxu0 0.0
        %6695 = vmatpush1.msra.mxu0 0.0
        %6696 = vmatprep.subr.mxu0 0.0
        %6697 = vmatpush1.msra.mxu0 0.0
        %6698 = vmatprep.subr.mxu0 0.0
        %6699 = vmatpush1.msra.mxu0 0.0
        %6700 = vmatprep.subr.mxu0 0.0
        %6701 = vmatpush1.msra.mxu0 0.0
        %6702 = vmatprep.subr.mxu0 0.0
        %6703 = vmatpush1.msra.mxu0 0.0
        %6704 = vmatprep.subr.mxu0 0.0
        %6705 = vmatpush1.msra.mxu0 0.0
        %6706 = vmatprep.subr.mxu0 0.0
        %6707 = vmatpush1.msra.mxu0 0.0
        %6708 = vmatprep.subr.mxu0 0.0
        %6709 = vmatpush1.msra.mxu0 0.0
        %6710 = vmatprep.subr.mxu0 0.0
        %6711 = vmatpush1.msra.mxu0 0.0
        %6712 = vmatprep.subr.mxu0 0.0
        %6713 = vmatpush1.msra.mxu0 0.0
        %6714 = vmatprep.subr.mxu0 0.0
        %6715 = vmatpush1.msra.mxu0 0.0
        %6716 = vmatprep.subr.mxu0 0.0
        %6717 = vmatpush1.msra.mxu0 0.0
        %6718 = vmatprep.subr.mxu0 %v6533
        %6719 = vmatpush1.msra.mxu0 %v6531
        %6720 = vmatprep.subr.mxu0 0.0
        %6721 = vmatpush2.msra.mxu0 0.0
        %6722 = vmatprep.subr.mxu0 0.0
        %6723 = vmatpush2.msra.mxu0 0.0
        %6724 = vmatprep.subr.mxu0 0.0
        %6725 = vmatpush2.msra.mxu0 0.0
        %6726 = vmatprep.subr.mxu0 0.0
        %6727 = vmatpush2.msra.mxu0 0.0
        %6728 = vmatprep.subr.mxu0 0.0
        %6729 = vmatpush2.msra.mxu0 0.0
        %6730 = vmatprep.subr.mxu0 0.0
        %6731 = vmatpush2.msra.mxu0 0.0
        %6732 = vmatprep.subr.mxu0 0.0
        %6733 = vmatpush2.msra.mxu0 0.0
        %6734 = vmatprep.subr.mxu0 0.0
        %6735 = vmatpush2.msra.mxu0 0.0
        %6736 = vmatprep.subr.mxu0 0.0
        %6737 = vmatpush2.msra.mxu0 0.0
        %6738 = vmatprep.subr.mxu0 0.0
        %6739 = vmatpush2.msra.mxu0 0.0
        %6740 = vmatprep.subr.mxu0 0.0
        %6741 = vmatpush2.msra.mxu0 0.0
        %6742 = vmatprep.subr.mxu0 0.0
        %6743 = vmatpush2.msra.mxu0 0.0
        %6744 = vmatprep.subr.mxu0 0.0
        %6745 = vmatpush2.msra.mxu0 0.0
        %6746 = vmatprep.subr.mxu0 0.0
        %6747 = vmatpush2.msra.mxu0 0.0
        %6748 = vmatprep.subr.mxu0 0.0
        %6749 = vmatpush2.msra.mxu0 0.0
        %6750 = vmatprep.subr.mxu0 0.0
        %6751 = vmatpush2.msra.mxu0 0.0
        %6752 = vmatprep.mubr.f32.mxu0 0.0
        %6753 = vmatmul.mubr.f32.gmra.mxu0 %v6686
        %v6754 = vpop.f32.mrf.mxu0
        %v6755 = vadd.f32 0.0, %v6754
        %v6756 = vpop.f32.mrf.mxu0
        %v6757 = vadd.f32 0.0, %v6756
        %6758 = vdwg.mxu0
        %6759 = vmatprep.subr.mxu0 0.0
        %6760 = vmatpush1.msra.mxu0 0.0
        %6761 = vmatprep.subr.mxu0 0.0
        %6762 = vmatpush1.msra.mxu0 0.0
        %6763 = vmatprep.subr.mxu0 0.0
        %6764 = vmatpush1.msra.mxu0 0.0
        %6765 = vmatprep.subr.mxu0 0.0
        %6766 = vmatpush1.msra.mxu0 0.0
        %6767 = vmatprep.subr.mxu0 0.0
        %6768 = vmatpush1.msra.mxu0 0.0
        %6769 = vmatprep.subr.mxu0 0.0
        %6770 = vmatpush1.msra.mxu0 0.0
        %6771 = vmatprep.subr.mxu0 0.0
        %6772 = vmatpush1.msra.mxu0 0.0
        %6773 = vmatprep.subr.mxu0 0.0
        %6774 = vmatpush1.msra.mxu0 0.0
        %6775 = vmatprep.subr.mxu0 0.0
        %6776 = vmatpush1.msra.mxu0 0.0
        %6777 = vmatprep.subr.mxu0 0.0
        %6778 = vmatpush1.msra.mxu0 0.0
        %6779 = vmatprep.subr.mxu0 0.0
        %6780 = vmatpush1.msra.mxu0 0.0
        %6781 = vmatprep.subr.mxu0 0.0
        %6782 = vmatpush1.msra.mxu0 0.0
        %6783 = vmatprep.subr.mxu0 0.0
        %6784 = vmatpush1.msra.mxu0 0.0
        %6785 = vmatprep.subr.mxu0 0.0
        %6786 = vmatpush1.msra.mxu0 0.0
        %6787 = vmatprep.subr.mxu0 0.0
        %6788 = vmatpush1.msra.mxu0 0.0
        %6789 = vmatprep.subr.mxu0 %v6537
        %6790 = vmatpush1.msra.mxu0 %v6535
        %6791 = vmatprep.subr.mxu0 0.0
        %6792 = vmatpush2.msra.mxu0 0.0
        %6793 = vmatprep.subr.mxu0 0.0
        %6794 = vmatpush2.msra.mxu0 0.0
        %6795 = vmatprep.subr.mxu0 0.0
        %6796 = vmatpush2.msra.mxu0 0.0
        %6797 = vmatprep.subr.mxu0 0.0
        %6798 = vmatpush2.msra.mxu0 0.0
        %6799 = vmatprep.subr.mxu0 0.0
        %6800 = vmatpush2.msra.mxu0 0.0
        %6801 = vmatprep.subr.mxu0 0.0
        %6802 = vmatpush2.msra.mxu0 0.0
        %6803 = vmatprep.subr.mxu0 0.0
        %6804 = vmatpush2.msra.mxu0 0.0
        %6805 = vmatprep.subr.mxu0 0.0
        %6806 = vmatpush2.msra.mxu0 0.0
        %6807 = vmatprep.subr.mxu0 0.0
        %6808 = vmatpush2.msra.mxu0 0.0
        %6809 = vmatprep.subr.mxu0 0.0
        %6810 = vmatpush2.msra.mxu0 0.0
        %6811 = vmatprep.subr.mxu0 0.0
        %6812 = vmatpush2.msra.mxu0 0.0
        %6813 = vmatprep.subr.mxu0 0.0
        %6814 = vmatpush2.msra.mxu0 0.0
        %6815 = vmatprep.subr.mxu0 0.0
        %6816 = vmatpush2.msra.mxu0 0.0
        %6817 = vmatprep.subr.mxu0 0.0
        %6818 = vmatpush2.msra.mxu0 0.0
        %6819 = vmatprep.subr.mxu0 0.0
        %6820 = vmatpush2.msra.mxu0 0.0
        %6821 = vmatprep.subr.mxu0 0.0
        %6822 = vmatpush2.msra.mxu0 0.0
        %6823 = vmatprep.mubr.f32.mxu0 0.0
        %6824 = vmatmul.mubr.f32.gmra.mxu0 %v6686
        %v6825 = vpop.f32.mrf.mxu0
        %v6826 = vadd.f32 0.0, %v6825
        %v6827 = vpop.f32.mrf.mxu0
        %6828 = vdwg.mxu0
        %v6829 = vadd.f32 %v6511, %v6755
        %v6830 = vadd.f32 %v6512, %v6757
        %v6831 = vadd.f32 %v6513, %v6826
        %s6832 = scalar_lea.vmem %s2, 120
        %v6833 = vld [vmem:[%s6832] sm:$0xff]
        %6834 = vrot.lane.b32.xlu0 %v223, 65
        %v6835 = vpop.permute.xlu0 %6834
        %6836 = vrot.lane.b32.xlu0 %v232, 65
        %v6837 = vpop.permute.xlu0 %6836
        %6838 = vrot.lane.b32.xlu0 %v224, 65
        %v6839 = vpop.permute.xlu0 %6838
        %6840 = vrot.lane.b32.xlu0 %v233, 65
        %v6841 = vpop.permute.xlu0 %6840
        %vm6842 = vcmask 531456
        %v6843 = vsel %vm6842, %v6835, %v6837
        %v6844 = vsel %vm6842, %v6837, %v6839
        %v6845 = vsel %vm6842, %v6839, %v6841
        %v6847 = vsel %vm246, %v6833, 0
        %v6849 = vsel %vm250, %v6843, 0
        %v6851 = vsel %vm250, %v6844, 0
        %v6853 = vsel %vm250, %v6845, 0
        %v6855 = vsel %vm250, %v6841, 0
        %6857 = vmatprep.subr.mxu0 0.0
        %6858 = vmatpush1.msra.mxu0 0.0
        %6859 = vmatprep.subr.mxu0 0.0
        %6860 = vmatpush1.msra.mxu0 0.0
        %6861 = vmatprep.subr.mxu0 0.0
        %6862 = vmatpush1.msra.mxu0 0.0
        %6863 = vmatprep.subr.mxu0 0.0
        %6864 = vmatpush1.msra.mxu0 0.0
        %6865 = vmatprep.subr.mxu0 0.0
        %6866 = vmatpush1.msra.mxu0 0.0
        %6867 = vmatprep.subr.mxu0 0.0
        %6868 = vmatpush1.msra.mxu0 0.0
        %6869 = vmatprep.subr.mxu0 0.0
        %6870 = vmatpush1.msra.mxu0 0.0
        %6871 = vmatprep.subr.mxu0 0.0
        %6872 = vmatpush1.msra.mxu0 0.0
        %6873 = vmatprep.subr.mxu0 0.0
        %6874 = vmatpush1.msra.mxu0 0.0
        %6875 = vmatprep.subr.mxu0 0.0
        %6876 = vmatpush1.msra.mxu0 0.0
        %6877 = vmatprep.subr.mxu0 0.0
        %6878 = vmatpush1.msra.mxu0 0.0
        %6879 = vmatprep.subr.mxu0 0.0
        %6880 = vmatpush1.msra.mxu0 0.0
        %6881 = vmatprep.subr.mxu0 0.0
        %6882 = vmatpush1.msra.mxu0 0.0
        %6883 = vmatprep.subr.mxu0 0.0
        %6884 = vmatpush1.msra.mxu0 0.0
        %6885 = vmatprep.subr.mxu0 0.0
        %6886 = vmatpush1.msra.mxu0 0.0
        %6887 = vmatprep.subr.mxu0 %v6851
        %6888 = vmatpush1.msra.mxu0 %v6849
        %6889 = vmatprep.subr.mxu0 0.0
        %6890 = vmatpush2.msra.mxu0 0.0
        %6891 = vmatprep.subr.mxu0 0.0
        %6892 = vmatpush2.msra.mxu0 0.0
        %6893 = vmatprep.subr.mxu0 0.0
        %6894 = vmatpush2.msra.mxu0 0.0
        %6895 = vmatprep.subr.mxu0 0.0
        %6896 = vmatpush2.msra.mxu0 0.0
        %6897 = vmatprep.subr.mxu0 0.0
        %6898 = vmatpush2.msra.mxu0 0.0
        %6899 = vmatprep.subr.mxu0 0.0
        %6900 = vmatpush2.msra.mxu0 0.0
        %6901 = vmatprep.subr.mxu0 0.0
        %6902 = vmatpush2.msra.mxu0 0.0
        %6903 = vmatprep.subr.mxu0 0.0
        %6904 = vmatpush2.msra.mxu0 0.0
        %6905 = vmatprep.subr.mxu0 0.0
        %6906 = vmatpush2.msra.mxu0 0.0
        %6907 = vmatprep.subr.mxu0 0.0
        %6908 = vmatpush2.msra.mxu0 0.0
        %6909 = vmatprep.subr.mxu0 0.0
        %6910 = vmatpush2.msra.mxu0 0.0
        %6911 = vmatprep.subr.mxu0 0.0
        %6912 = vmatpush2.msra.mxu0 0.0
        %6913 = vmatprep.subr.mxu0 0.0
        %6914 = vmatpush2.msra.mxu0 0.0
        %6915 = vmatprep.subr.mxu0 0.0
        %6916 = vmatpush2.msra.mxu0 0.0
        %6917 = vmatprep.subr.mxu0 0.0
        %6918 = vmatpush2.msra.mxu0 0.0
        %6919 = vmatprep.subr.mxu0 0.0
        %6920 = vmatpush2.msra.mxu0 0.0
        %6921 = vmatprep.mubr.f32.mxu0 0.0
        %6922 = vmatmul.mubr.f32.gmra.mxu0 %v6847
        %v6923 = vpop.f32.mrf.mxu0
        %v6924 = vadd.f32 0.0, %v6923
        %v6925 = vpop.f32.mrf.mxu0
        %v6926 = vadd.f32 0.0, %v6925
        %6927 = vdwg.mxu0
        %6928 = vmatprep.subr.mxu0 0.0
        %6929 = vmatpush1.msra.mxu0 0.0
        %6930 = vmatprep.subr.mxu0 0.0
        %6931 = vmatpush1.msra.mxu0 0.0
        %6932 = vmatprep.subr.mxu0 0.0
        %6933 = vmatpush1.msra.mxu0 0.0
        %6934 = vmatprep.subr.mxu0 0.0
        %6935 = vmatpush1.msra.mxu0 0.0
        %6936 = vmatprep.subr.mxu0 0.0
        %6937 = vmatpush1.msra.mxu0 0.0
        %6938 = vmatprep.subr.mxu0 0.0
        %6939 = vmatpush1.msra.mxu0 0.0
        %6940 = vmatprep.subr.mxu0 0.0
        %6941 = vmatpush1.msra.mxu0 0.0
        %6942 = vmatprep.subr.mxu0 0.0
        %6943 = vmatpush1.msra.mxu0 0.0
        %6944 = vmatprep.subr.mxu0 0.0
        %6945 = vmatpush1.msra.mxu0 0.0
        %6946 = vmatprep.subr.mxu0 0.0
        %6947 = vmatpush1.msra.mxu0 0.0
        %6948 = vmatprep.subr.mxu0 0.0
        %6949 = vmatpush1.msra.mxu0 0.0
        %6950 = vmatprep.subr.mxu0 0.0
        %6951 = vmatpush1.msra.mxu0 0.0
        %6952 = vmatprep.subr.mxu0 0.0
        %6953 = vmatpush1.msra.mxu0 0.0
        %6954 = vmatprep.subr.mxu0 0.0
        %6955 = vmatpush1.msra.mxu0 0.0
        %6956 = vmatprep.subr.mxu0 0.0
        %6957 = vmatpush1.msra.mxu0 0.0
        %6958 = vmatprep.subr.mxu0 %v6855
        %6959 = vmatpush1.msra.mxu0 %v6853
        %6960 = vmatprep.subr.mxu0 0.0
        %6961 = vmatpush2.msra.mxu0 0.0
        %6962 = vmatprep.subr.mxu0 0.0
        %6963 = vmatpush2.msra.mxu0 0.0
        %6964 = vmatprep.subr.mxu0 0.0
        %6965 = vmatpush2.msra.mxu0 0.0
        %6966 = vmatprep.subr.mxu0 0.0
        %6967 = vmatpush2.msra.mxu0 0.0
        %6968 = vmatprep.subr.mxu0 0.0
        %6969 = vmatpush2.msra.mxu0 0.0
        %6970 = vmatprep.subr.mxu0 0.0
        %6971 = vmatpush2.msra.mxu0 0.0
        %6972 = vmatprep.subr.mxu0 0.0
        %6973 = vmatpush2.msra.mxu0 0.0
        %6974 = vmatprep.subr.mxu0 0.0
        %6975 = vmatpush2.msra.mxu0 0.0
        %6976 = vmatprep.subr.mxu0 0.0
        %6977 = vmatpush2.msra.mxu0 0.0
        %6978 = vmatprep.subr.mxu0 0.0
        %6979 = vmatpush2.msra.mxu0 0.0
        %6980 = vmatprep.subr.mxu0 0.0
        %6981 = vmatpush2.msra.mxu0 0.0
        %6982 = vmatprep.subr.mxu0 0.0
        %6983 = vmatpush2.msra.mxu0 0.0
        %6984 = vmatprep.subr.mxu0 0.0
        %6985 = vmatpush2.msra.mxu0 0.0
        %6986 = vmatprep.subr.mxu0 0.0
        %6987 = vmatpush2.msra.mxu0 0.0
        %6988 = vmatprep.subr.mxu0 0.0
        %6989 = vmatpush2.msra.mxu0 0.0
        %6990 = vmatprep.subr.mxu0 0.0
        %6991 = vmatpush2.msra.mxu0 0.0
        %6992 = vmatprep.mubr.f32.mxu0 0.0
        %6993 = vmatmul.mubr.f32.gmra.mxu0 %v6847
        %v6994 = vpop.f32.mrf.mxu0
        %v6995 = vadd.f32 0.0, %v6994
        %v6996 = vpop.f32.mrf.mxu0
        %6997 = vdwg.mxu0
        %v6998 = vadd.f32 %v6680, %v6924
        %v6999 = vadd.f32 %v6681, %v6926
        %v7000 = vadd.f32 %v6682, %v6995
        %s7001 = scalar_lea.vmem %s3, 144
        %v7002 = vld [vmem:[%s7001] sm:$0xff]
        %v7004 = vsel %vm246, %v7002, 0
        %7006 = vmatprep.subr.mxu0 0.0
        %7007 = vmatpush1.msra.mxu0 0.0
        %7008 = vmatprep.subr.mxu0 0.0
        %7009 = vmatpush1.msra.mxu0 0.0
        %7010 = vmatprep.subr.mxu0 0.0
        %7011 = vmatpush1.msra.mxu0 0.0
        %7012 = vmatprep.subr.mxu0 0.0
        %7013 = vmatpush1.msra.mxu0 0.0
        %7014 = vmatprep.subr.mxu0 0.0
        %7015 = vmatpush1.msra.mxu0 0.0
        %7016 = vmatprep.subr.mxu0 0.0
        %7017 = vmatpush1.msra.mxu0 0.0
        %7018 = vmatprep.subr.mxu0 0.0
        %7019 = vmatpush1.msra.mxu0 0.0
        %7020 = vmatprep.subr.mxu0 0.0
        %7021 = vmatpush1.msra.mxu0 0.0
        %7022 = vmatprep.subr.mxu0 0.0
        %7023 = vmatpush1.msra.mxu0 0.0
        %7024 = vmatprep.subr.mxu0 0.0
        %7025 = vmatpush1.msra.mxu0 0.0
        %7026 = vmatprep.subr.mxu0 0.0
        %7027 = vmatpush1.msra.mxu0 0.0
        %7028 = vmatprep.subr.mxu0 0.0
        %7029 = vmatpush1.msra.mxu0 0.0
        %7030 = vmatprep.subr.mxu0 0.0
        %7031 = vmatpush1.msra.mxu0 0.0
        %7032 = vmatprep.subr.mxu0 0.0
        %7033 = vmatpush1.msra.mxu0 0.0
        %7034 = vmatprep.subr.mxu0 0.0
        %7035 = vmatpush1.msra.mxu0 0.0
        %7036 = vmatprep.subr.mxu0 %v6851
        %7037 = vmatpush1.msra.mxu0 %v6849
        %7038 = vmatprep.subr.mxu0 0.0
        %7039 = vmatpush2.msra.mxu0 0.0
        %7040 = vmatprep.subr.mxu0 0.0
        %7041 = vmatpush2.msra.mxu0 0.0
        %7042 = vmatprep.subr.mxu0 0.0
        %7043 = vmatpush2.msra.mxu0 0.0
        %7044 = vmatprep.subr.mxu0 0.0
        %7045 = vmatpush2.msra.mxu0 0.0
        %7046 = vmatprep.subr.mxu0 0.0
        %7047 = vmatpush2.msra.mxu0 0.0
        %7048 = vmatprep.subr.mxu0 0.0
        %7049 = vmatpush2.msra.mxu0 0.0
        %7050 = vmatprep.subr.mxu0 0.0
        %7051 = vmatpush2.msra.mxu0 0.0
        %7052 = vmatprep.subr.mxu0 0.0
        %7053 = vmatpush2.msra.mxu0 0.0
        %7054 = vmatprep.subr.mxu0 0.0
        %7055 = vmatpush2.msra.mxu0 0.0
        %7056 = vmatprep.subr.mxu0 0.0
        %7057 = vmatpush2.msra.mxu0 0.0
        %7058 = vmatprep.subr.mxu0 0.0
        %7059 = vmatpush2.msra.mxu0 0.0
        %7060 = vmatprep.subr.mxu0 0.0
        %7061 = vmatpush2.msra.mxu0 0.0
        %7062 = vmatprep.subr.mxu0 0.0
        %7063 = vmatpush2.msra.mxu0 0.0
        %7064 = vmatprep.subr.mxu0 0.0
        %7065 = vmatpush2.msra.mxu0 0.0
        %7066 = vmatprep.subr.mxu0 0.0
        %7067 = vmatpush2.msra.mxu0 0.0
        %7068 = vmatprep.subr.mxu0 0.0
        %7069 = vmatpush2.msra.mxu0 0.0
        %7070 = vmatprep.mubr.f32.mxu0 0.0
        %7071 = vmatmul.mubr.f32.gmra.mxu0 %v7004
        %v7072 = vpop.f32.mrf.mxu0
        %v7073 = vadd.f32 0.0, %v7072
        %v7074 = vpop.f32.mrf.mxu0
        %v7075 = vadd.f32 0.0, %v7074
        %7076 = vdwg.mxu0
        %7077 = vmatprep.subr.mxu0 0.0
        %7078 = vmatpush1.msra.mxu0 0.0
        %7079 = vmatprep.subr.mxu0 0.0
        %7080 = vmatpush1.msra.mxu0 0.0
        %7081 = vmatprep.subr.mxu0 0.0
        %7082 = vmatpush1.msra.mxu0 0.0
        %7083 = vmatprep.subr.mxu0 0.0
        %7084 = vmatpush1.msra.mxu0 0.0
        %7085 = vmatprep.subr.mxu0 0.0
        %7086 = vmatpush1.msra.mxu0 0.0
        %7087 = vmatprep.subr.mxu0 0.0
        %7088 = vmatpush1.msra.mxu0 0.0
        %7089 = vmatprep.subr.mxu0 0.0
        %7090 = vmatpush1.msra.mxu0 0.0
        %7091 = vmatprep.subr.mxu0 0.0
        %7092 = vmatpush1.msra.mxu0 0.0
        %7093 = vmatprep.subr.mxu0 0.0
        %7094 = vmatpush1.msra.mxu0 0.0
        %7095 = vmatprep.subr.mxu0 0.0
        %7096 = vmatpush1.msra.mxu0 0.0
        %7097 = vmatprep.subr.mxu0 0.0
        %7098 = vmatpush1.msra.mxu0 0.0
        %7099 = vmatprep.subr.mxu0 0.0
        %7100 = vmatpush1.msra.mxu0 0.0
        %7101 = vmatprep.subr.mxu0 0.0
        %7102 = vmatpush1.msra.mxu0 0.0
        %7103 = vmatprep.subr.mxu0 0.0
        %7104 = vmatpush1.msra.mxu0 0.0
        %7105 = vmatprep.subr.mxu0 0.0
        %7106 = vmatpush1.msra.mxu0 0.0
        %7107 = vmatprep.subr.mxu0 %v6855
        %7108 = vmatpush1.msra.mxu0 %v6853
        %7109 = vmatprep.subr.mxu0 0.0
        %7110 = vmatpush2.msra.mxu0 0.0
        %7111 = vmatprep.subr.mxu0 0.0
        %7112 = vmatpush2.msra.mxu0 0.0
        %7113 = vmatprep.subr.mxu0 0.0
        %7114 = vmatpush2.msra.mxu0 0.0
        %7115 = vmatprep.subr.mxu0 0.0
        %7116 = vmatpush2.msra.mxu0 0.0
        %7117 = vmatprep.subr.mxu0 0.0
        %7118 = vmatpush2.msra.mxu0 0.0
        %7119 = vmatprep.subr.mxu0 0.0
        %7120 = vmatpush2.msra.mxu0 0.0
        %7121 = vmatprep.subr.mxu0 0.0
        %7122 = vmatpush2.msra.mxu0 0.0
        %7123 = vmatprep.subr.mxu0 0.0
        %7124 = vmatpush2.msra.mxu0 0.0
        %7125 = vmatprep.subr.mxu0 0.0
        %7126 = vmatpush2.msra.mxu0 0.0
        %7127 = vmatprep.subr.mxu0 0.0
        %7128 = vmatpush2.msra.mxu0 0.0
        %7129 = vmatprep.subr.mxu0 0.0
        %7130 = vmatpush2.msra.mxu0 0.0
        %7131 = vmatprep.subr.mxu0 0.0
        %7132 = vmatpush2.msra.mxu0 0.0
        %7133 = vmatprep.subr.mxu0 0.0
        %7134 = vmatpush2.msra.mxu0 0.0
        %7135 = vmatprep.subr.mxu0 0.0
        %7136 = vmatpush2.msra.mxu0 0.0
        %7137 = vmatprep.subr.mxu0 0.0
        %7138 = vmatpush2.msra.mxu0 0.0
        %7139 = vmatprep.subr.mxu0 0.0
        %7140 = vmatpush2.msra.mxu0 0.0
        %7141 = vmatprep.mubr.f32.mxu0 0.0
        %7142 = vmatmul.mubr.f32.gmra.mxu0 %v7004
        %v7143 = vpop.f32.mrf.mxu0
        %v7144 = vadd.f32 0.0, %v7143
        %v7145 = vpop.f32.mrf.mxu0
        %7146 = vdwg.mxu0
        %v7147 = vadd.f32 %v6829, %v7073
        %v7148 = vadd.f32 %v6830, %v7075
        %v7149 = vadd.f32 %v6831, %v7144
        %s7150 = scalar_lea.vmem %s3, 152
        %v7151 = vld [vmem:[%s7150] sm:$0xff]
        %7152 = vrot.lane.b32.xlu0 %v223, 64
        %v7153 = vpop.permute.xlu0 %7152
        %7154 = vrot.lane.b32.xlu0 %v232, 64
        %v7155 = vpop.permute.xlu0 %7154
        %7156 = vrot.lane.b32.xlu0 %v224, 64
        %v7157 = vpop.permute.xlu0 %7156
        %7158 = vrot.lane.b32.xlu0 %v233, 64
        %v7159 = vpop.permute.xlu0 %7158
        %vm7160 = vcmask 523264
        %v7161 = vsel %vm7160, %v7153, %v7155
        %v7162 = vsel %vm7160, %v7155, %v7157
        %v7163 = vsel %vm7160, %v7157, %v7159
        %v7165 = vsel %vm246, %v7151, 0
        %v7167 = vsel %vm250, %v7161, 0
        %v7169 = vsel %vm250, %v7162, 0
        %v7171 = vsel %vm250, %v7163, 0
        %v7173 = vsel %vm250, %v7159, 0
        %7175 = vmatprep.subr.mxu0 0.0
        %7176 = vmatpush1.msra.mxu0 0.0
        %7177 = vmatprep.subr.mxu0 0.0
        %7178 = vmatpush1.msra.mxu0 0.0
        %7179 = vmatprep.subr.mxu0 0.0
        %7180 = vmatpush1.msra.mxu0 0.0
        %7181 = vmatprep.subr.mxu0 0.0
        %7182 = vmatpush1.msra.mxu0 0.0
        %7183 = vmatprep.subr.mxu0 0.0
        %7184 = vmatpush1.msra.mxu0 0.0
        %7185 = vmatprep.subr.mxu0 0.0
        %7186 = vmatpush1.msra.mxu0 0.0
        %7187 = vmatprep.subr.mxu0 0.0
        %7188 = vmatpush1.msra.mxu0 0.0
        %7189 = vmatprep.subr.mxu0 0.0
        %7190 = vmatpush1.msra.mxu0 0.0
        %7191 = vmatprep.subr.mxu0 0.0
        %7192 = vmatpush1.msra.mxu0 0.0
        %7193 = vmatprep.subr.mxu0 0.0
        %7194 = vmatpush1.msra.mxu0 0.0
        %7195 = vmatprep.subr.mxu0 0.0
        %7196 = vmatpush1.msra.mxu0 0.0
        %7197 = vmatprep.subr.mxu0 0.0
        %7198 = vmatpush1.msra.mxu0 0.0
        %7199 = vmatprep.subr.mxu0 0.0
        %7200 = vmatpush1.msra.mxu0 0.0
        %7201 = vmatprep.subr.mxu0 0.0
        %7202 = vmatpush1.msra.mxu0 0.0
        %7203 = vmatprep.subr.mxu0 0.0
        %7204 = vmatpush1.msra.mxu0 0.0
        %7205 = vmatprep.subr.mxu0 %v7169
        %7206 = vmatpush1.msra.mxu0 %v7167
        %7207 = vmatprep.subr.mxu0 0.0
        %7208 = vmatpush2.msra.mxu0 0.0
        %7209 = vmatprep.subr.mxu0 0.0
        %7210 = vmatpush2.msra.mxu0 0.0
        %7211 = vmatprep.subr.mxu0 0.0
        %7212 = vmatpush2.msra.mxu0 0.0
        %7213 = vmatprep.subr.mxu0 0.0
        %7214 = vmatpush2.msra.mxu0 0.0
        %7215 = vmatprep.subr.mxu0 0.0
        %7216 = vmatpush2.msra.mxu0 0.0
        %7217 = vmatprep.subr.mxu0 0.0
        %7218 = vmatpush2.msra.mxu0 0.0
        %7219 = vmatprep.subr.mxu0 0.0
        %7220 = vmatpush2.msra.mxu0 0.0
        %7221 = vmatprep.subr.mxu0 0.0
        %7222 = vmatpush2.msra.mxu0 0.0
        %7223 = vmatprep.subr.mxu0 0.0
        %7224 = vmatpush2.msra.mxu0 0.0
        %7225 = vmatprep.subr.mxu0 0.0
        %7226 = vmatpush2.msra.mxu0 0.0
        %7227 = vmatprep.subr.mxu0 0.0
        %7228 = vmatpush2.msra.mxu0 0.0
        %7229 = vmatprep.subr.mxu0 0.0
        %7230 = vmatpush2.msra.mxu0 0.0
        %7231 = vmatprep.subr.mxu0 0.0
        %7232 = vmatpush2.msra.mxu0 0.0
        %7233 = vmatprep.subr.mxu0 0.0
        %7234 = vmatpush2.msra.mxu0 0.0
        %7235 = vmatprep.subr.mxu0 0.0
        %7236 = vmatpush2.msra.mxu0 0.0
        %7237 = vmatprep.subr.mxu0 0.0
        %7238 = vmatpush2.msra.mxu0 0.0
        %7239 = vmatprep.mubr.f32.mxu0 0.0
        %7240 = vmatmul.mubr.f32.gmra.mxu0 %v7165
        %v7241 = vpop.f32.mrf.mxu0
        %v7242 = vadd.f32 0.0, %v7241
        %v7243 = vpop.f32.mrf.mxu0
        %v7244 = vadd.f32 0.0, %v7243
        %7245 = vdwg.mxu0
        %7246 = vmatprep.subr.mxu0 0.0
        %7247 = vmatpush1.msra.mxu0 0.0
        %7248 = vmatprep.subr.mxu0 0.0
        %7249 = vmatpush1.msra.mxu0 0.0
        %7250 = vmatprep.subr.mxu0 0.0
        %7251 = vmatpush1.msra.mxu0 0.0
        %7252 = vmatprep.subr.mxu0 0.0
        %7253 = vmatpush1.msra.mxu0 0.0
        %7254 = vmatprep.subr.mxu0 0.0
        %7255 = vmatpush1.msra.mxu0 0.0
        %7256 = vmatprep.subr.mxu0 0.0
        %7257 = vmatpush1.msra.mxu0 0.0
        %7258 = vmatprep.subr.mxu0 0.0
        %7259 = vmatpush1.msra.mxu0 0.0
        %7260 = vmatprep.subr.mxu0 0.0
        %7261 = vmatpush1.msra.mxu0 0.0
        %7262 = vmatprep.subr.mxu0 0.0
        %7263 = vmatpush1.msra.mxu0 0.0
        %7264 = vmatprep.subr.mxu0 0.0
        %7265 = vmatpush1.msra.mxu0 0.0
        %7266 = vmatprep.subr.mxu0 0.0
        %7267 = vmatpush1.msra.mxu0 0.0
        %7268 = vmatprep.subr.mxu0 0.0
        %7269 = vmatpush1.msra.mxu0 0.0
        %7270 = vmatprep.subr.mxu0 0.0
        %7271 = vmatpush1.msra.mxu0 0.0
        %7272 = vmatprep.subr.mxu0 0.0
        %7273 = vmatpush1.msra.mxu0 0.0
        %7274 = vmatprep.subr.mxu0 0.0
        %7275 = vmatpush1.msra.mxu0 0.0
        %7276 = vmatprep.subr.mxu0 %v7173
        %7277 = vmatpush1.msra.mxu0 %v7171
        %7278 = vmatprep.subr.mxu0 0.0
        %7279 = vmatpush2.msra.mxu0 0.0
        %7280 = vmatprep.subr.mxu0 0.0
        %7281 = vmatpush2.msra.mxu0 0.0
        %7282 = vmatprep.subr.mxu0 0.0
        %7283 = vmatpush2.msra.mxu0 0.0
        %7284 = vmatprep.subr.mxu0 0.0
        %7285 = vmatpush2.msra.mxu0 0.0
        %7286 = vmatprep.subr.mxu0 0.0
        %7287 = vmatpush2.msra.mxu0 0.0
        %7288 = vmatprep.subr.mxu0 0.0
        %7289 = vmatpush2.msra.mxu0 0.0
        %7290 = vmatprep.subr.mxu0 0.0
        %7291 = vmatpush2.msra.mxu0 0.0
        %7292 = vmatprep.subr.mxu0 0.0
        %7293 = vmatpush2.msra.mxu0 0.0
        %7294 = vmatprep.subr.mxu0 0.0
        %7295 = vmatpush2.msra.mxu0 0.0
        %7296 = vmatprep.subr.mxu0 0.0
        %7297 = vmatpush2.msra.mxu0 0.0
        %7298 = vmatprep.subr.mxu0 0.0
        %7299 = vmatpush2.msra.mxu0 0.0
        %7300 = vmatprep.subr.mxu0 0.0
        %7301 = vmatpush2.msra.mxu0 0.0
        %7302 = vmatprep.subr.mxu0 0.0
        %7303 = vmatpush2.msra.mxu0 0.0
        %7304 = vmatprep.subr.mxu0 0.0
        %7305 = vmatpush2.msra.mxu0 0.0
        %7306 = vmatprep.subr.mxu0 0.0
        %7307 = vmatpush2.msra.mxu0 0.0
        %7308 = vmatprep.subr.mxu0 0.0
        %7309 = vmatpush2.msra.mxu0 0.0
        %7310 = vmatprep.mubr.f32.mxu0 0.0
        %7311 = vmatmul.mubr.f32.gmra.mxu0 %v7165
        %v7312 = vpop.f32.mrf.mxu0
        %v7313 = vadd.f32 0.0, %v7312
        %v7314 = vpop.f32.mrf.mxu0
        %7315 = vdwg.mxu0
        %v7316 = vadd.f32 %v7147, %v7242
        %v7317 = vadd.f32 %v7148, %v7244
        %v7318 = vadd.f32 %v7149, %v7313
        %s7319 = scalar_lea.vmem %s3, 160
        %v7320 = vld [vmem:[%s7319] sm:$0xff]
        %7321 = vrot.lane.b32.xlu0 %v223, 48
        %v7322 = vpop.permute.xlu0 %7321
        %7323 = vrot.lane.b32.xlu0 %v232, 48
        %v7324 = vpop.permute.xlu0 %7323
        %7325 = vrot.lane.b32.xlu0 %v224, 48
        %v7326 = vpop.permute.xlu0 %7325
        %7327 = vrot.lane.b32.xlu0 %v233, 48
        %v7328 = vpop.permute.xlu0 %7327
        %vm7329 = vcmask 392192
        %v7330 = vsel %vm7329, %v7322, %v7324
        %v7331 = vsel %vm7329, %v7324, %v7326
        %v7332 = vsel %vm7329, %v7326, %v7328
        %v7334 = vsel %vm246, %v7320, 0
        %v7336 = vsel %vm250, %v7330, 0
        %v7338 = vsel %vm250, %v7331, 0
        %v7340 = vsel %vm250, %v7332, 0
        %v7342 = vsel %vm250, %v7328, 0
        %7344 = vmatprep.subr.mxu0 0.0
        %7345 = vmatpush1.msra.mxu0 0.0
        %7346 = vmatprep.subr.mxu0 0.0
        %7347 = vmatpush1.msra.mxu0 0.0
        %7348 = vmatprep.subr.mxu0 0.0
        %7349 = vmatpush1.msra.mxu0 0.0
        %7350 = vmatprep.subr.mxu0 0.0
        %7351 = vmatpush1.msra.mxu0 0.0
        %7352 = vmatprep.subr.mxu0 0.0
        %7353 = vmatpush1.msra.mxu0 0.0
        %7354 = vmatprep.subr.mxu0 0.0
        %7355 = vmatpush1.msra.mxu0 0.0
        %7356 = vmatprep.subr.mxu0 0.0
        %7357 = vmatpush1.msra.mxu0 0.0
        %7358 = vmatprep.subr.mxu0 0.0
        %7359 = vmatpush1.msra.mxu0 0.0
        %7360 = vmatprep.subr.mxu0 0.0
        %7361 = vmatpush1.msra.mxu0 0.0
        %7362 = vmatprep.subr.mxu0 0.0
        %7363 = vmatpush1.msra.mxu0 0.0
        %7364 = vmatprep.subr.mxu0 0.0
        %7365 = vmatpush1.msra.mxu0 0.0
        %7366 = vmatprep.subr.mxu0 0.0
        %7367 = vmatpush1.msra.mxu0 0.0
        %7368 = vmatprep.subr.mxu0 0.0
        %7369 = vmatpush1.msra.mxu0 0.0
        %7370 = vmatprep.subr.mxu0 0.0
        %7371 = vmatpush1.msra.mxu0 0.0
        %7372 = vmatprep.subr.mxu0 0.0
        %7373 = vmatpush1.msra.mxu0 0.0
        %7374 = vmatprep.subr.mxu0 %v7338
        %7375 = vmatpush1.msra.mxu0 %v7336
        %7376 = vmatprep.subr.mxu0 0.0
        %7377 = vmatpush2.msra.mxu0 0.0
        %7378 = vmatprep.subr.mxu0 0.0
        %7379 = vmatpush2.msra.mxu0 0.0
        %7380 = vmatprep.subr.mxu0 0.0
        %7381 = vmatpush2.msra.mxu0 0.0
        %7382 = vmatprep.subr.mxu0 0.0
        %7383 = vmatpush2.msra.mxu0 0.0
        %7384 = vmatprep.subr.mxu0 0.0
        %7385 = vmatpush2.msra.mxu0 0.0
        %7386 = vmatprep.subr.mxu0 0.0
        %7387 = vmatpush2.msra.mxu0 0.0
        %7388 = vmatprep.subr.mxu0 0.0
        %7389 = vmatpush2.msra.mxu0 0.0
        %7390 = vmatprep.subr.mxu0 0.0
        %7391 = vmatpush2.msra.mxu0 0.0
        %7392 = vmatprep.subr.mxu0 0.0
        %7393 = vmatpush2.msra.mxu0 0.0
        %7394 = vmatprep.subr.mxu0 0.0
        %7395 = vmatpush2.msra.mxu0 0.0
        %7396 = vmatprep.subr.mxu0 0.0
        %7397 = vmatpush2.msra.mxu0 0.0
        %7398 = vmatprep.subr.mxu0 0.0
        %7399 = vmatpush2.msra.mxu0 0.0
        %7400 = vmatprep.subr.mxu0 0.0
        %7401 = vmatpush2.msra.mxu0 0.0
        %7402 = vmatprep.subr.mxu0 0.0
        %7403 = vmatpush2.msra.mxu0 0.0
        %7404 = vmatprep.subr.mxu0 0.0
        %7405 = vmatpush2.msra.mxu0 0.0
        %7406 = vmatprep.subr.mxu0 0.0
        %7407 = vmatpush2.msra.mxu0 0.0
        %7408 = vmatprep.mubr.f32.mxu0 0.0
        %7409 = vmatmul.mubr.f32.gmra.mxu0 %v7334
        %v7410 = vpop.f32.mrf.mxu0
        %v7411 = vadd.f32 0.0, %v7410
        %v7412 = vpop.f32.mrf.mxu0
        %v7413 = vadd.f32 0.0, %v7412
        %7414 = vdwg.mxu0
        %7415 = vmatprep.subr.mxu0 0.0
        %7416 = vmatpush1.msra.mxu0 0.0
        %7417 = vmatprep.subr.mxu0 0.0
        %7418 = vmatpush1.msra.mxu0 0.0
        %7419 = vmatprep.subr.mxu0 0.0
        %7420 = vmatpush1.msra.mxu0 0.0
        %7421 = vmatprep.subr.mxu0 0.0
        %7422 = vmatpush1.msra.mxu0 0.0
        %7423 = vmatprep.subr.mxu0 0.0
        %7424 = vmatpush1.msra.mxu0 0.0
        %7425 = vmatprep.subr.mxu0 0.0
        %7426 = vmatpush1.msra.mxu0 0.0
        %7427 = vmatprep.subr.mxu0 0.0
        %7428 = vmatpush1.msra.mxu0 0.0
        %7429 = vmatprep.subr.mxu0 0.0
        %7430 = vmatpush1.msra.mxu0 0.0
        %7431 = vmatprep.subr.mxu0 0.0
        %7432 = vmatpush1.msra.mxu0 0.0
        %7433 = vmatprep.subr.mxu0 0.0
        %7434 = vmatpush1.msra.mxu0 0.0
        %7435 = vmatprep.subr.mxu0 0.0
        %7436 = vmatpush1.msra.mxu0 0.0
        %7437 = vmatprep.subr.mxu0 0.0
        %7438 = vmatpush1.msra.mxu0 0.0
        %7439 = vmatprep.subr.mxu0 0.0
        %7440 = vmatpush1.msra.mxu0 0.0
        %7441 = vmatprep.subr.mxu0 0.0
        %7442 = vmatpush1.msra.mxu0 0.0
        %7443 = vmatprep.subr.mxu0 0.0
        %7444 = vmatpush1.msra.mxu0 0.0
        %7445 = vmatprep.subr.mxu0 %v7342
        %7446 = vmatpush1.msra.mxu0 %v7340
        %7447 = vmatprep.subr.mxu0 0.0
        %7448 = vmatpush2.msra.mxu0 0.0
        %7449 = vmatprep.subr.mxu0 0.0
        %7450 = vmatpush2.msra.mxu0 0.0
        %7451 = vmatprep.subr.mxu0 0.0
        %7452 = vmatpush2.msra.mxu0 0.0
        %7453 = vmatprep.subr.mxu0 0.0
        %7454 = vmatpush2.msra.mxu0 0.0
        %7455 = vmatprep.subr.mxu0 0.0
        %7456 = vmatpush2.msra.mxu0 0.0
        %7457 = vmatprep.subr.mxu0 0.0
        %7458 = vmatpush2.msra.mxu0 0.0
        %7459 = vmatprep.subr.mxu0 0.0
        %7460 = vmatpush2.msra.mxu0 0.0
        %7461 = vmatprep.subr.mxu0 0.0
        %7462 = vmatpush2.msra.mxu0 0.0
        %7463 = vmatprep.subr.mxu0 0.0
        %7464 = vmatpush2.msra.mxu0 0.0
        %7465 = vmatprep.subr.mxu0 0.0
        %7466 = vmatpush2.msra.mxu0 0.0
        %7467 = vmatprep.subr.mxu0 0.0
        %7468 = vmatpush2.msra.mxu0 0.0
        %7469 = vmatprep.subr.mxu0 0.0
        %7470 = vmatpush2.msra.mxu0 0.0
        %7471 = vmatprep.subr.mxu0 0.0
        %7472 = vmatpush2.msra.mxu0 0.0
        %7473 = vmatprep.subr.mxu0 0.0
        %7474 = vmatpush2.msra.mxu0 0.0
        %7475 = vmatprep.subr.mxu0 0.0
        %7476 = vmatpush2.msra.mxu0 0.0
        %7477 = vmatprep.subr.mxu0 0.0
        %7478 = vmatpush2.msra.mxu0 0.0
        %7479 = vmatprep.mubr.f32.mxu0 0.0
        %7480 = vmatmul.mubr.f32.gmra.mxu0 %v7334
        %v7481 = vpop.f32.mrf.mxu0
        %v7482 = vadd.f32 0.0, %v7481
        %v7483 = vpop.f32.mrf.mxu0
        %7484 = vdwg.mxu0
        %v7485 = vadd.f32 %v7316, %v7411
        %v7486 = vadd.f32 %v7317, %v7413
        %v7487 = vadd.f32 %v7318, %v7482
        %s7488 = scalar_lea.vmem %s3, 168
        %v7489 = vld [vmem:[%s7488] sm:$0xff]
        %7490 = vrot.lane.b32.xlu0 %v223, 47
        %v7491 = vpop.permute.xlu0 %7490
        %7492 = vrot.lane.b32.xlu0 %v232, 47
        %v7493 = vpop.permute.xlu0 %7492
        %7494 = vrot.lane.b32.xlu0 %v224, 47
        %v7495 = vpop.permute.xlu0 %7494
        %7496 = vrot.lane.b32.xlu0 %v233, 47
        %v7497 = vpop.permute.xlu0 %7496
        %vm7498 = vcmask 384000
        %v7499 = vsel %vm7498, %v7491, %v7493
        %v7500 = vsel %vm7498, %v7493, %v7495
        %v7501 = vsel %vm7498, %v7495, %v7497
        %v7503 = vsel %vm246, %v7489, 0
        %v7505 = vsel %vm250, %v7499, 0
        %v7507 = vsel %vm250, %v7500, 0
        %v7509 = vsel %vm250, %v7501, 0
        %v7511 = vsel %vm250, %v7497, 0
        %7513 = vmatprep.subr.mxu0 0.0
        %7514 = vmatpush1.msra.mxu0 0.0
        %7515 = vmatprep.subr.mxu0 0.0
        %7516 = vmatpush1.msra.mxu0 0.0
        %7517 = vmatprep.subr.mxu0 0.0
        %7518 = vmatpush1.msra.mxu0 0.0
        %7519 = vmatprep.subr.mxu0 0.0
        %7520 = vmatpush1.msra.mxu0 0.0
        %7521 = vmatprep.subr.mxu0 0.0
        %7522 = vmatpush1.msra.mxu0 0.0
        %7523 = vmatprep.subr.mxu0 0.0
        %7524 = vmatpush1.msra.mxu0 0.0
        %7525 = vmatprep.subr.mxu0 0.0
        %7526 = vmatpush1.msra.mxu0 0.0
        %7527 = vmatprep.subr.mxu0 0.0
        %7528 = vmatpush1.msra.mxu0 0.0
        %7529 = vmatprep.subr.mxu0 0.0
        %7530 = vmatpush1.msra.mxu0 0.0
        %7531 = vmatprep.subr.mxu0 0.0
        %7532 = vmatpush1.msra.mxu0 0.0
        %7533 = vmatprep.subr.mxu0 0.0
        %7534 = vmatpush1.msra.mxu0 0.0
        %7535 = vmatprep.subr.mxu0 0.0
        %7536 = vmatpush1.msra.mxu0 0.0
        %7537 = vmatprep.subr.mxu0 0.0
        %7538 = vmatpush1.msra.mxu0 0.0
        %7539 = vmatprep.subr.mxu0 0.0
        %7540 = vmatpush1.msra.mxu0 0.0
        %7541 = vmatprep.subr.mxu0 0.0
        %7542 = vmatpush1.msra.mxu0 0.0
        %7543 = vmatprep.subr.mxu0 %v7507
        %7544 = vmatpush1.msra.mxu0 %v7505
        %7545 = vmatprep.subr.mxu0 0.0
        %7546 = vmatpush2.msra.mxu0 0.0
        %7547 = vmatprep.subr.mxu0 0.0
        %7548 = vmatpush2.msra.mxu0 0.0
        %7549 = vmatprep.subr.mxu0 0.0
        %7550 = vmatpush2.msra.mxu0 0.0
        %7551 = vmatprep.subr.mxu0 0.0
        %7552 = vmatpush2.msra.mxu0 0.0
        %7553 = vmatprep.subr.mxu0 0.0
        %7554 = vmatpush2.msra.mxu0 0.0
        %7555 = vmatprep.subr.mxu0 0.0
        %7556 = vmatpush2.msra.mxu0 0.0
        %7557 = vmatprep.subr.mxu0 0.0
        %7558 = vmatpush2.msra.mxu0 0.0
        %7559 = vmatprep.subr.mxu0 0.0
        %7560 = vmatpush2.msra.mxu0 0.0
        %7561 = vmatprep.subr.mxu0 0.0
        %7562 = vmatpush2.msra.mxu0 0.0
        %7563 = vmatprep.subr.mxu0 0.0
        %7564 = vmatpush2.msra.mxu0 0.0
        %7565 = vmatprep.subr.mxu0 0.0
        %7566 = vmatpush2.msra.mxu0 0.0
        %7567 = vmatprep.subr.mxu0 0.0
        %7568 = vmatpush2.msra.mxu0 0.0
        %7569 = vmatprep.subr.mxu0 0.0
        %7570 = vmatpush2.msra.mxu0 0.0
        %7571 = vmatprep.subr.mxu0 0.0
        %7572 = vmatpush2.msra.mxu0 0.0
        %7573 = vmatprep.subr.mxu0 0.0
        %7574 = vmatpush2.msra.mxu0 0.0
        %7575 = vmatprep.subr.mxu0 0.0
        %7576 = vmatpush2.msra.mxu0 0.0
        %7577 = vmatprep.mubr.f32.mxu0 0.0
        %7578 = vmatmul.mubr.f32.gmra.mxu0 %v7503
        %v7579 = vpop.f32.mrf.mxu0
        %v7580 = vadd.f32 0.0, %v7579
        %v7581 = vpop.f32.mrf.mxu0
        %v7582 = vadd.f32 0.0, %v7581
        %7583 = vdwg.mxu0
        %7584 = vmatprep.subr.mxu0 0.0
        %7585 = vmatpush1.msra.mxu0 0.0
        %7586 = vmatprep.subr.mxu0 0.0
        %7587 = vmatpush1.msra.mxu0 0.0
        %7588 = vmatprep.subr.mxu0 0.0
        %7589 = vmatpush1.msra.mxu0 0.0
        %7590 = vmatprep.subr.mxu0 0.0
        %7591 = vmatpush1.msra.mxu0 0.0
        %7592 = vmatprep.subr.mxu0 0.0
        %7593 = vmatpush1.msra.mxu0 0.0
        %7594 = vmatprep.subr.mxu0 0.0
        %7595 = vmatpush1.msra.mxu0 0.0
        %7596 = vmatprep.subr.mxu0 0.0
        %7597 = vmatpush1.msra.mxu0 0.0
        %7598 = vmatprep.subr.mxu0 0.0
        %7599 = vmatpush1.msra.mxu0 0.0
        %7600 = vmatprep.subr.mxu0 0.0
        %7601 = vmatpush1.msra.mxu0 0.0
        %7602 = vmatprep.subr.mxu0 0.0
        %7603 = vmatpush1.msra.mxu0 0.0
        %7604 = vmatprep.subr.mxu0 0.0
        %7605 = vmatpush1.msra.mxu0 0.0
        %7606 = vmatprep.subr.mxu0 0.0
        %7607 = vmatpush1.msra.mxu0 0.0
        %7608 = vmatprep.subr.mxu0 0.0
        %7609 = vmatpush1.msra.mxu0 0.0
        %7610 = vmatprep.subr.mxu0 0.0
        %7611 = vmatpush1.msra.mxu0 0.0
        %7612 = vmatprep.subr.mxu0 0.0
        %7613 = vmatpush1.msra.mxu0 0.0
        %7614 = vmatprep.subr.mxu0 %v7511
        %7615 = vmatpush1.msra.mxu0 %v7509
        %7616 = vmatprep.subr.mxu0 0.0
        %7617 = vmatpush2.msra.mxu0 0.0
        %7618 = vmatprep.subr.mxu0 0.0
        %7619 = vmatpush2.msra.mxu0 0.0
        %7620 = vmatprep.subr.mxu0 0.0
        %7621 = vmatpush2.msra.mxu0 0.0
        %7622 = vmatprep.subr.mxu0 0.0
        %7623 = vmatpush2.msra.mxu0 0.0
        %7624 = vmatprep.subr.mxu0 0.0
        %7625 = vmatpush2.msra.mxu0 0.0
        %7626 = vmatprep.subr.mxu0 0.0
        %7627 = vmatpush2.msra.mxu0 0.0
        %7628 = vmatprep.subr.mxu0 0.0
        %7629 = vmatpush2.msra.mxu0 0.0
        %7630 = vmatprep.subr.mxu0 0.0
        %7631 = vmatpush2.msra.mxu0 0.0
        %7632 = vmatprep.subr.mxu0 0.0
        %7633 = vmatpush2.msra.mxu0 0.0
        %7634 = vmatprep.subr.mxu0 0.0
        %7635 = vmatpush2.msra.mxu0 0.0
        %7636 = vmatprep.subr.mxu0 0.0
        %7637 = vmatpush2.msra.mxu0 0.0
        %7638 = vmatprep.subr.mxu0 0.0
        %7639 = vmatpush2.msra.mxu0 0.0
        %7640 = vmatprep.subr.mxu0 0.0
        %7641 = vmatpush2.msra.mxu0 0.0
        %7642 = vmatprep.subr.mxu0 0.0
        %7643 = vmatpush2.msra.mxu0 0.0
        %7644 = vmatprep.subr.mxu0 0.0
        %7645 = vmatpush2.msra.mxu0 0.0
        %7646 = vmatprep.subr.mxu0 0.0
        %7647 = vmatpush2.msra.mxu0 0.0
        %7648 = vmatprep.mubr.f32.mxu0 0.0
        %7649 = vmatmul.mubr.f32.gmra.mxu0 %v7503
        %v7650 = vpop.f32.mrf.mxu0
        %v7651 = vadd.f32 0.0, %v7650
        %v7652 = vpop.f32.mrf.mxu0
        %7653 = vdwg.mxu0
        %v7654 = vadd.f32 %v7485, %v7580
        %v7655 = vadd.f32 %v7486, %v7582
        %v7656 = vadd.f32 %v7487, %v7651
        %s7657 = scalar_lea.vmem %s3, 176
        %v7658 = vld [vmem:[%s7657] sm:$0xff]
        %7659 = vrot.lane.b32.xlu0 %v223, 46
        %v7660 = vpop.permute.xlu0 %7659
        %7661 = vrot.lane.b32.xlu0 %v232, 46
        %v7662 = vpop.permute.xlu0 %7661
        %7663 = vrot.lane.b32.xlu0 %v224, 46
        %v7664 = vpop.permute.xlu0 %7663
        %7665 = vrot.lane.b32.xlu0 %v233, 46
        %v7666 = vpop.permute.xlu0 %7665
        %vm7667 = vcmask 375808
        %v7668 = vsel %vm7667, %v7660, %v7662
        %v7669 = vsel %vm7667, %v7662, %v7664
        %v7670 = vsel %vm7667, %v7664, %v7666
        %v7672 = vsel %vm246, %v7658, 0
        %v7674 = vsel %vm250, %v7668, 0
        %v7676 = vsel %vm250, %v7669, 0
        %v7678 = vsel %vm250, %v7670, 0
        %v7680 = vsel %vm250, %v7666, 0
        %7682 = vmatprep.subr.mxu0 0.0
        %7683 = vmatpush1.msra.mxu0 0.0
        %7684 = vmatprep.subr.mxu0 0.0
        %7685 = vmatpush1.msra.mxu0 0.0
        %7686 = vmatprep.subr.mxu0 0.0
        %7687 = vmatpush1.msra.mxu0 0.0
        %7688 = vmatprep.subr.mxu0 0.0
        %7689 = vmatpush1.msra.mxu0 0.0
        %7690 = vmatprep.subr.mxu0 0.0
        %7691 = vmatpush1.msra.mxu0 0.0
        %7692 = vmatprep.subr.mxu0 0.0
        %7693 = vmatpush1.msra.mxu0 0.0
        %7694 = vmatprep.subr.mxu0 0.0
        %7695 = vmatpush1.msra.mxu0 0.0
        %7696 = vmatprep.subr.mxu0 0.0
        %7697 = vmatpush1.msra.mxu0 0.0
        %7698 = vmatprep.subr.mxu0 0.0
        %7699 = vmatpush1.msra.mxu0 0.0
        %7700 = vmatprep.subr.mxu0 0.0
        %7701 = vmatpush1.msra.mxu0 0.0
        %7702 = vmatprep.subr.mxu0 0.0
        %7703 = vmatpush1.msra.mxu0 0.0
        %7704 = vmatprep.subr.mxu0 0.0
        %7705 = vmatpush1.msra.mxu0 0.0
        %7706 = vmatprep.subr.mxu0 0.0
        %7707 = vmatpush1.msra.mxu0 0.0
        %7708 = vmatprep.subr.mxu0 0.0
        %7709 = vmatpush1.msra.mxu0 0.0
        %7710 = vmatprep.subr.mxu0 0.0
        %7711 = vmatpush1.msra.mxu0 0.0
        %7712 = vmatprep.subr.mxu0 %v7676
        %7713 = vmatpush1.msra.mxu0 %v7674
        %7714 = vmatprep.subr.mxu0 0.0
        %7715 = vmatpush2.msra.mxu0 0.0
        %7716 = vmatprep.subr.mxu0 0.0
        %7717 = vmatpush2.msra.mxu0 0.0
        %7718 = vmatprep.subr.mxu0 0.0
        %7719 = vmatpush2.msra.mxu0 0.0
        %7720 = vmatprep.subr.mxu0 0.0
        %7721 = vmatpush2.msra.mxu0 0.0
        %7722 = vmatprep.subr.mxu0 0.0
        %7723 = vmatpush2.msra.mxu0 0.0
        %7724 = vmatprep.subr.mxu0 0.0
        %7725 = vmatpush2.msra.mxu0 0.0
        %7726 = vmatprep.subr.mxu0 0.0
        %7727 = vmatpush2.msra.mxu0 0.0
        %7728 = vmatprep.subr.mxu0 0.0
        %7729 = vmatpush2.msra.mxu0 0.0
        %7730 = vmatprep.subr.mxu0 0.0
        %7731 = vmatpush2.msra.mxu0 0.0
        %7732 = vmatprep.subr.mxu0 0.0
        %7733 = vmatpush2.msra.mxu0 0.0
        %7734 = vmatprep.subr.mxu0 0.0
        %7735 = vmatpush2.msra.mxu0 0.0
        %7736 = vmatprep.subr.mxu0 0.0
        %7737 = vmatpush2.msra.mxu0 0.0
        %7738 = vmatprep.subr.mxu0 0.0
        %7739 = vmatpush2.msra.mxu0 0.0
        %7740 = vmatprep.subr.mxu0 0.0
        %7741 = vmatpush2.msra.mxu0 0.0
        %7742 = vmatprep.subr.mxu0 0.0
        %7743 = vmatpush2.msra.mxu0 0.0
        %7744 = vmatprep.subr.mxu0 0.0
        %7745 = vmatpush2.msra.mxu0 0.0
        %7746 = vmatprep.mubr.f32.mxu0 0.0
        %7747 = vmatmul.mubr.f32.gmra.mxu0 %v7672
        %v7748 = vpop.f32.mrf.mxu0
        %v7749 = vadd.f32 0.0, %v7748
        %v7750 = vpop.f32.mrf.mxu0
        %v7751 = vadd.f32 0.0, %v7750
        %7752 = vdwg.mxu0
        %7753 = vmatprep.subr.mxu0 0.0
        %7754 = vmatpush1.msra.mxu0 0.0
        %7755 = vmatprep.subr.mxu0 0.0
        %7756 = vmatpush1.msra.mxu0 0.0
        %7757 = vmatprep.subr.mxu0 0.0
        %7758 = vmatpush1.msra.mxu0 0.0
        %7759 = vmatprep.subr.mxu0 0.0
        %7760 = vmatpush1.msra.mxu0 0.0
        %7761 = vmatprep.subr.mxu0 0.0
        %7762 = vmatpush1.msra.mxu0 0.0
        %7763 = vmatprep.subr.mxu0 0.0
        %7764 = vmatpush1.msra.mxu0 0.0
        %7765 = vmatprep.subr.mxu0 0.0
        %7766 = vmatpush1.msra.mxu0 0.0
        %7767 = vmatprep.subr.mxu0 0.0
        %7768 = vmatpush1.msra.mxu0 0.0
        %7769 = vmatprep.subr.mxu0 0.0
        %7770 = vmatpush1.msra.mxu0 0.0
        %7771 = vmatprep.subr.mxu0 0.0
        %7772 = vmatpush1.msra.mxu0 0.0
        %7773 = vmatprep.subr.mxu0 0.0
        %7774 = vmatpush1.msra.mxu0 0.0
        %7775 = vmatprep.subr.mxu0 0.0
        %7776 = vmatpush1.msra.mxu0 0.0
        %7777 = vmatprep.subr.mxu0 0.0
        %7778 = vmatpush1.msra.mxu0 0.0
        %7779 = vmatprep.subr.mxu0 0.0
        %7780 = vmatpush1.msra.mxu0 0.0
        %7781 = vmatprep.subr.mxu0 0.0
        %7782 = vmatpush1.msra.mxu0 0.0
        %7783 = vmatprep.subr.mxu0 %v7680
        %7784 = vmatpush1.msra.mxu0 %v7678
        %7785 = vmatprep.subr.mxu0 0.0
        %7786 = vmatpush2.msra.mxu0 0.0
        %7787 = vmatprep.subr.mxu0 0.0
        %7788 = vmatpush2.msra.mxu0 0.0
        %7789 = vmatprep.subr.mxu0 0.0
        %7790 = vmatpush2.msra.mxu0 0.0
        %7791 = vmatprep.subr.mxu0 0.0
        %7792 = vmatpush2.msra.mxu0 0.0
        %7793 = vmatprep.subr.mxu0 0.0
        %7794 = vmatpush2.msra.mxu0 0.0
        %7795 = vmatprep.subr.mxu0 0.0
        %7796 = vmatpush2.msra.mxu0 0.0
        %7797 = vmatprep.subr.mxu0 0.0
        %7798 = vmatpush2.msra.mxu0 0.0
        %7799 = vmatprep.subr.mxu0 0.0
        %7800 = vmatpush2.msra.mxu0 0.0
        %7801 = vmatprep.subr.mxu0 0.0
        %7802 = vmatpush2.msra.mxu0 0.0
        %7803 = vmatprep.subr.mxu0 0.0
        %7804 = vmatpush2.msra.mxu0 0.0
        %7805 = vmatprep.subr.mxu0 0.0
        %7806 = vmatpush2.msra.mxu0 0.0
        %7807 = vmatprep.subr.mxu0 0.0
        %7808 = vmatpush2.msra.mxu0 0.0
        %7809 = vmatprep.subr.mxu0 0.0
        %7810 = vmatpush2.msra.mxu0 0.0
        %7811 = vmatprep.subr.mxu0 0.0
        %7812 = vmatpush2.msra.mxu0 0.0
        %7813 = vmatprep.subr.mxu0 0.0
        %7814 = vmatpush2.msra.mxu0 0.0
        %7815 = vmatprep.subr.mxu0 0.0
        %7816 = vmatpush2.msra.mxu0 0.0
        %7817 = vmatprep.mubr.f32.mxu0 0.0
        %7818 = vmatmul.mubr.f32.gmra.mxu0 %v7672
        %v7819 = vpop.f32.mrf.mxu0
        %v7820 = vadd.f32 0.0, %v7819
        %v7821 = vpop.f32.mrf.mxu0
        %7822 = vdwg.mxu0
        %v7823 = vadd.f32 %v7654, %v7749
        %v7824 = vadd.f32 %v7655, %v7751
        %v7825 = vadd.f32 %v7656, %v7820
        %s7826 = scalar_lea.vmem %s3, 184
        %v7827 = vld [vmem:[%s7826] sm:$0xff]
        %7828 = vrot.lane.b32.xlu0 %v223, 45
        %v7829 = vpop.permute.xlu0 %7828
        %7830 = vrot.lane.b32.xlu0 %v232, 45
        %v7831 = vpop.permute.xlu0 %7830
        %7832 = vrot.lane.b32.xlu0 %v224, 45
        %v7833 = vpop.permute.xlu0 %7832
        %7834 = vrot.lane.b32.xlu0 %v233, 45
        %v7835 = vpop.permute.xlu0 %7834
        %vm7836 = vcmask 367616
        %v7837 = vsel %vm7836, %v7829, %v7831
        %v7838 = vsel %vm7836, %v7831, %v7833
        %v7839 = vsel %vm7836, %v7833, %v7835
        %v7841 = vsel %vm246, %v7827, 0
        %v7843 = vsel %vm250, %v7837, 0
        %v7845 = vsel %vm250, %v7838, 0
        %v7847 = vsel %vm250, %v7839, 0
        %v7849 = vsel %vm250, %v7835, 0
        %7851 = vmatprep.subr.mxu0 0.0
        %7852 = vmatpush1.msra.mxu0 0.0
        %7853 = vmatprep.subr.mxu0 0.0
        %7854 = vmatpush1.msra.mxu0 0.0
        %7855 = vmatprep.subr.mxu0 0.0
        %7856 = vmatpush1.msra.mxu0 0.0
        %7857 = vmatprep.subr.mxu0 0.0
        %7858 = vmatpush1.msra.mxu0 0.0
        %7859 = vmatprep.subr.mxu0 0.0
        %7860 = vmatpush1.msra.mxu0 0.0
        %7861 = vmatprep.subr.mxu0 0.0
        %7862 = vmatpush1.msra.mxu0 0.0
        %7863 = vmatprep.subr.mxu0 0.0
        %7864 = vmatpush1.msra.mxu0 0.0
        %7865 = vmatprep.subr.mxu0 0.0
        %7866 = vmatpush1.msra.mxu0 0.0
        %7867 = vmatprep.subr.mxu0 0.0
        %7868 = vmatpush1.msra.mxu0 0.0
        %7869 = vmatprep.subr.mxu0 0.0
        %7870 = vmatpush1.msra.mxu0 0.0
        %7871 = vmatprep.subr.mxu0 0.0
        %7872 = vmatpush1.msra.mxu0 0.0
        %7873 = vmatprep.subr.mxu0 0.0
        %7874 = vmatpush1.msra.mxu0 0.0
        %7875 = vmatprep.subr.mxu0 0.0
        %7876 = vmatpush1.msra.mxu0 0.0
        %7877 = vmatprep.subr.mxu0 0.0
        %7878 = vmatpush1.msra.mxu0 0.0
        %7879 = vmatprep.subr.mxu0 0.0
        %7880 = vmatpush1.msra.mxu0 0.0
        %7881 = vmatprep.subr.mxu0 %v7845
        %7882 = vmatpush1.msra.mxu0 %v7843
        %7883 = vmatprep.subr.mxu0 0.0
        %7884 = vmatpush2.msra.mxu0 0.0
        %7885 = vmatprep.subr.mxu0 0.0
        %7886 = vmatpush2.msra.mxu0 0.0
        %7887 = vmatprep.subr.mxu0 0.0
        %7888 = vmatpush2.msra.mxu0 0.0
        %7889 = vmatprep.subr.mxu0 0.0
        %7890 = vmatpush2.msra.mxu0 0.0
        %7891 = vmatprep.subr.mxu0 0.0
        %7892 = vmatpush2.msra.mxu0 0.0
        %7893 = vmatprep.subr.mxu0 0.0
        %7894 = vmatpush2.msra.mxu0 0.0
        %7895 = vmatprep.subr.mxu0 0.0
        %7896 = vmatpush2.msra.mxu0 0.0
        %7897 = vmatprep.subr.mxu0 0.0
        %7898 = vmatpush2.msra.mxu0 0.0
        %7899 = vmatprep.subr.mxu0 0.0
        %7900 = vmatpush2.msra.mxu0 0.0
        %7901 = vmatprep.subr.mxu0 0.0
        %7902 = vmatpush2.msra.mxu0 0.0
        %7903 = vmatprep.subr.mxu0 0.0
        %7904 = vmatpush2.msra.mxu0 0.0
        %7905 = vmatprep.subr.mxu0 0.0
        %7906 = vmatpush2.msra.mxu0 0.0
        %7907 = vmatprep.subr.mxu0 0.0
        %7908 = vmatpush2.msra.mxu0 0.0
        %7909 = vmatprep.subr.mxu0 0.0
        %7910 = vmatpush2.msra.mxu0 0.0
        %7911 = vmatprep.subr.mxu0 0.0
        %7912 = vmatpush2.msra.mxu0 0.0
        %7913 = vmatprep.subr.mxu0 0.0
        %7914 = vmatpush2.msra.mxu0 0.0
        %7915 = vmatprep.mubr.f32.mxu0 0.0
        %7916 = vmatmul.mubr.f32.gmra.mxu0 %v7841
        %v7917 = vpop.f32.mrf.mxu0
        %v7918 = vadd.f32 0.0, %v7917
        %v7919 = vpop.f32.mrf.mxu0
        %v7920 = vadd.f32 0.0, %v7919
        %7921 = vdwg.mxu0
        %7922 = vmatprep.subr.mxu0 0.0
        %7923 = vmatpush1.msra.mxu0 0.0
        %7924 = vmatprep.subr.mxu0 0.0
        %7925 = vmatpush1.msra.mxu0 0.0
        %7926 = vmatprep.subr.mxu0 0.0
        %7927 = vmatpush1.msra.mxu0 0.0
        %7928 = vmatprep.subr.mxu0 0.0
        %7929 = vmatpush1.msra.mxu0 0.0
        %7930 = vmatprep.subr.mxu0 0.0
        %7931 = vmatpush1.msra.mxu0 0.0
        %7932 = vmatprep.subr.mxu0 0.0
        %7933 = vmatpush1.msra.mxu0 0.0
        %7934 = vmatprep.subr.mxu0 0.0
        %7935 = vmatpush1.msra.mxu0 0.0
        %7936 = vmatprep.subr.mxu0 0.0
        %7937 = vmatpush1.msra.mxu0 0.0
        %7938 = vmatprep.subr.mxu0 0.0
        %7939 = vmatpush1.msra.mxu0 0.0
        %7940 = vmatprep.subr.mxu0 0.0
        %7941 = vmatpush1.msra.mxu0 0.0
        %7942 = vmatprep.subr.mxu0 0.0
        %7943 = vmatpush1.msra.mxu0 0.0
        %7944 = vmatprep.subr.mxu0 0.0
        %7945 = vmatpush1.msra.mxu0 0.0
        %7946 = vmatprep.subr.mxu0 0.0
        %7947 = vmatpush1.msra.mxu0 0.0
        %7948 = vmatprep.subr.mxu0 0.0
        %7949 = vmatpush1.msra.mxu0 0.0
        %7950 = vmatprep.subr.mxu0 0.0
        %7951 = vmatpush1.msra.mxu0 0.0
        %7952 = vmatprep.subr.mxu0 %v7849
        %7953 = vmatpush1.msra.mxu0 %v7847
        %7954 = vmatprep.subr.mxu0 0.0
        %7955 = vmatpush2.msra.mxu0 0.0
        %7956 = vmatprep.subr.mxu0 0.0
        %7957 = vmatpush2.msra.mxu0 0.0
        %7958 = vmatprep.subr.mxu0 0.0
        %7959 = vmatpush2.msra.mxu0 0.0
        %7960 = vmatprep.subr.mxu0 0.0
        %7961 = vmatpush2.msra.mxu0 0.0
        %7962 = vmatprep.subr.mxu0 0.0
        %7963 = vmatpush2.msra.mxu0 0.0
        %7964 = vmatprep.subr.mxu0 0.0
        %7965 = vmatpush2.msra.mxu0 0.0
        %7966 = vmatprep.subr.mxu0 0.0
        %7967 = vmatpush2.msra.mxu0 0.0
        %7968 = vmatprep.subr.mxu0 0.0
        %7969 = vmatpush2.msra.mxu0 0.0
        %7970 = vmatprep.subr.mxu0 0.0
        %7971 = vmatpush2.msra.mxu0 0.0
        %7972 = vmatprep.subr.mxu0 0.0
        %7973 = vmatpush2.msra.mxu0 0.0
        %7974 = vmatprep.subr.mxu0 0.0
        %7975 = vmatpush2.msra.mxu0 0.0
        %7976 = vmatprep.subr.mxu0 0.0
        %7977 = vmatpush2.msra.mxu0 0.0
        %7978 = vmatprep.subr.mxu0 0.0
        %7979 = vmatpush2.msra.mxu0 0.0
        %7980 = vmatprep.subr.mxu0 0.0
        %7981 = vmatpush2.msra.mxu0 0.0
        %7982 = vmatprep.subr.mxu0 0.0
        %7983 = vmatpush2.msra.mxu0 0.0
        %7984 = vmatprep.subr.mxu0 0.0
        %7985 = vmatpush2.msra.mxu0 0.0
        %7986 = vmatprep.mubr.f32.mxu0 0.0
        %7987 = vmatmul.mubr.f32.gmra.mxu0 %v7841
        %v7988 = vpop.f32.mrf.mxu0
        %v7989 = vadd.f32 0.0, %v7988
        %v7990 = vpop.f32.mrf.mxu0
        %7991 = vdwg.mxu0
        %v7992 = vadd.f32 %v7823, %v7918
        %v7993 = vadd.f32 %v7824, %v7920
        %v7994 = vadd.f32 %v7825, %v7989
        %s7995 = scalar_lea.vmem %s3, 192
        %v7996 = vld [vmem:[%s7995] sm:$0xff]
        %7997 = vrot.lane.b32.xlu0 %v223, 44
        %v7998 = vpop.permute.xlu0 %7997
        %7999 = vrot.lane.b32.xlu0 %v232, 44
        %v8000 = vpop.permute.xlu0 %7999
        %8001 = vrot.lane.b32.xlu0 %v224, 44
        %v8002 = vpop.permute.xlu0 %8001
        %8003 = vrot.lane.b32.xlu0 %v233, 44
        %v8004 = vpop.permute.xlu0 %8003
        %vm8005 = vcmask 359424
        %v8006 = vsel %vm8005, %v7998, %v8000
        %v8007 = vsel %vm8005, %v8000, %v8002
        %v8008 = vsel %vm8005, %v8002, %v8004
        %v8010 = vsel %vm246, %v7996, 0
        %v8012 = vsel %vm250, %v8006, 0
        %v8014 = vsel %vm250, %v8007, 0
        %v8016 = vsel %vm250, %v8008, 0
        %v8018 = vsel %vm250, %v8004, 0
        %8020 = vmatprep.subr.mxu0 0.0
        %8021 = vmatpush1.msra.mxu0 0.0
        %8022 = vmatprep.subr.mxu0 0.0
        %8023 = vmatpush1.msra.mxu0 0.0
        %8024 = vmatprep.subr.mxu0 0.0
        %8025 = vmatpush1.msra.mxu0 0.0
        %8026 = vmatprep.subr.mxu0 0.0
        %8027 = vmatpush1.msra.mxu0 0.0
        %8028 = vmatprep.subr.mxu0 0.0
        %8029 = vmatpush1.msra.mxu0 0.0
        %8030 = vmatprep.subr.mxu0 0.0
        %8031 = vmatpush1.msra.mxu0 0.0
        %8032 = vmatprep.subr.mxu0 0.0
        %8033 = vmatpush1.msra.mxu0 0.0
        %8034 = vmatprep.subr.mxu0 0.0
        %8035 = vmatpush1.msra.mxu0 0.0
        %8036 = vmatprep.subr.mxu0 0.0
        %8037 = vmatpush1.msra.mxu0 0.0
        %8038 = vmatprep.subr.mxu0 0.0
        %8039 = vmatpush1.msra.mxu0 0.0
        %8040 = vmatprep.subr.mxu0 0.0
        %8041 = vmatpush1.msra.mxu0 0.0
        %8042 = vmatprep.subr.mxu0 0.0
        %8043 = vmatpush1.msra.mxu0 0.0
        %8044 = vmatprep.subr.mxu0 0.0
        %8045 = vmatpush1.msra.mxu0 0.0
        %8046 = vmatprep.subr.mxu0 0.0
        %8047 = vmatpush1.msra.mxu0 0.0
        %8048 = vmatprep.subr.mxu0 0.0
        %8049 = vmatpush1.msra.mxu0 0.0
        %8050 = vmatprep.subr.mxu0 %v8014
        %8051 = vmatpush1.msra.mxu0 %v8012
        %8052 = vmatprep.subr.mxu0 0.0
        %8053 = vmatpush2.msra.mxu0 0.0
        %8054 = vmatprep.subr.mxu0 0.0
        %8055 = vmatpush2.msra.mxu0 0.0
        %8056 = vmatprep.subr.mxu0 0.0
        %8057 = vmatpush2.msra.mxu0 0.0
        %8058 = vmatprep.subr.mxu0 0.0
        %8059 = vmatpush2.msra.mxu0 0.0
        %8060 = vmatprep.subr.mxu0 0.0
        %8061 = vmatpush2.msra.mxu0 0.0
        %8062 = vmatprep.subr.mxu0 0.0
        %8063 = vmatpush2.msra.mxu0 0.0
        %8064 = vmatprep.subr.mxu0 0.0
        %8065 = vmatpush2.msra.mxu0 0.0
        %8066 = vmatprep.subr.mxu0 0.0
        %8067 = vmatpush2.msra.mxu0 0.0
        %8068 = vmatprep.subr.mxu0 0.0
        %8069 = vmatpush2.msra.mxu0 0.0
        %8070 = vmatprep.subr.mxu0 0.0
        %8071 = vmatpush2.msra.mxu0 0.0
        %8072 = vmatprep.subr.mxu0 0.0
        %8073 = vmatpush2.msra.mxu0 0.0
        %8074 = vmatprep.subr.mxu0 0.0
        %8075 = vmatpush2.msra.mxu0 0.0
        %8076 = vmatprep.subr.mxu0 0.0
        %8077 = vmatpush2.msra.mxu0 0.0
        %8078 = vmatprep.subr.mxu0 0.0
        %8079 = vmatpush2.msra.mxu0 0.0
        %8080 = vmatprep.subr.mxu0 0.0
        %8081 = vmatpush2.msra.mxu0 0.0
        %8082 = vmatprep.subr.mxu0 0.0
        %8083 = vmatpush2.msra.mxu0 0.0
        %8084 = vmatprep.mubr.f32.mxu0 0.0
        %8085 = vmatmul.mubr.f32.gmra.mxu0 %v8010
        %v8086 = vpop.f32.mrf.mxu0
        %v8087 = vadd.f32 0.0, %v8086
        %v8088 = vpop.f32.mrf.mxu0
        %v8089 = vadd.f32 0.0, %v8088
        %8090 = vdwg.mxu0
        %8091 = vmatprep.subr.mxu0 0.0
        %8092 = vmatpush1.msra.mxu0 0.0
        %8093 = vmatprep.subr.mxu0 0.0
        %8094 = vmatpush1.msra.mxu0 0.0
        %8095 = vmatprep.subr.mxu0 0.0
        %8096 = vmatpush1.msra.mxu0 0.0
        %8097 = vmatprep.subr.mxu0 0.0
        %8098 = vmatpush1.msra.mxu0 0.0
        %8099 = vmatprep.subr.mxu0 0.0
        %8100 = vmatpush1.msra.mxu0 0.0
        %8101 = vmatprep.subr.mxu0 0.0
        %8102 = vmatpush1.msra.mxu0 0.0
        %8103 = vmatprep.subr.mxu0 0.0
        %8104 = vmatpush1.msra.mxu0 0.0
        %8105 = vmatprep.subr.mxu0 0.0
        %8106 = vmatpush1.msra.mxu0 0.0
        %8107 = vmatprep.subr.mxu0 0.0
        %8108 = vmatpush1.msra.mxu0 0.0
        %8109 = vmatprep.subr.mxu0 0.0
        %8110 = vmatpush1.msra.mxu0 0.0
        %8111 = vmatprep.subr.mxu0 0.0
        %8112 = vmatpush1.msra.mxu0 0.0
        %8113 = vmatprep.subr.mxu0 0.0
        %8114 = vmatpush1.msra.mxu0 0.0
        %8115 = vmatprep.subr.mxu0 0.0
        %8116 = vmatpush1.msra.mxu0 0.0
        %8117 = vmatprep.subr.mxu0 0.0
        %8118 = vmatpush1.msra.mxu0 0.0
        %8119 = vmatprep.subr.mxu0 0.0
        %8120 = vmatpush1.msra.mxu0 0.0
        %8121 = vmatprep.subr.mxu0 %v8018
        %8122 = vmatpush1.msra.mxu0 %v8016
        %8123 = vmatprep.subr.mxu0 0.0
        %8124 = vmatpush2.msra.mxu0 0.0
        %8125 = vmatprep.subr.mxu0 0.0
        %8126 = vmatpush2.msra.mxu0 0.0
        %8127 = vmatprep.subr.mxu0 0.0
        %8128 = vmatpush2.msra.mxu0 0.0
        %8129 = vmatprep.subr.mxu0 0.0
        %8130 = vmatpush2.msra.mxu0 0.0
        %8131 = vmatprep.subr.mxu0 0.0
        %8132 = vmatpush2.msra.mxu0 0.0
        %8133 = vmatprep.subr.mxu0 0.0
        %8134 = vmatpush2.msra.mxu0 0.0
        %8135 = vmatprep.subr.mxu0 0.0
        %8136 = vmatpush2.msra.mxu0 0.0
        %8137 = vmatprep.subr.mxu0 0.0
        %8138 = vmatpush2.msra.mxu0 0.0
        %8139 = vmatprep.subr.mxu0 0.0
        %8140 = vmatpush2.msra.mxu0 0.0
        %8141 = vmatprep.subr.mxu0 0.0
        %8142 = vmatpush2.msra.mxu0 0.0
        %8143 = vmatprep.subr.mxu0 0.0
        %8144 = vmatpush2.msra.mxu0 0.0
        %8145 = vmatprep.subr.mxu0 0.0
        %8146 = vmatpush2.msra.mxu0 0.0
        %8147 = vmatprep.subr.mxu0 0.0
        %8148 = vmatpush2.msra.mxu0 0.0
        %8149 = vmatprep.subr.mxu0 0.0
        %8150 = vmatpush2.msra.mxu0 0.0
        %8151 = vmatprep.subr.mxu0 0.0
        %8152 = vmatpush2.msra.mxu0 0.0
        %8153 = vmatprep.subr.mxu0 0.0
        %8154 = vmatpush2.msra.mxu0 0.0
        %8155 = vmatprep.mubr.f32.mxu0 0.0
        %8156 = vmatmul.mubr.f32.gmra.mxu0 %v8010
        %v8157 = vpop.f32.mrf.mxu0
        %v8158 = vadd.f32 0.0, %v8157
        %v8159 = vpop.f32.mrf.mxu0
        %8160 = vdwg.mxu0
        %v8161 = vadd.f32 %v7992, %v8087
        %v8162 = vadd.f32 %v7993, %v8089
        %v8163 = vadd.f32 %v7994, %v8158
        %8165 = vrot.lane.b32.xlu0 %v5089, 108
        %v8166 = vpop.permute.xlu0 %8165
        %8168 = vrot.lane.b32.xlu0 %v5089, 88
        %v8169 = vpop.permute.xlu0 %8168
        %8171 = vrot.lane.b32.xlu0 %v5089, 68
        %v8172 = vpop.permute.xlu0 %8171
        %8174 = vrot.lane.b32.xlu0 %v5089, 48
        %v8175 = vpop.permute.xlu0 %8174
        %8177 = vrot.lane.b32.xlu0 %v5089, 28
        %v8178 = vpop.permute.xlu0 %8177
        %8181 = vrot.lane.b32.xlu0 %v5089, 8
        %v8182 = vpop.permute.xlu0 %8181
        %8183 = vrot.lane.b32.xlu0 %v5090, 8
        %v8184 = vpop.permute.xlu0 %8183
        %vm8185 = vcmask 64512
        %v8186 = vsel %vm8185, %v8182, %v8184
        %8188 = vrot.lane.b32.xlu0 %v5090, 116
        %v8189 = vpop.permute.xlu0 %8188
        %8191 = vrot.lane.b32.xlu0 %v5090, 96
        %v8192 = vpop.permute.xlu0 %8191
        %8194 = vrot.lane.b32.xlu0 %v5090, 76
        %v8195 = vpop.permute.xlu0 %8194
        %8197 = vrot.lane.b32.xlu0 %v5090, 56
        %v8198 = vpop.permute.xlu0 %8197
        %8200 = vrot.lane.b32.xlu0 %v5090, 36
        %v8201 = vpop.permute.xlu0 %8200
        %8204 = vrot.lane.b32.xlu0 %v5090, 16
        %v8205 = vpop.permute.xlu0 %8204
        %8206 = vrot.lane.b32.xlu0 %v5091, 16
        %v8207 = vpop.permute.xlu0 %8206
        %vm8208 = vcmask 130048
        %v8209 = vsel %vm8208, %v8205, %v8207
        %8211 = vrot.lane.b32.xlu0 %v5091, 124
        %v8212 = vpop.permute.xlu0 %8211
        %8214 = vrot.lane.b32.xlu0 %v5091, 104
        %v8215 = vpop.permute.xlu0 %8214
        %8217 = vrot.lane.b32.xlu0 %v5091, 84
        %v8218 = vpop.permute.xlu0 %8217
        %8220 = vrot.lane.b32.xlu0 %v5091, 64
        %v8221 = vpop.permute.xlu0 %8220
        %8223 = vrot.lane.b32.xlu0 %v5091, 44
        %v8224 = vpop.permute.xlu0 %8223
        %8226 = vrot.lane.b32.xlu0 %v5091, 24
        %v8227 = vpop.permute.xlu0 %8226
        %8230 = vrot.lane.b32.xlu0 %v5091, 4
        %v8231 = vpop.permute.xlu0 %8230
        %8232 = vrot.lane.b32.xlu0 %v5092, 4
        %v8233 = vpop.permute.xlu0 %8232
        %v8234 = vsel %vm246, %v8231, %v8233
        %v8236 = vcombine.low %v5089, %v8169
        %v8237 = vcombine.high %v5089, %v8169
        %v8239 = vunpack.c.l.s4 1983009808
        %v8240 = vunpack.c.0.s8 %v8239
        %v8241 = vlaneseq
        %v8242 = vshrl.u32 %v8241, 7
        %v8243 = vsub.s32 %v8240, %v8242
        %v8244 = vrot.slane %v8236, %v8243
        %v8246 = vunpack.c.l.s4 1983009808
        %v8247 = vunpack.c.0.s8 %v8246
        %v8248 = vlaneseq
        %v8249 = vshrl.u32 %v8248, 7
        %v8250 = vsub.s32 %v8247, %v8249
        %v8251 = vrot.slane %v8237, %v8250
        %v8252 = vcombine.low %v8166, %v8172
        %v8253 = vcombine.high %v8166, %v8172
        %v8255 = vunpack.c.l.s4 1983009808
        %v8256 = vunpack.c.0.s8 %v8255
        %v8257 = vlaneseq
        %v8258 = vshrl.u32 %v8257, 7
        %v8259 = vsub.s32 %v8256, %v8258
        %v8260 = vrot.slane %v8252, %v8259
        %v8262 = vunpack.c.l.s4 1983009808
        %v8263 = vunpack.c.0.s8 %v8262
        %v8264 = vlaneseq
        %v8265 = vshrl.u32 %v8264, 7
        %v8266 = vsub.s32 %v8263, %v8265
        %v8267 = vrot.slane %v8253, %v8266
        %v8268 = vcombine.low %v8175, %v8186
        %v8269 = vcombine.high %v8175, %v8186
        %v8271 = vunpack.c.l.s4 1983009808
        %v8272 = vunpack.c.0.s8 %v8271
        %v8273 = vlaneseq
        %v8274 = vshrl.u32 %v8273, 7
        %v8275 = vsub.s32 %v8272, %v8274
        %v8276 = vrot.slane %v8268, %v8275
        %v8278 = vunpack.c.l.s4 1983009808
        %v8279 = vunpack.c.0.s8 %v8278
        %v8280 = vlaneseq
        %v8281 = vshrl.u32 %v8280, 7
        %v8282 = vsub.s32 %v8279, %v8281
        %v8283 = vrot.slane %v8269, %v8282
        %v8284 = vcombine.low %v8178, %v8189
        %v8285 = vcombine.high %v8178, %v8189
        %v8287 = vunpack.c.l.s4 1983009808
        %v8288 = vunpack.c.0.s8 %v8287
        %v8289 = vlaneseq
        %v8290 = vshrl.u32 %v8289, 7
        %v8291 = vsub.s32 %v8288, %v8290
        %v8292 = vrot.slane %v8284, %v8291
        %v8294 = vunpack.c.l.s4 1983009808
        %v8295 = vunpack.c.0.s8 %v8294
        %v8296 = vlaneseq
        %v8297 = vshrl.u32 %v8296, 7
        %v8298 = vsub.s32 %v8295, %v8297
        %v8299 = vrot.slane %v8285, %v8298
        %v8300 = vcombine.low %v8244, %v8260
        %v8301 = vcombine.high %v8244, %v8260
        %v8303 = vunpack.c.l.s4 1934713408
        %v8304 = vunpack.c.0.s8 %v8303
        %v8305 = vlaneseq
        %v8306 = vshrl.u32 %v8305, 7
        %v8307 = vsub.s32 %v8304, %v8306
        %v8308 = vrot.slane %v8300, %v8307
        %v8310 = vunpack.c.l.s4 1934713408
        %v8311 = vunpack.c.0.s8 %v8310
        %v8312 = vlaneseq
        %v8313 = vshrl.u32 %v8312, 7
        %v8314 = vsub.s32 %v8311, %v8313
        %v8315 = vrot.slane %v8301, %v8314
        %v8316 = vcombine.low %v8251, %v8267
        %v8317 = vcombine.high %v8251, %v8267
        %v8319 = vunpack.c.l.s4 1934713408
        %v8320 = vunpack.c.0.s8 %v8319
        %v8321 = vlaneseq
        %v8322 = vshrl.u32 %v8321, 7
        %v8323 = vsub.s32 %v8320, %v8322
        %v8324 = vrot.slane %v8316, %v8323
        %v8326 = vunpack.c.l.s4 1934713408
        %v8327 = vunpack.c.0.s8 %v8326
        %v8328 = vlaneseq
        %v8329 = vshrl.u32 %v8328, 7
        %v8330 = vsub.s32 %v8327, %v8329
        %v8331 = vrot.slane %v8317, %v8330
        %v8332 = vcombine.low %v8276, %v8292
        %v8333 = vcombine.high %v8276, %v8292
        %v8335 = vunpack.c.l.s4 1934713408
        %v8336 = vunpack.c.0.s8 %v8335
        %v8337 = vlaneseq
        %v8338 = vshrl.u32 %v8337, 7
        %v8339 = vsub.s32 %v8336, %v8338
        %v8340 = vrot.slane %v8332, %v8339
        %v8342 = vunpack.c.l.s4 1934713408
        %v8343 = vunpack.c.0.s8 %v8342
        %v8344 = vlaneseq
        %v8345 = vshrl.u32 %v8344, 7
        %v8346 = vsub.s32 %v8343, %v8345
        %v8347 = vrot.slane %v8333, %v8346
        %v8348 = vcombine.low %v8283, %v8299
        %v8349 = vcombine.high %v8283, %v8299
        %v8351 = vunpack.c.l.s4 1934713408
        %v8352 = vunpack.c.0.s8 %v8351
        %v8353 = vlaneseq
        %v8354 = vshrl.u32 %v8353, 7
        %v8355 = vsub.s32 %v8352, %v8354
        %v8356 = vrot.slane %v8348, %v8355
        %v8358 = vunpack.c.l.s4 1934713408
        %v8359 = vunpack.c.0.s8 %v8358
        %v8360 = vlaneseq
        %v8361 = vshrl.u32 %v8360, 7
        %v8362 = vsub.s32 %v8359, %v8361
        %v8363 = vrot.slane %v8349, %v8362
        %v8364 = vcombine.low %v8308, %v8340
        %v8365 = vcombine.high %v8308, %v8340
        %v8366 = vcombine.low %v8315, %v8347
        %v8367 = vcombine.high %v8315, %v8347
        %v8368 = vcombine.low %v8324, %v8356
        %v8369 = vcombine.high %v8324, %v8356
        %v8370 = vcombine.low %v8331, %v8363
        %v8371 = vcombine.high %v8331, %v8363
        %v8372 = vcombine.low %v8192, %v8198
        %v8373 = vcombine.high %v8192, %v8198
        %v8375 = vunpack.c.l.s4 1983009808
        %v8376 = vunpack.c.0.s8 %v8375
        %v8377 = vlaneseq
        %v8378 = vshrl.u32 %v8377, 7
        %v8379 = vsub.s32 %v8376, %v8378
        %v8380 = vrot.slane %v8372, %v8379
        %v8382 = vunpack.c.l.s4 1983009808
        %v8383 = vunpack.c.0.s8 %v8382
        %v8384 = vlaneseq
        %v8385 = vshrl.u32 %v8384, 7
        %v8386 = vsub.s32 %v8383, %v8385
        %v8387 = vrot.slane %v8373, %v8386
        %v8388 = vcombine.low %v8195, %v8201
        %v8389 = vcombine.high %v8195, %v8201
        %v8391 = vunpack.c.l.s4 1983009808
        %v8392 = vunpack.c.0.s8 %v8391
        %v8393 = vlaneseq
        %v8394 = vshrl.u32 %v8393, 7
        %v8395 = vsub.s32 %v8392, %v8394
        %v8396 = vrot.slane %v8388, %v8395
        %v8398 = vunpack.c.l.s4 1983009808
        %v8399 = vunpack.c.0.s8 %v8398
        %v8400 = vlaneseq
        %v8401 = vshrl.u32 %v8400, 7
        %v8402 = vsub.s32 %v8399, %v8401
        %v8403 = vrot.slane %v8389, %v8402
        %v8404 = vcombine.low %v8209, %v8215
        %v8405 = vcombine.high %v8209, %v8215
        %v8407 = vunpack.c.l.s4 1983009808
        %v8408 = vunpack.c.0.s8 %v8407
        %v8409 = vlaneseq
        %v8410 = vshrl.u32 %v8409, 7
        %v8411 = vsub.s32 %v8408, %v8410
        %v8412 = vrot.slane %v8404, %v8411
        %v8414 = vunpack.c.l.s4 1983009808
        %v8415 = vunpack.c.0.s8 %v8414
        %v8416 = vlaneseq
        %v8417 = vshrl.u32 %v8416, 7
        %v8418 = vsub.s32 %v8415, %v8417
        %v8419 = vrot.slane %v8405, %v8418
        %v8420 = vcombine.low %v8212, %v8218
        %v8421 = vcombine.high %v8212, %v8218
        %v8423 = vunpack.c.l.s4 1983009808
        %v8424 = vunpack.c.0.s8 %v8423
        %v8425 = vlaneseq
        %v8426 = vshrl.u32 %v8425, 7
        %v8427 = vsub.s32 %v8424, %v8426
        %v8428 = vrot.slane %v8420, %v8427
        %v8430 = vunpack.c.l.s4 1983009808
        %v8431 = vunpack.c.0.s8 %v8430
        %v8432 = vlaneseq
        %v8433 = vshrl.u32 %v8432, 7
        %v8434 = vsub.s32 %v8431, %v8433
        %v8435 = vrot.slane %v8421, %v8434
        %v8436 = vcombine.low %v8380, %v8396
        %v8437 = vcombine.high %v8380, %v8396
        %v8439 = vunpack.c.l.s4 1934713408
        %v8440 = vunpack.c.0.s8 %v8439
        %v8441 = vlaneseq
        %v8442 = vshrl.u32 %v8441, 7
        %v8443 = vsub.s32 %v8440, %v8442
        %v8444 = vrot.slane %v8436, %v8443
        %v8446 = vunpack.c.l.s4 1934713408
        %v8447 = vunpack.c.0.s8 %v8446
        %v8448 = vlaneseq
        %v8449 = vshrl.u32 %v8448, 7
        %v8450 = vsub.s32 %v8447, %v8449
        %v8451 = vrot.slane %v8437, %v8450
        %v8452 = vcombine.low %v8387, %v8403
        %v8453 = vcombine.high %v8387, %v8403
        %v8455 = vunpack.c.l.s4 1934713408
        %v8456 = vunpack.c.0.s8 %v8455
        %v8457 = vlaneseq
        %v8458 = vshrl.u32 %v8457, 7
        %v8459 = vsub.s32 %v8456, %v8458
        %v8460 = vrot.slane %v8452, %v8459
        %v8462 = vunpack.c.l.s4 1934713408
        %v8463 = vunpack.c.0.s8 %v8462
        %v8464 = vlaneseq
        %v8465 = vshrl.u32 %v8464, 7
        %v8466 = vsub.s32 %v8463, %v8465
        %v8467 = vrot.slane %v8453, %v8466
        %v8468 = vcombine.low %v8412, %v8428
        %v8469 = vcombine.high %v8412, %v8428
        %v8471 = vunpack.c.l.s4 1934713408
        %v8472 = vunpack.c.0.s8 %v8471
        %v8473 = vlaneseq
        %v8474 = vshrl.u32 %v8473, 7
        %v8475 = vsub.s32 %v8472, %v8474
        %v8476 = vrot.slane %v8468, %v8475
        %v8478 = vunpack.c.l.s4 1934713408
        %v8479 = vunpack.c.0.s8 %v8478
        %v8480 = vlaneseq
        %v8481 = vshrl.u32 %v8480, 7
        %v8482 = vsub.s32 %v8479, %v8481
        %v8483 = vrot.slane %v8469, %v8482
        %v8484 = vcombine.low %v8419, %v8435
        %v8485 = vcombine.high %v8419, %v8435
        %v8487 = vunpack.c.l.s4 1934713408
        %v8488 = vunpack.c.0.s8 %v8487
        %v8489 = vlaneseq
        %v8490 = vshrl.u32 %v8489, 7
        %v8491 = vsub.s32 %v8488, %v8490
        %v8492 = vrot.slane %v8484, %v8491
        %v8494 = vunpack.c.l.s4 1934713408
        %v8495 = vunpack.c.0.s8 %v8494
        %v8496 = vlaneseq
        %v8497 = vshrl.u32 %v8496, 7
        %v8498 = vsub.s32 %v8495, %v8497
        %v8499 = vrot.slane %v8485, %v8498
        %v8500 = vcombine.low %v8444, %v8476
        %v8501 = vcombine.high %v8444, %v8476
        %v8502 = vcombine.low %v8451, %v8483
        %v8503 = vcombine.high %v8451, %v8483
        %v8504 = vcombine.low %v8460, %v8492
        %v8505 = vcombine.high %v8460, %v8492
        %v8506 = vcombine.low %v8467, %v8499
        %v8507 = vcombine.high %v8467, %v8499
        %v8508 = vcombine.low %v8221, %v8227
        %v8509 = vcombine.high %v8221, %v8227
        %v8511 = vunpack.c.l.s4 1983009808
        %v8512 = vunpack.c.0.s8 %v8511
        %v8513 = vlaneseq
        %v8514 = vshrl.u32 %v8513, 7
        %v8515 = vsub.s32 %v8512, %v8514
        %v8516 = vrot.slane %v8508, %v8515
        %v8518 = vunpack.c.l.s4 1983009808
        %v8519 = vunpack.c.0.s8 %v8518
        %v8520 = vlaneseq
        %v8521 = vshrl.u32 %v8520, 7
        %v8522 = vsub.s32 %v8519, %v8521
        %v8523 = vrot.slane %v8509, %v8522
        %v8524 = vcombine.low %v8224, %v8234
        %v8525 = vcombine.high %v8224, %v8234
        %v8527 = vunpack.c.l.s4 1983009808
        %v8528 = vunpack.c.0.s8 %v8527
        %v8529 = vlaneseq
        %v8530 = vshrl.u32 %v8529, 7
        %v8531 = vsub.s32 %v8528, %v8530
        %v8532 = vrot.slane %v8524, %v8531
        %v8534 = vunpack.c.l.s4 1983009808
        %v8535 = vunpack.c.0.s8 %v8534
        %v8536 = vlaneseq
        %v8537 = vshrl.u32 %v8536, 7
        %v8538 = vsub.s32 %v8535, %v8537
        %v8539 = vrot.slane %v8525, %v8538
        %v8540 = vcombine.low %v8516, %v8532
        %v8541 = vcombine.high %v8516, %v8532
        %v8543 = vunpack.c.l.s4 1934713408
        %v8544 = vunpack.c.0.s8 %v8543
        %v8545 = vlaneseq
        %v8546 = vshrl.u32 %v8545, 7
        %v8547 = vsub.s32 %v8544, %v8546
        %v8548 = vrot.slane %v8540, %v8547
        %v8550 = vunpack.c.l.s4 1934713408
        %v8551 = vunpack.c.0.s8 %v8550
        %v8552 = vlaneseq
        %v8553 = vshrl.u32 %v8552, 7
        %v8554 = vsub.s32 %v8551, %v8553
        %v8555 = vrot.slane %v8541, %v8554
        %v8556 = vcombine.low %v8523, %v8539
        %v8557 = vcombine.high %v8523, %v8539
        %v8559 = vunpack.c.l.s4 1934713408
        %v8560 = vunpack.c.0.s8 %v8559
        %v8561 = vlaneseq
        %v8562 = vshrl.u32 %v8561, 7
        %v8563 = vsub.s32 %v8560, %v8562
        %v8564 = vrot.slane %v8556, %v8563
        %v8566 = vunpack.c.l.s4 1934713408
        %v8567 = vunpack.c.0.s8 %v8566
        %v8568 = vlaneseq
        %v8569 = vshrl.u32 %v8568, 7
        %v8570 = vsub.s32 %v8567, %v8569
        %v8571 = vrot.slane %v8557, %v8570
        %v8572 = vcombine.high %v8548, 0.0
        %v8573 = vcombine.high %v8555, 0.0
        %v8574 = vcombine.high %v8564, 0.0
        %v8575 = vcombine.high %v8571, 0.0
        %vm8600 = vcmask 1046528
        %v8601 = vrot.slane %v8364, 1
        %v8602 = vrot.slane %v8500, 1
        %v8603 = vsel %vm8600, %v8601, %v8602
        %v8604 = vrot.slane %v8548, 1
        %v8605 = vsel %vm8600, %v8602, %v8604
        %v8606 = vrot.slane %v8365, 1
        %v8607 = vrot.slane %v8501, 1
        %v8608 = vsel %vm8600, %v8606, %v8607
        %v8609 = vrot.slane %v8572, 1
        %v8610 = vsel %vm8600, %v8607, %v8609
        %v8611 = vrot.slane %v8366, 1
        %v8612 = vrot.slane %v8502, 1
        %v8613 = vsel %vm8600, %v8611, %v8612
        %v8614 = vrot.slane %v8555, 1
        %v8615 = vsel %vm8600, %v8612, %v8614
        %v8616 = vrot.slane %v8367, 1
        %v8617 = vrot.slane %v8503, 1
        %v8618 = vsel %vm8600, %v8616, %v8617
        %v8619 = vrot.slane %v8573, 1
        %v8620 = vsel %vm8600, %v8617, %v8619
        %v8621 = vrot.slane %v8368, 1
        %v8622 = vrot.slane %v8504, 1
        %v8623 = vsel %vm8600, %v8621, %v8622
        %v8624 = vrot.slane %v8564, 1
        %v8625 = vsel %vm8600, %v8622, %v8624
        %v8626 = vrot.slane %v8369, 1
        %v8627 = vrot.slane %v8505, 1
        %v8628 = vsel %vm8600, %v8626, %v8627
        %v8629 = vrot.slane %v8574, 1
        %v8630 = vsel %vm8600, %v8627, %v8629
        %v8631 = vrot.slane %v8370, 1
        %v8632 = vrot.slane %v8506, 1
        %v8633 = vsel %vm8600, %v8631, %v8632
        %v8634 = vrot.slane %v8571, 1
        %v8635 = vsel %vm8600, %v8632, %v8634
        %v8636 = vrot.slane %v8371, 1
        %v8637 = vrot.slane %v8507, 1
        %v8638 = vsel %vm8600, %v8636, %v8637
        %v8639 = vrot.slane %v8575, 1
        %v8640 = vsel %vm8600, %v8637, %v8639
        %8641 = vrot.lane.b32.xlu0 %v8603, 127
        %v8642 = vpop.permute.xlu0 %8641
        %8643 = vrot.lane.b32.xlu0 %v8605, 127
        %v8644 = vpop.permute.xlu0 %8643
        %8645 = vrot.lane.b32.xlu0 %v8608, 127
        %v8646 = vpop.permute.xlu0 %8645
        %8647 = vrot.lane.b32.xlu0 %v8610, 127
        %v8648 = vpop.permute.xlu0 %8647
        %8649 = vrot.lane.b32.xlu0 %v8613, 127
        %v8650 = vpop.permute.xlu0 %8649
        %8651 = vrot.lane.b32.xlu0 %v8615, 127
        %v8652 = vpop.permute.xlu0 %8651
        %8653 = vrot.lane.b32.xlu0 %v8618, 127
        %v8654 = vpop.permute.xlu0 %8653
        %8655 = vrot.lane.b32.xlu0 %v8620, 127
        %v8656 = vpop.permute.xlu0 %8655
        %8657 = vrot.lane.b32.xlu0 %v8623, 127
        %v8658 = vpop.permute.xlu0 %8657
        %8659 = vrot.lane.b32.xlu0 %v8625, 127
        %v8660 = vpop.permute.xlu0 %8659
        %8661 = vrot.lane.b32.xlu0 %v8628, 127
        %v8662 = vpop.permute.xlu0 %8661
        %8663 = vrot.lane.b32.xlu0 %v8630, 127
        %v8664 = vpop.permute.xlu0 %8663
        %8665 = vrot.lane.b32.xlu0 %v8633, 127
        %v8666 = vpop.permute.xlu0 %8665
        %8667 = vrot.lane.b32.xlu0 %v8635, 127
        %v8668 = vpop.permute.xlu0 %8667
        %8669 = vrot.lane.b32.xlu0 %v8638, 127
        %v8670 = vpop.permute.xlu0 %8669
        %8671 = vrot.lane.b32.xlu0 %v8640, 127
        %v8672 = vpop.permute.xlu0 %8671
        %v8689 = vcombine.low %v8642, %v8650
        %v8690 = vcombine.high %v8642, %v8650
        %v8692 = vunpack.c.l.s4 1983009808
        %v8693 = vunpack.c.0.s8 %v8692
        %v8694 = vlaneseq
        %v8695 = vshrl.u32 %v8694, 7
        %v8696 = vsub.s32 %v8693, %v8695
        %v8697 = vrot.slane %v8689, %v8696
        %v8699 = vunpack.c.l.s4 1983009808
        %v8700 = vunpack.c.0.s8 %v8699
        %v8701 = vlaneseq
        %v8702 = vshrl.u32 %v8701, 7
        %v8703 = vsub.s32 %v8700, %v8702
        %v8704 = vrot.slane %v8690, %v8703
        %v8705 = vcombine.low %v8646, %v8654
        %v8706 = vcombine.high %v8646, %v8654
        %v8708 = vunpack.c.l.s4 1983009808
        %v8709 = vunpack.c.0.s8 %v8708
        %v8710 = vlaneseq
        %v8711 = vshrl.u32 %v8710, 7
        %v8712 = vsub.s32 %v8709, %v8711
        %v8713 = vrot.slane %v8705, %v8712
        %v8715 = vunpack.c.l.s4 1983009808
        %v8716 = vunpack.c.0.s8 %v8715
        %v8717 = vlaneseq
        %v8718 = vshrl.u32 %v8717, 7
        %v8719 = vsub.s32 %v8716, %v8718
        %v8720 = vrot.slane %v8706, %v8719
        %v8721 = vcombine.low %v8658, %v8666
        %v8722 = vcombine.high %v8658, %v8666
        %v8724 = vunpack.c.l.s4 1983009808
        %v8725 = vunpack.c.0.s8 %v8724
        %v8726 = vlaneseq
        %v8727 = vshrl.u32 %v8726, 7
        %v8728 = vsub.s32 %v8725, %v8727
        %v8729 = vrot.slane %v8721, %v8728
        %v8731 = vunpack.c.l.s4 1983009808
        %v8732 = vunpack.c.0.s8 %v8731
        %v8733 = vlaneseq
        %v8734 = vshrl.u32 %v8733, 7
        %v8735 = vsub.s32 %v8732, %v8734
        %v8736 = vrot.slane %v8722, %v8735
        %v8737 = vcombine.low %v8662, %v8670
        %v8738 = vcombine.high %v8662, %v8670
        %v8740 = vunpack.c.l.s4 1983009808
        %v8741 = vunpack.c.0.s8 %v8740
        %v8742 = vlaneseq
        %v8743 = vshrl.u32 %v8742, 7
        %v8744 = vsub.s32 %v8741, %v8743
        %v8745 = vrot.slane %v8737, %v8744
        %v8747 = vunpack.c.l.s4 1983009808
        %v8748 = vunpack.c.0.s8 %v8747
        %v8749 = vlaneseq
        %v8750 = vshrl.u32 %v8749, 7
        %v8751 = vsub.s32 %v8748, %v8750
        %v8752 = vrot.slane %v8738, %v8751
        %v8753 = vcombine.low %v8697, %v8713
        %v8754 = vcombine.high %v8697, %v8713
        %v8756 = vunpack.c.l.s4 1934713408
        %v8757 = vunpack.c.0.s8 %v8756
        %v8758 = vlaneseq
        %v8759 = vshrl.u32 %v8758, 7
        %v8760 = vsub.s32 %v8757, %v8759
        %v8761 = vrot.slane %v8753, %v8760
        %v8763 = vunpack.c.l.s4 1934713408
        %v8764 = vunpack.c.0.s8 %v8763
        %v8765 = vlaneseq
        %v8766 = vshrl.u32 %v8765, 7
        %v8767 = vsub.s32 %v8764, %v8766
        %v8768 = vrot.slane %v8754, %v8767
        %v8769 = vcombine.low %v8704, %v8720
        %v8770 = vcombine.high %v8704, %v8720
        %v8772 = vunpack.c.l.s4 1934713408
        %v8773 = vunpack.c.0.s8 %v8772
        %v8774 = vlaneseq
        %v8775 = vshrl.u32 %v8774, 7
        %v8776 = vsub.s32 %v8773, %v8775
        %v8777 = vrot.slane %v8769, %v8776
        %v8779 = vunpack.c.l.s4 1934713408
        %v8780 = vunpack.c.0.s8 %v8779
        %v8781 = vlaneseq
        %v8782 = vshrl.u32 %v8781, 7
        %v8783 = vsub.s32 %v8780, %v8782
        %v8784 = vrot.slane %v8770, %v8783
        %v8785 = vcombine.low %v8729, %v8745
        %v8786 = vcombine.high %v8729, %v8745
        %v8788 = vunpack.c.l.s4 1934713408
        %v8789 = vunpack.c.0.s8 %v8788
        %v8790 = vlaneseq
        %v8791 = vshrl.u32 %v8790, 7
        %v8792 = vsub.s32 %v8789, %v8791
        %v8793 = vrot.slane %v8785, %v8792
        %v8795 = vunpack.c.l.s4 1934713408
        %v8796 = vunpack.c.0.s8 %v8795
        %v8797 = vlaneseq
        %v8798 = vshrl.u32 %v8797, 7
        %v8799 = vsub.s32 %v8796, %v8798
        %v8800 = vrot.slane %v8786, %v8799
        %v8801 = vcombine.low %v8736, %v8752
        %v8802 = vcombine.high %v8736, %v8752
        %v8804 = vunpack.c.l.s4 1934713408
        %v8805 = vunpack.c.0.s8 %v8804
        %v8806 = vlaneseq
        %v8807 = vshrl.u32 %v8806, 7
        %v8808 = vsub.s32 %v8805, %v8807
        %v8809 = vrot.slane %v8801, %v8808
        %v8811 = vunpack.c.l.s4 1934713408
        %v8812 = vunpack.c.0.s8 %v8811
        %v8813 = vlaneseq
        %v8814 = vshrl.u32 %v8813, 7
        %v8815 = vsub.s32 %v8812, %v8814
        %v8816 = vrot.slane %v8802, %v8815
        %v8817 = vcombine.low %v8761, %v8793
        %v8818 = vcombine.high %v8761, %v8793
        %v8819 = vcombine.low %v8768, %v8800
        %v8820 = vcombine.high %v8768, %v8800
        %v8821 = vcombine.low %v8777, %v8809
        %v8822 = vcombine.high %v8777, %v8809
        %v8823 = vcombine.low %v8784, %v8816
        %v8824 = vcombine.high %v8784, %v8816
        %v8825 = vcombine.low %v8644, %v8652
        %v8826 = vcombine.high %v8644, %v8652
        %v8828 = vunpack.c.l.s4 1983009808
        %v8829 = vunpack.c.0.s8 %v8828
        %v8830 = vlaneseq
        %v8831 = vshrl.u32 %v8830, 7
        %v8832 = vsub.s32 %v8829, %v8831
        %v8833 = vrot.slane %v8825, %v8832
        %v8835 = vunpack.c.l.s4 1983009808
        %v8836 = vunpack.c.0.s8 %v8835
        %v8837 = vlaneseq
        %v8838 = vshrl.u32 %v8837, 7
        %v8839 = vsub.s32 %v8836, %v8838
        %v8840 = vrot.slane %v8826, %v8839
        %v8841 = vcombine.low %v8648, %v8656
        %v8842 = vcombine.high %v8648, %v8656
        %v8844 = vunpack.c.l.s4 1983009808
        %v8845 = vunpack.c.0.s8 %v8844
        %v8846 = vlaneseq
        %v8847 = vshrl.u32 %v8846, 7
        %v8848 = vsub.s32 %v8845, %v8847
        %v8849 = vrot.slane %v8841, %v8848
        %v8851 = vunpack.c.l.s4 1983009808
        %v8852 = vunpack.c.0.s8 %v8851
        %v8853 = vlaneseq
        %v8854 = vshrl.u32 %v8853, 7
        %v8855 = vsub.s32 %v8852, %v8854
        %v8856 = vrot.slane %v8842, %v8855
        %v8857 = vcombine.low %v8660, %v8668
        %v8858 = vcombine.high %v8660, %v8668
        %v8860 = vunpack.c.l.s4 1983009808
        %v8861 = vunpack.c.0.s8 %v8860
        %v8862 = vlaneseq
        %v8863 = vshrl.u32 %v8862, 7
        %v8864 = vsub.s32 %v8861, %v8863
        %v8865 = vrot.slane %v8857, %v8864
        %v8867 = vunpack.c.l.s4 1983009808
        %v8868 = vunpack.c.0.s8 %v8867
        %v8869 = vlaneseq
        %v8870 = vshrl.u32 %v8869, 7
        %v8871 = vsub.s32 %v8868, %v8870
        %v8872 = vrot.slane %v8858, %v8871
        %v8873 = vcombine.low %v8664, %v8672
        %v8874 = vcombine.high %v8664, %v8672
        %v8876 = vunpack.c.l.s4 1983009808
        %v8877 = vunpack.c.0.s8 %v8876
        %v8878 = vlaneseq
        %v8879 = vshrl.u32 %v8878, 7
        %v8880 = vsub.s32 %v8877, %v8879
        %v8881 = vrot.slane %v8873, %v8880
        %v8883 = vunpack.c.l.s4 1983009808
        %v8884 = vunpack.c.0.s8 %v8883
        %v8885 = vlaneseq
        %v8886 = vshrl.u32 %v8885, 7
        %v8887 = vsub.s32 %v8884, %v8886
        %v8888 = vrot.slane %v8874, %v8887
        %v8889 = vcombine.low %v8833, %v8849
        %v8890 = vcombine.high %v8833, %v8849
        %v8892 = vunpack.c.l.s4 1934713408
        %v8893 = vunpack.c.0.s8 %v8892
        %v8894 = vlaneseq
        %v8895 = vshrl.u32 %v8894, 7
        %v8896 = vsub.s32 %v8893, %v8895
        %v8897 = vrot.slane %v8889, %v8896
        %v8899 = vunpack.c.l.s4 1934713408
        %v8900 = vunpack.c.0.s8 %v8899
        %v8901 = vlaneseq
        %v8902 = vshrl.u32 %v8901, 7
        %v8903 = vsub.s32 %v8900, %v8902
        %v8904 = vrot.slane %v8890, %v8903
        %v8905 = vcombine.low %v8840, %v8856
        %v8906 = vcombine.high %v8840, %v8856
        %v8908 = vunpack.c.l.s4 1934713408
        %v8909 = vunpack.c.0.s8 %v8908
        %v8910 = vlaneseq
        %v8911 = vshrl.u32 %v8910, 7
        %v8912 = vsub.s32 %v8909, %v8911
        %v8913 = vrot.slane %v8905, %v8912
        %v8915 = vunpack.c.l.s4 1934713408
        %v8916 = vunpack.c.0.s8 %v8915
        %v8917 = vlaneseq
        %v8918 = vshrl.u32 %v8917, 7
        %v8919 = vsub.s32 %v8916, %v8918
        %v8920 = vrot.slane %v8906, %v8919
        %v8921 = vcombine.low %v8865, %v8881
        %v8922 = vcombine.high %v8865, %v8881
        %v8924 = vunpack.c.l.s4 1934713408
        %v8925 = vunpack.c.0.s8 %v8924
        %v8926 = vlaneseq
        %v8927 = vshrl.u32 %v8926, 7
        %v8928 = vsub.s32 %v8925, %v8927
        %v8929 = vrot.slane %v8921, %v8928
        %v8931 = vunpack.c.l.s4 1934713408
        %v8932 = vunpack.c.0.s8 %v8931
        %v8933 = vlaneseq
        %v8934 = vshrl.u32 %v8933, 7
        %v8935 = vsub.s32 %v8932, %v8934
        %v8936 = vrot.slane %v8922, %v8935
        %v8937 = vcombine.low %v8872, %v8888
        %v8938 = vcombine.high %v8872, %v8888
        %v8940 = vunpack.c.l.s4 1934713408
        %v8941 = vunpack.c.0.s8 %v8940
        %v8942 = vlaneseq
        %v8943 = vshrl.u32 %v8942, 7
        %v8944 = vsub.s32 %v8941, %v8943
        %v8945 = vrot.slane %v8937, %v8944
        %v8947 = vunpack.c.l.s4 1934713408
        %v8948 = vunpack.c.0.s8 %v8947
        %v8949 = vlaneseq
        %v8950 = vshrl.u32 %v8949, 7
        %v8951 = vsub.s32 %v8948, %v8950
        %v8952 = vrot.slane %v8938, %v8951
        %v8953 = vcombine.low %v8897, %v8929
        %v8954 = vcombine.high %v8897, %v8929
        %v8955 = vcombine.low %v8904, %v8936
        %v8956 = vcombine.high %v8904, %v8936
        %v8957 = vcombine.low %v8913, %v8945
        %v8958 = vcombine.high %v8913, %v8945
        %v8959 = vcombine.low %v8920, %v8952
        %v8960 = vcombine.high %v8920, %v8952
        %8962 = vrot.lane.b32.xlu0 %v8818, 16
        %v8963 = vpop.permute.xlu0 %8962
        %8966 = vrot.lane.b32.xlu0 %v8819, 32
        %v8967 = vpop.permute.xlu0 %8966
        %8970 = vrot.lane.b32.xlu0 %v8820, 48
        %v8971 = vpop.permute.xlu0 %8970
        %8974 = vrot.lane.b32.xlu0 %v8821, 64
        %v8975 = vpop.permute.xlu0 %8974
        %8978 = vrot.lane.b32.xlu0 %v8822, 80
        %v8979 = vpop.permute.xlu0 %8978
        %8982 = vrot.lane.b32.xlu0 %v8823, 96
        %v8983 = vpop.permute.xlu0 %8982
        %8986 = vrot.lane.b32.xlu0 %v8824, 112
        %v8987 = vpop.permute.xlu0 %8986
        %8990 = vrot.lane.b32.xlu0 %v8954, 16
        %v8991 = vpop.permute.xlu0 %8990
        %8994 = vrot.lane.b32.xlu0 %v8955, 32
        %v8995 = vpop.permute.xlu0 %8994
        %8998 = vrot.lane.b32.xlu0 %v8956, 48
        %v8999 = vpop.permute.xlu0 %8998
        %9002 = vrot.lane.b32.xlu0 %v8957, 64
        %v9003 = vpop.permute.xlu0 %9002
        %9006 = vrot.lane.b32.xlu0 %v8958, 80
        %v9007 = vpop.permute.xlu0 %9006
        %9010 = vrot.lane.b32.xlu0 %v8959, 96
        %v9011 = vpop.permute.xlu0 %9010
        %9014 = vrot.lane.b32.xlu0 %v8960, 112
        %v9015 = vpop.permute.xlu0 %9014
        %v9017 = vsel %vm8208, %v8817, %v8963
        %vm9018 = vcmask 261120
        %v9019 = vsel %vm9018, %v9017, %v8967
        %v9020 = vsel %vm7329, %v9019, %v8971
        %v9021 = vsel %vm7160, %v9020, %v8975
        %vm9022 = vcmask 654336
        %v9023 = vsel %vm9022, %v9021, %v8979
        %vm9024 = vcmask 785408
        %v9025 = vsel %vm9024, %v9023, %v8983
        %vm9026 = vcmask 916480
        %v9027 = vsel %vm9026, %v9025, %v8987
        %v9028 = vsel %vm8208, %v8953, %v8991
        %v9029 = vsel %vm9018, %v9028, %v8995
        %v9030 = vsel %vm7329, %v9029, %v8999
        %v9031 = vsel %vm7160, %v9030, %v9003
        %v9032 = vsel %vm9022, %v9031, %v9007
        %v9033 = vsel %vm9024, %v9032, %v9011
        %v9034 = vsel %vm9026, %v9033, %v9015
        %v9035 = vmax.f32 %v9027, 0.0
        %v9036 = vmax.f32 %v9034, 0.0
        %9038 = vrot.lane.b32.xlu0 %v6998, 108
        %v9039 = vpop.permute.xlu0 %9038
        %9041 = vrot.lane.b32.xlu0 %v6998, 88
        %v9042 = vpop.permute.xlu0 %9041
        %9044 = vrot.lane.b32.xlu0 %v6998, 68
        %v9045 = vpop.permute.xlu0 %9044
        %9047 = vrot.lane.b32.xlu0 %v6998, 48
        %v9048 = vpop.permute.xlu0 %9047
        %9050 = vrot.lane.b32.xlu0 %v6998, 28
        %v9051 = vpop.permute.xlu0 %9050
        %9054 = vrot.lane.b32.xlu0 %v6998, 8
        %v9055 = vpop.permute.xlu0 %9054
        %9056 = vrot.lane.b32.xlu0 %v6999, 8
        %v9057 = vpop.permute.xlu0 %9056
        %v9058 = vsel %vm8185, %v9055, %v9057
        %9060 = vrot.lane.b32.xlu0 %v6999, 116
        %v9061 = vpop.permute.xlu0 %9060
        %9063 = vrot.lane.b32.xlu0 %v6999, 96
        %v9064 = vpop.permute.xlu0 %9063
        %9066 = vrot.lane.b32.xlu0 %v6999, 76
        %v9067 = vpop.permute.xlu0 %9066
        %9069 = vrot.lane.b32.xlu0 %v6999, 56
        %v9070 = vpop.permute.xlu0 %9069
        %9072 = vrot.lane.b32.xlu0 %v6999, 36
        %v9073 = vpop.permute.xlu0 %9072
        %9076 = vrot.lane.b32.xlu0 %v6999, 16
        %v9077 = vpop.permute.xlu0 %9076
        %9078 = vrot.lane.b32.xlu0 %v7000, 16
        %v9079 = vpop.permute.xlu0 %9078
        %v9080 = vsel %vm8208, %v9077, %v9079
        %9082 = vrot.lane.b32.xlu0 %v7000, 124
        %v9083 = vpop.permute.xlu0 %9082
        %9085 = vrot.lane.b32.xlu0 %v7000, 104
        %v9086 = vpop.permute.xlu0 %9085
        %9088 = vrot.lane.b32.xlu0 %v7000, 84
        %v9089 = vpop.permute.xlu0 %9088
        %v9091 = vcombine.low %v6998, %v9042
        %v9092 = vcombine.high %v6998, %v9042
        %v9094 = vunpack.c.l.s4 1983009808
        %v9095 = vunpack.c.0.s8 %v9094
        %v9096 = vlaneseq
        %v9097 = vshrl.u32 %v9096, 7
        %v9098 = vsub.s32 %v9095, %v9097
        %v9099 = vrot.slane %v9091, %v9098
        %v9101 = vunpack.c.l.s4 1983009808
        %v9102 = vunpack.c.0.s8 %v9101
        %v9103 = vlaneseq
        %v9104 = vshrl.u32 %v9103, 7
        %v9105 = vsub.s32 %v9102, %v9104
        %v9106 = vrot.slane %v9092, %v9105
        %v9107 = vcombine.low %v9039, %v9045
        %v9108 = vcombine.high %v9039, %v9045
        %v9110 = vunpack.c.l.s4 1983009808
        %v9111 = vunpack.c.0.s8 %v9110
        %v9112 = vlaneseq
        %v9113 = vshrl.u32 %v9112, 7
        %v9114 = vsub.s32 %v9111, %v9113
        %v9115 = vrot.slane %v9107, %v9114
        %v9117 = vunpack.c.l.s4 1983009808
        %v9118 = vunpack.c.0.s8 %v9117
        %v9119 = vlaneseq
        %v9120 = vshrl.u32 %v9119, 7
        %v9121 = vsub.s32 %v9118, %v9120
        %v9122 = vrot.slane %v9108, %v9121
        %v9123 = vcombine.low %v9048, %v9058
        %v9124 = vcombine.high %v9048, %v9058
        %v9126 = vunpack.c.l.s4 1983009808
        %v9127 = vunpack.c.0.s8 %v9126
        %v9128 = vlaneseq
        %v9129 = vshrl.u32 %v9128, 7
        %v9130 = vsub.s32 %v9127, %v9129
        %v9131 = vrot.slane %v9123, %v9130
        %v9133 = vunpack.c.l.s4 1983009808
        %v9134 = vunpack.c.0.s8 %v9133
        %v9135 = vlaneseq
        %v9136 = vshrl.u32 %v9135, 7
        %v9137 = vsub.s32 %v9134, %v9136
        %v9138 = vrot.slane %v9124, %v9137
        %v9139 = vcombine.low %v9051, %v9061
        %v9140 = vcombine.high %v9051, %v9061
        %v9142 = vunpack.c.l.s4 1983009808
        %v9143 = vunpack.c.0.s8 %v9142
        %v9144 = vlaneseq
        %v9145 = vshrl.u32 %v9144, 7
        %v9146 = vsub.s32 %v9143, %v9145
        %v9147 = vrot.slane %v9139, %v9146
        %v9149 = vunpack.c.l.s4 1983009808
        %v9150 = vunpack.c.0.s8 %v9149
        %v9151 = vlaneseq
        %v9152 = vshrl.u32 %v9151, 7
        %v9153 = vsub.s32 %v9150, %v9152
        %v9154 = vrot.slane %v9140, %v9153
        %v9155 = vcombine.low %v9099, %v9115
        %v9156 = vcombine.high %v9099, %v9115
        %v9158 = vunpack.c.l.s4 1934713408
        %v9159 = vunpack.c.0.s8 %v9158
        %v9160 = vlaneseq
        %v9161 = vshrl.u32 %v9160, 7
        %v9162 = vsub.s32 %v9159, %v9161
        %v9163 = vrot.slane %v9155, %v9162
        %v9165 = vunpack.c.l.s4 1934713408
        %v9166 = vunpack.c.0.s8 %v9165
        %v9167 = vlaneseq
        %v9168 = vshrl.u32 %v9167, 7
        %v9169 = vsub.s32 %v9166, %v9168
        %v9170 = vrot.slane %v9156, %v9169
        %v9171 = vcombine.low %v9106, %v9122
        %v9172 = vcombine.high %v9106, %v9122
        %v9174 = vunpack.c.l.s4 1934713408
        %v9175 = vunpack.c.0.s8 %v9174
        %v9176 = vlaneseq
        %v9177 = vshrl.u32 %v9176, 7
        %v9178 = vsub.s32 %v9175, %v9177
        %v9179 = vrot.slane %v9171, %v9178
        %v9181 = vunpack.c.l.s4 1934713408
        %v9182 = vunpack.c.0.s8 %v9181
        %v9183 = vlaneseq
        %v9184 = vshrl.u32 %v9183, 7
        %v9185 = vsub.s32 %v9182, %v9184
        %v9186 = vrot.slane %v9172, %v9185
        %v9187 = vcombine.low %v9131, %v9147
        %v9188 = vcombine.high %v9131, %v9147
        %v9190 = vunpack.c.l.s4 1934713408
        %v9191 = vunpack.c.0.s8 %v9190
        %v9192 = vlaneseq
        %v9193 = vshrl.u32 %v9192, 7
        %v9194 = vsub.s32 %v9191, %v9193
        %v9195 = vrot.slane %v9187, %v9194
        %v9197 = vunpack.c.l.s4 1934713408
        %v9198 = vunpack.c.0.s8 %v9197
        %v9199 = vlaneseq
        %v9200 = vshrl.u32 %v9199, 7
        %v9201 = vsub.s32 %v9198, %v9200
        %v9202 = vrot.slane %v9188, %v9201
        %v9203 = vcombine.low %v9138, %v9154
        %v9204 = vcombine.high %v9138, %v9154
        %v9206 = vunpack.c.l.s4 1934713408
        %v9207 = vunpack.c.0.s8 %v9206
        %v9208 = vlaneseq
        %v9209 = vshrl.u32 %v9208, 7
        %v9210 = vsub.s32 %v9207, %v9209
        %v9211 = vrot.slane %v9203, %v9210
        %v9213 = vunpack.c.l.s4 1934713408
        %v9214 = vunpack.c.0.s8 %v9213
        %v9215 = vlaneseq
        %v9216 = vshrl.u32 %v9215, 7
        %v9217 = vsub.s32 %v9214, %v9216
        %v9218 = vrot.slane %v9204, %v9217
        %v9219 = vcombine.low %v9163, %v9195
        %v9220 = vcombine.high %v9163, %v9195
        %v9221 = vcombine.low %v9170, %v9202
        %v9222 = vcombine.high %v9170, %v9202
        %v9223 = vcombine.low %v9179, %v9211
        %v9224 = vcombine.high %v9179, %v9211
        %v9225 = vcombine.low %v9186, %v9218
        %v9226 = vcombine.high %v9186, %v9218
        %v9227 = vcombine.low %v9064, %v9070
        %v9228 = vcombine.high %v9064, %v9070
        %v9230 = vunpack.c.l.s4 1983009808
        %v9231 = vunpack.c.0.s8 %v9230
        %v9232 = vlaneseq
        %v9233 = vshrl.u32 %v9232, 7
        %v9234 = vsub.s32 %v9231, %v9233
        %v9235 = vrot.slane %v9227, %v9234
        %v9237 = vunpack.c.l.s4 1983009808
        %v9238 = vunpack.c.0.s8 %v9237
        %v9239 = vlaneseq
        %v9240 = vshrl.u32 %v9239, 7
        %v9241 = vsub.s32 %v9238, %v9240
        %v9242 = vrot.slane %v9228, %v9241
        %v9243 = vcombine.low %v9067, %v9073
        %v9244 = vcombine.high %v9067, %v9073
        %v9246 = vunpack.c.l.s4 1983009808
        %v9247 = vunpack.c.0.s8 %v9246
        %v9248 = vlaneseq
        %v9249 = vshrl.u32 %v9248, 7
        %v9250 = vsub.s32 %v9247, %v9249
        %v9251 = vrot.slane %v9243, %v9250
        %v9253 = vunpack.c.l.s4 1983009808
        %v9254 = vunpack.c.0.s8 %v9253
        %v9255 = vlaneseq
        %v9256 = vshrl.u32 %v9255, 7
        %v9257 = vsub.s32 %v9254, %v9256
        %v9258 = vrot.slane %v9244, %v9257
        %v9259 = vcombine.low %v9080, %v9086
        %v9260 = vcombine.high %v9080, %v9086
        %v9262 = vunpack.c.l.s4 1983009808
        %v9263 = vunpack.c.0.s8 %v9262
        %v9264 = vlaneseq
        %v9265 = vshrl.u32 %v9264, 7
        %v9266 = vsub.s32 %v9263, %v9265
        %v9267 = vrot.slane %v9259, %v9266
        %v9269 = vunpack.c.l.s4 1983009808
        %v9270 = vunpack.c.0.s8 %v9269
        %v9271 = vlaneseq
        %v9272 = vshrl.u32 %v9271, 7
        %v9273 = vsub.s32 %v9270, %v9272
        %v9274 = vrot.slane %v9260, %v9273
        %v9275 = vcombine.low %v9083, %v9089
        %v9276 = vcombine.high %v9083, %v9089
        %v9278 = vunpack.c.l.s4 1983009808
        %v9279 = vunpack.c.0.s8 %v9278
        %v9280 = vlaneseq
        %v9281 = vshrl.u32 %v9280, 7
        %v9282 = vsub.s32 %v9279, %v9281
        %v9283 = vrot.slane %v9275, %v9282
        %v9285 = vunpack.c.l.s4 1983009808
        %v9286 = vunpack.c.0.s8 %v9285
        %v9287 = vlaneseq
        %v9288 = vshrl.u32 %v9287, 7
        %v9289 = vsub.s32 %v9286, %v9288
        %v9290 = vrot.slane %v9276, %v9289
        %v9291 = vcombine.low %v9235, %v9251
        %v9292 = vcombine.high %v9235, %v9251
        %v9294 = vunpack.c.l.s4 1934713408
        %v9295 = vunpack.c.0.s8 %v9294
        %v9296 = vlaneseq
        %v9297 = vshrl.u32 %v9296, 7
        %v9298 = vsub.s32 %v9295, %v9297
        %v9299 = vrot.slane %v9291, %v9298
        %v9301 = vunpack.c.l.s4 1934713408
        %v9302 = vunpack.c.0.s8 %v9301
        %v9303 = vlaneseq
        %v9304 = vshrl.u32 %v9303, 7
        %v9305 = vsub.s32 %v9302, %v9304
        %v9306 = vrot.slane %v9292, %v9305
        %v9307 = vcombine.low %v9242, %v9258
        %v9308 = vcombine.high %v9242, %v9258
        %v9310 = vunpack.c.l.s4 1934713408
        %v9311 = vunpack.c.0.s8 %v9310
        %v9312 = vlaneseq
        %v9313 = vshrl.u32 %v9312, 7
        %v9314 = vsub.s32 %v9311, %v9313
        %v9315 = vrot.slane %v9307, %v9314
        %v9317 = vunpack.c.l.s4 1934713408
        %v9318 = vunpack.c.0.s8 %v9317
        %v9319 = vlaneseq
        %v9320 = vshrl.u32 %v9319, 7
        %v9321 = vsub.s32 %v9318, %v9320
        %v9322 = vrot.slane %v9308, %v9321
        %v9323 = vcombine.low %v9267, %v9283
        %v9324 = vcombine.high %v9267, %v9283
        %v9326 = vunpack.c.l.s4 1934713408
        %v9327 = vunpack.c.0.s8 %v9326
        %v9328 = vlaneseq
        %v9329 = vshrl.u32 %v9328, 7
        %v9330 = vsub.s32 %v9327, %v9329
        %v9331 = vrot.slane %v9323, %v9330
        %v9333 = vunpack.c.l.s4 1934713408
        %v9334 = vunpack.c.0.s8 %v9333
        %v9335 = vlaneseq
        %v9336 = vshrl.u32 %v9335, 7
        %v9337 = vsub.s32 %v9334, %v9336
        %v9338 = vrot.slane %v9324, %v9337
        %v9339 = vcombine.low %v9274, %v9290
        %v9340 = vcombine.high %v9274, %v9290
        %v9342 = vunpack.c.l.s4 1934713408
        %v9343 = vunpack.c.0.s8 %v9342
        %v9344 = vlaneseq
        %v9345 = vshrl.u32 %v9344, 7
        %v9346 = vsub.s32 %v9343, %v9345
        %v9347 = vrot.slane %v9339, %v9346
        %v9349 = vunpack.c.l.s4 1934713408
        %v9350 = vunpack.c.0.s8 %v9349
        %v9351 = vlaneseq
        %v9352 = vshrl.u32 %v9351, 7
        %v9353 = vsub.s32 %v9350, %v9352
        %v9354 = vrot.slane %v9340, %v9353
        %v9355 = vcombine.low %v9299, %v9331
        %v9356 = vcombine.high %v9299, %v9331
        %v9357 = vcombine.low %v9306, %v9338
        %v9358 = vcombine.high %v9306, %v9338
        %v9359 = vcombine.low %v9315, %v9347
        %v9360 = vcombine.high %v9315, %v9347
        %v9361 = vcombine.low %v9322, %v9354
        %v9362 = vcombine.high %v9322, %v9354
        %v9379 = vrot.slane %v9219, 1
        %v9380 = vrot.slane %v9355, 1
        %v9381 = vsel %vm8600, %v9379, %v9380
        %v9382 = vrot.slane %v9220, 1
        %v9383 = vrot.slane %v9356, 1
        %v9384 = vsel %vm8600, %v9382, %v9383
        %v9385 = vrot.slane %v9221, 1
        %v9386 = vrot.slane %v9357, 1
        %v9387 = vsel %vm8600, %v9385, %v9386
        %v9388 = vrot.slane %v9222, 1
        %v9389 = vrot.slane %v9358, 1
        %v9390 = vsel %vm8600, %v9388, %v9389
        %v9391 = vrot.slane %v9223, 1
        %v9392 = vrot.slane %v9359, 1
        %v9393 = vsel %vm8600, %v9391, %v9392
        %v9394 = vrot.slane %v9224, 1
        %v9395 = vrot.slane %v9360, 1
        %v9396 = vsel %vm8600, %v9394, %v9395
        %v9397 = vrot.slane %v9225, 1
        %v9398 = vrot.slane %v9361, 1
        %v9399 = vsel %vm8600, %v9397, %v9398
        %v9400 = vrot.slane %v9226, 1
        %v9401 = vrot.slane %v9362, 1
        %v9402 = vsel %vm8600, %v9400, %v9401
        %9403 = vrot.lane.b32.xlu0 %v9381, 127
        %v9404 = vpop.permute.xlu0 %9403
        %9405 = vrot.lane.b32.xlu0 %v9380, 127
        %v9406 = vpop.permute.xlu0 %9405
        %9407 = vrot.lane.b32.xlu0 %v9384, 127
        %v9408 = vpop.permute.xlu0 %9407
        %9409 = vrot.lane.b32.xlu0 %v9383, 127
        %v9410 = vpop.permute.xlu0 %9409
        %9411 = vrot.lane.b32.xlu0 %v9387, 127
        %v9412 = vpop.permute.xlu0 %9411
        %9413 = vrot.lane.b32.xlu0 %v9386, 127
        %v9414 = vpop.permute.xlu0 %9413
        %9415 = vrot.lane.b32.xlu0 %v9390, 127
        %v9416 = vpop.permute.xlu0 %9415
        %9417 = vrot.lane.b32.xlu0 %v9389, 127
        %v9418 = vpop.permute.xlu0 %9417
        %9419 = vrot.lane.b32.xlu0 %v9393, 127
        %v9420 = vpop.permute.xlu0 %9419
        %9421 = vrot.lane.b32.xlu0 %v9392, 127
        %v9422 = vpop.permute.xlu0 %9421
        %9423 = vrot.lane.b32.xlu0 %v9396, 127
        %v9424 = vpop.permute.xlu0 %9423
        %9425 = vrot.lane.b32.xlu0 %v9395, 127
        %v9426 = vpop.permute.xlu0 %9425
        %9427 = vrot.lane.b32.xlu0 %v9399, 127
        %v9428 = vpop.permute.xlu0 %9427
        %9429 = vrot.lane.b32.xlu0 %v9398, 127
        %v9430 = vpop.permute.xlu0 %9429
        %9431 = vrot.lane.b32.xlu0 %v9402, 127
        %v9432 = vpop.permute.xlu0 %9431
        %9433 = vrot.lane.b32.xlu0 %v9401, 127
        %v9434 = vpop.permute.xlu0 %9433
        %v9451 = vcombine.low %v9404, %v9412
        %v9452 = vcombine.high %v9404, %v9412
        %v9454 = vunpack.c.l.s4 1983009808
        %v9455 = vunpack.c.0.s8 %v9454
        %v9456 = vlaneseq
        %v9457 = vshrl.u32 %v9456, 7
        %v9458 = vsub.s32 %v9455, %v9457
        %v9459 = vrot.slane %v9451, %v9458
        %v9461 = vunpack.c.l.s4 1983009808
        %v9462 = vunpack.c.0.s8 %v9461
        %v9463 = vlaneseq
        %v9464 = vshrl.u32 %v9463, 7
        %v9465 = vsub.s32 %v9462, %v9464
        %v9466 = vrot.slane %v9452, %v9465
        %v9467 = vcombine.low %v9408, %v9416
        %v9468 = vcombine.high %v9408, %v9416
        %v9470 = vunpack.c.l.s4 1983009808
        %v9471 = vunpack.c.0.s8 %v9470
        %v9472 = vlaneseq
        %v9473 = vshrl.u32 %v9472, 7
        %v9474 = vsub.s32 %v9471, %v9473
        %v9475 = vrot.slane %v9467, %v9474
        %v9477 = vunpack.c.l.s4 1983009808
        %v9478 = vunpack.c.0.s8 %v9477
        %v9479 = vlaneseq
        %v9480 = vshrl.u32 %v9479, 7
        %v9481 = vsub.s32 %v9478, %v9480
        %v9482 = vrot.slane %v9468, %v9481
        %v9483 = vcombine.low %v9420, %v9428
        %v9484 = vcombine.high %v9420, %v9428
        %v9486 = vunpack.c.l.s4 1983009808
        %v9487 = vunpack.c.0.s8 %v9486
        %v9488 = vlaneseq
        %v9489 = vshrl.u32 %v9488, 7
        %v9490 = vsub.s32 %v9487, %v9489
        %v9491 = vrot.slane %v9483, %v9490
        %v9493 = vunpack.c.l.s4 1983009808
        %v9494 = vunpack.c.0.s8 %v9493
        %v9495 = vlaneseq
        %v9496 = vshrl.u32 %v9495, 7
        %v9497 = vsub.s32 %v9494, %v9496
        %v9498 = vrot.slane %v9484, %v9497
        %v9499 = vcombine.low %v9424, %v9432
        %v9500 = vcombine.high %v9424, %v9432
        %v9502 = vunpack.c.l.s4 1983009808
        %v9503 = vunpack.c.0.s8 %v9502
        %v9504 = vlaneseq
        %v9505 = vshrl.u32 %v9504, 7
        %v9506 = vsub.s32 %v9503, %v9505
        %v9507 = vrot.slane %v9499, %v9506
        %v9509 = vunpack.c.l.s4 1983009808
        %v9510 = vunpack.c.0.s8 %v9509
        %v9511 = vlaneseq
        %v9512 = vshrl.u32 %v9511, 7
        %v9513 = vsub.s32 %v9510, %v9512
        %v9514 = vrot.slane %v9500, %v9513
        %v9515 = vcombine.low %v9459, %v9475
        %v9516 = vcombine.high %v9459, %v9475
        %v9518 = vunpack.c.l.s4 1934713408
        %v9519 = vunpack.c.0.s8 %v9518
        %v9520 = vlaneseq
        %v9521 = vshrl.u32 %v9520, 7
        %v9522 = vsub.s32 %v9519, %v9521
        %v9523 = vrot.slane %v9515, %v9522
        %v9525 = vunpack.c.l.s4 1934713408
        %v9526 = vunpack.c.0.s8 %v9525
        %v9527 = vlaneseq
        %v9528 = vshrl.u32 %v9527, 7
        %v9529 = vsub.s32 %v9526, %v9528
        %v9530 = vrot.slane %v9516, %v9529
        %v9531 = vcombine.low %v9466, %v9482
        %v9532 = vcombine.high %v9466, %v9482
        %v9534 = vunpack.c.l.s4 1934713408
        %v9535 = vunpack.c.0.s8 %v9534
        %v9536 = vlaneseq
        %v9537 = vshrl.u32 %v9536, 7
        %v9538 = vsub.s32 %v9535, %v9537
        %v9539 = vrot.slane %v9531, %v9538
        %v9541 = vunpack.c.l.s4 1934713408
        %v9542 = vunpack.c.0.s8 %v9541
        %v9543 = vlaneseq
        %v9544 = vshrl.u32 %v9543, 7
        %v9545 = vsub.s32 %v9542, %v9544
        %v9546 = vrot.slane %v9532, %v9545
        %v9547 = vcombine.low %v9491, %v9507
        %v9548 = vcombine.high %v9491, %v9507
        %v9550 = vunpack.c.l.s4 1934713408
        %v9551 = vunpack.c.0.s8 %v9550
        %v9552 = vlaneseq
        %v9553 = vshrl.u32 %v9552, 7
        %v9554 = vsub.s32 %v9551, %v9553
        %v9555 = vrot.slane %v9547, %v9554
        %v9557 = vunpack.c.l.s4 1934713408
        %v9558 = vunpack.c.0.s8 %v9557
        %v9559 = vlaneseq
        %v9560 = vshrl.u32 %v9559, 7
        %v9561 = vsub.s32 %v9558, %v9560
        %v9562 = vrot.slane %v9548, %v9561
        %v9563 = vcombine.low %v9498, %v9514
        %v9564 = vcombine.high %v9498, %v9514
        %v9566 = vunpack.c.l.s4 1934713408
        %v9567 = vunpack.c.0.s8 %v9566
        %v9568 = vlaneseq
        %v9569 = vshrl.u32 %v9568, 7
        %v9570 = vsub.s32 %v9567, %v9569
        %v9571 = vrot.slane %v9563, %v9570
        %v9573 = vunpack.c.l.s4 1934713408
        %v9574 = vunpack.c.0.s8 %v9573
        %v9575 = vlaneseq
        %v9576 = vshrl.u32 %v9575, 7
        %v9577 = vsub.s32 %v9574, %v9576
        %v9578 = vrot.slane %v9564, %v9577
        %v9579 = vcombine.low %v9523, %v9555
        %v9580 = vcombine.high %v9523, %v9555
        %v9581 = vcombine.low %v9530, %v9562
        %v9582 = vcombine.high %v9530, %v9562
        %v9583 = vcombine.low %v9539, %v9571
        %v9584 = vcombine.high %v9539, %v9571
        %v9585 = vcombine.low %v9546, %v9578
        %v9586 = vcombine.high %v9546, %v9578
        %v9587 = vcombine.low %v9406, %v9414
        %v9588 = vcombine.high %v9406, %v9414
        %v9590 = vunpack.c.l.s4 1983009808
        %v9591 = vunpack.c.0.s8 %v9590
        %v9592 = vlaneseq
        %v9593 = vshrl.u32 %v9592, 7
        %v9594 = vsub.s32 %v9591, %v9593
        %v9595 = vrot.slane %v9587, %v9594
        %v9597 = vunpack.c.l.s4 1983009808
        %v9598 = vunpack.c.0.s8 %v9597
        %v9599 = vlaneseq
        %v9600 = vshrl.u32 %v9599, 7
        %v9601 = vsub.s32 %v9598, %v9600
        %v9602 = vrot.slane %v9588, %v9601
        %v9603 = vcombine.low %v9410, %v9418
        %v9604 = vcombine.high %v9410, %v9418
        %v9606 = vunpack.c.l.s4 1983009808
        %v9607 = vunpack.c.0.s8 %v9606
        %v9608 = vlaneseq
        %v9609 = vshrl.u32 %v9608, 7
        %v9610 = vsub.s32 %v9607, %v9609
        %v9611 = vrot.slane %v9603, %v9610
        %v9613 = vunpack.c.l.s4 1983009808
        %v9614 = vunpack.c.0.s8 %v9613
        %v9615 = vlaneseq
        %v9616 = vshrl.u32 %v9615, 7
        %v9617 = vsub.s32 %v9614, %v9616
        %v9618 = vrot.slane %v9604, %v9617
        %v9619 = vcombine.low %v9422, %v9430
        %v9620 = vcombine.high %v9422, %v9430
        %v9622 = vunpack.c.l.s4 1983009808
        %v9623 = vunpack.c.0.s8 %v9622
        %v9624 = vlaneseq
        %v9625 = vshrl.u32 %v9624, 7
        %v9626 = vsub.s32 %v9623, %v9625
        %v9627 = vrot.slane %v9619, %v9626
        %v9629 = vunpack.c.l.s4 1983009808
        %v9630 = vunpack.c.0.s8 %v9629
        %v9631 = vlaneseq
        %v9632 = vshrl.u32 %v9631, 7
        %v9633 = vsub.s32 %v9630, %v9632
        %v9634 = vrot.slane %v9620, %v9633
        %v9635 = vcombine.low %v9426, %v9434
        %v9636 = vcombine.high %v9426, %v9434
        %v9638 = vunpack.c.l.s4 1983009808
        %v9639 = vunpack.c.0.s8 %v9638
        %v9640 = vlaneseq
        %v9641 = vshrl.u32 %v9640, 7
        %v9642 = vsub.s32 %v9639, %v9641
        %v9643 = vrot.slane %v9635, %v9642
        %v9645 = vunpack.c.l.s4 1983009808
        %v9646 = vunpack.c.0.s8 %v9645
        %v9647 = vlaneseq
        %v9648 = vshrl.u32 %v9647, 7
        %v9649 = vsub.s32 %v9646, %v9648
        %v9650 = vrot.slane %v9636, %v9649
        %v9651 = vcombine.low %v9595, %v9611
        %v9652 = vcombine.high %v9595, %v9611
        %v9654 = vunpack.c.l.s4 1934713408
        %v9655 = vunpack.c.0.s8 %v9654
        %v9656 = vlaneseq
        %v9657 = vshrl.u32 %v9656, 7
        %v9658 = vsub.s32 %v9655, %v9657
        %v9659 = vrot.slane %v9651, %v9658
        %v9661 = vunpack.c.l.s4 1934713408
        %v9662 = vunpack.c.0.s8 %v9661
        %v9663 = vlaneseq
        %v9664 = vshrl.u32 %v9663, 7
        %v9665 = vsub.s32 %v9662, %v9664
        %v9666 = vrot.slane %v9652, %v9665
        %v9667 = vcombine.low %v9602, %v9618
        %v9668 = vcombine.high %v9602, %v9618
        %v9670 = vunpack.c.l.s4 1934713408
        %v9671 = vunpack.c.0.s8 %v9670
        %v9672 = vlaneseq
        %v9673 = vshrl.u32 %v9672, 7
        %v9674 = vsub.s32 %v9671, %v9673
        %v9675 = vrot.slane %v9667, %v9674
        %v9677 = vunpack.c.l.s4 1934713408
        %v9678 = vunpack.c.0.s8 %v9677
        %v9679 = vlaneseq
        %v9680 = vshrl.u32 %v9679, 7
        %v9681 = vsub.s32 %v9678, %v9680
        %v9682 = vrot.slane %v9668, %v9681
        %v9683 = vcombine.low %v9627, %v9643
        %v9684 = vcombine.high %v9627, %v9643
        %v9686 = vunpack.c.l.s4 1934713408
        %v9687 = vunpack.c.0.s8 %v9686
        %v9688 = vlaneseq
        %v9689 = vshrl.u32 %v9688, 7
        %v9690 = vsub.s32 %v9687, %v9689
        %v9691 = vrot.slane %v9683, %v9690
        %v9693 = vunpack.c.l.s4 1934713408
        %v9694 = vunpack.c.0.s8 %v9693
        %v9695 = vlaneseq
        %v9696 = vshrl.u32 %v9695, 7
        %v9697 = vsub.s32 %v9694, %v9696
        %v9698 = vrot.slane %v9684, %v9697
        %v9699 = vcombine.low %v9634, %v9650
        %v9700 = vcombine.high %v9634, %v9650
        %v9702 = vunpack.c.l.s4 1934713408
        %v9703 = vunpack.c.0.s8 %v9702
        %v9704 = vlaneseq
        %v9705 = vshrl.u32 %v9704, 7
        %v9706 = vsub.s32 %v9703, %v9705
        %v9707 = vrot.slane %v9699, %v9706
        %v9709 = vunpack.c.l.s4 1934713408
        %v9710 = vunpack.c.0.s8 %v9709
        %v9711 = vlaneseq
        %v9712 = vshrl.u32 %v9711, 7
        %v9713 = vsub.s32 %v9710, %v9712
        %v9714 = vrot.slane %v9700, %v9713
        %v9715 = vcombine.low %v9659, %v9691
        %v9716 = vcombine.high %v9659, %v9691
        %v9717 = vcombine.low %v9666, %v9698
        %v9718 = vcombine.high %v9666, %v9698
        %v9719 = vcombine.low %v9675, %v9707
        %v9720 = vcombine.high %v9675, %v9707
        %v9721 = vcombine.low %v9682, %v9714
        %9723 = vrot.lane.b32.xlu0 %v9580, 15
        %v9724 = vpop.permute.xlu0 %9723
        %9727 = vrot.lane.b32.xlu0 %v9581, 30
        %v9728 = vpop.permute.xlu0 %9727
        %9731 = vrot.lane.b32.xlu0 %v9582, 45
        %v9732 = vpop.permute.xlu0 %9731
        %9735 = vrot.lane.b32.xlu0 %v9583, 60
        %v9736 = vpop.permute.xlu0 %9735
        %9739 = vrot.lane.b32.xlu0 %v9584, 75
        %v9740 = vpop.permute.xlu0 %9739
        %9743 = vrot.lane.b32.xlu0 %v9585, 90
        %v9744 = vpop.permute.xlu0 %9743
        %9747 = vrot.lane.b32.xlu0 %v9586, 105
        %v9748 = vpop.permute.xlu0 %9747
        %9751 = vrot.lane.b32.xlu0 %v9715, 120
        %v9752 = vpop.permute.xlu0 %9751
        %9755 = vrot.lane.b32.xlu0 %v9716, 7
        %v9756 = vpop.permute.xlu0 %9755
        %9759 = vrot.lane.b32.xlu0 %v9717, 22
        %v9760 = vpop.permute.xlu0 %9759
        %9763 = vrot.lane.b32.xlu0 %v9718, 37
        %v9764 = vpop.permute.xlu0 %9763
        %9767 = vrot.lane.b32.xlu0 %v9719, 52
        %v9768 = vpop.permute.xlu0 %9767
        %9771 = vrot.lane.b32.xlu0 %v9720, 67
        %v9772 = vpop.permute.xlu0 %9771
        %9775 = vrot.lane.b32.xlu0 %v9721, 82
        %v9776 = vpop.permute.xlu0 %9775
        %vm9778 = vcmask 121856
        %v9779 = vsel %vm9778, %v9579, %v9724
        %vm9780 = vcmask 244736
        %v9781 = vsel %vm9780, %v9779, %v9728
        %v9782 = vsel %vm7836, %v9781, %v9732
        %vm9783 = vcmask 490496
        %v9784 = vsel %vm9783, %v9782, %v9736
        %vm9785 = vcmask 613376
        %v9786 = vsel %vm9785, %v9784, %v9740
        %vm9787 = vcmask 736256
        %v9788 = vsel %vm9787, %v9786, %v9744
        %v9789 = vsel %vm3507, %v9788, %v9748
        %vm9790 = vcmask 982016
        %v9791 = vsel %vm9790, %v9789, %v9752
        %vm9792 = vcmask 56320
        %v9793 = vsel %vm9792, %v9752, %v9756
        %vm9794 = vcmask 179200
        %v9795 = vsel %vm9794, %v9793, %v9760
        %vm9796 = vcmask 302080
        %v9797 = vsel %vm9796, %v9795, %v9764
        %vm9798 = vcmask 424960
        %v9799 = vsel %vm9798, %v9797, %v9768
        %v9800 = vsel %vm6206, %v9799, %v9772
        %vm9801 = vcmask 670720
        %v9802 = vsel %vm9801, %v9800, %v9776
        %v9803 = vld [vmem:[%s4] sm:$0xff]
        %v9804 = vld [vmem:[%s4 + $0x8] sm:$0xff]
        %v9805 = vld [vmem:[%s4 + $0x10] sm:$0xff]
        %v9806 = vld [vmem:[%s4 + $0x18] sm:$0xff]
        %v9807 = vld [vmem:[%s4 + $0x20] sm:$0xff]
        %v9808 = vld [vmem:[%s4 + $0x28] sm:$0xff]
        %v9809 = vld [vmem:[%s4 + $0x30] sm:$0xff]
        %v9810 = vld [vmem:[%s4 + $0x38] sm:$0xff]
        %v9811 = vld [vmem:[%s4 + $0x40] sm:$0xff]
        %v9812 = vld [vmem:[%s4 + $0x48] sm:$0xff]
        %v9813 = vld [vmem:[%s4 + $0x50] sm:$0xff]
        %v9814 = vld [vmem:[%s4 + $0x58] sm:$0xff]
        %v9815 = vld [vmem:[%s4 + $0x60] sm:$0xff]
        %v9816 = vld [vmem:[%s4 + $0x68] sm:$0xff]
        %v9817 = vld [vmem:[%s4 + $0x70] sm:$0xff]
        %v9818 = vld [vmem:[%s4 + $0x78] sm:$0xff]
        %v9819 = vld [vmem:[%s4 + $0x80] sm:$0xff]
        %v9820 = vld [vmem:[%s4 + $0x88] sm:$0xff]
        %v9821 = vld [vmem:[%s4 + $0x90] sm:$0xff]
        %v9822 = vld [vmem:[%s4 + $0x98] sm:$0xff]
        %v9823 = vld [vmem:[%s4 + $0xa0] sm:$0xff]
        %v9824 = vld [vmem:[%s4 + $0xa8] sm:$0xff]
        %v9825 = vld [vmem:[%s4 + $0xb0] sm:$0xff]
        %v9826 = vld [vmem:[%s4 + $0xb8] sm:$0xff]
        %v9827 = vld [vmem:[%s4 + $0xc0] sm:$0xff]
        %v9828 = vld [vmem:[%s4 + $0xc8] sm:$0xff]
        %v9829 = vld [vmem:[%s4 + $0xd0] sm:$0xff]
        %v9830 = vld [vmem:[%s4 + $0xd8] sm:$0xff]
        %v9831 = vld [vmem:[%s4 + $0xe0] sm:$0xff]
        %v9832 = vld [vmem:[%s4 + $0xe8] sm:$0xff]
        %v9833 = vld [vmem:[%s4 + $0xf0] sm:$0xff]
        %v9834 = vld [vmem:[%s4 + $0xf8] sm:$0xff]
        %v9835 = vld [vmem:[%s4 + $0x100] sm:$0xff]
        %v9836 = vld [vmem:[%s4 + $0x108] sm:$0xff]
        %v9837 = vld [vmem:[%s4 + $0x110] sm:$0xff]
        %v9838 = vld [vmem:[%s4 + $0x118] sm:$0xff]
        %v9839 = vld [vmem:[%s4 + $0x120] sm:$0xff]
        %v9840 = vld [vmem:[%s4 + $0x128] sm:$0xff]
        %v9841 = vld [vmem:[%s4 + $0x130] sm:$0xff]
        %v9842 = vld [vmem:[%s4 + $0x138] sm:$0xff]
        %v9843 = vld [vmem:[%s4 + $0x140] sm:$0xff]
        %v9844 = vld [vmem:[%s4 + $0x148] sm:$0xff]
        %v9845 = vld [vmem:[%s4 + $0x150] sm:$0xff]
        %v9846 = vld [vmem:[%s4 + $0x158] sm:$0xff]
        %v9847 = vld [vmem:[%s4 + $0x160] sm:$0xff]
        %v9848 = vld [vmem:[%s4 + $0x168] sm:$0xff]
        %v9849 = vld [vmem:[%s4 + $0x170] sm:$0xff]
        %v9850 = vld [vmem:[%s4 + $0x178] sm:$0xff]
        %v9851 = vld [vmem:[%s4 + $0x180] sm:$0xff]
        %v9852 = vld [vmem:[%s4 + $0x188] sm:$0xff]
        %v9853 = vld [vmem:[%s4 + $0x190] sm:$0xff]
        %v9854 = vld [vmem:[%s4 + $0x198] sm:$0xff]
        %v9855 = vld [vmem:[%s4 + $0x1a0] sm:$0xff]
        %v9856 = vld [vmem:[%s4 + $0x1a8] sm:$0xff]
        %v9857 = vld [vmem:[%s4 + $0x1b0] sm:$0xff]
        %v9858 = vld [vmem:[%s4 + $0x1b8] sm:$0xff]
        %v9859 = vld [vmem:[%s4 + $0x1c0] sm:$0x1]
        %v9860 = vld [vmem:[%s4 + $0x1c8] sm:$0x1]
        %vm9861 = vcmask 793600
        %v9863 = vsel %vm9861, %v9802, 0
        %vm9865 = vcmask 1040384
        %v9867 = vsel %vm9865, %v9859, 0
        %v9870 = vsel %vm9865, %v9860, 0
        %9872 = vmatprep.subr.mxu0 %v9834
        %9873 = vmatpush1.msra.mxu0 %v9833
        %9874 = vmatprep.subr.mxu0 %v9832
        %9875 = vmatpush1.msra.mxu0 %v9831
        %9876 = vmatprep.subr.mxu0 %v9830
        %9877 = vmatpush1.msra.mxu0 %v9829
        %9878 = vmatprep.subr.mxu0 %v9828
        %9879 = vmatpush1.msra.mxu0 %v9827
        %9880 = vmatprep.subr.mxu0 %v9826
        %9881 = vmatpush1.msra.mxu0 %v9825
        %9882 = vmatprep.subr.mxu0 %v9824
        %9883 = vmatpush1.msra.mxu0 %v9823
        %9884 = vmatprep.subr.mxu0 %v9822
        %9885 = vmatpush1.msra.mxu0 %v9821
        %9886 = vmatprep.subr.mxu0 %v9820
        %9887 = vmatpush1.msra.mxu0 %v9819
        %9888 = vmatprep.subr.mxu0 %v9818
        %9889 = vmatpush1.msra.mxu0 %v9817
        %9890 = vmatprep.subr.mxu0 %v9816
        %9891 = vmatpush1.msra.mxu0 %v9815
        %9892 = vmatprep.subr.mxu0 %v9814
        %9893 = vmatpush1.msra.mxu0 %v9813
        %9894 = vmatprep.subr.mxu0 %v9812
        %9895 = vmatpush1.msra.mxu0 %v9811
        %9896 = vmatprep.subr.mxu0 %v9810
        %9897 = vmatpush1.msra.mxu0 %v9809
        %9898 = vmatprep.subr.mxu0 %v9808
        %9899 = vmatpush1.msra.mxu0 %v9807
        %9900 = vmatprep.subr.mxu0 %v9806
        %9901 = vmatpush1.msra.mxu0 %v9805
        %9902 = vmatprep.subr.mxu0 %v9804
        %9903 = vmatpush1.msra.mxu0 %v9803
        %9904 = vmatprep.subr.mxu0 0.0
        %9905 = vmatpush2.msra.mxu0 0.0
        %9906 = vmatprep.subr.mxu0 0.0
        %9907 = vmatpush2.msra.mxu0 0.0
        %9908 = vmatprep.subr.mxu0 0.0
        %9909 = vmatpush2.msra.mxu0 0.0
        %9910 = vmatprep.subr.mxu0 %v9870
        %9911 = vmatpush2.msra.mxu0 %v9867
        %9912 = vmatprep.subr.mxu0 %v9858
        %9913 = vmatpush2.msra.mxu0 %v9857
        %9914 = vmatprep.subr.mxu0 %v9856
        %9915 = vmatpush2.msra.mxu0 %v9855
        %9916 = vmatprep.subr.mxu0 %v9854
        %9917 = vmatpush2.msra.mxu0 %v9853
        %9918 = vmatprep.subr.mxu0 %v9852
        %9919 = vmatpush2.msra.mxu0 %v9851
        %9920 = vmatprep.subr.mxu0 %v9850
        %9921 = vmatpush2.msra.mxu0 %v9849
        %9922 = vmatprep.subr.mxu0 %v9848
        %9923 = vmatpush2.msra.mxu0 %v9847
        %9924 = vmatprep.subr.mxu0 %v9846
        %9925 = vmatpush2.msra.mxu0 %v9845
        %9926 = vmatprep.subr.mxu0 %v9844
        %9927 = vmatpush2.msra.mxu0 %v9843
        %9928 = vmatprep.subr.mxu0 %v9842
        %9929 = vmatpush2.msra.mxu0 %v9841
        %9930 = vmatprep.subr.mxu0 %v9840
        %9931 = vmatpush2.msra.mxu0 %v9839
        %9932 = vmatprep.subr.mxu0 %v9838
        %9933 = vmatpush2.msra.mxu0 %v9837
        %9934 = vmatprep.subr.mxu0 %v9836
        %9935 = vmatpush2.msra.mxu0 %v9835
        %9936 = vmatprep.mubr.f32.mxu0 %v9863
        %9937 = vmatmul.mubr.f32.gmra.mxu0 %v9791
        %v9938 = vpop.f32.mrf.mxu0
        %v9939 = vadd.f32 0.0, %v9938
        %v9940 = vpop.f32.mrf.mxu0
        %v9941 = vadd.f32 0.0, %v9940
        %9942 = vdwg.mxu0
        %v9943 = vadd.f32 %v9035, %v9939
        %v9944 = vadd.f32 %v9036, %v9941
        %v9945 = vmax.f32 %v9943, 0.0
        %v9946 = vmax.f32 %v9944, 0.0
        %9948 = vrot.lane.b32.xlu0 %v8161, 108
        %v9949 = vpop.permute.xlu0 %9948
        %9951 = vrot.lane.b32.xlu0 %v8161, 88
        %v9952 = vpop.permute.xlu0 %9951
        %9954 = vrot.lane.b32.xlu0 %v8161, 68
        %v9955 = vpop.permute.xlu0 %9954
        %9957 = vrot.lane.b32.xlu0 %v8161, 48
        %v9958 = vpop.permute.xlu0 %9957
        %9960 = vrot.lane.b32.xlu0 %v8161, 28
        %v9961 = vpop.permute.xlu0 %9960
        %9964 = vrot.lane.b32.xlu0 %v8161, 8
        %v9965 = vpop.permute.xlu0 %9964
        %9966 = vrot.lane.b32.xlu0 %v8162, 8
        %v9967 = vpop.permute.xlu0 %9966
        %v9968 = vsel %vm8185, %v9965, %v9967
        %9970 = vrot.lane.b32.xlu0 %v8162, 116
        %v9971 = vpop.permute.xlu0 %9970
        %9973 = vrot.lane.b32.xlu0 %v8162, 96
        %v9974 = vpop.permute.xlu0 %9973
        %9976 = vrot.lane.b32.xlu0 %v8162, 76
        %v9977 = vpop.permute.xlu0 %9976
        %9979 = vrot.lane.b32.xlu0 %v8162, 56
        %v9980 = vpop.permute.xlu0 %9979
        %9982 = vrot.lane.b32.xlu0 %v8162, 36
        %v9983 = vpop.permute.xlu0 %9982
        %9986 = vrot.lane.b32.xlu0 %v8162, 16
        %v9987 = vpop.permute.xlu0 %9986
        %9988 = vrot.lane.b32.xlu0 %v8163, 16
        %v9989 = vpop.permute.xlu0 %9988
        %v9990 = vsel %vm8208, %v9987, %v9989
        %9992 = vrot.lane.b32.xlu0 %v8163, 124
        %v9993 = vpop.permute.xlu0 %9992
        %9995 = vrot.lane.b32.xlu0 %v8163, 104
        %v9996 = vpop.permute.xlu0 %9995
        %9998 = vrot.lane.b32.xlu0 %v8163, 84
        %v9999 = vpop.permute.xlu0 %9998
        %v10001 = vcombine.low %v8161, %v9952
        %v10002 = vcombine.high %v8161, %v9952
        %v10004 = vunpack.c.l.s4 1983009808
        %v10005 = vunpack.c.0.s8 %v10004
        %v10006 = vlaneseq
        %v10007 = vshrl.u32 %v10006, 7
        %v10008 = vsub.s32 %v10005, %v10007
        %v10009 = vrot.slane %v10001, %v10008
        %v10011 = vunpack.c.l.s4 1983009808
        %v10012 = vunpack.c.0.s8 %v10011
        %v10013 = vlaneseq
        %v10014 = vshrl.u32 %v10013, 7
        %v10015 = vsub.s32 %v10012, %v10014
        %v10016 = vrot.slane %v10002, %v10015
        %v10017 = vcombine.low %v9949, %v9955
        %v10018 = vcombine.high %v9949, %v9955
        %v10020 = vunpack.c.l.s4 1983009808
        %v10021 = vunpack.c.0.s8 %v10020
        %v10022 = vlaneseq
        %v10023 = vshrl.u32 %v10022, 7
        %v10024 = vsub.s32 %v10021, %v10023
        %v10025 = vrot.slane %v10017, %v10024
        %v10027 = vunpack.c.l.s4 1983009808
        %v10028 = vunpack.c.0.s8 %v10027
        %v10029 = vlaneseq
        %v10030 = vshrl.u32 %v10029, 7
        %v10031 = vsub.s32 %v10028, %v10030
        %v10032 = vrot.slane %v10018, %v10031
        %v10033 = vcombine.low %v9958, %v9968
        %v10034 = vcombine.high %v9958, %v9968
        %v10036 = vunpack.c.l.s4 1983009808
        %v10037 = vunpack.c.0.s8 %v10036
        %v10038 = vlaneseq
        %v10039 = vshrl.u32 %v10038, 7
        %v10040 = vsub.s32 %v10037, %v10039
        %v10041 = vrot.slane %v10033, %v10040
        %v10043 = vunpack.c.l.s4 1983009808
        %v10044 = vunpack.c.0.s8 %v10043
        %v10045 = vlaneseq
        %v10046 = vshrl.u32 %v10045, 7
        %v10047 = vsub.s32 %v10044, %v10046
        %v10048 = vrot.slane %v10034, %v10047
        %v10049 = vcombine.low %v9961, %v9971
        %v10050 = vcombine.high %v9961, %v9971
        %v10052 = vunpack.c.l.s4 1983009808
        %v10053 = vunpack.c.0.s8 %v10052
        %v10054 = vlaneseq
        %v10055 = vshrl.u32 %v10054, 7
        %v10056 = vsub.s32 %v10053, %v10055
        %v10057 = vrot.slane %v10049, %v10056
        %v10059 = vunpack.c.l.s4 1983009808
        %v10060 = vunpack.c.0.s8 %v10059
        %v10061 = vlaneseq
        %v10062 = vshrl.u32 %v10061, 7
        %v10063 = vsub.s32 %v10060, %v10062
        %v10064 = vrot.slane %v10050, %v10063
        %v10065 = vcombine.low %v10009, %v10025
        %v10066 = vcombine.high %v10009, %v10025
        %v10068 = vunpack.c.l.s4 1934713408
        %v10069 = vunpack.c.0.s8 %v10068
        %v10070 = vlaneseq
        %v10071 = vshrl.u32 %v10070, 7
        %v10072 = vsub.s32 %v10069, %v10071
        %v10073 = vrot.slane %v10065, %v10072
        %v10075 = vunpack.c.l.s4 1934713408
        %v10076 = vunpack.c.0.s8 %v10075
        %v10077 = vlaneseq
        %v10078 = vshrl.u32 %v10077, 7
        %v10079 = vsub.s32 %v10076, %v10078
        %v10080 = vrot.slane %v10066, %v10079
        %v10081 = vcombine.low %v10016, %v10032
        %v10082 = vcombine.high %v10016, %v10032
        %v10084 = vunpack.c.l.s4 1934713408
        %v10085 = vunpack.c.0.s8 %v10084
        %v10086 = vlaneseq
        %v10087 = vshrl.u32 %v10086, 7
        %v10088 = vsub.s32 %v10085, %v10087
        %v10089 = vrot.slane %v10081, %v10088
        %v10091 = vunpack.c.l.s4 1934713408
        %v10092 = vunpack.c.0.s8 %v10091
        %v10093 = vlaneseq
        %v10094 = vshrl.u32 %v10093, 7
        %v10095 = vsub.s32 %v10092, %v10094
        %v10096 = vrot.slane %v10082, %v10095
        %v10097 = vcombine.low %v10041, %v10057
        %v10098 = vcombine.high %v10041, %v10057
        %v10100 = vunpack.c.l.s4 1934713408
        %v10101 = vunpack.c.0.s8 %v10100
        %v10102 = vlaneseq
        %v10103 = vshrl.u32 %v10102, 7
        %v10104 = vsub.s32 %v10101, %v10103
        %v10105 = vrot.slane %v10097, %v10104
        %v10107 = vunpack.c.l.s4 1934713408
        %v10108 = vunpack.c.0.s8 %v10107
        %v10109 = vlaneseq
        %v10110 = vshrl.u32 %v10109, 7
        %v10111 = vsub.s32 %v10108, %v10110
        %v10112 = vrot.slane %v10098, %v10111
        %v10113 = vcombine.low %v10048, %v10064
        %v10114 = vcombine.high %v10048, %v10064
        %v10116 = vunpack.c.l.s4 1934713408
        %v10117 = vunpack.c.0.s8 %v10116
        %v10118 = vlaneseq
        %v10119 = vshrl.u32 %v10118, 7
        %v10120 = vsub.s32 %v10117, %v10119
        %v10121 = vrot.slane %v10113, %v10120
        %v10123 = vunpack.c.l.s4 1934713408
        %v10124 = vunpack.c.0.s8 %v10123
        %v10125 = vlaneseq
        %v10126 = vshrl.u32 %v10125, 7
        %v10127 = vsub.s32 %v10124, %v10126
        %v10128 = vrot.slane %v10114, %v10127
        %v10129 = vcombine.low %v10073, %v10105
        %v10130 = vcombine.high %v10073, %v10105
        %v10131 = vcombine.low %v10080, %v10112
        %v10132 = vcombine.high %v10080, %v10112
        %v10133 = vcombine.low %v10089, %v10121
        %v10134 = vcombine.high %v10089, %v10121
        %v10135 = vcombine.low %v10096, %v10128
        %v10136 = vcombine.high %v10096, %v10128
        %v10137 = vcombine.low %v9974, %v9980
        %v10138 = vcombine.high %v9974, %v9980
        %v10140 = vunpack.c.l.s4 1983009808
        %v10141 = vunpack.c.0.s8 %v10140
        %v10142 = vlaneseq
        %v10143 = vshrl.u32 %v10142, 7
        %v10144 = vsub.s32 %v10141, %v10143
        %v10145 = vrot.slane %v10137, %v10144
        %v10147 = vunpack.c.l.s4 1983009808
        %v10148 = vunpack.c.0.s8 %v10147
        %v10149 = vlaneseq
        %v10150 = vshrl.u32 %v10149, 7
        %v10151 = vsub.s32 %v10148, %v10150
        %v10152 = vrot.slane %v10138, %v10151
        %v10153 = vcombine.low %v9977, %v9983
        %v10154 = vcombine.high %v9977, %v9983
        %v10156 = vunpack.c.l.s4 1983009808
        %v10157 = vunpack.c.0.s8 %v10156
        %v10158 = vlaneseq
        %v10159 = vshrl.u32 %v10158, 7
        %v10160 = vsub.s32 %v10157, %v10159
        %v10161 = vrot.slane %v10153, %v10160
        %v10163 = vunpack.c.l.s4 1983009808
        %v10164 = vunpack.c.0.s8 %v10163
        %v10165 = vlaneseq
        %v10166 = vshrl.u32 %v10165, 7
        %v10167 = vsub.s32 %v10164, %v10166
        %v10168 = vrot.slane %v10154, %v10167
        %v10169 = vcombine.low %v9990, %v9996
        %v10170 = vcombine.high %v9990, %v9996
        %v10172 = vunpack.c.l.s4 1983009808
        %v10173 = vunpack.c.0.s8 %v10172
        %v10174 = vlaneseq
        %v10175 = vshrl.u32 %v10174, 7
        %v10176 = vsub.s32 %v10173, %v10175
        %v10177 = vrot.slane %v10169, %v10176
        %v10179 = vunpack.c.l.s4 1983009808
        %v10180 = vunpack.c.0.s8 %v10179
        %v10181 = vlaneseq
        %v10182 = vshrl.u32 %v10181, 7
        %v10183 = vsub.s32 %v10180, %v10182
        %v10184 = vrot.slane %v10170, %v10183
        %v10185 = vcombine.low %v9993, %v9999
        %v10186 = vcombine.high %v9993, %v9999
        %v10188 = vunpack.c.l.s4 1983009808
        %v10189 = vunpack.c.0.s8 %v10188
        %v10190 = vlaneseq
        %v10191 = vshrl.u32 %v10190, 7
        %v10192 = vsub.s32 %v10189, %v10191
        %v10193 = vrot.slane %v10185, %v10192
        %v10195 = vunpack.c.l.s4 1983009808
        %v10196 = vunpack.c.0.s8 %v10195
        %v10197 = vlaneseq
        %v10198 = vshrl.u32 %v10197, 7
        %v10199 = vsub.s32 %v10196, %v10198
        %v10200 = vrot.slane %v10186, %v10199
        %v10201 = vcombine.low %v10145, %v10161
        %v10202 = vcombine.high %v10145, %v10161
        %v10204 = vunpack.c.l.s4 1934713408
        %v10205 = vunpack.c.0.s8 %v10204
        %v10206 = vlaneseq
        %v10207 = vshrl.u32 %v10206, 7
        %v10208 = vsub.s32 %v10205, %v10207
        %v10209 = vrot.slane %v10201, %v10208
        %v10211 = vunpack.c.l.s4 1934713408
        %v10212 = vunpack.c.0.s8 %v10211
        %v10213 = vlaneseq
        %v10214 = vshrl.u32 %v10213, 7
        %v10215 = vsub.s32 %v10212, %v10214
        %v10216 = vrot.slane %v10202, %v10215
        %v10217 = vcombine.low %v10152, %v10168
        %v10218 = vcombine.high %v10152, %v10168
        %v10220 = vunpack.c.l.s4 1934713408
        %v10221 = vunpack.c.0.s8 %v10220
        %v10222 = vlaneseq
        %v10223 = vshrl.u32 %v10222, 7
        %v10224 = vsub.s32 %v10221, %v10223
        %v10225 = vrot.slane %v10217, %v10224
        %v10227 = vunpack.c.l.s4 1934713408
        %v10228 = vunpack.c.0.s8 %v10227
        %v10229 = vlaneseq
        %v10230 = vshrl.u32 %v10229, 7
        %v10231 = vsub.s32 %v10228, %v10230
        %v10232 = vrot.slane %v10218, %v10231
        %v10233 = vcombine.low %v10177, %v10193
        %v10234 = vcombine.high %v10177, %v10193
        %v10236 = vunpack.c.l.s4 1934713408
        %v10237 = vunpack.c.0.s8 %v10236
        %v10238 = vlaneseq
        %v10239 = vshrl.u32 %v10238, 7
        %v10240 = vsub.s32 %v10237, %v10239
        %v10241 = vrot.slane %v10233, %v10240
        %v10243 = vunpack.c.l.s4 1934713408
        %v10244 = vunpack.c.0.s8 %v10243
        %v10245 = vlaneseq
        %v10246 = vshrl.u32 %v10245, 7
        %v10247 = vsub.s32 %v10244, %v10246
        %v10248 = vrot.slane %v10234, %v10247
        %v10249 = vcombine.low %v10184, %v10200
        %v10250 = vcombine.high %v10184, %v10200
        %v10252 = vunpack.c.l.s4 1934713408
        %v10253 = vunpack.c.0.s8 %v10252
        %v10254 = vlaneseq
        %v10255 = vshrl.u32 %v10254, 7
        %v10256 = vsub.s32 %v10253, %v10255
        %v10257 = vrot.slane %v10249, %v10256
        %v10259 = vunpack.c.l.s4 1934713408
        %v10260 = vunpack.c.0.s8 %v10259
        %v10261 = vlaneseq
        %v10262 = vshrl.u32 %v10261, 7
        %v10263 = vsub.s32 %v10260, %v10262
        %v10264 = vrot.slane %v10250, %v10263
        %v10265 = vcombine.low %v10209, %v10241
        %v10266 = vcombine.high %v10209, %v10241
        %v10267 = vcombine.low %v10216, %v10248
        %v10268 = vcombine.high %v10216, %v10248
        %v10269 = vcombine.low %v10225, %v10257
        %v10270 = vcombine.high %v10225, %v10257
        %v10271 = vcombine.low %v10232, %v10264
        %v10272 = vcombine.high %v10232, %v10264
        %v10273 = vcombine.low %v10129, %v10131
        %v10274 = vcombine.high %v10129, %v10131
        %v10276 = vunpack.c.l.s4 1983009808
        %v10277 = vunpack.c.0.s8 %v10276
        %v10278 = vlaneseq
        %v10279 = vshrl.u32 %v10278, 7
        %v10280 = vsub.s32 %v10277, %v10279
        %v10281 = vrot.slane %v10273, %v10280
        %v10283 = vunpack.c.l.s4 1983009808
        %v10284 = vunpack.c.0.s8 %v10283
        %v10285 = vlaneseq
        %v10286 = vshrl.u32 %v10285, 7
        %v10287 = vsub.s32 %v10284, %v10286
        %v10288 = vrot.slane %v10274, %v10287
        %v10289 = vcombine.low %v10130, %v10132
        %v10290 = vcombine.high %v10130, %v10132
        %v10292 = vunpack.c.l.s4 1983009808
        %v10293 = vunpack.c.0.s8 %v10292
        %v10294 = vlaneseq
        %v10295 = vshrl.u32 %v10294, 7
        %v10296 = vsub.s32 %v10293, %v10295
        %v10297 = vrot.slane %v10289, %v10296
        %v10299 = vunpack.c.l.s4 1983009808
        %v10300 = vunpack.c.0.s8 %v10299
        %v10301 = vlaneseq
        %v10302 = vshrl.u32 %v10301, 7
        %v10303 = vsub.s32 %v10300, %v10302
        %v10304 = vrot.slane %v10290, %v10303
        %v10305 = vcombine.low %v10133, %v10135
        %v10306 = vcombine.high %v10133, %v10135
        %v10308 = vunpack.c.l.s4 1983009808
        %v10309 = vunpack.c.0.s8 %v10308
        %v10310 = vlaneseq
        %v10311 = vshrl.u32 %v10310, 7
        %v10312 = vsub.s32 %v10309, %v10311
        %v10313 = vrot.slane %v10305, %v10312
        %v10315 = vunpack.c.l.s4 1983009808
        %v10316 = vunpack.c.0.s8 %v10315
        %v10317 = vlaneseq
        %v10318 = vshrl.u32 %v10317, 7
        %v10319 = vsub.s32 %v10316, %v10318
        %v10320 = vrot.slane %v10306, %v10319
        %v10321 = vcombine.low %v10134, %v10136
        %v10322 = vcombine.high %v10134, %v10136
        %v10324 = vunpack.c.l.s4 1983009808
        %v10325 = vunpack.c.0.s8 %v10324
        %v10326 = vlaneseq
        %v10327 = vshrl.u32 %v10326, 7
        %v10328 = vsub.s32 %v10325, %v10327
        %v10329 = vrot.slane %v10321, %v10328
        %v10331 = vunpack.c.l.s4 1983009808
        %v10332 = vunpack.c.0.s8 %v10331
        %v10333 = vlaneseq
        %v10334 = vshrl.u32 %v10333, 7
        %v10335 = vsub.s32 %v10332, %v10334
        %v10336 = vrot.slane %v10322, %v10335
        %v10337 = vcombine.low %v10281, %v10297
        %v10338 = vcombine.high %v10281, %v10297
        %v10340 = vunpack.c.l.s4 1934713408
        %v10341 = vunpack.c.0.s8 %v10340
        %v10342 = vlaneseq
        %v10343 = vshrl.u32 %v10342, 7
        %v10344 = vsub.s32 %v10341, %v10343
        %v10345 = vrot.slane %v10337, %v10344
        %v10347 = vunpack.c.l.s4 1934713408
        %v10348 = vunpack.c.0.s8 %v10347
        %v10349 = vlaneseq
        %v10350 = vshrl.u32 %v10349, 7
        %v10351 = vsub.s32 %v10348, %v10350
        %v10352 = vrot.slane %v10338, %v10351
        %v10353 = vcombine.low %v10288, %v10304
        %v10354 = vcombine.high %v10288, %v10304
        %v10356 = vunpack.c.l.s4 1934713408
        %v10357 = vunpack.c.0.s8 %v10356
        %v10358 = vlaneseq
        %v10359 = vshrl.u32 %v10358, 7
        %v10360 = vsub.s32 %v10357, %v10359
        %v10361 = vrot.slane %v10353, %v10360
        %v10363 = vunpack.c.l.s4 1934713408
        %v10364 = vunpack.c.0.s8 %v10363
        %v10365 = vlaneseq
        %v10366 = vshrl.u32 %v10365, 7
        %v10367 = vsub.s32 %v10364, %v10366
        %v10368 = vrot.slane %v10354, %v10367
        %v10369 = vcombine.low %v10313, %v10329
        %v10370 = vcombine.high %v10313, %v10329
        %v10372 = vunpack.c.l.s4 1934713408
        %v10373 = vunpack.c.0.s8 %v10372
        %v10374 = vlaneseq
        %v10375 = vshrl.u32 %v10374, 7
        %v10376 = vsub.s32 %v10373, %v10375
        %v10377 = vrot.slane %v10369, %v10376
        %v10379 = vunpack.c.l.s4 1934713408
        %v10380 = vunpack.c.0.s8 %v10379
        %v10381 = vlaneseq
        %v10382 = vshrl.u32 %v10381, 7
        %v10383 = vsub.s32 %v10380, %v10382
        %v10384 = vrot.slane %v10370, %v10383
        %v10385 = vcombine.low %v10320, %v10336
        %v10386 = vcombine.high %v10320, %v10336
        %v10388 = vunpack.c.l.s4 1934713408
        %v10389 = vunpack.c.0.s8 %v10388
        %v10390 = vlaneseq
        %v10391 = vshrl.u32 %v10390, 7
        %v10392 = vsub.s32 %v10389, %v10391
        %v10393 = vrot.slane %v10385, %v10392
        %v10395 = vunpack.c.l.s4 1934713408
        %v10396 = vunpack.c.0.s8 %v10395
        %v10397 = vlaneseq
        %v10398 = vshrl.u32 %v10397, 7
        %v10399 = vsub.s32 %v10396, %v10398
        %v10400 = vrot.slane %v10386, %v10399
        %v10401 = vcombine.low %v10345, %v10377
        %v10402 = vcombine.high %v10345, %v10377
        %v10403 = vcombine.low %v10352, %v10384
        %v10404 = vcombine.high %v10352, %v10384
        %v10405 = vcombine.low %v10361, %v10393
        %v10406 = vcombine.high %v10361, %v10393
        %v10407 = vcombine.low %v10368, %v10400
        %v10408 = vcombine.high %v10368, %v10400
        %v10409 = vcombine.low %v10265, %v10267
        %v10410 = vcombine.high %v10265, %v10267
        %v10412 = vunpack.c.l.s4 1983009808
        %v10413 = vunpack.c.0.s8 %v10412
        %v10414 = vlaneseq
        %v10415 = vshrl.u32 %v10414, 7
        %v10416 = vsub.s32 %v10413, %v10415
        %v10417 = vrot.slane %v10409, %v10416
        %v10419 = vunpack.c.l.s4 1983009808
        %v10420 = vunpack.c.0.s8 %v10419
        %v10421 = vlaneseq
        %v10422 = vshrl.u32 %v10421, 7
        %v10423 = vsub.s32 %v10420, %v10422
        %v10424 = vrot.slane %v10410, %v10423
        %v10425 = vcombine.low %v10266, %v10268
        %v10426 = vcombine.high %v10266, %v10268
        %v10428 = vunpack.c.l.s4 1983009808
        %v10429 = vunpack.c.0.s8 %v10428
        %v10430 = vlaneseq
        %v10431 = vshrl.u32 %v10430, 7
        %v10432 = vsub.s32 %v10429, %v10431
        %v10433 = vrot.slane %v10425, %v10432
        %v10435 = vunpack.c.l.s4 1983009808
        %v10436 = vunpack.c.0.s8 %v10435
        %v10437 = vlaneseq
        %v10438 = vshrl.u32 %v10437, 7
        %v10439 = vsub.s32 %v10436, %v10438
        %v10440 = vrot.slane %v10426, %v10439
        %v10441 = vcombine.low %v10269, %v10271
        %v10442 = vcombine.high %v10269, %v10271
        %v10444 = vunpack.c.l.s4 1983009808
        %v10445 = vunpack.c.0.s8 %v10444
        %v10446 = vlaneseq
        %v10447 = vshrl.u32 %v10446, 7
        %v10448 = vsub.s32 %v10445, %v10447
        %v10449 = vrot.slane %v10441, %v10448
        %v10451 = vunpack.c.l.s4 1983009808
        %v10452 = vunpack.c.0.s8 %v10451
        %v10453 = vlaneseq
        %v10454 = vshrl.u32 %v10453, 7
        %v10455 = vsub.s32 %v10452, %v10454
        %v10456 = vrot.slane %v10442, %v10455
        %v10457 = vcombine.low %v10270, %v10272
        %v10458 = vcombine.high %v10270, %v10272
        %v10460 = vunpack.c.l.s4 1983009808
        %v10461 = vunpack.c.0.s8 %v10460
        %v10462 = vlaneseq
        %v10463 = vshrl.u32 %v10462, 7
        %v10464 = vsub.s32 %v10461, %v10463
        %v10465 = vrot.slane %v10457, %v10464
        %v10467 = vunpack.c.l.s4 1983009808
        %v10468 = vunpack.c.0.s8 %v10467
        %v10469 = vlaneseq
        %v10470 = vshrl.u32 %v10469, 7
        %v10471 = vsub.s32 %v10468, %v10470
        %v10472 = vrot.slane %v10458, %v10471
        %v10473 = vcombine.low %v10417, %v10433
        %v10474 = vcombine.high %v10417, %v10433
        %v10476 = vunpack.c.l.s4 1934713408
        %v10477 = vunpack.c.0.s8 %v10476
        %v10478 = vlaneseq
        %v10479 = vshrl.u32 %v10478, 7
        %v10480 = vsub.s32 %v10477, %v10479
        %v10481 = vrot.slane %v10473, %v10480
        %v10483 = vunpack.c.l.s4 1934713408
        %v10484 = vunpack.c.0.s8 %v10483
        %v10485 = vlaneseq
        %v10486 = vshrl.u32 %v10485, 7
        %v10487 = vsub.s32 %v10484, %v10486
        %v10488 = vrot.slane %v10474, %v10487
        %v10489 = vcombine.low %v10424, %v10440
        %v10490 = vcombine.high %v10424, %v10440
        %v10492 = vunpack.c.l.s4 1934713408
        %v10493 = vunpack.c.0.s8 %v10492
        %v10494 = vlaneseq
        %v10495 = vshrl.u32 %v10494, 7
        %v10496 = vsub.s32 %v10493, %v10495
        %v10497 = vrot.slane %v10489, %v10496
        %v10499 = vunpack.c.l.s4 1934713408
        %v10500 = vunpack.c.0.s8 %v10499
        %v10501 = vlaneseq
        %v10502 = vshrl.u32 %v10501, 7
        %v10503 = vsub.s32 %v10500, %v10502
        %v10504 = vrot.slane %v10490, %v10503
        %v10505 = vcombine.low %v10449, %v10465
        %v10506 = vcombine.high %v10449, %v10465
        %v10508 = vunpack.c.l.s4 1934713408
        %v10509 = vunpack.c.0.s8 %v10508
        %v10510 = vlaneseq
        %v10511 = vshrl.u32 %v10510, 7
        %v10512 = vsub.s32 %v10509, %v10511
        %v10513 = vrot.slane %v10505, %v10512
        %v10515 = vunpack.c.l.s4 1934713408
        %v10516 = vunpack.c.0.s8 %v10515
        %v10517 = vlaneseq
        %v10518 = vshrl.u32 %v10517, 7
        %v10519 = vsub.s32 %v10516, %v10518
        %v10520 = vrot.slane %v10506, %v10519
        %v10521 = vcombine.low %v10456, %v10472
        %v10522 = vcombine.high %v10456, %v10472
        %v10524 = vunpack.c.l.s4 1934713408
        %v10525 = vunpack.c.0.s8 %v10524
        %v10526 = vlaneseq
        %v10527 = vshrl.u32 %v10526, 7
        %v10528 = vsub.s32 %v10525, %v10527
        %v10529 = vrot.slane %v10521, %v10528
        %v10531 = vunpack.c.l.s4 1934713408
        %v10532 = vunpack.c.0.s8 %v10531
        %v10533 = vlaneseq
        %v10534 = vshrl.u32 %v10533, 7
        %v10535 = vsub.s32 %v10532, %v10534
        %v10536 = vrot.slane %v10522, %v10535
        %v10537 = vcombine.low %v10481, %v10513
        %v10538 = vcombine.high %v10481, %v10513
        %v10539 = vcombine.low %v10488, %v10520
        %v10540 = vcombine.high %v10488, %v10520
        %v10541 = vcombine.low %v10497, %v10529
        %v10542 = vcombine.high %v10497, %v10529
        %v10543 = vcombine.low %v10504, %v10536
        %v10544 = vcombine.high %v10504, %v10536
        %10546 = vrot.lane.b32.xlu0 %v10402, 16
        %v10547 = vpop.permute.xlu0 %10546
        %10550 = vrot.lane.b32.xlu0 %v10403, 32
        %v10551 = vpop.permute.xlu0 %10550
        %10554 = vrot.lane.b32.xlu0 %v10404, 48
        %v10555 = vpop.permute.xlu0 %10554
        %10558 = vrot.lane.b32.xlu0 %v10405, 64
        %v10559 = vpop.permute.xlu0 %10558
        %10562 = vrot.lane.b32.xlu0 %v10406, 80
        %v10563 = vpop.permute.xlu0 %10562
        %10566 = vrot.lane.b32.xlu0 %v10407, 96
        %v10567 = vpop.permute.xlu0 %10566
        %10570 = vrot.lane.b32.xlu0 %v10408, 112
        %v10571 = vpop.permute.xlu0 %10570
        %10574 = vrot.lane.b32.xlu0 %v10538, 16
        %v10575 = vpop.permute.xlu0 %10574
        %10578 = vrot.lane.b32.xlu0 %v10539, 32
        %v10579 = vpop.permute.xlu0 %10578
        %10582 = vrot.lane.b32.xlu0 %v10540, 48
        %v10583 = vpop.permute.xlu0 %10582
        %10586 = vrot.lane.b32.xlu0 %v10541, 64
        %v10587 = vpop.permute.xlu0 %10586
        %10590 = vrot.lane.b32.xlu0 %v10542, 80
        %v10591 = vpop.permute.xlu0 %10590
        %10594 = vrot.lane.b32.xlu0 %v10543, 96
        %v10595 = vpop.permute.xlu0 %10594
        %10598 = vrot.lane.b32.xlu0 %v10544, 112
        %v10599 = vpop.permute.xlu0 %10598
        %v10601 = vsel %vm8208, %v10401, %v10547
        %v10602 = vsel %vm9018, %v10601, %v10551
        %v10603 = vsel %vm7329, %v10602, %v10555
        %v10604 = vsel %vm7160, %v10603, %v10559
        %v10605 = vsel %vm9022, %v10604, %v10563
        %v10606 = vsel %vm9024, %v10605, %v10567
        %v10607 = vsel %vm9026, %v10606, %v10571
        %v10608 = vsel %vm8208, %v10537, %v10575
        %v10609 = vsel %vm9018, %v10608, %v10579
        %v10610 = vsel %vm7329, %v10609, %v10583
        %v10611 = vsel %vm7160, %v10610, %v10587
        %v10612 = vsel %vm9022, %v10611, %v10591
        %v10613 = vsel %vm9024, %v10612, %v10595
        %v10614 = vsel %vm9026, %v10613, %v10599
        %v10615 = vadd.f32 %v9945, %v10607
        %v10616 = vadd.f32 %v9946, %v10614
        %v10617 = vmax.f32 %v10615, 0.0
        %v10618 = vmax.f32 %v10616, 0.0
        %10619 = vst [vmem:[%s217] sm:$0xff] %v10617
        %10620 = vst [vmem:[%s217 + $0x8] sm:$0xff] %v10618
        %s10621 = sand.u32 %s137, 1
        %s10622 = scalar_lea.sflag [#allocation3], %s10621
        %s10623 = sand.u32 %s137, 1
        %s10624 = smul.addr %s10623, 16
        %s10625 = scalar_lea.vmem [#allocation2], %s10624
        // Predicated region
        $region41: #{tpu_custom_call.1} parent=39 // pred_check
          %p10626 = pneg %p147
        $region42: #{tpu_custom_call.1} parent=39 // pred_check_branch
          %10628 = sbr.rel (%p10626) target = $region44
        $region43: #{tpu_custom_call.1} parent=39 // pred_region
          %s10630 = ssub.s32 256, 256
          %10631 = vsyncadd %s10622, %s10630
          %s10632 = smul.addr %s19, 2
          %s10633 = smul.addr %s10632, 128
          %s10634 = scalar_lea.hbm %s5, %s10633
          %s10636 = sshll.u32 %s10625, 4
          %s10637 = int_to_ptr.vmem [resolvable:$true] %s10636
          %10639 = dma.vmem_to_hbm [thread:$0]  %s10637, 256, %s10634, %s10622
        $region44: #{tpu_custom_call.1} parent=39 // pred_fallthru
          _
      $region40: #{tpu_custom_call.1} parent=5 // pred_fallthru
        _
      %p10640 = scmp.le.s32.totalorder 2, %s14
      // Predicated region
      $region45: #{tpu_custom_call.1} parent=5 // pred_check
        %p10641 = pneg %p10640
      $region46: #{tpu_custom_call.1} parent=5 // pred_check_branch
        %10643 = sbr.rel (%p10641) target = $region48
      $region47: #{tpu_custom_call.1} parent=5 // pred_region
        %s10644 = ssub.s32 %s14, 2
        // Predicated region
        $region49: #{tpu_custom_call.1} parent=47 // pred_check
          %p10645 = pneg %p153
        $region50: #{tpu_custom_call.1} parent=47 // pred_check_branch
          %10647 = sbr.rel (%p10645) target = $region52
        $region51: #{tpu_custom_call.1} parent=47 // pred_region
          %s10648 = sand.u32 %s138, 1
          %s10649 = scalar_lea.sflag [#allocation3], %s10648
          %s10650 = sand.u32 %s138, 1
          %s10651 = smul.addr %s10650, 16
          %s10652 = scalar_lea.vmem [#allocation2], %s10651
          %10653 = dma.done %s10649, 256
        $region52: #{tpu_custom_call.1} parent=47 // pred_fallthru
          _
      $region48: #{tpu_custom_call.1} parent=5 // pred_fallthru
        _
    $region6: #{tpu_custom_call.1} parent=1 // loop_footer
      %s18 = sadd.s32 1, %s14
    $region7: #{tpu_custom_call.1} parent=1 // loop_footer_branch
      %13 = sbr.rel target = $region3
    $region8: #{tpu_custom_call.1} parent=1 // loop_exit
      _
    %10654 = vsyncpa [#allocation3], 1
    %s10655 = scalar_lea.sflag [#allocation3], 1
    %10656 = vsyncpa %s10655, 1

</llo_original>
